<compile_context>
chip_gen: v7x
topology: tpu7x:2x2x1
jax: 0.10.0
libtpu: 0.0.40
codegen_flags: <defaults>
</compile_context>

<pallas_src>
import jax
import jax.numpy as jnp
import numpy as np
from jax.experimental import pallas as pl
from jax.experimental.pallas import tpu as pltpu


def _round_up(x, m):
    return ((x + m - 1) // m) * m


# ------------------------------ fused kernel --------------------------------

def _make_fused_kernel(H, W):
    Hp, Wp = H + 2, W + 2
    L = Hp * Wp                       # flat padded-grid size
    E = _round_up(Wp + 1, 8)          # slop rows on each side (8-aligned stores)
    base = E - (Wp + 1)
    # Start row (in the extended flat buffer) of tap (dy, dx) for output row 0.
    tap = [base + dy * Wp + dx for dy in range(3) for dx in range(3)]

    def kernel(alpha_ref, x_ref, mask_ref, w1_ref, b1_ref, w2_ref, b2_ref,
               w3_ref, b3_ref, w4_ref, o_ref, h1_ref, h2_ref, s2_ref, s3_ref):
        a1 = alpha_ref[0]
        a2 = alpha_ref[1]
        a3 = alpha_ref[2]
        mask = mask_ref[...]                                     # (L, 1)

        # Zero ONLY the slop strips (O(Wp) rows) so reads past the padded grid
        # stay finite; the data region is fully overwritten each step.  Done
        # every step because scratch is core-local on megacore parts.
        h1_ref[0:E, :] = jnp.zeros((E, 16), jnp.float32)
        h1_ref[E + L:E + L + E, :] = jnp.zeros((E, 16), jnp.float32)
        h2_ref[0:E, :] = jnp.zeros((E, 32), jnp.float32)
        h2_ref[E + L:E + L + E, :] = jnp.zeros((E, 32), jnp.float32)

        # ---- layer 1: Conv2d(1, 16, 3, pad=1) + PReLU  (VPU broadcasts) ----
        y1 = x_ref[0, tap[0]:tap[0] + L, :] * w1_ref[0:1, :]      # (L,1)*(1,16)
        for t in range(1, 9):
            y1 = y1 + x_ref[0, tap[t]:tap[t] + L, :] * w1_ref[t:t + 1, :]
        y1 = y1 + b1_ref[...]
        y1 = jnp.where(y1 >= 0.0, y1, a1 * y1)
        h1_ref[E:E + L, :] = y1 * mask          # exact zero halo for layer 2

        # ---- layer 2: stage 9 taps into one K=144 operand, single matmul ----
        for t in range(9):
            s2_ref[:, t * 16:(t + 1) * 16] = h1_ref[tap[t]:tap[t] + L, :]
        y2 = jnp.dot(s2_ref[...], w2_ref[...],
                     preferred_element_type=jnp.float32)          # (L, 32)
        y2 = y2 + b2_ref[...]
        y2 = jnp.where(y2 >= 0.0, y2, a2 * y2)
        h2_ref[E:E + L, :] = y2 * mask          # exact zero halo for layer 3

        # ---- layer 3: stage 9 taps into one K=288 operand, single matmul ----
        for t in range(9):
            s3_ref[:, t * 32:(t + 1) * 32] = h2_ref[tap[t]:tap[t] + L, :]
        y3 = jnp.dot(s3_ref[...], w3_ref[...],
                     preferred_element_type=jnp.float32)          # (L, 64)
        y3 = y3 + b3_ref[...]
        y3 = jnp.where(y3 >= 0.0, y3, a3 * y3)

        # ---- Conv2d(64, 1, 1, bias=False) + sigmoid(key * conf) -------------
        conf = jnp.sum(y3 * w4_ref[...], axis=-1, keepdims=True)  # (L, 1)
        keyv = x_ref[0, E:E + L, :]              # center tap == original key
        o_ref[0] = jax.nn.sigmoid(keyv * conf)   # halo rows discarded by wrapper

    return kernel


def fused_confidence_forward(x, params):
    """x: (N, H, W) raw key image -> (N, L, 1) sigmoid(key*conf) over the
    padded flat grid (interior extracted by the caller)."""
    N, H, W = x.shape
    Hp, Wp = H + 2, W + 2
    L = Hp * Wp
    E = _round_up(Wp + 1, 8)
    Lx = L + 2 * E

    # Zero-padded image in extended flat form: [E zeros | padded grid | E zeros].
    xp = jnp.pad(x, ((0, 0), (1, 1), (1, 1)))                 # (N, Hp, Wp)
    xflat = jnp.pad(xp.reshape(N, L), ((0, 0), (E, E)))       # (N, Lx), slop = 0
    xflat = xflat.reshape(N, Lx, 1)

    # Interior mask over the padded flat grid (1 inside, 0 on the 1-px halo).
    rr = jnp.arange(Hp)
    cc = jnp.arange(Wp)
    m2d = ((rr >= 1) & (rr <= H))[:, None] & ((cc >= 1) & (cc <= W))[None, :]
    mask = m2d.astype(jnp.float32).reshape(L, 1)

    flops = 2 * N * L * (9 * 1 * 16 + 9 * 16 * 32 + 9 * 32 * 64 + 64)
    bytes_accessed = 4 * (xflat.size + mask.size + N * L
                          + params["w1m"].size + params["w2p"].size
                          + params["w3p"].size + params["w4m"].size
                          + params["b1m"].size + params["b2m"].size
                          + params["b3m"].size + params["alphas"].size)

    return pl.pallas_call(
        _make_fused_kernel(H, W),
        out_shape=jax.ShapeDtypeStruct((N, L, 1), jnp.float32),
        grid=(N,),
        in_specs=[
            pl.BlockSpec(memory_space=pltpu.MemorySpace.SMEM),    # alphas (3,)
            pl.BlockSpec((1, Lx, 1), lambda i: (i, 0, 0)),        # flat padded key
            pl.BlockSpec((L, 1), lambda i: (0, 0)),               # interior mask
            pl.BlockSpec((9, 16), lambda i: (0, 0)),              # w1 taps
            pl.BlockSpec((1, 16), lambda i: (0, 0)),              # b1
            pl.BlockSpec((144, 32), lambda i: (0, 0)),            # w2 packed (9*16,32)
            pl.BlockSpec((1, 32), lambda i: (0, 0)),              # b2
            pl.BlockSpec((288, 64), lambda i: (0, 0)),            # w3 packed (9*32,64)
            pl.BlockSpec((1, 64), lambda i: (0, 0)),              # b3
            pl.BlockSpec((1, 64), lambda i: (0, 0)),              # w4 row
        ],
        out_specs=pl.BlockSpec((1, L, 1), lambda i: (i, 0, 0)),
        scratch_shapes=[
            pltpu.VMEM((Lx, 16), jnp.float32),     # layer-1 act. (zero halo)
            pltpu.VMEM((Lx, 32), jnp.float32),     # layer-2 act. (zero halo)
            pltpu.VMEM((L, 9 * 16), jnp.float32),  # layer-2 staged K=144 operand
            pltpu.VMEM((L, 9 * 32), jnp.float32),  # layer-3 staged K=288 operand
        ],
        compiler_params=pltpu.CompilerParams(
            dimension_semantics=("parallel",)),
        cost_estimate=pl.CostEstimate(
            flops=flops, transcendentals=N * L, bytes_accessed=bytes_accessed),
    )(params["alphas"], xflat, mask,
      params["w1m"], params["b1m"], params["w2p"], params["b2m"],
      params["w3p"], params["b3m"], params["w4m"])


# ------------------------------- glue (JAX) ----------------------------------

def oihw_to_taps(w):
    """(Cout, Cin, 3, 3) -> (9, Cin, Cout), tap order t = 3*dy + dx."""
    cout, cin, kh, kw = w.shape
    return jnp.transpose(w, (2, 3, 1, 0)).reshape(kh * kw, cin, cout)


def confidence_network(key_nchw, params):
    """Forward pass; input/output are NCHW with C == 1, like the PyTorch module."""
    N, C, H, W = key_nchw.shape
    assert C == 1
    Hp, Wp = H + 2, W + 2
    x = key_nchw.reshape(N, H, W).astype(jnp.float32)
    out_flat = fused_confidence_forward(x, params)            # (N, Hp*Wp, 1)
    out = out_flat.reshape(N, Hp, Wp)[:, 1:H + 1, 1:W + 1]    # drop halo rows
    return out.reshape(N, 1, H, W)


def init_params(rng):
    ks = jax.random.split(rng, 7)

    def conv_w(k, cout, cin, kh, kw):
        fan_in = cin * kh * kw
        return (jax.random.normal(k, (cout, cin, kh, kw), jnp.float32)
                / jnp.sqrt(jnp.float32(fan_in)))

    p = {
        "w1": conv_w(ks[0], 16, 1, 3, 3),
        "b1": 0.01 * jax.random.normal(ks[1], (16,), jnp.float32),
        "w2": conv_w(ks[2], 32, 16, 3, 3),
        "b2": 0.01 * jax.random.normal(ks[3], (32,), jnp.float32),
        "w3": conv_w(ks[4], 64, 32, 3, 3),
        "b3": 0.01 * jax.random.normal(ks[5], (64,), jnp.float32),
        "w4": conv_w(ks[6], 1, 64, 1, 1),
        # PyTorch PReLU() default: one shared parameter, init 0.25, per layer.
        "alphas": jnp.full((3,), 0.25, jnp.float32),
    }
    # Kernel-friendly packed forms (row order matches the staging column order:
    # column t*Cin + ci  <->  tap t, input channel ci).
    p["w1m"] = oihw_to_taps(p["w1"]).reshape(9, 16)            # Cin == 1
    p["w2p"] = oihw_to_taps(p["w2"]).reshape(9 * 16, 32)
    p["w3p"] = oihw_to_taps(p["w3"]).reshape(9 * 32, 64)
    p["w4m"] = p["w4"].reshape(1, 64)
    p["b1m"] = p["b1"].reshape(1, -1)
    p["b2m"] = p["b2"].reshape(1, -1)
    p["b3m"] = p["b3"].reshape(1, -1)
    return p


# --------------------------- pure-JAX reference ------------------------------

def ref_forward(key_nchw, params):
    def conv(x, w, b=None, pad="SAME"):
        y = jax.lax.conv_general_dilated(
            x, w, (1, 1), pad, dimension_numbers=("NCHW", "OIHW", "NCHW"))
        if b is not None:
            y = y + b.reshape(1, -1, 1, 1)
        return y

    def prelu(x, a):
        return jnp.where(x >= 0.0, x, a * x)

    a = params["alphas"]
    h = prelu(conv(key_nchw, params["w1"], params["b1"]), a[0])
    h = prelu(conv(h, params["w2"], params["b2"]), a[1])
    h = prelu(conv(h, params["w3"], params["b3"]), a[2])
    conf = conv(h, params["w4"], pad="VALID")
    return jax.nn.sigmoid(key_nchw * conf)


# ---------------------------------- main -------------------------------------

if __name__ == "__main__":
    rng = jax.random.PRNGKey(0)
    k_params, k_input = jax.random.split(rng)

    params = init_params(k_params)
    key = jax.random.normal(k_input, (2, 1, 16, 16), jnp.float32)  # NCHW, C=1

    out = jax.jit(confidence_network)(key, params)
    out = jax.block_until_ready(out)

    ref = jax.block_until_ready(ref_forward(key, params))
    np.testing.assert_allclose(np.asarray(out), np.asarray(ref),
                               rtol=2e-3, atol=2e-3)

    assert out.shape == key.shape and out.dtype == jnp.float32
    print("KERNEL_OK")
</pallas_src>

<mosaic_0001>
module attributes {stable_mosaic.version = 11 : i64} {
  func.func @kernel(%arg0: i32, %arg1: memref<3xf32, #tpu.memory_space<smem>>, %arg2: memref<1x372x1xf32, #tpu.memory_space<vmem>>, %arg3: memref<324x1xf32, #tpu.memory_space<vmem>>, %arg4: memref<9x16xf32, #tpu.memory_space<vmem>>, %arg5: memref<1x16xf32, #tpu.memory_space<vmem>>, %arg6: memref<144x32xf32, #tpu.memory_space<vmem>>, %arg7: memref<1x32xf32, #tpu.memory_space<vmem>>, %arg8: memref<288x64xf32, #tpu.memory_space<vmem>>, %arg9: memref<1x64xf32, #tpu.memory_space<vmem>>, %arg10: memref<1x64xf32, #tpu.memory_space<vmem>>, %arg11: memref<1x324x1xf32, #tpu.memory_space<vmem>>, %arg12: memref<372x16xf32, #tpu.memory_space<vmem>>, %arg13: memref<372x32xf32, #tpu.memory_space<vmem>>, %arg14: memref<324x144xf32, #tpu.memory_space<vmem>>, %arg15: memref<324x288xf32, #tpu.memory_space<vmem>>) attributes {dimension_semantics = [#tpu.dimension_semantics<parallel>], iteration_bounds = array<i64: 2>, scalar_prefetch = 0 : i64, scratch_operands = 4 : i64, tpu.core_type = #tpu.core_type<tc>, window_params = [{transform_indices = @transform_0, window_bounds = array<i64: 3>}, {transform_indices = @transform_1, window_bounds = array<i64: 1, 372, 1>}, {pipeline_mode = #tpu.pipeline_mode<synchronous>, transform_indices = @transform_2, window_bounds = array<i64: 324, 1>}, {pipeline_mode = #tpu.pipeline_mode<synchronous>, transform_indices = @transform_3, window_bounds = array<i64: 9, 16>}, {pipeline_mode = #tpu.pipeline_mode<synchronous>, transform_indices = @transform_4, window_bounds = array<i64: 1, 16>}, {pipeline_mode = #tpu.pipeline_mode<synchronous>, transform_indices = @transform_5, window_bounds = array<i64: 144, 32>}, {pipeline_mode = #tpu.pipeline_mode<synchronous>, transform_indices = @transform_6, window_bounds = array<i64: 1, 32>}, {pipeline_mode = #tpu.pipeline_mode<synchronous>, transform_indices = @transform_7, window_bounds = array<i64: 288, 64>}, {pipeline_mode = #tpu.pipeline_mode<synchronous>, transform_indices = @transform_8, window_bounds = array<i64: 1, 64>}, {pipeline_mode = #tpu.pipeline_mode<synchronous>, transform_indices = @transform_9, window_bounds = array<i64: 1, 64>}, {transform_indices = @transform_10, window_bounds = array<i64: 1, 324, 1>}]} {
    %c0 = arith.constant 0 : index
    %0 = memref.load %arg1[%c0] : memref<3xf32, #tpu.memory_space<smem>>
    %c1 = arith.constant 1 : index
    %1 = memref.load %arg1[%c1] : memref<3xf32, #tpu.memory_space<smem>>
    %c2 = arith.constant 2 : index
    %2 = memref.load %arg1[%c2] : memref<3xf32, #tpu.memory_space<smem>>
    %c0_0 = arith.constant 0 : index
    %c0_1 = arith.constant 0 : index
    %3 = vector.load %arg3[%c0_0, %c0_1] : memref<324x1xf32, #tpu.memory_space<vmem>>, vector<324x1xf32>
    %cst = arith.constant 0.000000e+00 : f32
    %4 = vector.broadcast %cst : f32 to vector<24x16xf32>
    %c0_2 = arith.constant 0 : index
    %c0_3 = arith.constant 0 : index
    %5 = vector.load %arg12[%c0_2, %c0_3] : memref<372x16xf32, #tpu.memory_space<vmem>>, vector<24x16xf32>
    tpu.vector_store %arg12[%c0_2, %c0_3], %4 {strides = array<i32>} : memref<372x16xf32, #tpu.memory_space<vmem>>, vector<24x16xf32>,
    %cst_4 = arith.constant 0.000000e+00 : f32
    %6 = vector.broadcast %cst_4 : f32 to vector<24x16xf32>
    %c348 = arith.constant 348 : index
    %c0_5 = arith.constant 0 : index
    %7 = vector.load %arg12[%c348, %c0_5] : memref<372x16xf32, #tpu.memory_space<vmem>>, vector<24x16xf32>
    tpu.vector_store %arg12[%c348, %c0_5], %6 {strides = array<i32>} : memref<372x16xf32, #tpu.memory_space<vmem>>, vector<24x16xf32>,
    %cst_6 = arith.constant 0.000000e+00 : f32
    %8 = vector.broadcast %cst_6 : f32 to vector<24x32xf32>
    %c0_7 = arith.constant 0 : index
    %c0_8 = arith.constant 0 : index
    %9 = vector.load %arg13[%c0_7, %c0_8] : memref<372x32xf32, #tpu.memory_space<vmem>>, vector<24x32xf32>
    tpu.vector_store %arg13[%c0_7, %c0_8], %8 {strides = array<i32>} : memref<372x32xf32, #tpu.memory_space<vmem>>, vector<24x32xf32>,
    %cst_9 = arith.constant 0.000000e+00 : f32
    %10 = vector.broadcast %cst_9 : f32 to vector<24x32xf32>
    %c348_10 = arith.constant 348 : index
    %c0_11 = arith.constant 0 : index
    %11 = vector.load %arg13[%c348_10, %c0_11] : memref<372x32xf32, #tpu.memory_space<vmem>>, vector<24x32xf32>
    tpu.vector_store %arg13[%c348_10, %c0_11], %10 {strides = array<i32>} : memref<372x32xf32, #tpu.memory_space<vmem>>, vector<24x32xf32>,
    %c0_12 = arith.constant 0 : index
    %c5 = arith.constant 5 : index
    %c0_13 = arith.constant 0 : index
    %12 = vector.load %arg2[%c0_12, %c5, %c0_13] : memref<1x372x1xf32, #tpu.memory_space<vmem>>, vector<1x324x1xf32>
    %13 = vector.shape_cast %12 : vector<1x324x1xf32> to vector<324x1xf32>
    %c0_14 = arith.constant 0 : index
    %c0_15 = arith.constant 0 : index
    %14 = vector.load %arg4[%c0_14, %c0_15] : memref<9x16xf32, #tpu.memory_space<vmem>>, vector<1x16xf32>
    %15 = vector.broadcast %13 : vector<324x1xf32> to vector<324x16xf32>
    %16 = vector.broadcast %14 : vector<1x16xf32> to vector<324x16xf32>
    %17 = arith.mulf %15, %16 : vector<324x16xf32>
    %c0_16 = arith.constant 0 : index
    %c6 = arith.constant 6 : index
    %c0_17 = arith.constant 0 : index
    %18 = vector.load %arg2[%c0_16, %c6, %c0_17] : memref<1x372x1xf32, #tpu.memory_space<vmem>>, vector<1x324x1xf32>
    %19 = vector.shape_cast %18 : vector<1x324x1xf32> to vector<324x1xf32>
    %c1_18 = arith.constant 1 : index
    %c0_19 = arith.constant 0 : index
    %20 = vector.load %arg4[%c1_18, %c0_19] : memref<9x16xf32, #tpu.memory_space<vmem>>, vector<1x16xf32>
    %21 = vector.broadcast %19 : vector<324x1xf32> to vector<324x16xf32>
    %22 = vector.broadcast %20 : vector<1x16xf32> to vector<324x16xf32>
    %23 = arith.mulf %21, %22 : vector<324x16xf32>
    %24 = arith.addf %17, %23 : vector<324x16xf32>
    %c0_20 = arith.constant 0 : index
    %c7 = arith.constant 7 : index
    %c0_21 = arith.constant 0 : index
    %25 = vector.load %arg2[%c0_20, %c7, %c0_21] : memref<1x372x1xf32, #tpu.memory_space<vmem>>, vector<1x324x1xf32>
    %26 = vector.shape_cast %25 : vector<1x324x1xf32> to vector<324x1xf32>
    %c2_22 = arith.constant 2 : index
    %c0_23 = arith.constant 0 : index
    %27 = vector.load %arg4[%c2_22, %c0_23] : memref<9x16xf32, #tpu.memory_space<vmem>>, vector<1x16xf32>
    %28 = vector.broadcast %26 : vector<324x1xf32> to vector<324x16xf32>
    %29 = vector.broadcast %27 : vector<1x16xf32> to vector<324x16xf32>
    %30 = arith.mulf %28, %29 : vector<324x16xf32>
    %31 = arith.addf %24, %30 : vector<324x16xf32>
    %c0_24 = arith.constant 0 : index
    %c23 = arith.constant 23 : index
    %c0_25 = arith.constant 0 : index
    %32 = vector.load %arg2[%c0_24, %c23, %c0_25] : memref<1x372x1xf32, #tpu.memory_space<vmem>>, vector<1x324x1xf32>
    %33 = vector.shape_cast %32 : vector<1x324x1xf32> to vector<324x1xf32>
    %c3 = arith.constant 3 : index
    %c0_26 = arith.constant 0 : index
    %34 = vector.load %arg4[%c3, %c0_26] : memref<9x16xf32, #tpu.memory_space<vmem>>, vector<1x16xf32>
    %35 = vector.broadcast %33 : vector<324x1xf32> to vector<324x16xf32>
    %36 = vector.broadcast %34 : vector<1x16xf32> to vector<324x16xf32>
    %37 = arith.mulf %35, %36 : vector<324x16xf32>
    %38 = arith.addf %31, %37 : vector<324x16xf32>
    %c0_27 = arith.constant 0 : index
    %c24 = arith.constant 24 : index
    %c0_28 = arith.constant 0 : index
    %39 = vector.load %arg2[%c0_27, %c24, %c0_28] : memref<1x372x1xf32, #tpu.memory_space<vmem>>, vector<1x324x1xf32>
    %40 = vector.shape_cast %39 : vector<1x324x1xf32> to vector<324x1xf32>
    %c4 = arith.constant 4 : index
    %c0_29 = arith.constant 0 : index
    %41 = vector.load %arg4[%c4, %c0_29] : memref<9x16xf32, #tpu.memory_space<vmem>>, vector<1x16xf32>
    %42 = vector.broadcast %40 : vector<324x1xf32> to vector<324x16xf32>
    %43 = vector.broadcast %41 : vector<1x16xf32> to vector<324x16xf32>
    %44 = arith.mulf %42, %43 : vector<324x16xf32>
    %45 = arith.addf %38, %44 : vector<324x16xf32>
    %c0_30 = arith.constant 0 : index
    %c25 = arith.constant 25 : index
    %c0_31 = arith.constant 0 : index
    %46 = vector.load %arg2[%c0_30, %c25, %c0_31] : memref<1x372x1xf32, #tpu.memory_space<vmem>>, vector<1x324x1xf32>
    %47 = vector.shape_cast %46 : vector<1x324x1xf32> to vector<324x1xf32>
    %c5_32 = arith.constant 5 : index
    %c0_33 = arith.constant 0 : index
    %48 = vector.load %arg4[%c5_32, %c0_33] : memref<9x16xf32, #tpu.memory_space<vmem>>, vector<1x16xf32>
    %49 = vector.broadcast %47 : vector<324x1xf32> to vector<324x16xf32>
    %50 = vector.broadcast %48 : vector<1x16xf32> to vector<324x16xf32>
    %51 = arith.mulf %49, %50 : vector<324x16xf32>
    %52 = arith.addf %45, %51 : vector<324x16xf32>
    %c0_34 = arith.constant 0 : index
    %c41 = arith.constant 41 : index
    %c0_35 = arith.constant 0 : index
    %53 = vector.load %arg2[%c0_34, %c41, %c0_35] : memref<1x372x1xf32, #tpu.memory_space<vmem>>, vector<1x324x1xf32>
    %54 = vector.shape_cast %53 : vector<1x324x1xf32> to vector<324x1xf32>
    %c6_36 = arith.constant 6 : index
    %c0_37 = arith.constant 0 : index
    %55 = vector.load %arg4[%c6_36, %c0_37] : memref<9x16xf32, #tpu.memory_space<vmem>>, vector<1x16xf32>
    %56 = vector.broadcast %54 : vector<324x1xf32> to vector<324x16xf32>
    %57 = vector.broadcast %55 : vector<1x16xf32> to vector<324x16xf32>
    %58 = arith.mulf %56, %57 : vector<324x16xf32>
    %59 = arith.addf %52, %58 : vector<324x16xf32>
    %c0_38 = arith.constant 0 : index
    %c42 = arith.constant 42 : index
    %c0_39 = arith.constant 0 : index
    %60 = vector.load %arg2[%c0_38, %c42, %c0_39] : memref<1x372x1xf32, #tpu.memory_space<vmem>>, vector<1x324x1xf32>
    %61 = vector.shape_cast %60 : vector<1x324x1xf32> to vector<324x1xf32>
    %c7_40 = arith.constant 7 : index
    %c0_41 = arith.constant 0 : index
    %62 = vector.load %arg4[%c7_40, %c0_41] : memref<9x16xf32, #tpu.memory_space<vmem>>, vector<1x16xf32>
    %63 = vector.broadcast %61 : vector<324x1xf32> to vector<324x16xf32>
    %64 = vector.broadcast %62 : vector<1x16xf32> to vector<324x16xf32>
    %65 = arith.mulf %63, %64 : vector<324x16xf32>
    %66 = arith.addf %59, %65 : vector<324x16xf32>
    %c0_42 = arith.constant 0 : index
    %c43 = arith.constant 43 : index
    %c0_43 = arith.constant 0 : index
    %67 = vector.load %arg2[%c0_42, %c43, %c0_43] : memref<1x372x1xf32, #tpu.memory_space<vmem>>, vector<1x324x1xf32>
    %68 = vector.shape_cast %67 : vector<1x324x1xf32> to vector<324x1xf32>
    %c8 = arith.constant 8 : index
    %c0_44 = arith.constant 0 : index
    %69 = vector.load %arg4[%c8, %c0_44] : memref<9x16xf32, #tpu.memory_space<vmem>>, vector<1x16xf32>
    %70 = vector.broadcast %68 : vector<324x1xf32> to vector<324x16xf32>
    %71 = vector.broadcast %69 : vector<1x16xf32> to vector<324x16xf32>
    %72 = arith.mulf %70, %71 : vector<324x16xf32>
    %73 = arith.addf %66, %72 : vector<324x16xf32>
    %c0_45 = arith.constant 0 : index
    %c0_46 = arith.constant 0 : index
    %74 = vector.load %arg5[%c0_45, %c0_46] : memref<1x16xf32, #tpu.memory_space<vmem>>, vector<1x16xf32>
    %75 = vector.broadcast %74 : vector<1x16xf32> to vector<324x16xf32>
    %76 = arith.addf %73, %75 : vector<324x16xf32>
    %cst_47 = arith.constant 0.000000e+00 : f32
    %77 = vector.broadcast %cst_47 : f32 to vector<324x16xf32>
    %78 = arith.cmpf oge, %76, %77 : vector<324x16xf32>
    %79 = vector.broadcast %0 : f32 to vector<324x16xf32>
    %80 = arith.mulf %79, %76 : vector<324x16xf32>
    %81 = arith.select %78, %76, %80 : vector<324x16xi1>, vector<324x16xf32>
    %82 = vector.broadcast %3 : vector<324x1xf32> to vector<324x16xf32>
    %83 = arith.mulf %81, %82 : vector<324x16xf32>
    %c24_48 = arith.constant 24 : index
    %c0_49 = arith.constant 0 : index
    %84 = vector.load %arg12[%c24_48, %c0_49] : memref<372x16xf32, #tpu.memory_space<vmem>>, vector<324x16xf32>
    tpu.vector_store %arg12[%c24_48, %c0_49], %83 {strides = array<i32>} : memref<372x16xf32, #tpu.memory_space<vmem>>, vector<324x16xf32>,
    %c5_50 = arith.constant 5 : index
    %c0_51 = arith.constant 0 : index
    %85 = vector.load %arg12[%c5_50, %c0_51] : memref<372x16xf32, #tpu.memory_space<vmem>>, vector<324x16xf32>
    %c0_52 = arith.constant 0 : index
    %c0_53 = arith.constant 0 : index
    %86 = vector.load %arg14[%c0_52, %c0_53] : memref<324x144xf32, #tpu.memory_space<vmem>>, vector<324x16xf32>
    tpu.vector_store %arg14[%c0_52, %c0_53], %85 {strides = array<i32>} : memref<324x144xf32, #tpu.memory_space<vmem>>, vector<324x16xf32>,
    %c6_54 = arith.constant 6 : index
    %c0_55 = arith.constant 0 : index
    %87 = vector.load %arg12[%c6_54, %c0_55] : memref<372x16xf32, #tpu.memory_space<vmem>>, vector<324x16xf32>
    %c0_56 = arith.constant 0 : index
    %c16 = arith.constant 16 : index
    %88 = vector.load %arg14[%c0_56, %c16] : memref<324x144xf32, #tpu.memory_space<vmem>>, vector<324x16xf32>
    tpu.vector_store %arg14[%c0_56, %c16], %87 {strides = array<i32>} : memref<324x144xf32, #tpu.memory_space<vmem>>, vector<324x16xf32>,
    %c7_57 = arith.constant 7 : index
    %c0_58 = arith.constant 0 : index
    %89 = vector.load %arg12[%c7_57, %c0_58] : memref<372x16xf32, #tpu.memory_space<vmem>>, vector<324x16xf32>
    %c0_59 = arith.constant 0 : index
    %c32 = arith.constant 32 : index
    %90 = vector.load %arg14[%c0_59, %c32] : memref<324x144xf32, #tpu.memory_space<vmem>>, vector<324x16xf32>
    tpu.vector_store %arg14[%c0_59, %c32], %89 {strides = array<i32>} : memref<324x144xf32, #tpu.memory_space<vmem>>, vector<324x16xf32>,
    %c23_60 = arith.constant 23 : index
    %c0_61 = arith.constant 0 : index
    %91 = vector.load %arg12[%c23_60, %c0_61] : memref<372x16xf32, #tpu.memory_space<vmem>>, vector<324x16xf32>
    %c0_62 = arith.constant 0 : index
    %c48 = arith.constant 48 : index
    %92 = vector.load %arg14[%c0_62, %c48] : memref<324x144xf32, #tpu.memory_space<vmem>>, vector<324x16xf32>
    tpu.vector_store %arg14[%c0_62, %c48], %91 {strides = array<i32>} : memref<324x144xf32, #tpu.memory_space<vmem>>, vector<324x16xf32>,
    %c24_63 = arith.constant 24 : index
    %c0_64 = arith.constant 0 : index
    %93 = vector.load %arg12[%c24_63, %c0_64] : memref<372x16xf32, #tpu.memory_space<vmem>>, vector<324x16xf32>
    %c0_65 = arith.constant 0 : index
    %c64 = arith.constant 64 : index
    %94 = vector.load %arg14[%c0_65, %c64] : memref<324x144xf32, #tpu.memory_space<vmem>>, vector<324x16xf32>
    tpu.vector_store %arg14[%c0_65, %c64], %93 {strides = array<i32>} : memref<324x144xf32, #tpu.memory_space<vmem>>, vector<324x16xf32>,
    %c25_66 = arith.constant 25 : index
    %c0_67 = arith.constant 0 : index
    %95 = vector.load %arg12[%c25_66, %c0_67] : memref<372x16xf32, #tpu.memory_space<vmem>>, vector<324x16xf32>
    %c0_68 = arith.constant 0 : index
    %c80 = arith.constant 80 : index
    %96 = vector.load %arg14[%c0_68, %c80] : memref<324x144xf32, #tpu.memory_space<vmem>>, vector<324x16xf32>
    tpu.vector_store %arg14[%c0_68, %c80], %95 {strides = array<i32>} : memref<324x144xf32, #tpu.memory_space<vmem>>, vector<324x16xf32>,
    %c41_69 = arith.constant 41 : index
    %c0_70 = arith.constant 0 : index
    %97 = vector.load %arg12[%c41_69, %c0_70] : memref<372x16xf32, #tpu.memory_space<vmem>>, vector<324x16xf32>
    %c0_71 = arith.constant 0 : index
    %c96 = arith.constant 96 : index
    %98 = vector.load %arg14[%c0_71, %c96] : memref<324x144xf32, #tpu.memory_space<vmem>>, vector<324x16xf32>
    tpu.vector_store %arg14[%c0_71, %c96], %97 {strides = array<i32>} : memref<324x144xf32, #tpu.memory_space<vmem>>, vector<324x16xf32>,
    %c42_72 = arith.constant 42 : index
    %c0_73 = arith.constant 0 : index
    %99 = vector.load %arg12[%c42_72, %c0_73] : memref<372x16xf32, #tpu.memory_space<vmem>>, vector<324x16xf32>
    %c0_74 = arith.constant 0 : index
    %c112 = arith.constant 112 : index
    %100 = vector.load %arg14[%c0_74, %c112] : memref<324x144xf32, #tpu.memory_space<vmem>>, vector<324x16xf32>
    tpu.vector_store %arg14[%c0_74, %c112], %99 {strides = array<i32>} : memref<324x144xf32, #tpu.memory_space<vmem>>, vector<324x16xf32>,
    %c43_75 = arith.constant 43 : index
    %c0_76 = arith.constant 0 : index
    %101 = vector.load %arg12[%c43_75, %c0_76] : memref<372x16xf32, #tpu.memory_space<vmem>>, vector<324x16xf32>
    %c0_77 = arith.constant 0 : index
    %c128 = arith.constant 128 : index
    %102 = vector.load %arg14[%c0_77, %c128] : memref<324x144xf32, #tpu.memory_space<vmem>>, vector<324x16xf32>
    tpu.vector_store %arg14[%c0_77, %c128], %101 {strides = array<i32>} : memref<324x144xf32, #tpu.memory_space<vmem>>, vector<324x16xf32>,
    %c0_78 = arith.constant 0 : index
    %c0_79 = arith.constant 0 : index
    %103 = vector.load %arg14[%c0_78, %c0_79] : memref<324x144xf32, #tpu.memory_space<vmem>>, vector<324x144xf32>
    %c0_80 = arith.constant 0 : index
    %c0_81 = arith.constant 0 : index
    %104 = vector.load %arg6[%c0_80, %c0_81] : memref<144x32xf32, #tpu.memory_space<vmem>>, vector<144x32xf32>
    %cst_82 = arith.constant dense<0.000000e+00> : vector<324x32xf32>
    %105 = tpu.matmul %103, %104, %cst_82 {dimension_numbers = #tpu.dot_dimension_numbers<[1], [0], [0], [1], [0, 0, 1, 1], [], []>} : vector<324x144xf32>, vector<144x32xf32>, vector<324x32xf32> -> vector<324x32xf32>
    %c0_83 = arith.constant 0 : index
    %c0_84 = arith.constant 0 : index
    %106 = vector.load %arg7[%c0_83, %c0_84] : memref<1x32xf32, #tpu.memory_space<vmem>>, vector<1x32xf32>
    %107 = vector.broadcast %106 : vector<1x32xf32> to vector<324x32xf32>
    %108 = arith.addf %105, %107 : vector<324x32xf32>
    %cst_85 = arith.constant 0.000000e+00 : f32
    %109 = vector.broadcast %cst_85 : f32 to vector<324x32xf32>
    %110 = arith.cmpf oge, %108, %109 : vector<324x32xf32>
    %111 = vector.broadcast %1 : f32 to vector<324x32xf32>
    %112 = arith.mulf %111, %108 : vector<324x32xf32>
    %113 = arith.select %110, %108, %112 : vector<324x32xi1>, vector<324x32xf32>
    %114 = vector.broadcast %3 : vector<324x1xf32> to vector<324x32xf32>
    %115 = arith.mulf %113, %114 : vector<324x32xf32>
    %c24_86 = arith.constant 24 : index
    %c0_87 = arith.constant 0 : index
    %116 = vector.load %arg13[%c24_86, %c0_87] : memref<372x32xf32, #tpu.memory_space<vmem>>, vector<324x32xf32>
    tpu.vector_store %arg13[%c24_86, %c0_87], %115 {strides = array<i32>} : memref<372x32xf32, #tpu.memory_space<vmem>>, vector<324x32xf32>,
    %c5_88 = arith.constant 5 : index
    %c0_89 = arith.constant 0 : index
    %117 = vector.load %arg13[%c5_88, %c0_89] : memref<372x32xf32, #tpu.memory_space<vmem>>, vector<324x32xf32>
    %c0_90 = arith.constant 0 : index
    %c0_91 = arith.constant 0 : index
    %118 = vector.load %arg15[%c0_90, %c0_91] : memref<324x288xf32, #tpu.memory_space<vmem>>, vector<324x32xf32>
    tpu.vector_store %arg15[%c0_90, %c0_91], %117 {strides = array<i32>} : memref<324x288xf32, #tpu.memory_space<vmem>>, vector<324x32xf32>,
    %c6_92 = arith.constant 6 : index
    %c0_93 = arith.constant 0 : index
    %119 = vector.load %arg13[%c6_92, %c0_93] : memref<372x32xf32, #tpu.memory_space<vmem>>, vector<324x32xf32>
    %c0_94 = arith.constant 0 : index
    %c32_95 = arith.constant 32 : index
    %120 = vector.load %arg15[%c0_94, %c32_95] : memref<324x288xf32, #tpu.memory_space<vmem>>, vector<324x32xf32>
    tpu.vector_store %arg15[%c0_94, %c32_95], %119 {strides = array<i32>} : memref<324x288xf32, #tpu.memory_space<vmem>>, vector<324x32xf32>,
    %c7_96 = arith.constant 7 : index
    %c0_97 = arith.constant 0 : index
    %121 = vector.load %arg13[%c7_96, %c0_97] : memref<372x32xf32, #tpu.memory_space<vmem>>, vector<324x32xf32>
    %c0_98 = arith.constant 0 : index
    %c64_99 = arith.constant 64 : index
    %122 = vector.load %arg15[%c0_98, %c64_99] : memref<324x288xf32, #tpu.memory_space<vmem>>, vector<324x32xf32>
    tpu.vector_store %arg15[%c0_98, %c64_99], %121 {strides = array<i32>} : memref<324x288xf32, #tpu.memory_space<vmem>>, vector<324x32xf32>,
    %c23_100 = arith.constant 23 : index
    %c0_101 = arith.constant 0 : index
    %123 = vector.load %arg13[%c23_100, %c0_101] : memref<372x32xf32, #tpu.memory_space<vmem>>, vector<324x32xf32>
    %c0_102 = arith.constant 0 : index
    %c96_103 = arith.constant 96 : index
    %124 = vector.load %arg15[%c0_102, %c96_103] : memref<324x288xf32, #tpu.memory_space<vmem>>, vector<324x32xf32>
    tpu.vector_store %arg15[%c0_102, %c96_103], %123 {strides = array<i32>} : memref<324x288xf32, #tpu.memory_space<vmem>>, vector<324x32xf32>,
    %c24_104 = arith.constant 24 : index
    %c0_105 = arith.constant 0 : index
    %125 = vector.load %arg13[%c24_104, %c0_105] : memref<372x32xf32, #tpu.memory_space<vmem>>, vector<324x32xf32>
    %c0_106 = arith.constant 0 : index
    %c128_107 = arith.constant 128 : index
    %126 = vector.load %arg15[%c0_106, %c128_107] : memref<324x288xf32, #tpu.memory_space<vmem>>, vector<324x32xf32>
    tpu.vector_store %arg15[%c0_106, %c128_107], %125 {strides = array<i32>} : memref<324x288xf32, #tpu.memory_space<vmem>>, vector<324x32xf32>,
    %c25_108 = arith.constant 25 : index
    %c0_109 = arith.constant 0 : index
    %127 = vector.load %arg13[%c25_108, %c0_109] : memref<372x32xf32, #tpu.memory_space<vmem>>, vector<324x32xf32>
    %c0_110 = arith.constant 0 : index
    %c160 = arith.constant 160 : index
    %128 = vector.load %arg15[%c0_110, %c160] : memref<324x288xf32, #tpu.memory_space<vmem>>, vector<324x32xf32>
    tpu.vector_store %arg15[%c0_110, %c160], %127 {strides = array<i32>} : memref<324x288xf32, #tpu.memory_space<vmem>>, vector<324x32xf32>,
    %c41_111 = arith.constant 41 : index
    %c0_112 = arith.constant 0 : index
    %129 = vector.load %arg13[%c41_111, %c0_112] : memref<372x32xf32, #tpu.memory_space<vmem>>, vector<324x32xf32>
    %c0_113 = arith.constant 0 : index
    %c192 = arith.constant 192 : index
    %130 = vector.load %arg15[%c0_113, %c192] : memref<324x288xf32, #tpu.memory_space<vmem>>, vector<324x32xf32>
    tpu.vector_store %arg15[%c0_113, %c192], %129 {strides = array<i32>} : memref<324x288xf32, #tpu.memory_space<vmem>>, vector<324x32xf32>,
    %c42_114 = arith.constant 42 : index
    %c0_115 = arith.constant 0 : index
    %131 = vector.load %arg13[%c42_114, %c0_115] : memref<372x32xf32, #tpu.memory_space<vmem>>, vector<324x32xf32>
    %c0_116 = arith.constant 0 : index
    %c224 = arith.constant 224 : index
    %132 = vector.load %arg15[%c0_116, %c224] : memref<324x288xf32, #tpu.memory_space<vmem>>, vector<324x32xf32>
    tpu.vector_store %arg15[%c0_116, %c224], %131 {strides = array<i32>} : memref<324x288xf32, #tpu.memory_space<vmem>>, vector<324x32xf32>,
    %c43_117 = arith.constant 43 : index
    %c0_118 = arith.constant 0 : index
    %133 = vector.load %arg13[%c43_117, %c0_118] : memref<372x32xf32, #tpu.memory_space<vmem>>, vector<324x32xf32>
    %c0_119 = arith.constant 0 : index
    %c256 = arith.constant 256 : index
    %134 = vector.load %arg15[%c0_119, %c256] : memref<324x288xf32, #tpu.memory_space<vmem>>, vector<324x32xf32>
    tpu.vector_store %arg15[%c0_119, %c256], %133 {strides = array<i32>} : memref<324x288xf32, #tpu.memory_space<vmem>>, vector<324x32xf32>,
    %c0_120 = arith.constant 0 : index
    %c0_121 = arith.constant 0 : index
    %135 = vector.load %arg15[%c0_120, %c0_121] : memref<324x288xf32, #tpu.memory_space<vmem>>, vector<324x288xf32>
    %c0_122 = arith.constant 0 : index
    %c0_123 = arith.constant 0 : index
    %136 = vector.load %arg8[%c0_122, %c0_123] : memref<288x64xf32, #tpu.memory_space<vmem>>, vector<288x64xf32>
    %cst_124 = arith.constant dense<0.000000e+00> : vector<324x64xf32>
    %137 = tpu.matmul %135, %136, %cst_124 {dimension_numbers = #tpu.dot_dimension_numbers<[1], [0], [0], [1], [0, 0, 1, 1], [], []>} : vector<324x288xf32>, vector<288x64xf32>, vector<324x64xf32> -> vector<324x64xf32>
    %c0_125 = arith.constant 0 : index
    %c0_126 = arith.constant 0 : index
    %138 = vector.load %arg9[%c0_125, %c0_126] : memref<1x64xf32, #tpu.memory_space<vmem>>, vector<1x64xf32>
    %139 = vector.broadcast %138 : vector<1x64xf32> to vector<324x64xf32>
    %140 = arith.addf %137, %139 : vector<324x64xf32>
    %cst_127 = arith.constant 0.000000e+00 : f32
    %141 = vector.broadcast %cst_127 : f32 to vector<324x64xf32>
    %142 = arith.cmpf oge, %140, %141 : vector<324x64xf32>
    %143 = vector.broadcast %2 : f32 to vector<324x64xf32>
    %144 = arith.mulf %143, %140 : vector<324x64xf32>
    %145 = arith.select %142, %140, %144 : vector<324x64xi1>, vector<324x64xf32>
    %c0_128 = arith.constant 0 : index
    %c0_129 = arith.constant 0 : index
    %146 = vector.load %arg10[%c0_128, %c0_129] : memref<1x64xf32, #tpu.memory_space<vmem>>, vector<1x64xf32>
    %147 = vector.broadcast %146 : vector<1x64xf32> to vector<324x64xf32>
    %148 = arith.mulf %145, %147 : vector<324x64xf32>
    %cst_130 = arith.constant dense<0.000000e+00> : vector<324xf32>
    %149 = vector.multi_reduction <add>, %148, %cst_130 [1] : vector<324x64xf32> to vector<324xf32>
    %150 = vector.shape_cast %149 : vector<324xf32> to vector<324x1xf32>
    %c0_131 = arith.constant 0 : index
    %c24_132 = arith.constant 24 : index
    %c0_133 = arith.constant 0 : index
    %151 = vector.load %arg2[%c0_131, %c24_132, %c0_133] : memref<1x372x1xf32, #tpu.memory_space<vmem>>, vector<1x324x1xf32>
    %152 = vector.shape_cast %151 : vector<1x324x1xf32> to vector<324x1xf32>
    %153 = arith.mulf %152, %150 : vector<324x1xf32>
    %154 = arith.negf %153 : vector<324x1xf32>
    %155 = math.exp %154 : vector<324x1xf32>
    %cst_134 = arith.constant 1.000000e+00 : f32
    %156 = vector.broadcast %cst_134 : f32 to vector<324x1xf32>
    %157 = arith.addf %156, %155 : vector<324x1xf32>
    %158 = arith.divf %156, %157 : vector<324x1xf32>
    %c0_135 = arith.constant 0 : index
    %c0_136 = arith.constant 0 : index
    %c0_137 = arith.constant 0 : index
    %159 = vector.load %arg11[%c0_135, %c0_136, %c0_137] : memref<1x324x1xf32, #tpu.memory_space<vmem>>, vector<1x324x1xf32>
    %160 = vector.shape_cast %159 : vector<1x324x1xf32> to vector<324x1xf32>
    %161 = vector.shape_cast %158 : vector<324x1xf32> to vector<1x324x1xf32>
    tpu.vector_store %arg11[%c0_135, %c0_136, %c0_137], %161 {strides = array<i32>} : memref<1x324x1xf32, #tpu.memory_space<vmem>>, vector<1x324x1xf32>,
    return
  }
  func.func @transform_0(%arg0: i32) -> i32 {
    %c0_i32 = arith.constant 0 : i32
    %c0_i32_0 = arith.constant 0 : i32
    return %c0_i32 : i32
  }
  func.func @transform_1(%arg0: i32) -> (i32, i32, i32) {
    %c0_i32 = arith.constant 0 : i32
    %c0_i32_0 = arith.constant 0 : i32
    %c0_i32_1 = arith.constant 0 : i32
    return %arg0, %c0_i32, %c0_i32_0 : i32, i32, i32
  }
  func.func @transform_2(%arg0: i32) -> (i32, i32) {
    %c0_i32 = arith.constant 0 : i32
    %c0_i32_0 = arith.constant 0 : i32
    %c0_i32_1 = arith.constant 0 : i32
    return %c0_i32, %c0_i32_0 : i32, i32
  }
  func.func @transform_3(%arg0: i32) -> (i32, i32) {
    %c0_i32 = arith.constant 0 : i32
    %c0_i32_0 = arith.constant 0 : i32
    %c0_i32_1 = arith.constant 0 : i32
    return %c0_i32, %c0_i32_0 : i32, i32
  }
  func.func @transform_4(%arg0: i32) -> (i32, i32) {
    %c0_i32 = arith.constant 0 : i32
    %c0_i32_0 = arith.constant 0 : i32
    %c0_i32_1 = arith.constant 0 : i32
    return %c0_i32, %c0_i32_0 : i32, i32
  }
  func.func @transform_5(%arg0: i32) -> (i32, i32) {
    %c0_i32 = arith.constant 0 : i32
    %c0_i32_0 = arith.constant 0 : i32
    %c0_i32_1 = arith.constant 0 : i32
    return %c0_i32, %c0_i32_0 : i32, i32
  }
  func.func @transform_6(%arg0: i32) -> (i32, i32) {
    %c0_i32 = arith.constant 0 : i32
    %c0_i32_0 = arith.constant 0 : i32
    %c0_i32_1 = arith.constant 0 : i32
    return %c0_i32, %c0_i32_0 : i32, i32
  }
  func.func @transform_7(%arg0: i32) -> (i32, i32) {
    %c0_i32 = arith.constant 0 : i32
    %c0_i32_0 = arith.constant 0 : i32
    %c0_i32_1 = arith.constant 0 : i32
    return %c0_i32, %c0_i32_0 : i32, i32
  }
  func.func @transform_8(%arg0: i32) -> (i32, i32) {
    %c0_i32 = arith.constant 0 : i32
    %c0_i32_0 = arith.constant 0 : i32
    %c0_i32_1 = arith.constant 0 : i32
    return %c0_i32, %c0_i32_0 : i32, i32
  }
  func.func @transform_9(%arg0: i32) -> (i32, i32) {
    %c0_i32 = arith.constant 0 : i32
    %c0_i32_0 = arith.constant 0 : i32
    %c0_i32_1 = arith.constant 0 : i32
    return %c0_i32, %c0_i32_0 : i32, i32
  }
  func.func @transform_10(%arg0: i32) -> (i32, i32, i32) {
    %c0_i32 = arith.constant 0 : i32
    %c0_i32_0 = arith.constant 0 : i32
    %c0_i32_1 = arith.constant 0 : i32
    return %arg0, %c0_i32, %c0_i32_0 : i32, i32, i32
  }
}

</mosaic_0001>

<llo_original>
// kernel: confidence_network.1
$region0: #{confidence_network.1}
  #allocation0 [shape = 'u32[]', space=smem, size = 0x4, offset = 0x4, fixed_abs, tag = 'smem constant byte address 0x4 - core index']
  #allocation1 [shape = 'u32[144,128]{1,0:T(1,128)}', space=vmem, size = 0x12000, scoped, tag = 'internal scratch']
  #allocation2 [shape = 'f32[372,16]{1,0:T(8,128)}', space=vmem, size = 0x2f000, scoped, tag = 'scratch operand']
  #allocation3 [shape = 'f32[372,32]{1,0:T(8,128)}', space=vmem, size = 0x2f000, scoped, tag = 'scratch operand']
  #allocation4 [shape = 'f32[324,144]{1,0:T(8,128)}', space=vmem, size = 0x52000, scoped, tag = 'scratch operand']
  #allocation5 [shape = 'f32[324,288]{1,0:T(8,128)}', space=vmem, size = 0x7b000, scoped, tag = 'scratch operand']
  %s0 = inlined_call_operand.vmem [shape: f32[3], index: 0, kind: input, shape index: {}]
  %s1 = inlined_call_operand.vmem [shape: f32[2,372,1], index: 1, kind: input, shape index: {}]
  %s2 = inlined_call_operand.vmem [shape: f32[324,1], index: 2, kind: input, shape index: {}]
  %s3 = inlined_call_operand.vmem [shape: f32[9,16], index: 3, kind: input, shape index: {}]
  %s4 = inlined_call_operand.vmem [shape: f32[1,16], index: 4, kind: input, shape index: {}]
  %s5 = inlined_call_operand.vmem [shape: f32[144,32], index: 5, kind: input, shape index: {}]
  %s6 = inlined_call_operand.vmem [shape: f32[1,32], index: 6, kind: input, shape index: {}]
  %s7 = inlined_call_operand.vmem [shape: f32[288,64], index: 7, kind: input, shape index: {}]
  %s8 = inlined_call_operand.vmem [shape: f32[1,64], index: 8, kind: input, shape index: {}]
  %s9 = inlined_call_operand.vmem [shape: f32[1,64], index: 9, kind: input, shape index: {}]
  %s10 = inlined_call_operand.vmem [shape: f32[2,324,1], index: 10, kind: output, shape index: {}]
  %s11 = sld [smem:[#allocation0]]
  $region77: #{confidence_network.1} parent=0
    _
  %s13 = ssub.s32 1, %s11
  %s14 = scalar_select 0, %s13, %s11
  $region1: #{confidence_network.1} parent=0
    #allocation6 [shape = 'u8[512]{0}', space=smem, size = 0x200, scoped, tag = 'input window, operand 0, single buffered']
    #allocation7 [shape = 's32[2]{0}', space=sflag, size = 0x8, scoped, tag = 'scoped memory for confidence_network.1']
    %15 = vsyncpa [#allocation7], 0
    loop: start=0, step=1, limit=4
    $region2: #{confidence_network.1} parent=1 // loop_pre_header
      _
    $region3: #{confidence_network.1} parent=1 // loop_header
      %s17 = sphi 0, %s21
      %p18 = scmp.ge.s32.totalorder %s17, 4
      %s25 = sphi 0, %s25
      %s27 = sphi 0, %s25
      %s28 = sphi 0, %s27
      %s42 = sphi 0, %s28
      %s48 = sphi 0, %s50
      %s51 = sphi 0, %s48
      %s52 = sphi 0, %s51
      %s68 = sphi 0, %s52
      %s72 = sphi 0, %s72
      %s74 = sphi 0, %s72
      %s75 = sphi 0, %s74
      %s89 = sphi 0, %s75
      %s93 = sphi 0, %s93
      %s95 = sphi 0, %s93
      %s96 = sphi 0, %s95
      %s110 = sphi 0, %s96
      %s114 = sphi 0, %s114
      %s116 = sphi 0, %s114
      %s117 = sphi 0, %s116
      %s131 = sphi 0, %s117
      %s135 = sphi 0, %s135
      %s137 = sphi 0, %s135
      %s138 = sphi 0, %s137
      %s152 = sphi 0, %s138
      %s156 = sphi 0, %s156
      %s158 = sphi 0, %s156
      %s159 = sphi 0, %s158
      %s173 = sphi 0, %s159
      %s177 = sphi 0, %s177
      %s179 = sphi 0, %s177
      %s180 = sphi 0, %s179
      %s194 = sphi 0, %s180
      %s198 = sphi 0, %s198
      %s200 = sphi 0, %s198
      %s201 = sphi 0, %s200
      %s215 = sphi 0, %s201
      %s219 = sphi 0, %s219
      %s221 = sphi 0, %s219
      %s222 = sphi 0, %s221
      %s236 = sphi 0, %s222
      %s242 = sphi 0, %s244
      %s245 = sphi 0, %s242
      %s246 = sphi 0, %s245
      %s262 = sphi 0, %s246
    $region4: #{confidence_network.1} parent=1 // loop_header_branch
      %20 = sbr.rel (%p18) target = $region8
    $region5: #{confidence_network.1} parent=1 // loop_body
      %s22 = ssub.s32 %s17, 1
      %s23 = ssub.s32 %s17, 2
      %s24 = sadd.s32 %s17, 1
      %s26 = sadd.s32 %s25, 1
      %p29 = scmp.eq.s32.totalorder %s17, 1
      %p30 = scmp.ne.s32.totalorder %s25, %s27
      %p31 = scmp.eq.s32.totalorder %s17, 0
      %p32 = por %p30, %p31
      %p33 = scmp.ne.s32.totalorder %s25, %s27
      %p34 = scmp.eq.s32.totalorder %s22, 1
      %p35 = por %p33, %p34
      %p36 = scmp.ne.s32.totalorder %s27, %s28
      %p37 = scmp.eq.s32.totalorder %s22, 0
      %p38 = por %p36, %p37
      %p39 = scmp.ne.s32.totalorder %s27, %s28
      %p40 = scmp.eq.s32.totalorder %s23, 1
      %p41 = por %p39, %p40
      %p43 = scmp.ne.s32.totalorder %s28, %s42
      %p44 = scmp.eq.s32.totalorder %s23, 0
      %p45 = por %p43, %p44
      %s46 = ssub.s32 %s17, %s24
      %p47 = scmp.eq.s32.totalorder %s46, 0
      %s49 = sadd.s32 %s48, 1
      %s50 = scalar_select %p47, %s48, %s49
      %p53 = pneg %p47
      %p54 = scmp.eq.s32.totalorder %s17, 1
      %p55 = por %p53, %p54
      %p56 = scmp.ne.s32.totalorder %s48, %s51
      %p57 = scmp.eq.s32.totalorder %s17, 0
      %p58 = por %p56, %p57
      %p59 = scmp.ne.s32.totalorder %s48, %s51
      %p60 = scmp.eq.s32.totalorder %s22, 1
      %p61 = por %p59, %p60
      %p62 = scmp.ne.s32.totalorder %s51, %s52
      %p63 = scmp.eq.s32.totalorder %s22, 0
      %p64 = por %p62, %p63
      %p65 = scmp.ne.s32.totalorder %s51, %s52
      %p66 = scmp.eq.s32.totalorder %s23, 1
      %p67 = por %p65, %p66
      %p69 = scmp.ne.s32.totalorder %s52, %s68
      %p70 = scmp.eq.s32.totalorder %s23, 0
      %p71 = por %p69, %p70
      %s73 = sadd.s32 %s72, 1
      %p76 = scmp.eq.s32.totalorder %s17, 1
      %p77 = scmp.ne.s32.totalorder %s72, %s74
      %p78 = scmp.eq.s32.totalorder %s17, 0
      %p79 = por %p77, %p78
      %p80 = scmp.ne.s32.totalorder %s72, %s74
      %p81 = scmp.eq.s32.totalorder %s22, 1
      %p82 = por %p80, %p81
      %p83 = scmp.ne.s32.totalorder %s74, %s75
      %p84 = scmp.eq.s32.totalorder %s22, 0
      %p85 = por %p83, %p84
      %p86 = scmp.ne.s32.totalorder %s74, %s75
      %p87 = scmp.eq.s32.totalorder %s23, 1
      %p88 = por %p86, %p87
      %p90 = scmp.ne.s32.totalorder %s75, %s89
      %p91 = scmp.eq.s32.totalorder %s23, 0
      %p92 = por %p90, %p91
      %s94 = sadd.s32 %s93, 1
      %p97 = scmp.eq.s32.totalorder %s17, 1
      %p98 = scmp.ne.s32.totalorder %s93, %s95
      %p99 = scmp.eq.s32.totalorder %s17, 0
      %p100 = por %p98, %p99
      %p101 = scmp.ne.s32.totalorder %s93, %s95
      %p102 = scmp.eq.s32.totalorder %s22, 1
      %p103 = por %p101, %p102
      %p104 = scmp.ne.s32.totalorder %s95, %s96
      %p105 = scmp.eq.s32.totalorder %s22, 0
      %p106 = por %p104, %p105
      %p107 = scmp.ne.s32.totalorder %s95, %s96
      %p108 = scmp.eq.s32.totalorder %s23, 1
      %p109 = por %p107, %p108
      %p111 = scmp.ne.s32.totalorder %s96, %s110
      %p112 = scmp.eq.s32.totalorder %s23, 0
      %p113 = por %p111, %p112
      %s115 = sadd.s32 %s114, 1
      %p118 = scmp.eq.s32.totalorder %s17, 1
      %p119 = scmp.ne.s32.totalorder %s114, %s116
      %p120 = scmp.eq.s32.totalorder %s17, 0
      %p121 = por %p119, %p120
      %p122 = scmp.ne.s32.totalorder %s114, %s116
      %p123 = scmp.eq.s32.totalorder %s22, 1
      %p124 = por %p122, %p123
      %p125 = scmp.ne.s32.totalorder %s116, %s117
      %p126 = scmp.eq.s32.totalorder %s22, 0
      %p127 = por %p125, %p126
      %p128 = scmp.ne.s32.totalorder %s116, %s117
      %p129 = scmp.eq.s32.totalorder %s23, 1
      %p130 = por %p128, %p129
      %p132 = scmp.ne.s32.totalorder %s117, %s131
      %p133 = scmp.eq.s32.totalorder %s23, 0
      %p134 = por %p132, %p133
      %s136 = sadd.s32 %s135, 1
      %p139 = scmp.eq.s32.totalorder %s17, 1
      %p140 = scmp.ne.s32.totalorder %s135, %s137
      %p141 = scmp.eq.s32.totalorder %s17, 0
      %p142 = por %p140, %p141
      %p143 = scmp.ne.s32.totalorder %s135, %s137
      %p144 = scmp.eq.s32.totalorder %s22, 1
      %p145 = por %p143, %p144
      %p146 = scmp.ne.s32.totalorder %s137, %s138
      %p147 = scmp.eq.s32.totalorder %s22, 0
      %p148 = por %p146, %p147
      %p149 = scmp.ne.s32.totalorder %s137, %s138
      %p150 = scmp.eq.s32.totalorder %s23, 1
      %p151 = por %p149, %p150
      %p153 = scmp.ne.s32.totalorder %s138, %s152
      %p154 = scmp.eq.s32.totalorder %s23, 0
      %p155 = por %p153, %p154
      %s157 = sadd.s32 %s156, 1
      %p160 = scmp.eq.s32.totalorder %s17, 1
      %p161 = scmp.ne.s32.totalorder %s156, %s158
      %p162 = scmp.eq.s32.totalorder %s17, 0
      %p163 = por %p161, %p162
      %p164 = scmp.ne.s32.totalorder %s156, %s158
      %p165 = scmp.eq.s32.totalorder %s22, 1
      %p166 = por %p164, %p165
      %p167 = scmp.ne.s32.totalorder %s158, %s159
      %p168 = scmp.eq.s32.totalorder %s22, 0
      %p169 = por %p167, %p168
      %p170 = scmp.ne.s32.totalorder %s158, %s159
      %p171 = scmp.eq.s32.totalorder %s23, 1
      %p172 = por %p170, %p171
      %p174 = scmp.ne.s32.totalorder %s159, %s173
      %p175 = scmp.eq.s32.totalorder %s23, 0
      %p176 = por %p174, %p175
      %s178 = sadd.s32 %s177, 1
      %p181 = scmp.eq.s32.totalorder %s17, 1
      %p182 = scmp.ne.s32.totalorder %s177, %s179
      %p183 = scmp.eq.s32.totalorder %s17, 0
      %p184 = por %p182, %p183
      %p185 = scmp.ne.s32.totalorder %s177, %s179
      %p186 = scmp.eq.s32.totalorder %s22, 1
      %p187 = por %p185, %p186
      %p188 = scmp.ne.s32.totalorder %s179, %s180
      %p189 = scmp.eq.s32.totalorder %s22, 0
      %p190 = por %p188, %p189
      %p191 = scmp.ne.s32.totalorder %s179, %s180
      %p192 = scmp.eq.s32.totalorder %s23, 1
      %p193 = por %p191, %p192
      %p195 = scmp.ne.s32.totalorder %s180, %s194
      %p196 = scmp.eq.s32.totalorder %s23, 0
      %p197 = por %p195, %p196
      %s199 = sadd.s32 %s198, 1
      %p202 = scmp.eq.s32.totalorder %s17, 1
      %p203 = scmp.ne.s32.totalorder %s198, %s200
      %p204 = scmp.eq.s32.totalorder %s17, 0
      %p205 = por %p203, %p204
      %p206 = scmp.ne.s32.totalorder %s198, %s200
      %p207 = scmp.eq.s32.totalorder %s22, 1
      %p208 = por %p206, %p207
      %p209 = scmp.ne.s32.totalorder %s200, %s201
      %p210 = scmp.eq.s32.totalorder %s22, 0
      %p211 = por %p209, %p210
      %p212 = scmp.ne.s32.totalorder %s200, %s201
      %p213 = scmp.eq.s32.totalorder %s23, 1
      %p214 = por %p212, %p213
      %p216 = scmp.ne.s32.totalorder %s201, %s215
      %p217 = scmp.eq.s32.totalorder %s23, 0
      %p218 = por %p216, %p217
      %s220 = sadd.s32 %s219, 1
      %p223 = scmp.eq.s32.totalorder %s17, 1
      %p224 = scmp.ne.s32.totalorder %s219, %s221
      %p225 = scmp.eq.s32.totalorder %s17, 0
      %p226 = por %p224, %p225
      %p227 = scmp.ne.s32.totalorder %s219, %s221
      %p228 = scmp.eq.s32.totalorder %s22, 1
      %p229 = por %p227, %p228
      %p230 = scmp.ne.s32.totalorder %s221, %s222
      %p231 = scmp.eq.s32.totalorder %s22, 0
      %p232 = por %p230, %p231
      %p233 = scmp.ne.s32.totalorder %s221, %s222
      %p234 = scmp.eq.s32.totalorder %s23, 1
      %p235 = por %p233, %p234
      %p237 = scmp.ne.s32.totalorder %s222, %s236
      %p238 = scmp.eq.s32.totalorder %s23, 0
      %p239 = por %p237, %p238
      %s240 = ssub.s32 %s17, %s24
      %p241 = scmp.eq.s32.totalorder %s240, 0
      %s243 = sadd.s32 %s242, 1
      %s244 = scalar_select %p241, %s242, %s243
      %p247 = pneg %p241
      %p248 = scmp.eq.s32.totalorder %s17, 1
      %p249 = por %p247, %p248
      %p250 = scmp.ne.s32.totalorder %s242, %s245
      %p251 = scmp.eq.s32.totalorder %s17, 0
      %p252 = por %p250, %p251
      %p253 = scmp.ne.s32.totalorder %s242, %s245
      %p254 = scmp.eq.s32.totalorder %s22, 1
      %p255 = por %p253, %p254
      %p256 = scmp.ne.s32.totalorder %s245, %s246
      %p257 = scmp.eq.s32.totalorder %s22, 0
      %p258 = por %p256, %p257
      %p259 = scmp.ne.s32.totalorder %s245, %s246
      %p260 = scmp.eq.s32.totalorder %s23, 1
      %p261 = por %p259, %p260
      %p263 = scmp.ne.s32.totalorder %s246, %s262
      %p264 = scmp.eq.s32.totalorder %s23, 0
      %p265 = por %p263, %p264
      %p266 = scmp.le.s32.totalorder 1, %s17
      %p267 = scmp.lt.s32.totalorder %s17, 3
      %p268 = pnand %p266, %p267
      %p269 = pneg %p268
      // Predicated region
      $region9: #{confidence_network.1} parent=5 // pred_check
        _
      $region10: #{confidence_network.1} parent=5 // pred_check_branch
        %271 = sbr.rel (%p268) target = $region12
      $region11: #{confidence_network.1} parent=5 // pred_region
        %s272 = ssub.s32 %s17, 1
        // Predicated region
        $region13: #{confidence_network.1} parent=11 // pred_check
          %p273 = pneg %p38
        $region14: #{confidence_network.1} parent=11 // pred_check_branch
          %275 = sbr.rel (%p273) target = $region16
        $region15: #{confidence_network.1} parent=11 // pred_region
          %s277 = ssub.s32 16, 16
          %278 = vsyncadd [#allocation7], %s277
          %s280 = sshll.u32 %s0, 4
          %s281 = int_to_ptr.vmem [resolvable:$true] %s280
          %283 = dma.vmem_to_smem %s281, 16, [#allocation6], [#allocation7]
        $region16: #{confidence_network.1} parent=11 // pred_fallthru
          _
        // Predicated region
        $region17: #{confidence_network.1} parent=11 // pred_check
          %p284 = pneg %p85
        $region18: #{confidence_network.1} parent=11 // pred_check_branch
          %286 = sbr.rel (%p284) target = $region20
        $region19: #{confidence_network.1} parent=11 // pred_region
          _
        $region20: #{confidence_network.1} parent=11 // pred_fallthru
          _
        // Predicated region
        $region21: #{confidence_network.1} parent=11 // pred_check
          %p287 = pneg %p106
        $region22: #{confidence_network.1} parent=11 // pred_check_branch
          %289 = sbr.rel (%p287) target = $region24
        $region23: #{confidence_network.1} parent=11 // pred_region
          _
        $region24: #{confidence_network.1} parent=11 // pred_fallthru
          _
        // Predicated region
        $region25: #{confidence_network.1} parent=11 // pred_check
          %p290 = pneg %p127
        $region26: #{confidence_network.1} parent=11 // pred_check_branch
          %292 = sbr.rel (%p290) target = $region28
        $region27: #{confidence_network.1} parent=11 // pred_region
          _
        $region28: #{confidence_network.1} parent=11 // pred_fallthru
          _
        // Predicated region
        $region29: #{confidence_network.1} parent=11 // pred_check
          %p293 = pneg %p148
        $region30: #{confidence_network.1} parent=11 // pred_check_branch
          %295 = sbr.rel (%p293) target = $region32
        $region31: #{confidence_network.1} parent=11 // pred_region
          _
        $region32: #{confidence_network.1} parent=11 // pred_fallthru
          _
        // Predicated region
        $region33: #{confidence_network.1} parent=11 // pred_check
          %p296 = pneg %p169
        $region34: #{confidence_network.1} parent=11 // pred_check_branch
          %298 = sbr.rel (%p296) target = $region36
        $region35: #{confidence_network.1} parent=11 // pred_region
          _
        $region36: #{confidence_network.1} parent=11 // pred_fallthru
          _
        // Predicated region
        $region37: #{confidence_network.1} parent=11 // pred_check
          %p299 = pneg %p190
        $region38: #{confidence_network.1} parent=11 // pred_check_branch
          %301 = sbr.rel (%p299) target = $region40
        $region39: #{confidence_network.1} parent=11 // pred_region
          _
        $region40: #{confidence_network.1} parent=11 // pred_fallthru
          _
        // Predicated region
        $region41: #{confidence_network.1} parent=11 // pred_check
          %p302 = pneg %p211
        $region42: #{confidence_network.1} parent=11 // pred_check_branch
          %304 = sbr.rel (%p302) target = $region44
        $region43: #{confidence_network.1} parent=11 // pred_region
          _
        $region44: #{confidence_network.1} parent=11 // pred_fallthru
          _
        // Predicated region
        $region45: #{confidence_network.1} parent=11 // pred_check
          %p305 = pneg %p232
        $region46: #{confidence_network.1} parent=11 // pred_check_branch
          %307 = sbr.rel (%p305) target = $region48
        $region47: #{confidence_network.1} parent=11 // pred_region
          _
        $region48: #{confidence_network.1} parent=11 // pred_fallthru
          _
      $region12: #{confidence_network.1} parent=5 // pred_fallthru
        _
      %p308 = scmp.lt.s32.totalorder %s17, 2
      // Predicated region
      $region49: #{confidence_network.1} parent=5 // pred_check
        %p309 = pneg %p308
      $region50: #{confidence_network.1} parent=5 // pred_check_branch
        %311 = sbr.rel (%p309) target = $region52
      $region51: #{confidence_network.1} parent=5 // pred_region
        // Predicated region
        $region53: #{confidence_network.1} parent=51 // pred_check
          %p312 = pneg %p58
        $region54: #{confidence_network.1} parent=51 // pred_check_branch
          %314 = sbr.rel (%p312) target = $region56
        $region55: #{confidence_network.1} parent=51 // pred_region
          %p315 = scmp.lt.s32.totalorder %s17, 1
          %s316 = scalar_select %p315, %s17, 1
          %s317 = smul.addr %s316, 47
          %s318 = smul.addr %s317, 8
          %s319 = scalar_lea.vmem %s1, %s318
        $region56: #{confidence_network.1} parent=51 // pred_fallthru
          _
      $region52: #{confidence_network.1} parent=5 // pred_fallthru
        _
      %p320 = scmp.le.s32.totalorder 1, %s17
      %p321 = scmp.lt.s32.totalorder %s17, 3
      %p322 = pnand %p320, %p321
      %p323 = pneg %p322
      // Predicated region
      $region57: #{confidence_network.1} parent=5 // pred_check
        _
      $region58: #{confidence_network.1} parent=5 // pred_check_branch
        %325 = sbr.rel (%p322) target = $region60
      $region59: #{confidence_network.1} parent=5 // pred_region
        %s326 = ssub.s32 %s17, 1
        // Predicated region
        $region61: #{confidence_network.1} parent=59 // pred_check
          %p327 = pneg %p38
        $region62: #{confidence_network.1} parent=59 // pred_check_branch
          %329 = sbr.rel (%p327) target = $region64
        $region63: #{confidence_network.1} parent=59 // pred_region
          %330 = dma.done [#allocation7], 16
        $region64: #{confidence_network.1} parent=59 // pred_fallthru
          _
        %331 = sfence
        %p332 = pneg %p38
        %p333 = pneg %p35
        %p334 = scmp.lt.s32.totalorder %s22, 1
        %s335 = scalar_select %p334, %s22, 1
        %s336 = smul.addr %s335, 47
        %s337 = smul.addr %s336, 8
        %s338 = scalar_lea.vmem %s1, %s337
        %p339 = pneg %p64
        %p340 = pneg %p61
        %p341 = pneg %p85
        %p342 = pneg %p82
        %p343 = pneg %p106
        %p344 = pneg %p103
        %p345 = pneg %p127
        %p346 = pneg %p124
        %p347 = pneg %p148
        %p348 = pneg %p145
        %p349 = pneg %p169
        %p350 = pneg %p166
        %p351 = pneg %p190
        %p352 = pneg %p187
        %p353 = pneg %p211
        %p354 = pneg %p208
        %p355 = pneg %p232
        %p356 = pneg %p229
        %p357 = pneg %p258
        %p358 = pneg %p255
        %p359 = scmp.lt.s32.totalorder %s22, 1
        %s360 = scalar_select %p359, %s22, 1
        %s361 = smul.addr %s360, 41
        %s362 = smul.addr %s361, 8
        %s363 = scalar_lea.vmem %s10, %s362
        %p364 = scmp.lt.s32.totalorder %s22, 1
        %s365 = scalar_select %p364, %s22, 1
        %s366 = smul.addr %s365, 47
        %s367 = smul.addr %s366, 8
        %s368 = scalar_lea.vmem %s1, %s367
        %p369 = scmp.lt.s32.totalorder %s22, 1
        %s370 = scalar_select %p369, %s22, 1
        %s371 = smul.addr %s370, 41
        %s372 = smul.addr %s371, 8
        %s373 = scalar_lea.vmem %s10, %s372
        %s374 = sld [smem:[#allocation6]]
        %s375 = sld [smem:[#allocation6 + $0x1]]
        %s376 = sld [smem:[#allocation6 + $0x2]]
        %v377 = vld [vmem:[%s2] sm:$0xff]
        %v378 = vld [vmem:[%s2 + $0x8] sm:$0xff]
        %v379 = vld [vmem:[%s2 + $0x10] sm:$0xff]
        %v380 = vld [vmem:[%s2 + $0x18] sm:$0xff]
        %v381 = vld [vmem:[%s2 + $0x20] sm:$0xff]
        %v382 = vld [vmem:[%s2 + $0x28] sm:$0xff]
        %v383 = vld [vmem:[%s2 + $0x30] sm:$0xff]
        %v384 = vld [vmem:[%s2 + $0x38] sm:$0xff]
        %v385 = vld [vmem:[%s2 + $0x40] sm:$0xff]
        %v386 = vld [vmem:[%s2 + $0x48] sm:$0xff]
        %v387 = vld [vmem:[%s2 + $0x50] sm:$0xff]
        %v388 = vld [vmem:[%s2 + $0x58] sm:$0xff]
        %v389 = vld [vmem:[%s2 + $0x60] sm:$0xff]
        %v390 = vld [vmem:[%s2 + $0x68] sm:$0xff]
        %v391 = vld [vmem:[%s2 + $0x70] sm:$0xff]
        %v392 = vld [vmem:[%s2 + $0x78] sm:$0xff]
        %v393 = vld [vmem:[%s2 + $0x80] sm:$0xff]
        %v394 = vld [vmem:[%s2 + $0x88] sm:$0xff]
        %v395 = vld [vmem:[%s2 + $0x90] sm:$0xff]
        %v396 = vld [vmem:[%s2 + $0x98] sm:$0xff]
        %v397 = vld [vmem:[%s2 + $0xa0] sm:$0xff]
        %v398 = vld [vmem:[%s2 + $0xa8] sm:$0xff]
        %v399 = vld [vmem:[%s2 + $0xb0] sm:$0xff]
        %v400 = vld [vmem:[%s2 + $0xb8] sm:$0xff]
        %v401 = vld [vmem:[%s2 + $0xc0] sm:$0xff]
        %v402 = vld [vmem:[%s2 + $0xc8] sm:$0xff]
        %v403 = vld [vmem:[%s2 + $0xd0] sm:$0xff]
        %v404 = vld [vmem:[%s2 + $0xd8] sm:$0xff]
        %v405 = vld [vmem:[%s2 + $0xe0] sm:$0xff]
        %v406 = vld [vmem:[%s2 + $0xe8] sm:$0xff]
        %v407 = vld [vmem:[%s2 + $0xf0] sm:$0xff]
        %v408 = vld [vmem:[%s2 + $0xf8] sm:$0xff]
        %v409 = vld [vmem:[%s2 + $0x100] sm:$0xff]
        %v410 = vld [vmem:[%s2 + $0x108] sm:$0xff]
        %v411 = vld [vmem:[%s2 + $0x110] sm:$0xff]
        %v412 = vld [vmem:[%s2 + $0x118] sm:$0xff]
        %v413 = vld [vmem:[%s2 + $0x120] sm:$0xff]
        %v414 = vld [vmem:[%s2 + $0x128] sm:$0xff]
        %v415 = vld [vmem:[%s2 + $0x130] sm:$0xff]
        %v416 = vld [vmem:[%s2 + $0x138] sm:$0xff]
        %v417 = vld [vmem:[%s2 + $0x140] sm:$0xf]
        %vm418 = vcmask 130048
        %419 = vst.msk [vmem:[#allocation2] sm:$0xff] %vm418, 0.0
        %420 = vst.msk [vmem:[#allocation2 + $0x8] sm:$0xff] %vm418, 0.0
        %421 = vst.msk [vmem:[#allocation2 + $0x10] sm:$0xff] %vm418, 0.0
        %422 = vst.msk [vmem:[#allocation2 + $0x15c] sm:$0xff] %vm418, 0.0
        %423 = vst.msk [vmem:[#allocation2 + $0x164] sm:$0xff] %vm418, 0.0
        %424 = vst.msk [vmem:[#allocation2 + $0x16c] sm:$0xff] %vm418, 0.0
        %vm425 = vcmask 261120
        %426 = vst.msk [vmem:[#allocation3] sm:$0xff] %vm425, 0.0
        %427 = vst.msk [vmem:[#allocation3 + $0x8] sm:$0xff] %vm425, 0.0
        %428 = vst.msk [vmem:[#allocation3 + $0x10] sm:$0xff] %vm425, 0.0
        %429 = vst.msk [vmem:[#allocation3 + $0x15c] sm:$0xff] %vm425, 0.0
        %430 = vst.msk [vmem:[#allocation3 + $0x164] sm:$0xff] %vm425, 0.0
        %431 = vst.msk [vmem:[#allocation3 + $0x16c] sm:$0xff] %vm425, 0.0
        %v432 = vld [vmem:[%s368 + $0x5] sm:$0xff]
        %v433 = vld [vmem:[%s368 + $0xd] sm:$0xff]
        %v434 = vld [vmem:[%s368 + $0x15] sm:$0xff]
        %v435 = vld [vmem:[%s368 + $0x1d] sm:$0xff]
        %v436 = vld [vmem:[%s368 + $0x25] sm:$0xff]
        %v437 = vld [vmem:[%s368 + $0x2d] sm:$0xff]
        %v438 = vld [vmem:[%s368 + $0x35] sm:$0xff]
        %v439 = vld [vmem:[%s368 + $0x3d] sm:$0xff]
        %v440 = vld [vmem:[%s368 + $0x45] sm:$0xff]
        %v441 = vld [vmem:[%s368 + $0x4d] sm:$0xff]
        %v442 = vld [vmem:[%s368 + $0x55] sm:$0xff]
        %v443 = vld [vmem:[%s368 + $0x5d] sm:$0xff]
        %v444 = vld [vmem:[%s368 + $0x65] sm:$0xff]
        %v445 = vld [vmem:[%s368 + $0x6d] sm:$0xff]
        %v446 = vld [vmem:[%s368 + $0x75] sm:$0xff]
        %v447 = vld [vmem:[%s368 + $0x7d] sm:$0xff]
        %v448 = vld [vmem:[%s368 + $0x85] sm:$0xff]
        %v449 = vld [vmem:[%s368 + $0x8d] sm:$0xff]
        %v450 = vld [vmem:[%s368 + $0x95] sm:$0xff]
        %v451 = vld [vmem:[%s368 + $0x9d] sm:$0xff]
        %v452 = vld [vmem:[%s368 + $0xa5] sm:$0xff]
        %v453 = vld [vmem:[%s368 + $0xad] sm:$0xff]
        %v454 = vld [vmem:[%s368 + $0xb5] sm:$0xff]
        %v455 = vld [vmem:[%s368 + $0xbd] sm:$0xff]
        %v456 = vld [vmem:[%s368 + $0xc5] sm:$0xff]
        %v457 = vld [vmem:[%s368 + $0xcd] sm:$0xff]
        %v458 = vld [vmem:[%s368 + $0xd5] sm:$0xff]
        %v459 = vld [vmem:[%s368 + $0xdd] sm:$0xff]
        %v460 = vld [vmem:[%s368 + $0xe5] sm:$0xff]
        %v461 = vld [vmem:[%s368 + $0xed] sm:$0xff]
        %v462 = vld [vmem:[%s368 + $0xf5] sm:$0xff]
        %v463 = vld [vmem:[%s368 + $0xfd] sm:$0xff]
        %v464 = vld [vmem:[%s368 + $0x105] sm:$0xff]
        %v465 = vld [vmem:[%s368 + $0x10d] sm:$0xff]
        %v466 = vld [vmem:[%s368 + $0x115] sm:$0xff]
        %v467 = vld [vmem:[%s368 + $0x11d] sm:$0xff]
        %v468 = vld [vmem:[%s368 + $0x125] sm:$0xff]
        %v469 = vld [vmem:[%s368 + $0x12d] sm:$0xff]
        %v470 = vld [vmem:[%s368 + $0x135] sm:$0xff]
        %v471 = vld [vmem:[%s368 + $0x13d] sm:$0xff]
        %v472 = vld [vmem:[%s368 + $0x145] sm:$0xf]
        %v473 = vld [vmem:[%s3] sm:$0x1]
        %475 = vset.pattern.permute.xlu0 0
        %476 = vperm.xlu0 %475, %v432
        %v477 = vpop.permute.xlu0 %476
        %480 = vset.pattern.permute.xlu0 0
        %481 = vperm.xlu0 %480, %v433
        %v482 = vpop.permute.xlu0 %481
        %485 = vset.pattern.permute.xlu0 0
        %486 = vperm.xlu0 %485, %v434
        %v487 = vpop.permute.xlu0 %486
        %490 = vset.pattern.permute.xlu0 0
        %491 = vperm.xlu0 %490, %v435
        %v492 = vpop.permute.xlu0 %491
        %495 = vset.pattern.permute.xlu0 0
        %496 = vperm.xlu0 %495, %v436
        %v497 = vpop.permute.xlu0 %496
        %500 = vset.pattern.permute.xlu0 0
        %501 = vperm.xlu0 %500, %v437
        %v502 = vpop.permute.xlu0 %501
        %505 = vset.pattern.permute.xlu0 0
        %506 = vperm.xlu0 %505, %v438
        %v507 = vpop.permute.xlu0 %506
        %510 = vset.pattern.permute.xlu0 0
        %511 = vperm.xlu0 %510, %v439
        %v512 = vpop.permute.xlu0 %511
        %515 = vset.pattern.permute.xlu0 0
        %516 = vperm.xlu0 %515, %v440
        %v517 = vpop.permute.xlu0 %516
        %520 = vset.pattern.permute.xlu0 0
        %521 = vperm.xlu0 %520, %v441
        %v522 = vpop.permute.xlu0 %521
        %525 = vset.pattern.permute.xlu0 0
        %526 = vperm.xlu0 %525, %v442
        %v527 = vpop.permute.xlu0 %526
        %530 = vset.pattern.permute.xlu0 0
        %531 = vperm.xlu0 %530, %v443
        %v532 = vpop.permute.xlu0 %531
        %535 = vset.pattern.permute.xlu0 0
        %536 = vperm.xlu0 %535, %v444
        %v537 = vpop.permute.xlu0 %536
        %540 = vset.pattern.permute.xlu0 0
        %541 = vperm.xlu0 %540, %v445
        %v542 = vpop.permute.xlu0 %541
        %545 = vset.pattern.permute.xlu0 0
        %546 = vperm.xlu0 %545, %v446
        %v547 = vpop.permute.xlu0 %546
        %550 = vset.pattern.permute.xlu0 0
        %551 = vperm.xlu0 %550, %v447
        %v552 = vpop.permute.xlu0 %551
        %555 = vset.pattern.permute.xlu0 0
        %556 = vperm.xlu0 %555, %v448
        %v557 = vpop.permute.xlu0 %556
        %560 = vset.pattern.permute.xlu0 0
        %561 = vperm.xlu0 %560, %v449
        %v562 = vpop.permute.xlu0 %561
        %565 = vset.pattern.permute.xlu0 0
        %566 = vperm.xlu0 %565, %v450
        %v567 = vpop.permute.xlu0 %566
        %570 = vset.pattern.permute.xlu0 0
        %571 = vperm.xlu0 %570, %v451
        %v572 = vpop.permute.xlu0 %571
        %575 = vset.pattern.permute.xlu0 0
        %576 = vperm.xlu0 %575, %v452
        %v577 = vpop.permute.xlu0 %576
        %580 = vset.pattern.permute.xlu0 0
        %581 = vperm.xlu0 %580, %v453
        %v582 = vpop.permute.xlu0 %581
        %585 = vset.pattern.permute.xlu0 0
        %586 = vperm.xlu0 %585, %v454
        %v587 = vpop.permute.xlu0 %586
        %590 = vset.pattern.permute.xlu0 0
        %591 = vperm.xlu0 %590, %v455
        %v592 = vpop.permute.xlu0 %591
        %595 = vset.pattern.permute.xlu0 0
        %596 = vperm.xlu0 %595, %v456
        %v597 = vpop.permute.xlu0 %596
        %600 = vset.pattern.permute.xlu0 0
        %601 = vperm.xlu0 %600, %v457
        %v602 = vpop.permute.xlu0 %601
        %605 = vset.pattern.permute.xlu0 0
        %606 = vperm.xlu0 %605, %v458
        %v607 = vpop.permute.xlu0 %606
        %610 = vset.pattern.permute.xlu0 0
        %611 = vperm.xlu0 %610, %v459
        %v612 = vpop.permute.xlu0 %611
        %615 = vset.pattern.permute.xlu0 0
        %616 = vperm.xlu0 %615, %v460
        %v617 = vpop.permute.xlu0 %616
        %620 = vset.pattern.permute.xlu0 0
        %621 = vperm.xlu0 %620, %v461
        %v622 = vpop.permute.xlu0 %621
        %625 = vset.pattern.permute.xlu0 0
        %626 = vperm.xlu0 %625, %v462
        %v627 = vpop.permute.xlu0 %626
        %630 = vset.pattern.permute.xlu0 0
        %631 = vperm.xlu0 %630, %v463
        %v632 = vpop.permute.xlu0 %631
        %635 = vset.pattern.permute.xlu0 0
        %636 = vperm.xlu0 %635, %v464
        %v637 = vpop.permute.xlu0 %636
        %640 = vset.pattern.permute.xlu0 0
        %641 = vperm.xlu0 %640, %v465
        %v642 = vpop.permute.xlu0 %641
        %645 = vset.pattern.permute.xlu0 0
        %646 = vperm.xlu0 %645, %v466
        %v647 = vpop.permute.xlu0 %646
        %650 = vset.pattern.permute.xlu0 0
        %651 = vperm.xlu0 %650, %v467
        %v652 = vpop.permute.xlu0 %651
        %655 = vset.pattern.permute.xlu0 0
        %656 = vperm.xlu0 %655, %v468
        %v657 = vpop.permute.xlu0 %656
        %660 = vset.pattern.permute.xlu0 0
        %661 = vperm.xlu0 %660, %v469
        %v662 = vpop.permute.xlu0 %661
        %665 = vset.pattern.permute.xlu0 0
        %666 = vperm.xlu0 %665, %v470
        %v667 = vpop.permute.xlu0 %666
        %670 = vset.pattern.permute.xlu0 0
        %671 = vperm.xlu0 %670, %v471
        %v672 = vpop.permute.xlu0 %671
        %675 = vset.pattern.permute.xlu0 0
        %676 = vperm.xlu0 %675, %v472
        %v677 = vpop.permute.xlu0 %676
        %v679 = vlaneseq
        %v680 = vshrl.u32 %v679, 7
        %v681 = vsub.s32 0, %v680
        %v682 = vrot.slane %v473, %v681
        %v683 = vmul.f32 %v477, %v682
        %v684 = vmul.f32 %v482, %v682
        %v685 = vmul.f32 %v487, %v682
        %v686 = vmul.f32 %v492, %v682
        %v687 = vmul.f32 %v497, %v682
        %v688 = vmul.f32 %v502, %v682
        %v689 = vmul.f32 %v507, %v682
        %v690 = vmul.f32 %v512, %v682
        %v691 = vmul.f32 %v517, %v682
        %v692 = vmul.f32 %v522, %v682
        %v693 = vmul.f32 %v527, %v682
        %v694 = vmul.f32 %v532, %v682
        %v695 = vmul.f32 %v537, %v682
        %v696 = vmul.f32 %v542, %v682
        %v697 = vmul.f32 %v547, %v682
        %v698 = vmul.f32 %v552, %v682
        %v699 = vmul.f32 %v557, %v682
        %v700 = vmul.f32 %v562, %v682
        %v701 = vmul.f32 %v567, %v682
        %v702 = vmul.f32 %v572, %v682
        %v703 = vmul.f32 %v577, %v682
        %v704 = vmul.f32 %v582, %v682
        %v705 = vmul.f32 %v587, %v682
        %v706 = vmul.f32 %v592, %v682
        %v707 = vmul.f32 %v597, %v682
        %v708 = vmul.f32 %v602, %v682
        %v709 = vmul.f32 %v607, %v682
        %v710 = vmul.f32 %v612, %v682
        %v711 = vmul.f32 %v617, %v682
        %v712 = vmul.f32 %v622, %v682
        %v713 = vmul.f32 %v627, %v682
        %v714 = vmul.f32 %v632, %v682
        %v715 = vmul.f32 %v637, %v682
        %v716 = vmul.f32 %v642, %v682
        %v717 = vmul.f32 %v647, %v682
        %v718 = vmul.f32 %v652, %v682
        %v719 = vmul.f32 %v657, %v682
        %v720 = vmul.f32 %v662, %v682
        %v721 = vmul.f32 %v667, %v682
        %v722 = vmul.f32 %v672, %v682
        %v723 = vmul.f32 %v677, %v682
        %v724 = vld [vmem:[%s368 + $0x6] sm:$0xff]
        %v725 = vld [vmem:[%s368 + $0xe] sm:$0xff]
        %v726 = vld [vmem:[%s368 + $0x16] sm:$0xff]
        %v727 = vld [vmem:[%s368 + $0x1e] sm:$0xff]
        %v728 = vld [vmem:[%s368 + $0x26] sm:$0xff]
        %v729 = vld [vmem:[%s368 + $0x2e] sm:$0xff]
        %v730 = vld [vmem:[%s368 + $0x36] sm:$0xff]
        %v731 = vld [vmem:[%s368 + $0x3e] sm:$0xff]
        %v732 = vld [vmem:[%s368 + $0x46] sm:$0xff]
        %v733 = vld [vmem:[%s368 + $0x4e] sm:$0xff]
        %v734 = vld [vmem:[%s368 + $0x56] sm:$0xff]
        %v735 = vld [vmem:[%s368 + $0x5e] sm:$0xff]
        %v736 = vld [vmem:[%s368 + $0x66] sm:$0xff]
        %v737 = vld [vmem:[%s368 + $0x6e] sm:$0xff]
        %v738 = vld [vmem:[%s368 + $0x76] sm:$0xff]
        %v739 = vld [vmem:[%s368 + $0x7e] sm:$0xff]
        %v740 = vld [vmem:[%s368 + $0x86] sm:$0xff]
        %v741 = vld [vmem:[%s368 + $0x8e] sm:$0xff]
        %v742 = vld [vmem:[%s368 + $0x96] sm:$0xff]
        %v743 = vld [vmem:[%s368 + $0x9e] sm:$0xff]
        %v744 = vld [vmem:[%s368 + $0xa6] sm:$0xff]
        %v745 = vld [vmem:[%s368 + $0xae] sm:$0xff]
        %v746 = vld [vmem:[%s368 + $0xb6] sm:$0xff]
        %v747 = vld [vmem:[%s368 + $0xbe] sm:$0xff]
        %v748 = vld [vmem:[%s368 + $0xc6] sm:$0xff]
        %v749 = vld [vmem:[%s368 + $0xce] sm:$0xff]
        %v750 = vld [vmem:[%s368 + $0xd6] sm:$0xff]
        %v751 = vld [vmem:[%s368 + $0xde] sm:$0xff]
        %v752 = vld [vmem:[%s368 + $0xe6] sm:$0xff]
        %v753 = vld [vmem:[%s368 + $0xee] sm:$0xff]
        %v754 = vld [vmem:[%s368 + $0xf6] sm:$0xff]
        %v755 = vld [vmem:[%s368 + $0xfe] sm:$0xff]
        %v756 = vld [vmem:[%s368 + $0x106] sm:$0xff]
        %v757 = vld [vmem:[%s368 + $0x10e] sm:$0xff]
        %v758 = vld [vmem:[%s368 + $0x116] sm:$0xff]
        %v759 = vld [vmem:[%s368 + $0x11e] sm:$0xff]
        %v760 = vld [vmem:[%s368 + $0x126] sm:$0xff]
        %v761 = vld [vmem:[%s368 + $0x12e] sm:$0xff]
        %v762 = vld [vmem:[%s368 + $0x136] sm:$0xff]
        %v763 = vld [vmem:[%s368 + $0x13e] sm:$0xff]
        %v764 = vld [vmem:[%s368 + $0x146] sm:$0xf]
        %v765 = vld [vmem:[%s3 + $0x1] sm:$0x1]
        %767 = vset.pattern.permute.xlu0 0
        %768 = vperm.xlu0 %767, %v724
        %v769 = vpop.permute.xlu0 %768
        %772 = vset.pattern.permute.xlu0 0
        %773 = vperm.xlu0 %772, %v725
        %v774 = vpop.permute.xlu0 %773
        %777 = vset.pattern.permute.xlu0 0
        %778 = vperm.xlu0 %777, %v726
        %v779 = vpop.permute.xlu0 %778
        %782 = vset.pattern.permute.xlu0 0
        %783 = vperm.xlu0 %782, %v727
        %v784 = vpop.permute.xlu0 %783
        %787 = vset.pattern.permute.xlu0 0
        %788 = vperm.xlu0 %787, %v728
        %v789 = vpop.permute.xlu0 %788
        %792 = vset.pattern.permute.xlu0 0
        %793 = vperm.xlu0 %792, %v729
        %v794 = vpop.permute.xlu0 %793
        %797 = vset.pattern.permute.xlu0 0
        %798 = vperm.xlu0 %797, %v730
        %v799 = vpop.permute.xlu0 %798
        %802 = vset.pattern.permute.xlu0 0
        %803 = vperm.xlu0 %802, %v731
        %v804 = vpop.permute.xlu0 %803
        %807 = vset.pattern.permute.xlu0 0
        %808 = vperm.xlu0 %807, %v732
        %v809 = vpop.permute.xlu0 %808
        %812 = vset.pattern.permute.xlu0 0
        %813 = vperm.xlu0 %812, %v733
        %v814 = vpop.permute.xlu0 %813
        %817 = vset.pattern.permute.xlu0 0
        %818 = vperm.xlu0 %817, %v734
        %v819 = vpop.permute.xlu0 %818
        %822 = vset.pattern.permute.xlu0 0
        %823 = vperm.xlu0 %822, %v735
        %v824 = vpop.permute.xlu0 %823
        %827 = vset.pattern.permute.xlu0 0
        %828 = vperm.xlu0 %827, %v736
        %v829 = vpop.permute.xlu0 %828
        %832 = vset.pattern.permute.xlu0 0
        %833 = vperm.xlu0 %832, %v737
        %v834 = vpop.permute.xlu0 %833
        %837 = vset.pattern.permute.xlu0 0
        %838 = vperm.xlu0 %837, %v738
        %v839 = vpop.permute.xlu0 %838
        %842 = vset.pattern.permute.xlu0 0
        %843 = vperm.xlu0 %842, %v739
        %v844 = vpop.permute.xlu0 %843
        %847 = vset.pattern.permute.xlu0 0
        %848 = vperm.xlu0 %847, %v740
        %v849 = vpop.permute.xlu0 %848
        %852 = vset.pattern.permute.xlu0 0
        %853 = vperm.xlu0 %852, %v741
        %v854 = vpop.permute.xlu0 %853
        %857 = vset.pattern.permute.xlu0 0
        %858 = vperm.xlu0 %857, %v742
        %v859 = vpop.permute.xlu0 %858
        %862 = vset.pattern.permute.xlu0 0
        %863 = vperm.xlu0 %862, %v743
        %v864 = vpop.permute.xlu0 %863
        %867 = vset.pattern.permute.xlu0 0
        %868 = vperm.xlu0 %867, %v744
        %v869 = vpop.permute.xlu0 %868
        %872 = vset.pattern.permute.xlu0 0
        %873 = vperm.xlu0 %872, %v745
        %v874 = vpop.permute.xlu0 %873
        %877 = vset.pattern.permute.xlu0 0
        %878 = vperm.xlu0 %877, %v746
        %v879 = vpop.permute.xlu0 %878
        %882 = vset.pattern.permute.xlu0 0
        %883 = vperm.xlu0 %882, %v747
        %v884 = vpop.permute.xlu0 %883
        %887 = vset.pattern.permute.xlu0 0
        %888 = vperm.xlu0 %887, %v748
        %v889 = vpop.permute.xlu0 %888
        %892 = vset.pattern.permute.xlu0 0
        %893 = vperm.xlu0 %892, %v749
        %v894 = vpop.permute.xlu0 %893
        %897 = vset.pattern.permute.xlu0 0
        %898 = vperm.xlu0 %897, %v750
        %v899 = vpop.permute.xlu0 %898
        %902 = vset.pattern.permute.xlu0 0
        %903 = vperm.xlu0 %902, %v751
        %v904 = vpop.permute.xlu0 %903
        %907 = vset.pattern.permute.xlu0 0
        %908 = vperm.xlu0 %907, %v752
        %v909 = vpop.permute.xlu0 %908
        %912 = vset.pattern.permute.xlu0 0
        %913 = vperm.xlu0 %912, %v753
        %v914 = vpop.permute.xlu0 %913
        %917 = vset.pattern.permute.xlu0 0
        %918 = vperm.xlu0 %917, %v754
        %v919 = vpop.permute.xlu0 %918
        %922 = vset.pattern.permute.xlu0 0
        %923 = vperm.xlu0 %922, %v755
        %v924 = vpop.permute.xlu0 %923
        %927 = vset.pattern.permute.xlu0 0
        %928 = vperm.xlu0 %927, %v756
        %v929 = vpop.permute.xlu0 %928
        %932 = vset.pattern.permute.xlu0 0
        %933 = vperm.xlu0 %932, %v757
        %v934 = vpop.permute.xlu0 %933
        %937 = vset.pattern.permute.xlu0 0
        %938 = vperm.xlu0 %937, %v758
        %v939 = vpop.permute.xlu0 %938
        %942 = vset.pattern.permute.xlu0 0
        %943 = vperm.xlu0 %942, %v759
        %v944 = vpop.permute.xlu0 %943
        %947 = vset.pattern.permute.xlu0 0
        %948 = vperm.xlu0 %947, %v760
        %v949 = vpop.permute.xlu0 %948
        %952 = vset.pattern.permute.xlu0 0
        %953 = vperm.xlu0 %952, %v761
        %v954 = vpop.permute.xlu0 %953
        %957 = vset.pattern.permute.xlu0 0
        %958 = vperm.xlu0 %957, %v762
        %v959 = vpop.permute.xlu0 %958
        %962 = vset.pattern.permute.xlu0 0
        %963 = vperm.xlu0 %962, %v763
        %v964 = vpop.permute.xlu0 %963
        %967 = vset.pattern.permute.xlu0 0
        %968 = vperm.xlu0 %967, %v764
        %v969 = vpop.permute.xlu0 %968
        %v971 = vlaneseq
        %v972 = vshrl.u32 %v971, 7
        %v973 = vsub.s32 0, %v972
        %v974 = vrot.slane %v765, %v973
        %v975 = vmul.f32 %v769, %v974
        %v976 = vmul.f32 %v774, %v974
        %v977 = vmul.f32 %v779, %v974
        %v978 = vmul.f32 %v784, %v974
        %v979 = vmul.f32 %v789, %v974
        %v980 = vmul.f32 %v794, %v974
        %v981 = vmul.f32 %v799, %v974
        %v982 = vmul.f32 %v804, %v974
        %v983 = vmul.f32 %v809, %v974
        %v984 = vmul.f32 %v814, %v974
        %v985 = vmul.f32 %v819, %v974
        %v986 = vmul.f32 %v824, %v974
        %v987 = vmul.f32 %v829, %v974
        %v988 = vmul.f32 %v834, %v974
        %v989 = vmul.f32 %v839, %v974
        %v990 = vmul.f32 %v844, %v974
        %v991 = vmul.f32 %v849, %v974
        %v992 = vmul.f32 %v854, %v974
        %v993 = vmul.f32 %v859, %v974
        %v994 = vmul.f32 %v864, %v974
        %v995 = vmul.f32 %v869, %v974
        %v996 = vmul.f32 %v874, %v974
        %v997 = vmul.f32 %v879, %v974
        %v998 = vmul.f32 %v884, %v974
        %v999 = vmul.f32 %v889, %v974
        %v1000 = vmul.f32 %v894, %v974
        %v1001 = vmul.f32 %v899, %v974
        %v1002 = vmul.f32 %v904, %v974
        %v1003 = vmul.f32 %v909, %v974
        %v1004 = vmul.f32 %v914, %v974
        %v1005 = vmul.f32 %v919, %v974
        %v1006 = vmul.f32 %v924, %v974
        %v1007 = vmul.f32 %v929, %v974
        %v1008 = vmul.f32 %v934, %v974
        %v1009 = vmul.f32 %v939, %v974
        %v1010 = vmul.f32 %v944, %v974
        %v1011 = vmul.f32 %v949, %v974
        %v1012 = vmul.f32 %v954, %v974
        %v1013 = vmul.f32 %v959, %v974
        %v1014 = vmul.f32 %v964, %v974
        %v1015 = vmul.f32 %v969, %v974
        %v1016 = vadd.f32 %v683, %v975
        %v1017 = vadd.f32 %v684, %v976
        %v1018 = vadd.f32 %v685, %v977
        %v1019 = vadd.f32 %v686, %v978
        %v1020 = vadd.f32 %v687, %v979
        %v1021 = vadd.f32 %v688, %v980
        %v1022 = vadd.f32 %v689, %v981
        %v1023 = vadd.f32 %v690, %v982
        %v1024 = vadd.f32 %v691, %v983
        %v1025 = vadd.f32 %v692, %v984
        %v1026 = vadd.f32 %v693, %v985
        %v1027 = vadd.f32 %v694, %v986
        %v1028 = vadd.f32 %v695, %v987
        %v1029 = vadd.f32 %v696, %v988
        %v1030 = vadd.f32 %v697, %v989
        %v1031 = vadd.f32 %v698, %v990
        %v1032 = vadd.f32 %v699, %v991
        %v1033 = vadd.f32 %v700, %v992
        %v1034 = vadd.f32 %v701, %v993
        %v1035 = vadd.f32 %v702, %v994
        %v1036 = vadd.f32 %v703, %v995
        %v1037 = vadd.f32 %v704, %v996
        %v1038 = vadd.f32 %v705, %v997
        %v1039 = vadd.f32 %v706, %v998
        %v1040 = vadd.f32 %v707, %v999
        %v1041 = vadd.f32 %v708, %v1000
        %v1042 = vadd.f32 %v709, %v1001
        %v1043 = vadd.f32 %v710, %v1002
        %v1044 = vadd.f32 %v711, %v1003
        %v1045 = vadd.f32 %v712, %v1004
        %v1046 = vadd.f32 %v713, %v1005
        %v1047 = vadd.f32 %v714, %v1006
        %v1048 = vadd.f32 %v715, %v1007
        %v1049 = vadd.f32 %v716, %v1008
        %v1050 = vadd.f32 %v717, %v1009
        %v1051 = vadd.f32 %v718, %v1010
        %v1052 = vadd.f32 %v719, %v1011
        %v1053 = vadd.f32 %v720, %v1012
        %v1054 = vadd.f32 %v721, %v1013
        %v1055 = vadd.f32 %v722, %v1014
        %v1056 = vadd.f32 %v723, %v1015
        %v1057 = vld [vmem:[%s368 + $0x7] sm:$0xff]
        %v1058 = vld [vmem:[%s368 + $0xf] sm:$0xff]
        %v1059 = vld [vmem:[%s368 + $0x17] sm:$0xff]
        %v1060 = vld [vmem:[%s368 + $0x1f] sm:$0xff]
        %v1061 = vld [vmem:[%s368 + $0x27] sm:$0xff]
        %v1062 = vld [vmem:[%s368 + $0x2f] sm:$0xff]
        %v1063 = vld [vmem:[%s368 + $0x37] sm:$0xff]
        %v1064 = vld [vmem:[%s368 + $0x3f] sm:$0xff]
        %v1065 = vld [vmem:[%s368 + $0x47] sm:$0xff]
        %v1066 = vld [vmem:[%s368 + $0x4f] sm:$0xff]
        %v1067 = vld [vmem:[%s368 + $0x57] sm:$0xff]
        %v1068 = vld [vmem:[%s368 + $0x5f] sm:$0xff]
        %v1069 = vld [vmem:[%s368 + $0x67] sm:$0xff]
        %v1070 = vld [vmem:[%s368 + $0x6f] sm:$0xff]
        %v1071 = vld [vmem:[%s368 + $0x77] sm:$0xff]
        %v1072 = vld [vmem:[%s368 + $0x7f] sm:$0xff]
        %v1073 = vld [vmem:[%s368 + $0x87] sm:$0xff]
        %v1074 = vld [vmem:[%s368 + $0x8f] sm:$0xff]
        %v1075 = vld [vmem:[%s368 + $0x97] sm:$0xff]
        %v1076 = vld [vmem:[%s368 + $0x9f] sm:$0xff]
        %v1077 = vld [vmem:[%s368 + $0xa7] sm:$0xff]
        %v1078 = vld [vmem:[%s368 + $0xaf] sm:$0xff]
        %v1079 = vld [vmem:[%s368 + $0xb7] sm:$0xff]
        %v1080 = vld [vmem:[%s368 + $0xbf] sm:$0xff]
        %v1081 = vld [vmem:[%s368 + $0xc7] sm:$0xff]
        %v1082 = vld [vmem:[%s368 + $0xcf] sm:$0xff]
        %v1083 = vld [vmem:[%s368 + $0xd7] sm:$0xff]
        %v1084 = vld [vmem:[%s368 + $0xdf] sm:$0xff]
        %v1085 = vld [vmem:[%s368 + $0xe7] sm:$0xff]
        %v1086 = vld [vmem:[%s368 + $0xef] sm:$0xff]
        %v1087 = vld [vmem:[%s368 + $0xf7] sm:$0xff]
        %v1088 = vld [vmem:[%s368 + $0xff] sm:$0xff]
        %v1089 = vld [vmem:[%s368 + $0x107] sm:$0xff]
        %v1090 = vld [vmem:[%s368 + $0x10f] sm:$0xff]
        %v1091 = vld [vmem:[%s368 + $0x117] sm:$0xff]
        %v1092 = vld [vmem:[%s368 + $0x11f] sm:$0xff]
        %v1093 = vld [vmem:[%s368 + $0x127] sm:$0xff]
        %v1094 = vld [vmem:[%s368 + $0x12f] sm:$0xff]
        %v1095 = vld [vmem:[%s368 + $0x137] sm:$0xff]
        %v1096 = vld [vmem:[%s368 + $0x13f] sm:$0xff]
        %v1097 = vld [vmem:[%s368 + $0x147] sm:$0xf]
        %v1098 = vld [vmem:[%s3 + $0x2] sm:$0x1]
        %1100 = vset.pattern.permute.xlu0 0
        %1101 = vperm.xlu0 %1100, %v1057
        %v1102 = vpop.permute.xlu0 %1101
        %1105 = vset.pattern.permute.xlu0 0
        %1106 = vperm.xlu0 %1105, %v1058
        %v1107 = vpop.permute.xlu0 %1106
        %1110 = vset.pattern.permute.xlu0 0
        %1111 = vperm.xlu0 %1110, %v1059
        %v1112 = vpop.permute.xlu0 %1111
        %1115 = vset.pattern.permute.xlu0 0
        %1116 = vperm.xlu0 %1115, %v1060
        %v1117 = vpop.permute.xlu0 %1116
        %1120 = vset.pattern.permute.xlu0 0
        %1121 = vperm.xlu0 %1120, %v1061
        %v1122 = vpop.permute.xlu0 %1121
        %1125 = vset.pattern.permute.xlu0 0
        %1126 = vperm.xlu0 %1125, %v1062
        %v1127 = vpop.permute.xlu0 %1126
        %1130 = vset.pattern.permute.xlu0 0
        %1131 = vperm.xlu0 %1130, %v1063
        %v1132 = vpop.permute.xlu0 %1131
        %1135 = vset.pattern.permute.xlu0 0
        %1136 = vperm.xlu0 %1135, %v1064
        %v1137 = vpop.permute.xlu0 %1136
        %1140 = vset.pattern.permute.xlu0 0
        %1141 = vperm.xlu0 %1140, %v1065
        %v1142 = vpop.permute.xlu0 %1141
        %1145 = vset.pattern.permute.xlu0 0
        %1146 = vperm.xlu0 %1145, %v1066
        %v1147 = vpop.permute.xlu0 %1146
        %1150 = vset.pattern.permute.xlu0 0
        %1151 = vperm.xlu0 %1150, %v1067
        %v1152 = vpop.permute.xlu0 %1151
        %1155 = vset.pattern.permute.xlu0 0
        %1156 = vperm.xlu0 %1155, %v1068
        %v1157 = vpop.permute.xlu0 %1156
        %1160 = vset.pattern.permute.xlu0 0
        %1161 = vperm.xlu0 %1160, %v1069
        %v1162 = vpop.permute.xlu0 %1161
        %1165 = vset.pattern.permute.xlu0 0
        %1166 = vperm.xlu0 %1165, %v1070
        %v1167 = vpop.permute.xlu0 %1166
        %1170 = vset.pattern.permute.xlu0 0
        %1171 = vperm.xlu0 %1170, %v1071
        %v1172 = vpop.permute.xlu0 %1171
        %1175 = vset.pattern.permute.xlu0 0
        %1176 = vperm.xlu0 %1175, %v1072
        %v1177 = vpop.permute.xlu0 %1176
        %1180 = vset.pattern.permute.xlu0 0
        %1181 = vperm.xlu0 %1180, %v1073
        %v1182 = vpop.permute.xlu0 %1181
        %1185 = vset.pattern.permute.xlu0 0
        %1186 = vperm.xlu0 %1185, %v1074
        %v1187 = vpop.permute.xlu0 %1186
        %1190 = vset.pattern.permute.xlu0 0
        %1191 = vperm.xlu0 %1190, %v1075
        %v1192 = vpop.permute.xlu0 %1191
        %1195 = vset.pattern.permute.xlu0 0
        %1196 = vperm.xlu0 %1195, %v1076
        %v1197 = vpop.permute.xlu0 %1196
        %1200 = vset.pattern.permute.xlu0 0
        %1201 = vperm.xlu0 %1200, %v1077
        %v1202 = vpop.permute.xlu0 %1201
        %1205 = vset.pattern.permute.xlu0 0
        %1206 = vperm.xlu0 %1205, %v1078
        %v1207 = vpop.permute.xlu0 %1206
        %1210 = vset.pattern.permute.xlu0 0
        %1211 = vperm.xlu0 %1210, %v1079
        %v1212 = vpop.permute.xlu0 %1211
        %1215 = vset.pattern.permute.xlu0 0
        %1216 = vperm.xlu0 %1215, %v1080
        %v1217 = vpop.permute.xlu0 %1216
        %1220 = vset.pattern.permute.xlu0 0
        %1221 = vperm.xlu0 %1220, %v1081
        %v1222 = vpop.permute.xlu0 %1221
        %1225 = vset.pattern.permute.xlu0 0
        %1226 = vperm.xlu0 %1225, %v1082
        %v1227 = vpop.permute.xlu0 %1226
        %1230 = vset.pattern.permute.xlu0 0
        %1231 = vperm.xlu0 %1230, %v1083
        %v1232 = vpop.permute.xlu0 %1231
        %1235 = vset.pattern.permute.xlu0 0
        %1236 = vperm.xlu0 %1235, %v1084
        %v1237 = vpop.permute.xlu0 %1236
        %1240 = vset.pattern.permute.xlu0 0
        %1241 = vperm.xlu0 %1240, %v1085
        %v1242 = vpop.permute.xlu0 %1241
        %1245 = vset.pattern.permute.xlu0 0
        %1246 = vperm.xlu0 %1245, %v1086
        %v1247 = vpop.permute.xlu0 %1246
        %1250 = vset.pattern.permute.xlu0 0
        %1251 = vperm.xlu0 %1250, %v1087
        %v1252 = vpop.permute.xlu0 %1251
        %1255 = vset.pattern.permute.xlu0 0
        %1256 = vperm.xlu0 %1255, %v1088
        %v1257 = vpop.permute.xlu0 %1256
        %1260 = vset.pattern.permute.xlu0 0
        %1261 = vperm.xlu0 %1260, %v1089
        %v1262 = vpop.permute.xlu0 %1261
        %1265 = vset.pattern.permute.xlu0 0
        %1266 = vperm.xlu0 %1265, %v1090
        %v1267 = vpop.permute.xlu0 %1266
        %1270 = vset.pattern.permute.xlu0 0
        %1271 = vperm.xlu0 %1270, %v1091
        %v1272 = vpop.permute.xlu0 %1271
        %1275 = vset.pattern.permute.xlu0 0
        %1276 = vperm.xlu0 %1275, %v1092
        %v1277 = vpop.permute.xlu0 %1276
        %1280 = vset.pattern.permute.xlu0 0
        %1281 = vperm.xlu0 %1280, %v1093
        %v1282 = vpop.permute.xlu0 %1281
        %1285 = vset.pattern.permute.xlu0 0
        %1286 = vperm.xlu0 %1285, %v1094
        %v1287 = vpop.permute.xlu0 %1286
        %1290 = vset.pattern.permute.xlu0 0
        %1291 = vperm.xlu0 %1290, %v1095
        %v1292 = vpop.permute.xlu0 %1291
        %1295 = vset.pattern.permute.xlu0 0
        %1296 = vperm.xlu0 %1295, %v1096
        %v1297 = vpop.permute.xlu0 %1296
        %1300 = vset.pattern.permute.xlu0 0
        %1301 = vperm.xlu0 %1300, %v1097
        %v1302 = vpop.permute.xlu0 %1301
        %v1304 = vlaneseq
        %v1305 = vshrl.u32 %v1304, 7
        %v1306 = vsub.s32 0, %v1305
        %v1307 = vrot.slane %v1098, %v1306
        %v1308 = vmul.f32 %v1102, %v1307
        %v1309 = vmul.f32 %v1107, %v1307
        %v1310 = vmul.f32 %v1112, %v1307
        %v1311 = vmul.f32 %v1117, %v1307
        %v1312 = vmul.f32 %v1122, %v1307
        %v1313 = vmul.f32 %v1127, %v1307
        %v1314 = vmul.f32 %v1132, %v1307
        %v1315 = vmul.f32 %v1137, %v1307
        %v1316 = vmul.f32 %v1142, %v1307
        %v1317 = vmul.f32 %v1147, %v1307
        %v1318 = vmul.f32 %v1152, %v1307
        %v1319 = vmul.f32 %v1157, %v1307
        %v1320 = vmul.f32 %v1162, %v1307
        %v1321 = vmul.f32 %v1167, %v1307
        %v1322 = vmul.f32 %v1172, %v1307
        %v1323 = vmul.f32 %v1177, %v1307
        %v1324 = vmul.f32 %v1182, %v1307
        %v1325 = vmul.f32 %v1187, %v1307
        %v1326 = vmul.f32 %v1192, %v1307
        %v1327 = vmul.f32 %v1197, %v1307
        %v1328 = vmul.f32 %v1202, %v1307
        %v1329 = vmul.f32 %v1207, %v1307
        %v1330 = vmul.f32 %v1212, %v1307
        %v1331 = vmul.f32 %v1217, %v1307
        %v1332 = vmul.f32 %v1222, %v1307
        %v1333 = vmul.f32 %v1227, %v1307
        %v1334 = vmul.f32 %v1232, %v1307
        %v1335 = vmul.f32 %v1237, %v1307
        %v1336 = vmul.f32 %v1242, %v1307
        %v1337 = vmul.f32 %v1247, %v1307
        %v1338 = vmul.f32 %v1252, %v1307
        %v1339 = vmul.f32 %v1257, %v1307
        %v1340 = vmul.f32 %v1262, %v1307
        %v1341 = vmul.f32 %v1267, %v1307
        %v1342 = vmul.f32 %v1272, %v1307
        %v1343 = vmul.f32 %v1277, %v1307
        %v1344 = vmul.f32 %v1282, %v1307
        %v1345 = vmul.f32 %v1287, %v1307
        %v1346 = vmul.f32 %v1292, %v1307
        %v1347 = vmul.f32 %v1297, %v1307
        %v1348 = vmul.f32 %v1302, %v1307
        %v1349 = vadd.f32 %v1016, %v1308
        %v1350 = vadd.f32 %v1017, %v1309
        %v1351 = vadd.f32 %v1018, %v1310
        %v1352 = vadd.f32 %v1019, %v1311
        %v1353 = vadd.f32 %v1020, %v1312
        %v1354 = vadd.f32 %v1021, %v1313
        %v1355 = vadd.f32 %v1022, %v1314
        %v1356 = vadd.f32 %v1023, %v1315
        %v1357 = vadd.f32 %v1024, %v1316
        %v1358 = vadd.f32 %v1025, %v1317
        %v1359 = vadd.f32 %v1026, %v1318
        %v1360 = vadd.f32 %v1027, %v1319
        %v1361 = vadd.f32 %v1028, %v1320
        %v1362 = vadd.f32 %v1029, %v1321
        %v1363 = vadd.f32 %v1030, %v1322
        %v1364 = vadd.f32 %v1031, %v1323
        %v1365 = vadd.f32 %v1032, %v1324
        %v1366 = vadd.f32 %v1033, %v1325
        %v1367 = vadd.f32 %v1034, %v1326
        %v1368 = vadd.f32 %v1035, %v1327
        %v1369 = vadd.f32 %v1036, %v1328
        %v1370 = vadd.f32 %v1037, %v1329
        %v1371 = vadd.f32 %v1038, %v1330
        %v1372 = vadd.f32 %v1039, %v1331
        %v1373 = vadd.f32 %v1040, %v1332
        %v1374 = vadd.f32 %v1041, %v1333
        %v1375 = vadd.f32 %v1042, %v1334
        %v1376 = vadd.f32 %v1043, %v1335
        %v1377 = vadd.f32 %v1044, %v1336
        %v1378 = vadd.f32 %v1045, %v1337
        %v1379 = vadd.f32 %v1046, %v1338
        %v1380 = vadd.f32 %v1047, %v1339
        %v1381 = vadd.f32 %v1048, %v1340
        %v1382 = vadd.f32 %v1049, %v1341
        %v1383 = vadd.f32 %v1050, %v1342
        %v1384 = vadd.f32 %v1051, %v1343
        %v1385 = vadd.f32 %v1052, %v1344
        %v1386 = vadd.f32 %v1053, %v1345
        %v1387 = vadd.f32 %v1054, %v1346
        %v1388 = vadd.f32 %v1055, %v1347
        %v1389 = vadd.f32 %v1056, %v1348
        %v1390 = vld [vmem:[%s368 + $0x17] sm:$0xff]
        %v1391 = vld [vmem:[%s368 + $0x1f] sm:$0xff]
        %v1392 = vld [vmem:[%s368 + $0x27] sm:$0xff]
        %v1393 = vld [vmem:[%s368 + $0x2f] sm:$0xff]
        %v1394 = vld [vmem:[%s368 + $0x37] sm:$0xff]
        %v1395 = vld [vmem:[%s368 + $0x3f] sm:$0xff]
        %v1396 = vld [vmem:[%s368 + $0x47] sm:$0xff]
        %v1397 = vld [vmem:[%s368 + $0x4f] sm:$0xff]
        %v1398 = vld [vmem:[%s368 + $0x57] sm:$0xff]
        %v1399 = vld [vmem:[%s368 + $0x5f] sm:$0xff]
        %v1400 = vld [vmem:[%s368 + $0x67] sm:$0xff]
        %v1401 = vld [vmem:[%s368 + $0x6f] sm:$0xff]
        %v1402 = vld [vmem:[%s368 + $0x77] sm:$0xff]
        %v1403 = vld [vmem:[%s368 + $0x7f] sm:$0xff]
        %v1404 = vld [vmem:[%s368 + $0x87] sm:$0xff]
        %v1405 = vld [vmem:[%s368 + $0x8f] sm:$0xff]
        %v1406 = vld [vmem:[%s368 + $0x97] sm:$0xff]
        %v1407 = vld [vmem:[%s368 + $0x9f] sm:$0xff]
        %v1408 = vld [vmem:[%s368 + $0xa7] sm:$0xff]
        %v1409 = vld [vmem:[%s368 + $0xaf] sm:$0xff]
        %v1410 = vld [vmem:[%s368 + $0xb7] sm:$0xff]
        %v1411 = vld [vmem:[%s368 + $0xbf] sm:$0xff]
        %v1412 = vld [vmem:[%s368 + $0xc7] sm:$0xff]
        %v1413 = vld [vmem:[%s368 + $0xcf] sm:$0xff]
        %v1414 = vld [vmem:[%s368 + $0xd7] sm:$0xff]
        %v1415 = vld [vmem:[%s368 + $0xdf] sm:$0xff]
        %v1416 = vld [vmem:[%s368 + $0xe7] sm:$0xff]
        %v1417 = vld [vmem:[%s368 + $0xef] sm:$0xff]
        %v1418 = vld [vmem:[%s368 + $0xf7] sm:$0xff]
        %v1419 = vld [vmem:[%s368 + $0xff] sm:$0xff]
        %v1420 = vld [vmem:[%s368 + $0x107] sm:$0xff]
        %v1421 = vld [vmem:[%s368 + $0x10f] sm:$0xff]
        %v1422 = vld [vmem:[%s368 + $0x117] sm:$0xff]
        %v1423 = vld [vmem:[%s368 + $0x11f] sm:$0xff]
        %v1424 = vld [vmem:[%s368 + $0x127] sm:$0xff]
        %v1425 = vld [vmem:[%s368 + $0x12f] sm:$0xff]
        %v1426 = vld [vmem:[%s368 + $0x137] sm:$0xff]
        %v1427 = vld [vmem:[%s368 + $0x13f] sm:$0xff]
        %v1428 = vld [vmem:[%s368 + $0x147] sm:$0xff]
        %v1429 = vld [vmem:[%s368 + $0x14f] sm:$0xff]
        %v1430 = vld [vmem:[%s368 + $0x157] sm:$0xf]
        %v1431 = vld [vmem:[%s3 + $0x3] sm:$0x1]
        %1433 = vset.pattern.permute.xlu0 0
        %1434 = vperm.xlu0 %1433, %v1390
        %v1435 = vpop.permute.xlu0 %1434
        %1438 = vset.pattern.permute.xlu0 0
        %1439 = vperm.xlu0 %1438, %v1391
        %v1440 = vpop.permute.xlu0 %1439
        %1443 = vset.pattern.permute.xlu0 0
        %1444 = vperm.xlu0 %1443, %v1392
        %v1445 = vpop.permute.xlu0 %1444
        %1448 = vset.pattern.permute.xlu0 0
        %1449 = vperm.xlu0 %1448, %v1393
        %v1450 = vpop.permute.xlu0 %1449
        %1453 = vset.pattern.permute.xlu0 0
        %1454 = vperm.xlu0 %1453, %v1394
        %v1455 = vpop.permute.xlu0 %1454
        %1458 = vset.pattern.permute.xlu0 0
        %1459 = vperm.xlu0 %1458, %v1395
        %v1460 = vpop.permute.xlu0 %1459
        %1463 = vset.pattern.permute.xlu0 0
        %1464 = vperm.xlu0 %1463, %v1396
        %v1465 = vpop.permute.xlu0 %1464
        %1468 = vset.pattern.permute.xlu0 0
        %1469 = vperm.xlu0 %1468, %v1397
        %v1470 = vpop.permute.xlu0 %1469
        %1473 = vset.pattern.permute.xlu0 0
        %1474 = vperm.xlu0 %1473, %v1398
        %v1475 = vpop.permute.xlu0 %1474
        %1478 = vset.pattern.permute.xlu0 0
        %1479 = vperm.xlu0 %1478, %v1399
        %v1480 = vpop.permute.xlu0 %1479
        %1483 = vset.pattern.permute.xlu0 0
        %1484 = vperm.xlu0 %1483, %v1400
        %v1485 = vpop.permute.xlu0 %1484
        %1488 = vset.pattern.permute.xlu0 0
        %1489 = vperm.xlu0 %1488, %v1401
        %v1490 = vpop.permute.xlu0 %1489
        %1493 = vset.pattern.permute.xlu0 0
        %1494 = vperm.xlu0 %1493, %v1402
        %v1495 = vpop.permute.xlu0 %1494
        %1498 = vset.pattern.permute.xlu0 0
        %1499 = vperm.xlu0 %1498, %v1403
        %v1500 = vpop.permute.xlu0 %1499
        %1503 = vset.pattern.permute.xlu0 0
        %1504 = vperm.xlu0 %1503, %v1404
        %v1505 = vpop.permute.xlu0 %1504
        %1508 = vset.pattern.permute.xlu0 0
        %1509 = vperm.xlu0 %1508, %v1405
        %v1510 = vpop.permute.xlu0 %1509
        %1513 = vset.pattern.permute.xlu0 0
        %1514 = vperm.xlu0 %1513, %v1406
        %v1515 = vpop.permute.xlu0 %1514
        %1518 = vset.pattern.permute.xlu0 0
        %1519 = vperm.xlu0 %1518, %v1407
        %v1520 = vpop.permute.xlu0 %1519
        %1523 = vset.pattern.permute.xlu0 0
        %1524 = vperm.xlu0 %1523, %v1408
        %v1525 = vpop.permute.xlu0 %1524
        %1528 = vset.pattern.permute.xlu0 0
        %1529 = vperm.xlu0 %1528, %v1409
        %v1530 = vpop.permute.xlu0 %1529
        %1533 = vset.pattern.permute.xlu0 0
        %1534 = vperm.xlu0 %1533, %v1410
        %v1535 = vpop.permute.xlu0 %1534
        %1538 = vset.pattern.permute.xlu0 0
        %1539 = vperm.xlu0 %1538, %v1411
        %v1540 = vpop.permute.xlu0 %1539
        %1543 = vset.pattern.permute.xlu0 0
        %1544 = vperm.xlu0 %1543, %v1412
        %v1545 = vpop.permute.xlu0 %1544
        %1548 = vset.pattern.permute.xlu0 0
        %1549 = vperm.xlu0 %1548, %v1413
        %v1550 = vpop.permute.xlu0 %1549
        %1553 = vset.pattern.permute.xlu0 0
        %1554 = vperm.xlu0 %1553, %v1414
        %v1555 = vpop.permute.xlu0 %1554
        %1558 = vset.pattern.permute.xlu0 0
        %1559 = vperm.xlu0 %1558, %v1415
        %v1560 = vpop.permute.xlu0 %1559
        %1563 = vset.pattern.permute.xlu0 0
        %1564 = vperm.xlu0 %1563, %v1416
        %v1565 = vpop.permute.xlu0 %1564
        %1568 = vset.pattern.permute.xlu0 0
        %1569 = vperm.xlu0 %1568, %v1417
        %v1570 = vpop.permute.xlu0 %1569
        %1573 = vset.pattern.permute.xlu0 0
        %1574 = vperm.xlu0 %1573, %v1418
        %v1575 = vpop.permute.xlu0 %1574
        %1578 = vset.pattern.permute.xlu0 0
        %1579 = vperm.xlu0 %1578, %v1419
        %v1580 = vpop.permute.xlu0 %1579
        %1583 = vset.pattern.permute.xlu0 0
        %1584 = vperm.xlu0 %1583, %v1420
        %v1585 = vpop.permute.xlu0 %1584
        %1588 = vset.pattern.permute.xlu0 0
        %1589 = vperm.xlu0 %1588, %v1421
        %v1590 = vpop.permute.xlu0 %1589
        %1593 = vset.pattern.permute.xlu0 0
        %1594 = vperm.xlu0 %1593, %v1422
        %v1595 = vpop.permute.xlu0 %1594
        %1598 = vset.pattern.permute.xlu0 0
        %1599 = vperm.xlu0 %1598, %v1423
        %v1600 = vpop.permute.xlu0 %1599
        %1603 = vset.pattern.permute.xlu0 0
        %1604 = vperm.xlu0 %1603, %v1424
        %v1605 = vpop.permute.xlu0 %1604
        %1608 = vset.pattern.permute.xlu0 0
        %1609 = vperm.xlu0 %1608, %v1425
        %v1610 = vpop.permute.xlu0 %1609
        %1613 = vset.pattern.permute.xlu0 0
        %1614 = vperm.xlu0 %1613, %v1426
        %v1615 = vpop.permute.xlu0 %1614
        %1618 = vset.pattern.permute.xlu0 0
        %1619 = vperm.xlu0 %1618, %v1427
        %v1620 = vpop.permute.xlu0 %1619
        %1623 = vset.pattern.permute.xlu0 0
        %1624 = vperm.xlu0 %1623, %v1428
        %v1625 = vpop.permute.xlu0 %1624
        %1628 = vset.pattern.permute.xlu0 0
        %1629 = vperm.xlu0 %1628, %v1429
        %v1630 = vpop.permute.xlu0 %1629
        %1633 = vset.pattern.permute.xlu0 0
        %1634 = vperm.xlu0 %1633, %v1430
        %v1635 = vpop.permute.xlu0 %1634
        %v1637 = vlaneseq
        %v1638 = vshrl.u32 %v1637, 7
        %v1639 = vsub.s32 0, %v1638
        %v1640 = vrot.slane %v1431, %v1639
        %v1641 = vmul.f32 %v1435, %v1640
        %v1642 = vmul.f32 %v1440, %v1640
        %v1643 = vmul.f32 %v1445, %v1640
        %v1644 = vmul.f32 %v1450, %v1640
        %v1645 = vmul.f32 %v1455, %v1640
        %v1646 = vmul.f32 %v1460, %v1640
        %v1647 = vmul.f32 %v1465, %v1640
        %v1648 = vmul.f32 %v1470, %v1640
        %v1649 = vmul.f32 %v1475, %v1640
        %v1650 = vmul.f32 %v1480, %v1640
        %v1651 = vmul.f32 %v1485, %v1640
        %v1652 = vmul.f32 %v1490, %v1640
        %v1653 = vmul.f32 %v1495, %v1640
        %v1654 = vmul.f32 %v1500, %v1640
        %v1655 = vmul.f32 %v1505, %v1640
        %v1656 = vmul.f32 %v1510, %v1640
        %v1657 = vmul.f32 %v1515, %v1640
        %v1658 = vmul.f32 %v1520, %v1640
        %v1659 = vmul.f32 %v1525, %v1640
        %v1660 = vmul.f32 %v1530, %v1640
        %v1661 = vmul.f32 %v1535, %v1640
        %v1662 = vmul.f32 %v1540, %v1640
        %v1663 = vmul.f32 %v1545, %v1640
        %v1664 = vmul.f32 %v1550, %v1640
        %v1665 = vmul.f32 %v1555, %v1640
        %v1666 = vmul.f32 %v1560, %v1640
        %v1667 = vmul.f32 %v1565, %v1640
        %v1668 = vmul.f32 %v1570, %v1640
        %v1669 = vmul.f32 %v1575, %v1640
        %v1670 = vmul.f32 %v1580, %v1640
        %v1671 = vmul.f32 %v1585, %v1640
        %v1672 = vmul.f32 %v1590, %v1640
        %v1673 = vmul.f32 %v1595, %v1640
        %v1674 = vmul.f32 %v1600, %v1640
        %v1675 = vmul.f32 %v1605, %v1640
        %v1676 = vmul.f32 %v1610, %v1640
        %v1677 = vmul.f32 %v1615, %v1640
        %v1678 = vmul.f32 %v1620, %v1640
        %v1679 = vmul.f32 %v1625, %v1640
        %v1680 = vmul.f32 %v1630, %v1640
        %v1681 = vmul.f32 %v1635, %v1640
        %v1682 = vadd.f32 %v1349, %v1641
        %v1683 = vadd.f32 %v1350, %v1642
        %v1684 = vadd.f32 %v1351, %v1643
        %v1685 = vadd.f32 %v1352, %v1644
        %v1686 = vadd.f32 %v1353, %v1645
        %v1687 = vadd.f32 %v1354, %v1646
        %v1688 = vadd.f32 %v1355, %v1647
        %v1689 = vadd.f32 %v1356, %v1648
        %v1690 = vadd.f32 %v1357, %v1649
        %v1691 = vadd.f32 %v1358, %v1650
        %v1692 = vadd.f32 %v1359, %v1651
        %v1693 = vadd.f32 %v1360, %v1652
        %v1694 = vadd.f32 %v1361, %v1653
        %v1695 = vadd.f32 %v1362, %v1654
        %v1696 = vadd.f32 %v1363, %v1655
        %v1697 = vadd.f32 %v1364, %v1656
        %v1698 = vadd.f32 %v1365, %v1657
        %v1699 = vadd.f32 %v1366, %v1658
        %v1700 = vadd.f32 %v1367, %v1659
        %v1701 = vadd.f32 %v1368, %v1660
        %v1702 = vadd.f32 %v1369, %v1661
        %v1703 = vadd.f32 %v1370, %v1662
        %v1704 = vadd.f32 %v1371, %v1663
        %v1705 = vadd.f32 %v1372, %v1664
        %v1706 = vadd.f32 %v1373, %v1665
        %v1707 = vadd.f32 %v1374, %v1666
        %v1708 = vadd.f32 %v1375, %v1667
        %v1709 = vadd.f32 %v1376, %v1668
        %v1710 = vadd.f32 %v1377, %v1669
        %v1711 = vadd.f32 %v1378, %v1670
        %v1712 = vadd.f32 %v1379, %v1671
        %v1713 = vadd.f32 %v1380, %v1672
        %v1714 = vadd.f32 %v1381, %v1673
        %v1715 = vadd.f32 %v1382, %v1674
        %v1716 = vadd.f32 %v1383, %v1675
        %v1717 = vadd.f32 %v1384, %v1676
        %v1718 = vadd.f32 %v1385, %v1677
        %v1719 = vadd.f32 %v1386, %v1678
        %v1720 = vadd.f32 %v1387, %v1679
        %v1721 = vadd.f32 %v1388, %v1680
        %v1722 = vadd.f32 %v1389, %v1681
        %v1723 = vld [vmem:[%s368 + $0x18] sm:$0xff]
        %v1724 = vld [vmem:[%s368 + $0x20] sm:$0xff]
        %v1725 = vld [vmem:[%s368 + $0x28] sm:$0xff]
        %v1726 = vld [vmem:[%s368 + $0x30] sm:$0xff]
        %v1727 = vld [vmem:[%s368 + $0x38] sm:$0xff]
        %v1728 = vld [vmem:[%s368 + $0x40] sm:$0xff]
        %v1729 = vld [vmem:[%s368 + $0x48] sm:$0xff]
        %v1730 = vld [vmem:[%s368 + $0x50] sm:$0xff]
        %v1731 = vld [vmem:[%s368 + $0x58] sm:$0xff]
        %v1732 = vld [vmem:[%s368 + $0x60] sm:$0xff]
        %v1733 = vld [vmem:[%s368 + $0x68] sm:$0xff]
        %v1734 = vld [vmem:[%s368 + $0x70] sm:$0xff]
        %v1735 = vld [vmem:[%s368 + $0x78] sm:$0xff]
        %v1736 = vld [vmem:[%s368 + $0x80] sm:$0xff]
        %v1737 = vld [vmem:[%s368 + $0x88] sm:$0xff]
        %v1738 = vld [vmem:[%s368 + $0x90] sm:$0xff]
        %v1739 = vld [vmem:[%s368 + $0x98] sm:$0xff]
        %v1740 = vld [vmem:[%s368 + $0xa0] sm:$0xff]
        %v1741 = vld [vmem:[%s368 + $0xa8] sm:$0xff]
        %v1742 = vld [vmem:[%s368 + $0xb0] sm:$0xff]
        %v1743 = vld [vmem:[%s368 + $0xb8] sm:$0xff]
        %v1744 = vld [vmem:[%s368 + $0xc0] sm:$0xff]
        %v1745 = vld [vmem:[%s368 + $0xc8] sm:$0xff]
        %v1746 = vld [vmem:[%s368 + $0xd0] sm:$0xff]
        %v1747 = vld [vmem:[%s368 + $0xd8] sm:$0xff]
        %v1748 = vld [vmem:[%s368 + $0xe0] sm:$0xff]
        %v1749 = vld [vmem:[%s368 + $0xe8] sm:$0xff]
        %v1750 = vld [vmem:[%s368 + $0xf0] sm:$0xff]
        %v1751 = vld [vmem:[%s368 + $0xf8] sm:$0xff]
        %v1752 = vld [vmem:[%s368 + $0x100] sm:$0xff]
        %v1753 = vld [vmem:[%s368 + $0x108] sm:$0xff]
        %v1754 = vld [vmem:[%s368 + $0x110] sm:$0xff]
        %v1755 = vld [vmem:[%s368 + $0x118] sm:$0xff]
        %v1756 = vld [vmem:[%s368 + $0x120] sm:$0xff]
        %v1757 = vld [vmem:[%s368 + $0x128] sm:$0xff]
        %v1758 = vld [vmem:[%s368 + $0x130] sm:$0xff]
        %v1759 = vld [vmem:[%s368 + $0x138] sm:$0xff]
        %v1760 = vld [vmem:[%s368 + $0x140] sm:$0xff]
        %v1761 = vld [vmem:[%s368 + $0x148] sm:$0xff]
        %v1762 = vld [vmem:[%s368 + $0x150] sm:$0xff]
        %v1763 = vld [vmem:[%s368 + $0x158] sm:$0xf]
        %v1764 = vld [vmem:[%s3 + $0x4] sm:$0x1]
        %1766 = vset.pattern.permute.xlu0 0
        %1767 = vperm.xlu0 %1766, %v1723
        %v1768 = vpop.permute.xlu0 %1767
        %1771 = vset.pattern.permute.xlu0 0
        %1772 = vperm.xlu0 %1771, %v1724
        %v1773 = vpop.permute.xlu0 %1772
        %1776 = vset.pattern.permute.xlu0 0
        %1777 = vperm.xlu0 %1776, %v1725
        %v1778 = vpop.permute.xlu0 %1777
        %1781 = vset.pattern.permute.xlu0 0
        %1782 = vperm.xlu0 %1781, %v1726
        %v1783 = vpop.permute.xlu0 %1782
        %1786 = vset.pattern.permute.xlu0 0
        %1787 = vperm.xlu0 %1786, %v1727
        %v1788 = vpop.permute.xlu0 %1787
        %1791 = vset.pattern.permute.xlu0 0
        %1792 = vperm.xlu0 %1791, %v1728
        %v1793 = vpop.permute.xlu0 %1792
        %1796 = vset.pattern.permute.xlu0 0
        %1797 = vperm.xlu0 %1796, %v1729
        %v1798 = vpop.permute.xlu0 %1797
        %1801 = vset.pattern.permute.xlu0 0
        %1802 = vperm.xlu0 %1801, %v1730
        %v1803 = vpop.permute.xlu0 %1802
        %1806 = vset.pattern.permute.xlu0 0
        %1807 = vperm.xlu0 %1806, %v1731
        %v1808 = vpop.permute.xlu0 %1807
        %1811 = vset.pattern.permute.xlu0 0
        %1812 = vperm.xlu0 %1811, %v1732
        %v1813 = vpop.permute.xlu0 %1812
        %1816 = vset.pattern.permute.xlu0 0
        %1817 = vperm.xlu0 %1816, %v1733
        %v1818 = vpop.permute.xlu0 %1817
        %1821 = vset.pattern.permute.xlu0 0
        %1822 = vperm.xlu0 %1821, %v1734
        %v1823 = vpop.permute.xlu0 %1822
        %1826 = vset.pattern.permute.xlu0 0
        %1827 = vperm.xlu0 %1826, %v1735
        %v1828 = vpop.permute.xlu0 %1827
        %1831 = vset.pattern.permute.xlu0 0
        %1832 = vperm.xlu0 %1831, %v1736
        %v1833 = vpop.permute.xlu0 %1832
        %1836 = vset.pattern.permute.xlu0 0
        %1837 = vperm.xlu0 %1836, %v1737
        %v1838 = vpop.permute.xlu0 %1837
        %1841 = vset.pattern.permute.xlu0 0
        %1842 = vperm.xlu0 %1841, %v1738
        %v1843 = vpop.permute.xlu0 %1842
        %1846 = vset.pattern.permute.xlu0 0
        %1847 = vperm.xlu0 %1846, %v1739
        %v1848 = vpop.permute.xlu0 %1847
        %1851 = vset.pattern.permute.xlu0 0
        %1852 = vperm.xlu0 %1851, %v1740
        %v1853 = vpop.permute.xlu0 %1852
        %1856 = vset.pattern.permute.xlu0 0
        %1857 = vperm.xlu0 %1856, %v1741
        %v1858 = vpop.permute.xlu0 %1857
        %1861 = vset.pattern.permute.xlu0 0
        %1862 = vperm.xlu0 %1861, %v1742
        %v1863 = vpop.permute.xlu0 %1862
        %1866 = vset.pattern.permute.xlu0 0
        %1867 = vperm.xlu0 %1866, %v1743
        %v1868 = vpop.permute.xlu0 %1867
        %1871 = vset.pattern.permute.xlu0 0
        %1872 = vperm.xlu0 %1871, %v1744
        %v1873 = vpop.permute.xlu0 %1872
        %1876 = vset.pattern.permute.xlu0 0
        %1877 = vperm.xlu0 %1876, %v1745
        %v1878 = vpop.permute.xlu0 %1877
        %1881 = vset.pattern.permute.xlu0 0
        %1882 = vperm.xlu0 %1881, %v1746
        %v1883 = vpop.permute.xlu0 %1882
        %1886 = vset.pattern.permute.xlu0 0
        %1887 = vperm.xlu0 %1886, %v1747
        %v1888 = vpop.permute.xlu0 %1887
        %1891 = vset.pattern.permute.xlu0 0
        %1892 = vperm.xlu0 %1891, %v1748
        %v1893 = vpop.permute.xlu0 %1892
        %1896 = vset.pattern.permute.xlu0 0
        %1897 = vperm.xlu0 %1896, %v1749
        %v1898 = vpop.permute.xlu0 %1897
        %1901 = vset.pattern.permute.xlu0 0
        %1902 = vperm.xlu0 %1901, %v1750
        %v1903 = vpop.permute.xlu0 %1902
        %1906 = vset.pattern.permute.xlu0 0
        %1907 = vperm.xlu0 %1906, %v1751
        %v1908 = vpop.permute.xlu0 %1907
        %1911 = vset.pattern.permute.xlu0 0
        %1912 = vperm.xlu0 %1911, %v1752
        %v1913 = vpop.permute.xlu0 %1912
        %1916 = vset.pattern.permute.xlu0 0
        %1917 = vperm.xlu0 %1916, %v1753
        %v1918 = vpop.permute.xlu0 %1917
        %1921 = vset.pattern.permute.xlu0 0
        %1922 = vperm.xlu0 %1921, %v1754
        %v1923 = vpop.permute.xlu0 %1922
        %1926 = vset.pattern.permute.xlu0 0
        %1927 = vperm.xlu0 %1926, %v1755
        %v1928 = vpop.permute.xlu0 %1927
        %1931 = vset.pattern.permute.xlu0 0
        %1932 = vperm.xlu0 %1931, %v1756
        %v1933 = vpop.permute.xlu0 %1932
        %1936 = vset.pattern.permute.xlu0 0
        %1937 = vperm.xlu0 %1936, %v1757
        %v1938 = vpop.permute.xlu0 %1937
        %1941 = vset.pattern.permute.xlu0 0
        %1942 = vperm.xlu0 %1941, %v1758
        %v1943 = vpop.permute.xlu0 %1942
        %1946 = vset.pattern.permute.xlu0 0
        %1947 = vperm.xlu0 %1946, %v1759
        %v1948 = vpop.permute.xlu0 %1947
        %1951 = vset.pattern.permute.xlu0 0
        %1952 = vperm.xlu0 %1951, %v1760
        %v1953 = vpop.permute.xlu0 %1952
        %1956 = vset.pattern.permute.xlu0 0
        %1957 = vperm.xlu0 %1956, %v1761
        %v1958 = vpop.permute.xlu0 %1957
        %1961 = vset.pattern.permute.xlu0 0
        %1962 = vperm.xlu0 %1961, %v1762
        %v1963 = vpop.permute.xlu0 %1962
        %1966 = vset.pattern.permute.xlu0 0
        %1967 = vperm.xlu0 %1966, %v1763
        %v1968 = vpop.permute.xlu0 %1967
        %v1970 = vlaneseq
        %v1971 = vshrl.u32 %v1970, 7
        %v1972 = vsub.s32 0, %v1971
        %v1973 = vrot.slane %v1764, %v1972
        %v1974 = vmul.f32 %v1768, %v1973
        %v1975 = vmul.f32 %v1773, %v1973
        %v1976 = vmul.f32 %v1778, %v1973
        %v1977 = vmul.f32 %v1783, %v1973
        %v1978 = vmul.f32 %v1788, %v1973
        %v1979 = vmul.f32 %v1793, %v1973
        %v1980 = vmul.f32 %v1798, %v1973
        %v1981 = vmul.f32 %v1803, %v1973
        %v1982 = vmul.f32 %v1808, %v1973
        %v1983 = vmul.f32 %v1813, %v1973
        %v1984 = vmul.f32 %v1818, %v1973
        %v1985 = vmul.f32 %v1823, %v1973
        %v1986 = vmul.f32 %v1828, %v1973
        %v1987 = vmul.f32 %v1833, %v1973
        %v1988 = vmul.f32 %v1838, %v1973
        %v1989 = vmul.f32 %v1843, %v1973
        %v1990 = vmul.f32 %v1848, %v1973
        %v1991 = vmul.f32 %v1853, %v1973
        %v1992 = vmul.f32 %v1858, %v1973
        %v1993 = vmul.f32 %v1863, %v1973
        %v1994 = vmul.f32 %v1868, %v1973
        %v1995 = vmul.f32 %v1873, %v1973
        %v1996 = vmul.f32 %v1878, %v1973
        %v1997 = vmul.f32 %v1883, %v1973
        %v1998 = vmul.f32 %v1888, %v1973
        %v1999 = vmul.f32 %v1893, %v1973
        %v2000 = vmul.f32 %v1898, %v1973
        %v2001 = vmul.f32 %v1903, %v1973
        %v2002 = vmul.f32 %v1908, %v1973
        %v2003 = vmul.f32 %v1913, %v1973
        %v2004 = vmul.f32 %v1918, %v1973
        %v2005 = vmul.f32 %v1923, %v1973
        %v2006 = vmul.f32 %v1928, %v1973
        %v2007 = vmul.f32 %v1933, %v1973
        %v2008 = vmul.f32 %v1938, %v1973
        %v2009 = vmul.f32 %v1943, %v1973
        %v2010 = vmul.f32 %v1948, %v1973
        %v2011 = vmul.f32 %v1953, %v1973
        %v2012 = vmul.f32 %v1958, %v1973
        %v2013 = vmul.f32 %v1963, %v1973
        %v2014 = vmul.f32 %v1968, %v1973
        %v2015 = vadd.f32 %v1682, %v1974
        %v2016 = vadd.f32 %v1683, %v1975
        %v2017 = vadd.f32 %v1684, %v1976
        %v2018 = vadd.f32 %v1685, %v1977
        %v2019 = vadd.f32 %v1686, %v1978
        %v2020 = vadd.f32 %v1687, %v1979
        %v2021 = vadd.f32 %v1688, %v1980
        %v2022 = vadd.f32 %v1689, %v1981
        %v2023 = vadd.f32 %v1690, %v1982
        %v2024 = vadd.f32 %v1691, %v1983
        %v2025 = vadd.f32 %v1692, %v1984
        %v2026 = vadd.f32 %v1693, %v1985
        %v2027 = vadd.f32 %v1694, %v1986
        %v2028 = vadd.f32 %v1695, %v1987
        %v2029 = vadd.f32 %v1696, %v1988
        %v2030 = vadd.f32 %v1697, %v1989
        %v2031 = vadd.f32 %v1698, %v1990
        %v2032 = vadd.f32 %v1699, %v1991
        %v2033 = vadd.f32 %v1700, %v1992
        %v2034 = vadd.f32 %v1701, %v1993
        %v2035 = vadd.f32 %v1702, %v1994
        %v2036 = vadd.f32 %v1703, %v1995
        %v2037 = vadd.f32 %v1704, %v1996
        %v2038 = vadd.f32 %v1705, %v1997
        %v2039 = vadd.f32 %v1706, %v1998
        %v2040 = vadd.f32 %v1707, %v1999
        %v2041 = vadd.f32 %v1708, %v2000
        %v2042 = vadd.f32 %v1709, %v2001
        %v2043 = vadd.f32 %v1710, %v2002
        %v2044 = vadd.f32 %v1711, %v2003
        %v2045 = vadd.f32 %v1712, %v2004
        %v2046 = vadd.f32 %v1713, %v2005
        %v2047 = vadd.f32 %v1714, %v2006
        %v2048 = vadd.f32 %v1715, %v2007
        %v2049 = vadd.f32 %v1716, %v2008
        %v2050 = vadd.f32 %v1717, %v2009
        %v2051 = vadd.f32 %v1718, %v2010
        %v2052 = vadd.f32 %v1719, %v2011
        %v2053 = vadd.f32 %v1720, %v2012
        %v2054 = vadd.f32 %v1721, %v2013
        %v2055 = vadd.f32 %v1722, %v2014
        %v2056 = vld [vmem:[%s368 + $0x19] sm:$0xff]
        %v2057 = vld [vmem:[%s368 + $0x21] sm:$0xff]
        %v2058 = vld [vmem:[%s368 + $0x29] sm:$0xff]
        %v2059 = vld [vmem:[%s368 + $0x31] sm:$0xff]
        %v2060 = vld [vmem:[%s368 + $0x39] sm:$0xff]
        %v2061 = vld [vmem:[%s368 + $0x41] sm:$0xff]
        %v2062 = vld [vmem:[%s368 + $0x49] sm:$0xff]
        %v2063 = vld [vmem:[%s368 + $0x51] sm:$0xff]
        %v2064 = vld [vmem:[%s368 + $0x59] sm:$0xff]
        %v2065 = vld [vmem:[%s368 + $0x61] sm:$0xff]
        %v2066 = vld [vmem:[%s368 + $0x69] sm:$0xff]
        %v2067 = vld [vmem:[%s368 + $0x71] sm:$0xff]
        %v2068 = vld [vmem:[%s368 + $0x79] sm:$0xff]
        %v2069 = vld [vmem:[%s368 + $0x81] sm:$0xff]
        %v2070 = vld [vmem:[%s368 + $0x89] sm:$0xff]
        %v2071 = vld [vmem:[%s368 + $0x91] sm:$0xff]
        %v2072 = vld [vmem:[%s368 + $0x99] sm:$0xff]
        %v2073 = vld [vmem:[%s368 + $0xa1] sm:$0xff]
        %v2074 = vld [vmem:[%s368 + $0xa9] sm:$0xff]
        %v2075 = vld [vmem:[%s368 + $0xb1] sm:$0xff]
        %v2076 = vld [vmem:[%s368 + $0xb9] sm:$0xff]
        %v2077 = vld [vmem:[%s368 + $0xc1] sm:$0xff]
        %v2078 = vld [vmem:[%s368 + $0xc9] sm:$0xff]
        %v2079 = vld [vmem:[%s368 + $0xd1] sm:$0xff]
        %v2080 = vld [vmem:[%s368 + $0xd9] sm:$0xff]
        %v2081 = vld [vmem:[%s368 + $0xe1] sm:$0xff]
        %v2082 = vld [vmem:[%s368 + $0xe9] sm:$0xff]
        %v2083 = vld [vmem:[%s368 + $0xf1] sm:$0xff]
        %v2084 = vld [vmem:[%s368 + $0xf9] sm:$0xff]
        %v2085 = vld [vmem:[%s368 + $0x101] sm:$0xff]
        %v2086 = vld [vmem:[%s368 + $0x109] sm:$0xff]
        %v2087 = vld [vmem:[%s368 + $0x111] sm:$0xff]
        %v2088 = vld [vmem:[%s368 + $0x119] sm:$0xff]
        %v2089 = vld [vmem:[%s368 + $0x121] sm:$0xff]
        %v2090 = vld [vmem:[%s368 + $0x129] sm:$0xff]
        %v2091 = vld [vmem:[%s368 + $0x131] sm:$0xff]
        %v2092 = vld [vmem:[%s368 + $0x139] sm:$0xff]
        %v2093 = vld [vmem:[%s368 + $0x141] sm:$0xff]
        %v2094 = vld [vmem:[%s368 + $0x149] sm:$0xff]
        %v2095 = vld [vmem:[%s368 + $0x151] sm:$0xff]
        %v2096 = vld [vmem:[%s368 + $0x159] sm:$0xf]
        %v2097 = vld [vmem:[%s3 + $0x5] sm:$0x1]
        %2099 = vset.pattern.permute.xlu0 0
        %2100 = vperm.xlu0 %2099, %v2056
        %v2101 = vpop.permute.xlu0 %2100
        %2104 = vset.pattern.permute.xlu0 0
        %2105 = vperm.xlu0 %2104, %v2057
        %v2106 = vpop.permute.xlu0 %2105
        %2109 = vset.pattern.permute.xlu0 0
        %2110 = vperm.xlu0 %2109, %v2058
        %v2111 = vpop.permute.xlu0 %2110
        %2114 = vset.pattern.permute.xlu0 0
        %2115 = vperm.xlu0 %2114, %v2059
        %v2116 = vpop.permute.xlu0 %2115
        %2119 = vset.pattern.permute.xlu0 0
        %2120 = vperm.xlu0 %2119, %v2060
        %v2121 = vpop.permute.xlu0 %2120
        %2124 = vset.pattern.permute.xlu0 0
        %2125 = vperm.xlu0 %2124, %v2061
        %v2126 = vpop.permute.xlu0 %2125
        %2129 = vset.pattern.permute.xlu0 0
        %2130 = vperm.xlu0 %2129, %v2062
        %v2131 = vpop.permute.xlu0 %2130
        %2134 = vset.pattern.permute.xlu0 0
        %2135 = vperm.xlu0 %2134, %v2063
        %v2136 = vpop.permute.xlu0 %2135
        %2139 = vset.pattern.permute.xlu0 0
        %2140 = vperm.xlu0 %2139, %v2064
        %v2141 = vpop.permute.xlu0 %2140
        %2144 = vset.pattern.permute.xlu0 0
        %2145 = vperm.xlu0 %2144, %v2065
        %v2146 = vpop.permute.xlu0 %2145
        %2149 = vset.pattern.permute.xlu0 0
        %2150 = vperm.xlu0 %2149, %v2066
        %v2151 = vpop.permute.xlu0 %2150
        %2154 = vset.pattern.permute.xlu0 0
        %2155 = vperm.xlu0 %2154, %v2067
        %v2156 = vpop.permute.xlu0 %2155
        %2159 = vset.pattern.permute.xlu0 0
        %2160 = vperm.xlu0 %2159, %v2068
        %v2161 = vpop.permute.xlu0 %2160
        %2164 = vset.pattern.permute.xlu0 0
        %2165 = vperm.xlu0 %2164, %v2069
        %v2166 = vpop.permute.xlu0 %2165
        %2169 = vset.pattern.permute.xlu0 0
        %2170 = vperm.xlu0 %2169, %v2070
        %v2171 = vpop.permute.xlu0 %2170
        %2174 = vset.pattern.permute.xlu0 0
        %2175 = vperm.xlu0 %2174, %v2071
        %v2176 = vpop.permute.xlu0 %2175
        %2179 = vset.pattern.permute.xlu0 0
        %2180 = vperm.xlu0 %2179, %v2072
        %v2181 = vpop.permute.xlu0 %2180
        %2184 = vset.pattern.permute.xlu0 0
        %2185 = vperm.xlu0 %2184, %v2073
        %v2186 = vpop.permute.xlu0 %2185
        %2189 = vset.pattern.permute.xlu0 0
        %2190 = vperm.xlu0 %2189, %v2074
        %v2191 = vpop.permute.xlu0 %2190
        %2194 = vset.pattern.permute.xlu0 0
        %2195 = vperm.xlu0 %2194, %v2075
        %v2196 = vpop.permute.xlu0 %2195
        %2199 = vset.pattern.permute.xlu0 0
        %2200 = vperm.xlu0 %2199, %v2076
        %v2201 = vpop.permute.xlu0 %2200
        %2204 = vset.pattern.permute.xlu0 0
        %2205 = vperm.xlu0 %2204, %v2077
        %v2206 = vpop.permute.xlu0 %2205
        %2209 = vset.pattern.permute.xlu0 0
        %2210 = vperm.xlu0 %2209, %v2078
        %v2211 = vpop.permute.xlu0 %2210
        %2214 = vset.pattern.permute.xlu0 0
        %2215 = vperm.xlu0 %2214, %v2079
        %v2216 = vpop.permute.xlu0 %2215
        %2219 = vset.pattern.permute.xlu0 0
        %2220 = vperm.xlu0 %2219, %v2080
        %v2221 = vpop.permute.xlu0 %2220
        %2224 = vset.pattern.permute.xlu0 0
        %2225 = vperm.xlu0 %2224, %v2081
        %v2226 = vpop.permute.xlu0 %2225
        %2229 = vset.pattern.permute.xlu0 0
        %2230 = vperm.xlu0 %2229, %v2082
        %v2231 = vpop.permute.xlu0 %2230
        %2234 = vset.pattern.permute.xlu0 0
        %2235 = vperm.xlu0 %2234, %v2083
        %v2236 = vpop.permute.xlu0 %2235
        %2239 = vset.pattern.permute.xlu0 0
        %2240 = vperm.xlu0 %2239, %v2084
        %v2241 = vpop.permute.xlu0 %2240
        %2244 = vset.pattern.permute.xlu0 0
        %2245 = vperm.xlu0 %2244, %v2085
        %v2246 = vpop.permute.xlu0 %2245
        %2249 = vset.pattern.permute.xlu0 0
        %2250 = vperm.xlu0 %2249, %v2086
        %v2251 = vpop.permute.xlu0 %2250
        %2254 = vset.pattern.permute.xlu0 0
        %2255 = vperm.xlu0 %2254, %v2087
        %v2256 = vpop.permute.xlu0 %2255
        %2259 = vset.pattern.permute.xlu0 0
        %2260 = vperm.xlu0 %2259, %v2088
        %v2261 = vpop.permute.xlu0 %2260
        %2264 = vset.pattern.permute.xlu0 0
        %2265 = vperm.xlu0 %2264, %v2089
        %v2266 = vpop.permute.xlu0 %2265
        %2269 = vset.pattern.permute.xlu0 0
        %2270 = vperm.xlu0 %2269, %v2090
        %v2271 = vpop.permute.xlu0 %2270
        %2274 = vset.pattern.permute.xlu0 0
        %2275 = vperm.xlu0 %2274, %v2091
        %v2276 = vpop.permute.xlu0 %2275
        %2279 = vset.pattern.permute.xlu0 0
        %2280 = vperm.xlu0 %2279, %v2092
        %v2281 = vpop.permute.xlu0 %2280
        %2284 = vset.pattern.permute.xlu0 0
        %2285 = vperm.xlu0 %2284, %v2093
        %v2286 = vpop.permute.xlu0 %2285
        %2289 = vset.pattern.permute.xlu0 0
        %2290 = vperm.xlu0 %2289, %v2094
        %v2291 = vpop.permute.xlu0 %2290
        %2294 = vset.pattern.permute.xlu0 0
        %2295 = vperm.xlu0 %2294, %v2095
        %v2296 = vpop.permute.xlu0 %2295
        %2299 = vset.pattern.permute.xlu0 0
        %2300 = vperm.xlu0 %2299, %v2096
        %v2301 = vpop.permute.xlu0 %2300
        %v2303 = vlaneseq
        %v2304 = vshrl.u32 %v2303, 7
        %v2305 = vsub.s32 0, %v2304
        %v2306 = vrot.slane %v2097, %v2305
        %v2307 = vmul.f32 %v2101, %v2306
        %v2308 = vmul.f32 %v2106, %v2306
        %v2309 = vmul.f32 %v2111, %v2306
        %v2310 = vmul.f32 %v2116, %v2306
        %v2311 = vmul.f32 %v2121, %v2306
        %v2312 = vmul.f32 %v2126, %v2306
        %v2313 = vmul.f32 %v2131, %v2306
        %v2314 = vmul.f32 %v2136, %v2306
        %v2315 = vmul.f32 %v2141, %v2306
        %v2316 = vmul.f32 %v2146, %v2306
        %v2317 = vmul.f32 %v2151, %v2306
        %v2318 = vmul.f32 %v2156, %v2306
        %v2319 = vmul.f32 %v2161, %v2306
        %v2320 = vmul.f32 %v2166, %v2306
        %v2321 = vmul.f32 %v2171, %v2306
        %v2322 = vmul.f32 %v2176, %v2306
        %v2323 = vmul.f32 %v2181, %v2306
        %v2324 = vmul.f32 %v2186, %v2306
        %v2325 = vmul.f32 %v2191, %v2306
        %v2326 = vmul.f32 %v2196, %v2306
        %v2327 = vmul.f32 %v2201, %v2306
        %v2328 = vmul.f32 %v2206, %v2306
        %v2329 = vmul.f32 %v2211, %v2306
        %v2330 = vmul.f32 %v2216, %v2306
        %v2331 = vmul.f32 %v2221, %v2306
        %v2332 = vmul.f32 %v2226, %v2306
        %v2333 = vmul.f32 %v2231, %v2306
        %v2334 = vmul.f32 %v2236, %v2306
        %v2335 = vmul.f32 %v2241, %v2306
        %v2336 = vmul.f32 %v2246, %v2306
        %v2337 = vmul.f32 %v2251, %v2306
        %v2338 = vmul.f32 %v2256, %v2306
        %v2339 = vmul.f32 %v2261, %v2306
        %v2340 = vmul.f32 %v2266, %v2306
        %v2341 = vmul.f32 %v2271, %v2306
        %v2342 = vmul.f32 %v2276, %v2306
        %v2343 = vmul.f32 %v2281, %v2306
        %v2344 = vmul.f32 %v2286, %v2306
        %v2345 = vmul.f32 %v2291, %v2306
        %v2346 = vmul.f32 %v2296, %v2306
        %v2347 = vmul.f32 %v2301, %v2306
        %v2348 = vadd.f32 %v2015, %v2307
        %v2349 = vadd.f32 %v2016, %v2308
        %v2350 = vadd.f32 %v2017, %v2309
        %v2351 = vadd.f32 %v2018, %v2310
        %v2352 = vadd.f32 %v2019, %v2311
        %v2353 = vadd.f32 %v2020, %v2312
        %v2354 = vadd.f32 %v2021, %v2313
        %v2355 = vadd.f32 %v2022, %v2314
        %v2356 = vadd.f32 %v2023, %v2315
        %v2357 = vadd.f32 %v2024, %v2316
        %v2358 = vadd.f32 %v2025, %v2317
        %v2359 = vadd.f32 %v2026, %v2318
        %v2360 = vadd.f32 %v2027, %v2319
        %v2361 = vadd.f32 %v2028, %v2320
        %v2362 = vadd.f32 %v2029, %v2321
        %v2363 = vadd.f32 %v2030, %v2322
        %v2364 = vadd.f32 %v2031, %v2323
        %v2365 = vadd.f32 %v2032, %v2324
        %v2366 = vadd.f32 %v2033, %v2325
        %v2367 = vadd.f32 %v2034, %v2326
        %v2368 = vadd.f32 %v2035, %v2327
        %v2369 = vadd.f32 %v2036, %v2328
        %v2370 = vadd.f32 %v2037, %v2329
        %v2371 = vadd.f32 %v2038, %v2330
        %v2372 = vadd.f32 %v2039, %v2331
        %v2373 = vadd.f32 %v2040, %v2332
        %v2374 = vadd.f32 %v2041, %v2333
        %v2375 = vadd.f32 %v2042, %v2334
        %v2376 = vadd.f32 %v2043, %v2335
        %v2377 = vadd.f32 %v2044, %v2336
        %v2378 = vadd.f32 %v2045, %v2337
        %v2379 = vadd.f32 %v2046, %v2338
        %v2380 = vadd.f32 %v2047, %v2339
        %v2381 = vadd.f32 %v2048, %v2340
        %v2382 = vadd.f32 %v2049, %v2341
        %v2383 = vadd.f32 %v2050, %v2342
        %v2384 = vadd.f32 %v2051, %v2343
        %v2385 = vadd.f32 %v2052, %v2344
        %v2386 = vadd.f32 %v2053, %v2345
        %v2387 = vadd.f32 %v2054, %v2346
        %v2388 = vadd.f32 %v2055, %v2347
        %v2389 = vld [vmem:[%s368 + $0x29] sm:$0xff]
        %v2390 = vld [vmem:[%s368 + $0x31] sm:$0xff]
        %v2391 = vld [vmem:[%s368 + $0x39] sm:$0xff]
        %v2392 = vld [vmem:[%s368 + $0x41] sm:$0xff]
        %v2393 = vld [vmem:[%s368 + $0x49] sm:$0xff]
        %v2394 = vld [vmem:[%s368 + $0x51] sm:$0xff]
        %v2395 = vld [vmem:[%s368 + $0x59] sm:$0xff]
        %v2396 = vld [vmem:[%s368 + $0x61] sm:$0xff]
        %v2397 = vld [vmem:[%s368 + $0x69] sm:$0xff]
        %v2398 = vld [vmem:[%s368 + $0x71] sm:$0xff]
        %v2399 = vld [vmem:[%s368 + $0x79] sm:$0xff]
        %v2400 = vld [vmem:[%s368 + $0x81] sm:$0xff]
        %v2401 = vld [vmem:[%s368 + $0x89] sm:$0xff]
        %v2402 = vld [vmem:[%s368 + $0x91] sm:$0xff]
        %v2403 = vld [vmem:[%s368 + $0x99] sm:$0xff]
        %v2404 = vld [vmem:[%s368 + $0xa1] sm:$0xff]
        %v2405 = vld [vmem:[%s368 + $0xa9] sm:$0xff]
        %v2406 = vld [vmem:[%s368 + $0xb1] sm:$0xff]
        %v2407 = vld [vmem:[%s368 + $0xb9] sm:$0xff]
        %v2408 = vld [vmem:[%s368 + $0xc1] sm:$0xff]
        %v2409 = vld [vmem:[%s368 + $0xc9] sm:$0xff]
        %v2410 = vld [vmem:[%s368 + $0xd1] sm:$0xff]
        %v2411 = vld [vmem:[%s368 + $0xd9] sm:$0xff]
        %v2412 = vld [vmem:[%s368 + $0xe1] sm:$0xff]
        %v2413 = vld [vmem:[%s368 + $0xe9] sm:$0xff]
        %v2414 = vld [vmem:[%s368 + $0xf1] sm:$0xff]
        %v2415 = vld [vmem:[%s368 + $0xf9] sm:$0xff]
        %v2416 = vld [vmem:[%s368 + $0x101] sm:$0xff]
        %v2417 = vld [vmem:[%s368 + $0x109] sm:$0xff]
        %v2418 = vld [vmem:[%s368 + $0x111] sm:$0xff]
        %v2419 = vld [vmem:[%s368 + $0x119] sm:$0xff]
        %v2420 = vld [vmem:[%s368 + $0x121] sm:$0xff]
        %v2421 = vld [vmem:[%s368 + $0x129] sm:$0xff]
        %v2422 = vld [vmem:[%s368 + $0x131] sm:$0xff]
        %v2423 = vld [vmem:[%s368 + $0x139] sm:$0xff]
        %v2424 = vld [vmem:[%s368 + $0x141] sm:$0xff]
        %v2425 = vld [vmem:[%s368 + $0x149] sm:$0xff]
        %v2426 = vld [vmem:[%s368 + $0x151] sm:$0xff]
        %v2427 = vld [vmem:[%s368 + $0x159] sm:$0xff]
        %v2428 = vld [vmem:[%s368 + $0x161] sm:$0xff]
        %v2429 = vld [vmem:[%s368 + $0x169] sm:$0xf]
        %v2430 = vld [vmem:[%s3 + $0x6] sm:$0x1]
        %2432 = vset.pattern.permute.xlu0 0
        %2433 = vperm.xlu0 %2432, %v2389
        %v2434 = vpop.permute.xlu0 %2433
        %2437 = vset.pattern.permute.xlu0 0
        %2438 = vperm.xlu0 %2437, %v2390
        %v2439 = vpop.permute.xlu0 %2438
        %2442 = vset.pattern.permute.xlu0 0
        %2443 = vperm.xlu0 %2442, %v2391
        %v2444 = vpop.permute.xlu0 %2443
        %2447 = vset.pattern.permute.xlu0 0
        %2448 = vperm.xlu0 %2447, %v2392
        %v2449 = vpop.permute.xlu0 %2448
        %2452 = vset.pattern.permute.xlu0 0
        %2453 = vperm.xlu0 %2452, %v2393
        %v2454 = vpop.permute.xlu0 %2453
        %2457 = vset.pattern.permute.xlu0 0
        %2458 = vperm.xlu0 %2457, %v2394
        %v2459 = vpop.permute.xlu0 %2458
        %2462 = vset.pattern.permute.xlu0 0
        %2463 = vperm.xlu0 %2462, %v2395
        %v2464 = vpop.permute.xlu0 %2463
        %2467 = vset.pattern.permute.xlu0 0
        %2468 = vperm.xlu0 %2467, %v2396
        %v2469 = vpop.permute.xlu0 %2468
        %2472 = vset.pattern.permute.xlu0 0
        %2473 = vperm.xlu0 %2472, %v2397
        %v2474 = vpop.permute.xlu0 %2473
        %2477 = vset.pattern.permute.xlu0 0
        %2478 = vperm.xlu0 %2477, %v2398
        %v2479 = vpop.permute.xlu0 %2478
        %2482 = vset.pattern.permute.xlu0 0
        %2483 = vperm.xlu0 %2482, %v2399
        %v2484 = vpop.permute.xlu0 %2483
        %2487 = vset.pattern.permute.xlu0 0
        %2488 = vperm.xlu0 %2487, %v2400
        %v2489 = vpop.permute.xlu0 %2488
        %2492 = vset.pattern.permute.xlu0 0
        %2493 = vperm.xlu0 %2492, %v2401
        %v2494 = vpop.permute.xlu0 %2493
        %2497 = vset.pattern.permute.xlu0 0
        %2498 = vperm.xlu0 %2497, %v2402
        %v2499 = vpop.permute.xlu0 %2498
        %2502 = vset.pattern.permute.xlu0 0
        %2503 = vperm.xlu0 %2502, %v2403
        %v2504 = vpop.permute.xlu0 %2503
        %2507 = vset.pattern.permute.xlu0 0
        %2508 = vperm.xlu0 %2507, %v2404
        %v2509 = vpop.permute.xlu0 %2508
        %2512 = vset.pattern.permute.xlu0 0
        %2513 = vperm.xlu0 %2512, %v2405
        %v2514 = vpop.permute.xlu0 %2513
        %2517 = vset.pattern.permute.xlu0 0
        %2518 = vperm.xlu0 %2517, %v2406
        %v2519 = vpop.permute.xlu0 %2518
        %2522 = vset.pattern.permute.xlu0 0
        %2523 = vperm.xlu0 %2522, %v2407
        %v2524 = vpop.permute.xlu0 %2523
        %2527 = vset.pattern.permute.xlu0 0
        %2528 = vperm.xlu0 %2527, %v2408
        %v2529 = vpop.permute.xlu0 %2528
        %2532 = vset.pattern.permute.xlu0 0
        %2533 = vperm.xlu0 %2532, %v2409
        %v2534 = vpop.permute.xlu0 %2533
        %2537 = vset.pattern.permute.xlu0 0
        %2538 = vperm.xlu0 %2537, %v2410
        %v2539 = vpop.permute.xlu0 %2538
        %2542 = vset.pattern.permute.xlu0 0
        %2543 = vperm.xlu0 %2542, %v2411
        %v2544 = vpop.permute.xlu0 %2543
        %2547 = vset.pattern.permute.xlu0 0
        %2548 = vperm.xlu0 %2547, %v2412
        %v2549 = vpop.permute.xlu0 %2548
        %2552 = vset.pattern.permute.xlu0 0
        %2553 = vperm.xlu0 %2552, %v2413
        %v2554 = vpop.permute.xlu0 %2553
        %2557 = vset.pattern.permute.xlu0 0
        %2558 = vperm.xlu0 %2557, %v2414
        %v2559 = vpop.permute.xlu0 %2558
        %2562 = vset.pattern.permute.xlu0 0
        %2563 = vperm.xlu0 %2562, %v2415
        %v2564 = vpop.permute.xlu0 %2563
        %2567 = vset.pattern.permute.xlu0 0
        %2568 = vperm.xlu0 %2567, %v2416
        %v2569 = vpop.permute.xlu0 %2568
        %2572 = vset.pattern.permute.xlu0 0
        %2573 = vperm.xlu0 %2572, %v2417
        %v2574 = vpop.permute.xlu0 %2573
        %2577 = vset.pattern.permute.xlu0 0
        %2578 = vperm.xlu0 %2577, %v2418
        %v2579 = vpop.permute.xlu0 %2578
        %2582 = vset.pattern.permute.xlu0 0
        %2583 = vperm.xlu0 %2582, %v2419
        %v2584 = vpop.permute.xlu0 %2583
        %2587 = vset.pattern.permute.xlu0 0
        %2588 = vperm.xlu0 %2587, %v2420
        %v2589 = vpop.permute.xlu0 %2588
        %2592 = vset.pattern.permute.xlu0 0
        %2593 = vperm.xlu0 %2592, %v2421
        %v2594 = vpop.permute.xlu0 %2593
        %2597 = vset.pattern.permute.xlu0 0
        %2598 = vperm.xlu0 %2597, %v2422
        %v2599 = vpop.permute.xlu0 %2598
        %2602 = vset.pattern.permute.xlu0 0
        %2603 = vperm.xlu0 %2602, %v2423
        %v2604 = vpop.permute.xlu0 %2603
        %2607 = vset.pattern.permute.xlu0 0
        %2608 = vperm.xlu0 %2607, %v2424
        %v2609 = vpop.permute.xlu0 %2608
        %2612 = vset.pattern.permute.xlu0 0
        %2613 = vperm.xlu0 %2612, %v2425
        %v2614 = vpop.permute.xlu0 %2613
        %2617 = vset.pattern.permute.xlu0 0
        %2618 = vperm.xlu0 %2617, %v2426
        %v2619 = vpop.permute.xlu0 %2618
        %2622 = vset.pattern.permute.xlu0 0
        %2623 = vperm.xlu0 %2622, %v2427
        %v2624 = vpop.permute.xlu0 %2623
        %2627 = vset.pattern.permute.xlu0 0
        %2628 = vperm.xlu0 %2627, %v2428
        %v2629 = vpop.permute.xlu0 %2628
        %2632 = vset.pattern.permute.xlu0 0
        %2633 = vperm.xlu0 %2632, %v2429
        %v2634 = vpop.permute.xlu0 %2633
        %v2636 = vlaneseq
        %v2637 = vshrl.u32 %v2636, 7
        %v2638 = vsub.s32 0, %v2637
        %v2639 = vrot.slane %v2430, %v2638
        %v2640 = vmul.f32 %v2434, %v2639
        %v2641 = vmul.f32 %v2439, %v2639
        %v2642 = vmul.f32 %v2444, %v2639
        %v2643 = vmul.f32 %v2449, %v2639
        %v2644 = vmul.f32 %v2454, %v2639
        %v2645 = vmul.f32 %v2459, %v2639
        %v2646 = vmul.f32 %v2464, %v2639
        %v2647 = vmul.f32 %v2469, %v2639
        %v2648 = vmul.f32 %v2474, %v2639
        %v2649 = vmul.f32 %v2479, %v2639
        %v2650 = vmul.f32 %v2484, %v2639
        %v2651 = vmul.f32 %v2489, %v2639
        %v2652 = vmul.f32 %v2494, %v2639
        %v2653 = vmul.f32 %v2499, %v2639
        %v2654 = vmul.f32 %v2504, %v2639
        %v2655 = vmul.f32 %v2509, %v2639
        %v2656 = vmul.f32 %v2514, %v2639
        %v2657 = vmul.f32 %v2519, %v2639
        %v2658 = vmul.f32 %v2524, %v2639
        %v2659 = vmul.f32 %v2529, %v2639
        %v2660 = vmul.f32 %v2534, %v2639
        %v2661 = vmul.f32 %v2539, %v2639
        %v2662 = vmul.f32 %v2544, %v2639
        %v2663 = vmul.f32 %v2549, %v2639
        %v2664 = vmul.f32 %v2554, %v2639
        %v2665 = vmul.f32 %v2559, %v2639
        %v2666 = vmul.f32 %v2564, %v2639
        %v2667 = vmul.f32 %v2569, %v2639
        %v2668 = vmul.f32 %v2574, %v2639
        %v2669 = vmul.f32 %v2579, %v2639
        %v2670 = vmul.f32 %v2584, %v2639
        %v2671 = vmul.f32 %v2589, %v2639
        %v2672 = vmul.f32 %v2594, %v2639
        %v2673 = vmul.f32 %v2599, %v2639
        %v2674 = vmul.f32 %v2604, %v2639
        %v2675 = vmul.f32 %v2609, %v2639
        %v2676 = vmul.f32 %v2614, %v2639
        %v2677 = vmul.f32 %v2619, %v2639
        %v2678 = vmul.f32 %v2624, %v2639
        %v2679 = vmul.f32 %v2629, %v2639
        %v2680 = vmul.f32 %v2634, %v2639
        %v2681 = vadd.f32 %v2348, %v2640
        %v2682 = vadd.f32 %v2349, %v2641
        %v2683 = vadd.f32 %v2350, %v2642
        %v2684 = vadd.f32 %v2351, %v2643
        %v2685 = vadd.f32 %v2352, %v2644
        %v2686 = vadd.f32 %v2353, %v2645
        %v2687 = vadd.f32 %v2354, %v2646
        %v2688 = vadd.f32 %v2355, %v2647
        %v2689 = vadd.f32 %v2356, %v2648
        %v2690 = vadd.f32 %v2357, %v2649
        %v2691 = vadd.f32 %v2358, %v2650
        %v2692 = vadd.f32 %v2359, %v2651
        %v2693 = vadd.f32 %v2360, %v2652
        %v2694 = vadd.f32 %v2361, %v2653
        %v2695 = vadd.f32 %v2362, %v2654
        %v2696 = vadd.f32 %v2363, %v2655
        %v2697 = vadd.f32 %v2364, %v2656
        %v2698 = vadd.f32 %v2365, %v2657
        %v2699 = vadd.f32 %v2366, %v2658
        %v2700 = vadd.f32 %v2367, %v2659
        %v2701 = vadd.f32 %v2368, %v2660
        %v2702 = vadd.f32 %v2369, %v2661
        %v2703 = vadd.f32 %v2370, %v2662
        %v2704 = vadd.f32 %v2371, %v2663
        %v2705 = vadd.f32 %v2372, %v2664
        %v2706 = vadd.f32 %v2373, %v2665
        %v2707 = vadd.f32 %v2374, %v2666
        %v2708 = vadd.f32 %v2375, %v2667
        %v2709 = vadd.f32 %v2376, %v2668
        %v2710 = vadd.f32 %v2377, %v2669
        %v2711 = vadd.f32 %v2378, %v2670
        %v2712 = vadd.f32 %v2379, %v2671
        %v2713 = vadd.f32 %v2380, %v2672
        %v2714 = vadd.f32 %v2381, %v2673
        %v2715 = vadd.f32 %v2382, %v2674
        %v2716 = vadd.f32 %v2383, %v2675
        %v2717 = vadd.f32 %v2384, %v2676
        %v2718 = vadd.f32 %v2385, %v2677
        %v2719 = vadd.f32 %v2386, %v2678
        %v2720 = vadd.f32 %v2387, %v2679
        %v2721 = vadd.f32 %v2388, %v2680
        %v2722 = vld [vmem:[%s368 + $0x2a] sm:$0xff]
        %v2723 = vld [vmem:[%s368 + $0x32] sm:$0xff]
        %v2724 = vld [vmem:[%s368 + $0x3a] sm:$0xff]
        %v2725 = vld [vmem:[%s368 + $0x42] sm:$0xff]
        %v2726 = vld [vmem:[%s368 + $0x4a] sm:$0xff]
        %v2727 = vld [vmem:[%s368 + $0x52] sm:$0xff]
        %v2728 = vld [vmem:[%s368 + $0x5a] sm:$0xff]
        %v2729 = vld [vmem:[%s368 + $0x62] sm:$0xff]
        %v2730 = vld [vmem:[%s368 + $0x6a] sm:$0xff]
        %v2731 = vld [vmem:[%s368 + $0x72] sm:$0xff]
        %v2732 = vld [vmem:[%s368 + $0x7a] sm:$0xff]
        %v2733 = vld [vmem:[%s368 + $0x82] sm:$0xff]
        %v2734 = vld [vmem:[%s368 + $0x8a] sm:$0xff]
        %v2735 = vld [vmem:[%s368 + $0x92] sm:$0xff]
        %v2736 = vld [vmem:[%s368 + $0x9a] sm:$0xff]
        %v2737 = vld [vmem:[%s368 + $0xa2] sm:$0xff]
        %v2738 = vld [vmem:[%s368 + $0xaa] sm:$0xff]
        %v2739 = vld [vmem:[%s368 + $0xb2] sm:$0xff]
        %v2740 = vld [vmem:[%s368 + $0xba] sm:$0xff]
        %v2741 = vld [vmem:[%s368 + $0xc2] sm:$0xff]
        %v2742 = vld [vmem:[%s368 + $0xca] sm:$0xff]
        %v2743 = vld [vmem:[%s368 + $0xd2] sm:$0xff]
        %v2744 = vld [vmem:[%s368 + $0xda] sm:$0xff]
        %v2745 = vld [vmem:[%s368 + $0xe2] sm:$0xff]
        %v2746 = vld [vmem:[%s368 + $0xea] sm:$0xff]
        %v2747 = vld [vmem:[%s368 + $0xf2] sm:$0xff]
        %v2748 = vld [vmem:[%s368 + $0xfa] sm:$0xff]
        %v2749 = vld [vmem:[%s368 + $0x102] sm:$0xff]
        %v2750 = vld [vmem:[%s368 + $0x10a] sm:$0xff]
        %v2751 = vld [vmem:[%s368 + $0x112] sm:$0xff]
        %v2752 = vld [vmem:[%s368 + $0x11a] sm:$0xff]
        %v2753 = vld [vmem:[%s368 + $0x122] sm:$0xff]
        %v2754 = vld [vmem:[%s368 + $0x12a] sm:$0xff]
        %v2755 = vld [vmem:[%s368 + $0x132] sm:$0xff]
        %v2756 = vld [vmem:[%s368 + $0x13a] sm:$0xff]
        %v2757 = vld [vmem:[%s368 + $0x142] sm:$0xff]
        %v2758 = vld [vmem:[%s368 + $0x14a] sm:$0xff]
        %v2759 = vld [vmem:[%s368 + $0x152] sm:$0xff]
        %v2760 = vld [vmem:[%s368 + $0x15a] sm:$0xff]
        %v2761 = vld [vmem:[%s368 + $0x162] sm:$0xff]
        %v2762 = vld [vmem:[%s368 + $0x16a] sm:$0xf]
        %v2763 = vld [vmem:[%s3 + $0x7] sm:$0x1]
        %2765 = vset.pattern.permute.xlu0 0
        %2766 = vperm.xlu0 %2765, %v2722
        %v2767 = vpop.permute.xlu0 %2766
        %2770 = vset.pattern.permute.xlu0 0
        %2771 = vperm.xlu0 %2770, %v2723
        %v2772 = vpop.permute.xlu0 %2771
        %2775 = vset.pattern.permute.xlu0 0
        %2776 = vperm.xlu0 %2775, %v2724
        %v2777 = vpop.permute.xlu0 %2776
        %2780 = vset.pattern.permute.xlu0 0
        %2781 = vperm.xlu0 %2780, %v2725
        %v2782 = vpop.permute.xlu0 %2781
        %2785 = vset.pattern.permute.xlu0 0
        %2786 = vperm.xlu0 %2785, %v2726
        %v2787 = vpop.permute.xlu0 %2786
        %2790 = vset.pattern.permute.xlu0 0
        %2791 = vperm.xlu0 %2790, %v2727
        %v2792 = vpop.permute.xlu0 %2791
        %2795 = vset.pattern.permute.xlu0 0
        %2796 = vperm.xlu0 %2795, %v2728
        %v2797 = vpop.permute.xlu0 %2796
        %2800 = vset.pattern.permute.xlu0 0
        %2801 = vperm.xlu0 %2800, %v2729
        %v2802 = vpop.permute.xlu0 %2801
        %2805 = vset.pattern.permute.xlu0 0
        %2806 = vperm.xlu0 %2805, %v2730
        %v2807 = vpop.permute.xlu0 %2806
        %2810 = vset.pattern.permute.xlu0 0
        %2811 = vperm.xlu0 %2810, %v2731
        %v2812 = vpop.permute.xlu0 %2811
        %2815 = vset.pattern.permute.xlu0 0
        %2816 = vperm.xlu0 %2815, %v2732
        %v2817 = vpop.permute.xlu0 %2816
        %2820 = vset.pattern.permute.xlu0 0
        %2821 = vperm.xlu0 %2820, %v2733
        %v2822 = vpop.permute.xlu0 %2821
        %2825 = vset.pattern.permute.xlu0 0
        %2826 = vperm.xlu0 %2825, %v2734
        %v2827 = vpop.permute.xlu0 %2826
        %2830 = vset.pattern.permute.xlu0 0
        %2831 = vperm.xlu0 %2830, %v2735
        %v2832 = vpop.permute.xlu0 %2831
        %2835 = vset.pattern.permute.xlu0 0
        %2836 = vperm.xlu0 %2835, %v2736
        %v2837 = vpop.permute.xlu0 %2836
        %2840 = vset.pattern.permute.xlu0 0
        %2841 = vperm.xlu0 %2840, %v2737
        %v2842 = vpop.permute.xlu0 %2841
        %2845 = vset.pattern.permute.xlu0 0
        %2846 = vperm.xlu0 %2845, %v2738
        %v2847 = vpop.permute.xlu0 %2846
        %2850 = vset.pattern.permute.xlu0 0
        %2851 = vperm.xlu0 %2850, %v2739
        %v2852 = vpop.permute.xlu0 %2851
        %2855 = vset.pattern.permute.xlu0 0
        %2856 = vperm.xlu0 %2855, %v2740
        %v2857 = vpop.permute.xlu0 %2856
        %2860 = vset.pattern.permute.xlu0 0
        %2861 = vperm.xlu0 %2860, %v2741
        %v2862 = vpop.permute.xlu0 %2861
        %2865 = vset.pattern.permute.xlu0 0
        %2866 = vperm.xlu0 %2865, %v2742
        %v2867 = vpop.permute.xlu0 %2866
        %2870 = vset.pattern.permute.xlu0 0
        %2871 = vperm.xlu0 %2870, %v2743
        %v2872 = vpop.permute.xlu0 %2871
        %2875 = vset.pattern.permute.xlu0 0
        %2876 = vperm.xlu0 %2875, %v2744
        %v2877 = vpop.permute.xlu0 %2876
        %2880 = vset.pattern.permute.xlu0 0
        %2881 = vperm.xlu0 %2880, %v2745
        %v2882 = vpop.permute.xlu0 %2881
        %2885 = vset.pattern.permute.xlu0 0
        %2886 = vperm.xlu0 %2885, %v2746
        %v2887 = vpop.permute.xlu0 %2886
        %2890 = vset.pattern.permute.xlu0 0
        %2891 = vperm.xlu0 %2890, %v2747
        %v2892 = vpop.permute.xlu0 %2891
        %2895 = vset.pattern.permute.xlu0 0
        %2896 = vperm.xlu0 %2895, %v2748
        %v2897 = vpop.permute.xlu0 %2896
        %2900 = vset.pattern.permute.xlu0 0
        %2901 = vperm.xlu0 %2900, %v2749
        %v2902 = vpop.permute.xlu0 %2901
        %2905 = vset.pattern.permute.xlu0 0
        %2906 = vperm.xlu0 %2905, %v2750
        %v2907 = vpop.permute.xlu0 %2906
        %2910 = vset.pattern.permute.xlu0 0
        %2911 = vperm.xlu0 %2910, %v2751
        %v2912 = vpop.permute.xlu0 %2911
        %2915 = vset.pattern.permute.xlu0 0
        %2916 = vperm.xlu0 %2915, %v2752
        %v2917 = vpop.permute.xlu0 %2916
        %2920 = vset.pattern.permute.xlu0 0
        %2921 = vperm.xlu0 %2920, %v2753
        %v2922 = vpop.permute.xlu0 %2921
        %2925 = vset.pattern.permute.xlu0 0
        %2926 = vperm.xlu0 %2925, %v2754
        %v2927 = vpop.permute.xlu0 %2926
        %2930 = vset.pattern.permute.xlu0 0
        %2931 = vperm.xlu0 %2930, %v2755
        %v2932 = vpop.permute.xlu0 %2931
        %2935 = vset.pattern.permute.xlu0 0
        %2936 = vperm.xlu0 %2935, %v2756
        %v2937 = vpop.permute.xlu0 %2936
        %2940 = vset.pattern.permute.xlu0 0
        %2941 = vperm.xlu0 %2940, %v2757
        %v2942 = vpop.permute.xlu0 %2941
        %2945 = vset.pattern.permute.xlu0 0
        %2946 = vperm.xlu0 %2945, %v2758
        %v2947 = vpop.permute.xlu0 %2946
        %2950 = vset.pattern.permute.xlu0 0
        %2951 = vperm.xlu0 %2950, %v2759
        %v2952 = vpop.permute.xlu0 %2951
        %2955 = vset.pattern.permute.xlu0 0
        %2956 = vperm.xlu0 %2955, %v2760
        %v2957 = vpop.permute.xlu0 %2956
        %2960 = vset.pattern.permute.xlu0 0
        %2961 = vperm.xlu0 %2960, %v2761
        %v2962 = vpop.permute.xlu0 %2961
        %2965 = vset.pattern.permute.xlu0 0
        %2966 = vperm.xlu0 %2965, %v2762
        %v2967 = vpop.permute.xlu0 %2966
        %v2969 = vlaneseq
        %v2970 = vshrl.u32 %v2969, 7
        %v2971 = vsub.s32 0, %v2970
        %v2972 = vrot.slane %v2763, %v2971
        %v2973 = vmul.f32 %v2767, %v2972
        %v2974 = vmul.f32 %v2772, %v2972
        %v2975 = vmul.f32 %v2777, %v2972
        %v2976 = vmul.f32 %v2782, %v2972
        %v2977 = vmul.f32 %v2787, %v2972
        %v2978 = vmul.f32 %v2792, %v2972
        %v2979 = vmul.f32 %v2797, %v2972
        %v2980 = vmul.f32 %v2802, %v2972
        %v2981 = vmul.f32 %v2807, %v2972
        %v2982 = vmul.f32 %v2812, %v2972
        %v2983 = vmul.f32 %v2817, %v2972
        %v2984 = vmul.f32 %v2822, %v2972
        %v2985 = vmul.f32 %v2827, %v2972
        %v2986 = vmul.f32 %v2832, %v2972
        %v2987 = vmul.f32 %v2837, %v2972
        %v2988 = vmul.f32 %v2842, %v2972
        %v2989 = vmul.f32 %v2847, %v2972
        %v2990 = vmul.f32 %v2852, %v2972
        %v2991 = vmul.f32 %v2857, %v2972
        %v2992 = vmul.f32 %v2862, %v2972
        %v2993 = vmul.f32 %v2867, %v2972
        %v2994 = vmul.f32 %v2872, %v2972
        %v2995 = vmul.f32 %v2877, %v2972
        %v2996 = vmul.f32 %v2882, %v2972
        %v2997 = vmul.f32 %v2887, %v2972
        %v2998 = vmul.f32 %v2892, %v2972
        %v2999 = vmul.f32 %v2897, %v2972
        %v3000 = vmul.f32 %v2902, %v2972
        %v3001 = vmul.f32 %v2907, %v2972
        %v3002 = vmul.f32 %v2912, %v2972
        %v3003 = vmul.f32 %v2917, %v2972
        %v3004 = vmul.f32 %v2922, %v2972
        %v3005 = vmul.f32 %v2927, %v2972
        %v3006 = vmul.f32 %v2932, %v2972
        %v3007 = vmul.f32 %v2937, %v2972
        %v3008 = vmul.f32 %v2942, %v2972
        %v3009 = vmul.f32 %v2947, %v2972
        %v3010 = vmul.f32 %v2952, %v2972
        %v3011 = vmul.f32 %v2957, %v2972
        %v3012 = vmul.f32 %v2962, %v2972
        %v3013 = vmul.f32 %v2967, %v2972
        %v3014 = vadd.f32 %v2681, %v2973
        %v3015 = vadd.f32 %v2682, %v2974
        %v3016 = vadd.f32 %v2683, %v2975
        %v3017 = vadd.f32 %v2684, %v2976
        %v3018 = vadd.f32 %v2685, %v2977
        %v3019 = vadd.f32 %v2686, %v2978
        %v3020 = vadd.f32 %v2687, %v2979
        %v3021 = vadd.f32 %v2688, %v2980
        %v3022 = vadd.f32 %v2689, %v2981
        %v3023 = vadd.f32 %v2690, %v2982
        %v3024 = vadd.f32 %v2691, %v2983
        %v3025 = vadd.f32 %v2692, %v2984
        %v3026 = vadd.f32 %v2693, %v2985
        %v3027 = vadd.f32 %v2694, %v2986
        %v3028 = vadd.f32 %v2695, %v2987
        %v3029 = vadd.f32 %v2696, %v2988
        %v3030 = vadd.f32 %v2697, %v2989
        %v3031 = vadd.f32 %v2698, %v2990
        %v3032 = vadd.f32 %v2699, %v2991
        %v3033 = vadd.f32 %v2700, %v2992
        %v3034 = vadd.f32 %v2701, %v2993
        %v3035 = vadd.f32 %v2702, %v2994
        %v3036 = vadd.f32 %v2703, %v2995
        %v3037 = vadd.f32 %v2704, %v2996
        %v3038 = vadd.f32 %v2705, %v2997
        %v3039 = vadd.f32 %v2706, %v2998
        %v3040 = vadd.f32 %v2707, %v2999
        %v3041 = vadd.f32 %v2708, %v3000
        %v3042 = vadd.f32 %v2709, %v3001
        %v3043 = vadd.f32 %v2710, %v3002
        %v3044 = vadd.f32 %v2711, %v3003
        %v3045 = vadd.f32 %v2712, %v3004
        %v3046 = vadd.f32 %v2713, %v3005
        %v3047 = vadd.f32 %v2714, %v3006
        %v3048 = vadd.f32 %v2715, %v3007
        %v3049 = vadd.f32 %v2716, %v3008
        %v3050 = vadd.f32 %v2717, %v3009
        %v3051 = vadd.f32 %v2718, %v3010
        %v3052 = vadd.f32 %v2719, %v3011
        %v3053 = vadd.f32 %v2720, %v3012
        %v3054 = vadd.f32 %v2721, %v3013
        %v3055 = vld [vmem:[%s368 + $0x2b] sm:$0xff]
        %v3056 = vld [vmem:[%s368 + $0x33] sm:$0xff]
        %v3057 = vld [vmem:[%s368 + $0x3b] sm:$0xff]
        %v3058 = vld [vmem:[%s368 + $0x43] sm:$0xff]
        %v3059 = vld [vmem:[%s368 + $0x4b] sm:$0xff]
        %v3060 = vld [vmem:[%s368 + $0x53] sm:$0xff]
        %v3061 = vld [vmem:[%s368 + $0x5b] sm:$0xff]
        %v3062 = vld [vmem:[%s368 + $0x63] sm:$0xff]
        %v3063 = vld [vmem:[%s368 + $0x6b] sm:$0xff]
        %v3064 = vld [vmem:[%s368 + $0x73] sm:$0xff]
        %v3065 = vld [vmem:[%s368 + $0x7b] sm:$0xff]
        %v3066 = vld [vmem:[%s368 + $0x83] sm:$0xff]
        %v3067 = vld [vmem:[%s368 + $0x8b] sm:$0xff]
        %v3068 = vld [vmem:[%s368 + $0x93] sm:$0xff]
        %v3069 = vld [vmem:[%s368 + $0x9b] sm:$0xff]
        %v3070 = vld [vmem:[%s368 + $0xa3] sm:$0xff]
        %v3071 = vld [vmem:[%s368 + $0xab] sm:$0xff]
        %v3072 = vld [vmem:[%s368 + $0xb3] sm:$0xff]
        %v3073 = vld [vmem:[%s368 + $0xbb] sm:$0xff]
        %v3074 = vld [vmem:[%s368 + $0xc3] sm:$0xff]
        %v3075 = vld [vmem:[%s368 + $0xcb] sm:$0xff]
        %v3076 = vld [vmem:[%s368 + $0xd3] sm:$0xff]
        %v3077 = vld [vmem:[%s368 + $0xdb] sm:$0xff]
        %v3078 = vld [vmem:[%s368 + $0xe3] sm:$0xff]
        %v3079 = vld [vmem:[%s368 + $0xeb] sm:$0xff]
        %v3080 = vld [vmem:[%s368 + $0xf3] sm:$0xff]
        %v3081 = vld [vmem:[%s368 + $0xfb] sm:$0xff]
        %v3082 = vld [vmem:[%s368 + $0x103] sm:$0xff]
        %v3083 = vld [vmem:[%s368 + $0x10b] sm:$0xff]
        %v3084 = vld [vmem:[%s368 + $0x113] sm:$0xff]
        %v3085 = vld [vmem:[%s368 + $0x11b] sm:$0xff]
        %v3086 = vld [vmem:[%s368 + $0x123] sm:$0xff]
        %v3087 = vld [vmem:[%s368 + $0x12b] sm:$0xff]
        %v3088 = vld [vmem:[%s368 + $0x133] sm:$0xff]
        %v3089 = vld [vmem:[%s368 + $0x13b] sm:$0xff]
        %v3090 = vld [vmem:[%s368 + $0x143] sm:$0xff]
        %v3091 = vld [vmem:[%s368 + $0x14b] sm:$0xff]
        %v3092 = vld [vmem:[%s368 + $0x153] sm:$0xff]
        %v3093 = vld [vmem:[%s368 + $0x15b] sm:$0xff]
        %v3094 = vld [vmem:[%s368 + $0x163] sm:$0xff]
        %v3095 = vld [vmem:[%s368 + $0x16b] sm:$0xf]
        %v3096 = vld [vmem:[%s3 + $0x8] sm:$0x1]
        %3098 = vset.pattern.permute.xlu0 0
        %3099 = vperm.xlu0 %3098, %v3055
        %v3100 = vpop.permute.xlu0 %3099
        %3103 = vset.pattern.permute.xlu0 0
        %3104 = vperm.xlu0 %3103, %v3056
        %v3105 = vpop.permute.xlu0 %3104
        %3108 = vset.pattern.permute.xlu0 0
        %3109 = vperm.xlu0 %3108, %v3057
        %v3110 = vpop.permute.xlu0 %3109
        %3113 = vset.pattern.permute.xlu0 0
        %3114 = vperm.xlu0 %3113, %v3058
        %v3115 = vpop.permute.xlu0 %3114
        %3118 = vset.pattern.permute.xlu0 0
        %3119 = vperm.xlu0 %3118, %v3059
        %v3120 = vpop.permute.xlu0 %3119
        %3123 = vset.pattern.permute.xlu0 0
        %3124 = vperm.xlu0 %3123, %v3060
        %v3125 = vpop.permute.xlu0 %3124
        %3128 = vset.pattern.permute.xlu0 0
        %3129 = vperm.xlu0 %3128, %v3061
        %v3130 = vpop.permute.xlu0 %3129
        %3133 = vset.pattern.permute.xlu0 0
        %3134 = vperm.xlu0 %3133, %v3062
        %v3135 = vpop.permute.xlu0 %3134
        %3138 = vset.pattern.permute.xlu0 0
        %3139 = vperm.xlu0 %3138, %v3063
        %v3140 = vpop.permute.xlu0 %3139
        %3143 = vset.pattern.permute.xlu0 0
        %3144 = vperm.xlu0 %3143, %v3064
        %v3145 = vpop.permute.xlu0 %3144
        %3148 = vset.pattern.permute.xlu0 0
        %3149 = vperm.xlu0 %3148, %v3065
        %v3150 = vpop.permute.xlu0 %3149
        %3153 = vset.pattern.permute.xlu0 0
        %3154 = vperm.xlu0 %3153, %v3066
        %v3155 = vpop.permute.xlu0 %3154
        %3158 = vset.pattern.permute.xlu0 0
        %3159 = vperm.xlu0 %3158, %v3067
        %v3160 = vpop.permute.xlu0 %3159
        %3163 = vset.pattern.permute.xlu0 0
        %3164 = vperm.xlu0 %3163, %v3068
        %v3165 = vpop.permute.xlu0 %3164
        %3168 = vset.pattern.permute.xlu0 0
        %3169 = vperm.xlu0 %3168, %v3069
        %v3170 = vpop.permute.xlu0 %3169
        %3173 = vset.pattern.permute.xlu0 0
        %3174 = vperm.xlu0 %3173, %v3070
        %v3175 = vpop.permute.xlu0 %3174
        %3178 = vset.pattern.permute.xlu0 0
        %3179 = vperm.xlu0 %3178, %v3071
        %v3180 = vpop.permute.xlu0 %3179
        %3183 = vset.pattern.permute.xlu0 0
        %3184 = vperm.xlu0 %3183, %v3072
        %v3185 = vpop.permute.xlu0 %3184
        %3188 = vset.pattern.permute.xlu0 0
        %3189 = vperm.xlu0 %3188, %v3073
        %v3190 = vpop.permute.xlu0 %3189
        %3193 = vset.pattern.permute.xlu0 0
        %3194 = vperm.xlu0 %3193, %v3074
        %v3195 = vpop.permute.xlu0 %3194
        %3198 = vset.pattern.permute.xlu0 0
        %3199 = vperm.xlu0 %3198, %v3075
        %v3200 = vpop.permute.xlu0 %3199
        %3203 = vset.pattern.permute.xlu0 0
        %3204 = vperm.xlu0 %3203, %v3076
        %v3205 = vpop.permute.xlu0 %3204
        %3208 = vset.pattern.permute.xlu0 0
        %3209 = vperm.xlu0 %3208, %v3077
        %v3210 = vpop.permute.xlu0 %3209
        %3213 = vset.pattern.permute.xlu0 0
        %3214 = vperm.xlu0 %3213, %v3078
        %v3215 = vpop.permute.xlu0 %3214
        %3218 = vset.pattern.permute.xlu0 0
        %3219 = vperm.xlu0 %3218, %v3079
        %v3220 = vpop.permute.xlu0 %3219
        %3223 = vset.pattern.permute.xlu0 0
        %3224 = vperm.xlu0 %3223, %v3080
        %v3225 = vpop.permute.xlu0 %3224
        %3228 = vset.pattern.permute.xlu0 0
        %3229 = vperm.xlu0 %3228, %v3081
        %v3230 = vpop.permute.xlu0 %3229
        %3233 = vset.pattern.permute.xlu0 0
        %3234 = vperm.xlu0 %3233, %v3082
        %v3235 = vpop.permute.xlu0 %3234
        %3238 = vset.pattern.permute.xlu0 0
        %3239 = vperm.xlu0 %3238, %v3083
        %v3240 = vpop.permute.xlu0 %3239
        %3243 = vset.pattern.permute.xlu0 0
        %3244 = vperm.xlu0 %3243, %v3084
        %v3245 = vpop.permute.xlu0 %3244
        %3248 = vset.pattern.permute.xlu0 0
        %3249 = vperm.xlu0 %3248, %v3085
        %v3250 = vpop.permute.xlu0 %3249
        %3253 = vset.pattern.permute.xlu0 0
        %3254 = vperm.xlu0 %3253, %v3086
        %v3255 = vpop.permute.xlu0 %3254
        %3258 = vset.pattern.permute.xlu0 0
        %3259 = vperm.xlu0 %3258, %v3087
        %v3260 = vpop.permute.xlu0 %3259
        %3263 = vset.pattern.permute.xlu0 0
        %3264 = vperm.xlu0 %3263, %v3088
        %v3265 = vpop.permute.xlu0 %3264
        %3268 = vset.pattern.permute.xlu0 0
        %3269 = vperm.xlu0 %3268, %v3089
        %v3270 = vpop.permute.xlu0 %3269
        %3273 = vset.pattern.permute.xlu0 0
        %3274 = vperm.xlu0 %3273, %v3090
        %v3275 = vpop.permute.xlu0 %3274
        %3278 = vset.pattern.permute.xlu0 0
        %3279 = vperm.xlu0 %3278, %v3091
        %v3280 = vpop.permute.xlu0 %3279
        %3283 = vset.pattern.permute.xlu0 0
        %3284 = vperm.xlu0 %3283, %v3092
        %v3285 = vpop.permute.xlu0 %3284
        %3288 = vset.pattern.permute.xlu0 0
        %3289 = vperm.xlu0 %3288, %v3093
        %v3290 = vpop.permute.xlu0 %3289
        %3293 = vset.pattern.permute.xlu0 0
        %3294 = vperm.xlu0 %3293, %v3094
        %v3295 = vpop.permute.xlu0 %3294
        %3298 = vset.pattern.permute.xlu0 0
        %3299 = vperm.xlu0 %3298, %v3095
        %v3300 = vpop.permute.xlu0 %3299
        %v3302 = vlaneseq
        %v3303 = vshrl.u32 %v3302, 7
        %v3304 = vsub.s32 0, %v3303
        %v3305 = vrot.slane %v3096, %v3304
        %v3306 = vmul.f32 %v3100, %v3305
        %v3307 = vmul.f32 %v3105, %v3305
        %v3308 = vmul.f32 %v3110, %v3305
        %v3309 = vmul.f32 %v3115, %v3305
        %v3310 = vmul.f32 %v3120, %v3305
        %v3311 = vmul.f32 %v3125, %v3305
        %v3312 = vmul.f32 %v3130, %v3305
        %v3313 = vmul.f32 %v3135, %v3305
        %v3314 = vmul.f32 %v3140, %v3305
        %v3315 = vmul.f32 %v3145, %v3305
        %v3316 = vmul.f32 %v3150, %v3305
        %v3317 = vmul.f32 %v3155, %v3305
        %v3318 = vmul.f32 %v3160, %v3305
        %v3319 = vmul.f32 %v3165, %v3305
        %v3320 = vmul.f32 %v3170, %v3305
        %v3321 = vmul.f32 %v3175, %v3305
        %v3322 = vmul.f32 %v3180, %v3305
        %v3323 = vmul.f32 %v3185, %v3305
        %v3324 = vmul.f32 %v3190, %v3305
        %v3325 = vmul.f32 %v3195, %v3305
        %v3326 = vmul.f32 %v3200, %v3305
        %v3327 = vmul.f32 %v3205, %v3305
        %v3328 = vmul.f32 %v3210, %v3305
        %v3329 = vmul.f32 %v3215, %v3305
        %v3330 = vmul.f32 %v3220, %v3305
        %v3331 = vmul.f32 %v3225, %v3305
        %v3332 = vmul.f32 %v3230, %v3305
        %v3333 = vmul.f32 %v3235, %v3305
        %v3334 = vmul.f32 %v3240, %v3305
        %v3335 = vmul.f32 %v3245, %v3305
        %v3336 = vmul.f32 %v3250, %v3305
        %v3337 = vmul.f32 %v3255, %v3305
        %v3338 = vmul.f32 %v3260, %v3305
        %v3339 = vmul.f32 %v3265, %v3305
        %v3340 = vmul.f32 %v3270, %v3305
        %v3341 = vmul.f32 %v3275, %v3305
        %v3342 = vmul.f32 %v3280, %v3305
        %v3343 = vmul.f32 %v3285, %v3305
        %v3344 = vmul.f32 %v3290, %v3305
        %v3345 = vmul.f32 %v3295, %v3305
        %v3346 = vmul.f32 %v3300, %v3305
        %v3347 = vadd.f32 %v3014, %v3306
        %v3348 = vadd.f32 %v3015, %v3307
        %v3349 = vadd.f32 %v3016, %v3308
        %v3350 = vadd.f32 %v3017, %v3309
        %v3351 = vadd.f32 %v3018, %v3310
        %v3352 = vadd.f32 %v3019, %v3311
        %v3353 = vadd.f32 %v3020, %v3312
        %v3354 = vadd.f32 %v3021, %v3313
        %v3355 = vadd.f32 %v3022, %v3314
        %v3356 = vadd.f32 %v3023, %v3315
        %v3357 = vadd.f32 %v3024, %v3316
        %v3358 = vadd.f32 %v3025, %v3317
        %v3359 = vadd.f32 %v3026, %v3318
        %v3360 = vadd.f32 %v3027, %v3319
        %v3361 = vadd.f32 %v3028, %v3320
        %v3362 = vadd.f32 %v3029, %v3321
        %v3363 = vadd.f32 %v3030, %v3322
        %v3364 = vadd.f32 %v3031, %v3323
        %v3365 = vadd.f32 %v3032, %v3324
        %v3366 = vadd.f32 %v3033, %v3325
        %v3367 = vadd.f32 %v3034, %v3326
        %v3368 = vadd.f32 %v3035, %v3327
        %v3369 = vadd.f32 %v3036, %v3328
        %v3370 = vadd.f32 %v3037, %v3329
        %v3371 = vadd.f32 %v3038, %v3330
        %v3372 = vadd.f32 %v3039, %v3331
        %v3373 = vadd.f32 %v3040, %v3332
        %v3374 = vadd.f32 %v3041, %v3333
        %v3375 = vadd.f32 %v3042, %v3334
        %v3376 = vadd.f32 %v3043, %v3335
        %v3377 = vadd.f32 %v3044, %v3336
        %v3378 = vadd.f32 %v3045, %v3337
        %v3379 = vadd.f32 %v3046, %v3338
        %v3380 = vadd.f32 %v3047, %v3339
        %v3381 = vadd.f32 %v3048, %v3340
        %v3382 = vadd.f32 %v3049, %v3341
        %v3383 = vadd.f32 %v3050, %v3342
        %v3384 = vadd.f32 %v3051, %v3343
        %v3385 = vadd.f32 %v3052, %v3344
        %v3386 = vadd.f32 %v3053, %v3345
        %v3387 = vadd.f32 %v3054, %v3346
        %v3388 = vld [vmem:[%s4] sm:$0x1]
        %v3390 = vlaneseq
        %v3391 = vshrl.u32 %v3390, 7
        %v3392 = vsub.s32 0, %v3391
        %v3393 = vrot.slane %v3388, %v3392
        %v3395 = vadd.f32 %v3347, %v3393
        %v3396 = vadd.f32 %v3348, %v3393
        %v3397 = vadd.f32 %v3349, %v3393
        %v3398 = vadd.f32 %v3350, %v3393
        %v3399 = vadd.f32 %v3351, %v3393
        %v3400 = vadd.f32 %v3352, %v3393
        %v3401 = vadd.f32 %v3353, %v3393
        %v3402 = vadd.f32 %v3354, %v3393
        %v3403 = vadd.f32 %v3355, %v3393
        %v3404 = vadd.f32 %v3356, %v3393
        %v3405 = vadd.f32 %v3357, %v3393
        %v3406 = vadd.f32 %v3358, %v3393
        %v3407 = vadd.f32 %v3359, %v3393
        %v3408 = vadd.f32 %v3360, %v3393
        %v3409 = vadd.f32 %v3361, %v3393
        %v3410 = vadd.f32 %v3362, %v3393
        %v3411 = vadd.f32 %v3363, %v3393
        %v3412 = vadd.f32 %v3364, %v3393
        %v3413 = vadd.f32 %v3365, %v3393
        %v3414 = vadd.f32 %v3366, %v3393
        %v3415 = vadd.f32 %v3367, %v3393
        %v3416 = vadd.f32 %v3368, %v3393
        %v3417 = vadd.f32 %v3369, %v3393
        %v3418 = vadd.f32 %v3370, %v3393
        %v3419 = vadd.f32 %v3371, %v3393
        %v3420 = vadd.f32 %v3372, %v3393
        %v3421 = vadd.f32 %v3373, %v3393
        %v3422 = vadd.f32 %v3374, %v3393
        %v3423 = vadd.f32 %v3375, %v3393
        %v3424 = vadd.f32 %v3376, %v3393
        %v3425 = vadd.f32 %v3377, %v3393
        %v3426 = vadd.f32 %v3378, %v3393
        %v3427 = vadd.f32 %v3379, %v3393
        %v3428 = vadd.f32 %v3380, %v3393
        %v3429 = vadd.f32 %v3381, %v3393
        %v3430 = vadd.f32 %v3382, %v3393
        %v3431 = vadd.f32 %v3383, %v3393
        %v3432 = vadd.f32 %v3384, %v3393
        %v3433 = vadd.f32 %v3385, %v3393
        %v3434 = vadd.f32 %v3386, %v3393
        %v3435 = vadd.f32 %v3387, %v3393
        %vm3436 = vcmp.ge.f32.partialorder %v3395, 0.0
        %vm3437 = vcmp.ge.f32.partialorder %v3396, 0.0
        %vm3438 = vcmp.ge.f32.partialorder %v3397, 0.0
        %vm3439 = vcmp.ge.f32.partialorder %v3398, 0.0
        %vm3440 = vcmp.ge.f32.partialorder %v3399, 0.0
        %vm3441 = vcmp.ge.f32.partialorder %v3400, 0.0
        %vm3442 = vcmp.ge.f32.partialorder %v3401, 0.0
        %vm3443 = vcmp.ge.f32.partialorder %v3402, 0.0
        %vm3444 = vcmp.ge.f32.partialorder %v3403, 0.0
        %vm3445 = vcmp.ge.f32.partialorder %v3404, 0.0
        %vm3446 = vcmp.ge.f32.partialorder %v3405, 0.0
        %vm3447 = vcmp.ge.f32.partialorder %v3406, 0.0
        %vm3448 = vcmp.ge.f32.partialorder %v3407, 0.0
        %vm3449 = vcmp.ge.f32.partialorder %v3408, 0.0
        %vm3450 = vcmp.ge.f32.partialorder %v3409, 0.0
        %vm3451 = vcmp.ge.f32.partialorder %v3410, 0.0
        %vm3452 = vcmp.ge.f32.partialorder %v3411, 0.0
        %vm3453 = vcmp.ge.f32.partialorder %v3412, 0.0
        %vm3454 = vcmp.ge.f32.partialorder %v3413, 0.0
        %vm3455 = vcmp.ge.f32.partialorder %v3414, 0.0
        %vm3456 = vcmp.ge.f32.partialorder %v3415, 0.0
        %vm3457 = vcmp.ge.f32.partialorder %v3416, 0.0
        %vm3458 = vcmp.ge.f32.partialorder %v3417, 0.0
        %vm3459 = vcmp.ge.f32.partialorder %v3418, 0.0
        %vm3460 = vcmp.ge.f32.partialorder %v3419, 0.0
        %vm3461 = vcmp.ge.f32.partialorder %v3420, 0.0
        %vm3462 = vcmp.ge.f32.partialorder %v3421, 0.0
        %vm3463 = vcmp.ge.f32.partialorder %v3422, 0.0
        %vm3464 = vcmp.ge.f32.partialorder %v3423, 0.0
        %vm3465 = vcmp.ge.f32.partialorder %v3424, 0.0
        %vm3466 = vcmp.ge.f32.partialorder %v3425, 0.0
        %vm3467 = vcmp.ge.f32.partialorder %v3426, 0.0
        %vm3468 = vcmp.ge.f32.partialorder %v3427, 0.0
        %vm3469 = vcmp.ge.f32.partialorder %v3428, 0.0
        %vm3470 = vcmp.ge.f32.partialorder %v3429, 0.0
        %vm3471 = vcmp.ge.f32.partialorder %v3430, 0.0
        %vm3472 = vcmp.ge.f32.partialorder %v3431, 0.0
        %vm3473 = vcmp.ge.f32.partialorder %v3432, 0.0
        %vm3474 = vcmp.ge.f32.partialorder %v3433, 0.0
        %vm3475 = vcmp.ge.f32.partialorder %v3434, 0.0
        %vm3476 = vcmp.ge.f32.partialorder %v3435, 0.0
        %v3477 = vstv %s374
        %v3478 = vmul.f32 %v3477, %v3395
        %v3479 = vmul.f32 %v3477, %v3396
        %v3480 = vmul.f32 %v3477, %v3397
        %v3481 = vmul.f32 %v3477, %v3398
        %v3482 = vmul.f32 %v3477, %v3399
        %v3483 = vmul.f32 %v3477, %v3400
        %v3484 = vmul.f32 %v3477, %v3401
        %v3485 = vmul.f32 %v3477, %v3402
        %v3486 = vmul.f32 %v3477, %v3403
        %v3487 = vmul.f32 %v3477, %v3404
        %v3488 = vmul.f32 %v3477, %v3405
        %v3489 = vmul.f32 %v3477, %v3406
        %v3490 = vmul.f32 %v3477, %v3407
        %v3491 = vmul.f32 %v3477, %v3408
        %v3492 = vmul.f32 %v3477, %v3409
        %v3493 = vmul.f32 %v3477, %v3410
        %v3494 = vmul.f32 %v3477, %v3411
        %v3495 = vmul.f32 %v3477, %v3412
        %v3496 = vmul.f32 %v3477, %v3413
        %v3497 = vmul.f32 %v3477, %v3414
        %v3498 = vmul.f32 %v3477, %v3415
        %v3499 = vmul.f32 %v3477, %v3416
        %v3500 = vmul.f32 %v3477, %v3417
        %v3501 = vmul.f32 %v3477, %v3418
        %v3502 = vmul.f32 %v3477, %v3419
        %v3503 = vmul.f32 %v3477, %v3420
        %v3504 = vmul.f32 %v3477, %v3421
        %v3505 = vmul.f32 %v3477, %v3422
        %v3506 = vmul.f32 %v3477, %v3423
        %v3507 = vmul.f32 %v3477, %v3424
        %v3508 = vmul.f32 %v3477, %v3425
        %v3509 = vmul.f32 %v3477, %v3426
        %v3510 = vmul.f32 %v3477, %v3427
        %v3511 = vmul.f32 %v3477, %v3428
        %v3512 = vmul.f32 %v3477, %v3429
        %v3513 = vmul.f32 %v3477, %v3430
        %v3514 = vmul.f32 %v3477, %v3431
        %v3515 = vmul.f32 %v3477, %v3432
        %v3516 = vmul.f32 %v3477, %v3433
        %v3517 = vmul.f32 %v3477, %v3434
        %v3518 = vmul.f32 %v3477, %v3435
        %v3519 = vsel %vm3436, %v3395, %v3478
        %v3520 = vsel %vm3437, %v3396, %v3479
        %v3521 = vsel %vm3438, %v3397, %v3480
        %v3522 = vsel %vm3439, %v3398, %v3481
        %v3523 = vsel %vm3440, %v3399, %v3482
        %v3524 = vsel %vm3441, %v3400, %v3483
        %v3525 = vsel %vm3442, %v3401, %v3484
        %v3526 = vsel %vm3443, %v3402, %v3485
        %v3527 = vsel %vm3444, %v3403, %v3486
        %v3528 = vsel %vm3445, %v3404, %v3487
        %v3529 = vsel %vm3446, %v3405, %v3488
        %v3530 = vsel %vm3447, %v3406, %v3489
        %v3531 = vsel %vm3448, %v3407, %v3490
        %v3532 = vsel %vm3449, %v3408, %v3491
        %v3533 = vsel %vm3450, %v3409, %v3492
        %v3534 = vsel %vm3451, %v3410, %v3493
        %v3535 = vsel %vm3452, %v3411, %v3494
        %v3536 = vsel %vm3453, %v3412, %v3495
        %v3537 = vsel %vm3454, %v3413, %v3496
        %v3538 = vsel %vm3455, %v3414, %v3497
        %v3539 = vsel %vm3456, %v3415, %v3498
        %v3540 = vsel %vm3457, %v3416, %v3499
        %v3541 = vsel %vm3458, %v3417, %v3500
        %v3542 = vsel %vm3459, %v3418, %v3501
        %v3543 = vsel %vm3460, %v3419, %v3502
        %v3544 = vsel %vm3461, %v3420, %v3503
        %v3545 = vsel %vm3462, %v3421, %v3504
        %v3546 = vsel %vm3463, %v3422, %v3505
        %v3547 = vsel %vm3464, %v3423, %v3506
        %v3548 = vsel %vm3465, %v3424, %v3507
        %v3549 = vsel %vm3466, %v3425, %v3508
        %v3550 = vsel %vm3467, %v3426, %v3509
        %v3551 = vsel %vm3468, %v3427, %v3510
        %v3552 = vsel %vm3469, %v3428, %v3511
        %v3553 = vsel %vm3470, %v3429, %v3512
        %v3554 = vsel %vm3471, %v3430, %v3513
        %v3555 = vsel %vm3472, %v3431, %v3514
        %v3556 = vsel %vm3473, %v3432, %v3515
        %v3557 = vsel %vm3474, %v3433, %v3516
        %v3558 = vsel %vm3475, %v3434, %v3517
        %v3559 = vsel %vm3476, %v3435, %v3518
        %3561 = vset.pattern.permute.xlu0 0
        %3562 = vperm.xlu0 %3561, %v377
        %v3563 = vpop.permute.xlu0 %3562
        %3566 = vset.pattern.permute.xlu0 0
        %3567 = vperm.xlu0 %3566, %v378
        %v3568 = vpop.permute.xlu0 %3567
        %3571 = vset.pattern.permute.xlu0 0
        %3572 = vperm.xlu0 %3571, %v379
        %v3573 = vpop.permute.xlu0 %3572
        %3576 = vset.pattern.permute.xlu0 0
        %3577 = vperm.xlu0 %3576, %v380
        %v3578 = vpop.permute.xlu0 %3577
        %3581 = vset.pattern.permute.xlu0 0
        %3582 = vperm.xlu0 %3581, %v381
        %v3583 = vpop.permute.xlu0 %3582
        %3586 = vset.pattern.permute.xlu0 0
        %3587 = vperm.xlu0 %3586, %v382
        %v3588 = vpop.permute.xlu0 %3587
        %3591 = vset.pattern.permute.xlu0 0
        %3592 = vperm.xlu0 %3591, %v383
        %v3593 = vpop.permute.xlu0 %3592
        %3596 = vset.pattern.permute.xlu0 0
        %3597 = vperm.xlu0 %3596, %v384
        %v3598 = vpop.permute.xlu0 %3597
        %3601 = vset.pattern.permute.xlu0 0
        %3602 = vperm.xlu0 %3601, %v385
        %v3603 = vpop.permute.xlu0 %3602
        %3606 = vset.pattern.permute.xlu0 0
        %3607 = vperm.xlu0 %3606, %v386
        %v3608 = vpop.permute.xlu0 %3607
        %3611 = vset.pattern.permute.xlu0 0
        %3612 = vperm.xlu0 %3611, %v387
        %v3613 = vpop.permute.xlu0 %3612
        %3616 = vset.pattern.permute.xlu0 0
        %3617 = vperm.xlu0 %3616, %v388
        %v3618 = vpop.permute.xlu0 %3617
        %3621 = vset.pattern.permute.xlu0 0
        %3622 = vperm.xlu0 %3621, %v389
        %v3623 = vpop.permute.xlu0 %3622
        %3626 = vset.pattern.permute.xlu0 0
        %3627 = vperm.xlu0 %3626, %v390
        %v3628 = vpop.permute.xlu0 %3627
        %3631 = vset.pattern.permute.xlu0 0
        %3632 = vperm.xlu0 %3631, %v391
        %v3633 = vpop.permute.xlu0 %3632
        %3636 = vset.pattern.permute.xlu0 0
        %3637 = vperm.xlu0 %3636, %v392
        %v3638 = vpop.permute.xlu0 %3637
        %3641 = vset.pattern.permute.xlu0 0
        %3642 = vperm.xlu0 %3641, %v393
        %v3643 = vpop.permute.xlu0 %3642
        %3646 = vset.pattern.permute.xlu0 0
        %3647 = vperm.xlu0 %3646, %v394
        %v3648 = vpop.permute.xlu0 %3647
        %3651 = vset.pattern.permute.xlu0 0
        %3652 = vperm.xlu0 %3651, %v395
        %v3653 = vpop.permute.xlu0 %3652
        %3656 = vset.pattern.permute.xlu0 0
        %3657 = vperm.xlu0 %3656, %v396
        %v3658 = vpop.permute.xlu0 %3657
        %3661 = vset.pattern.permute.xlu0 0
        %3662 = vperm.xlu0 %3661, %v397
        %v3663 = vpop.permute.xlu0 %3662
        %3666 = vset.pattern.permute.xlu0 0
        %3667 = vperm.xlu0 %3666, %v398
        %v3668 = vpop.permute.xlu0 %3667
        %3671 = vset.pattern.permute.xlu0 0
        %3672 = vperm.xlu0 %3671, %v399
        %v3673 = vpop.permute.xlu0 %3672
        %3676 = vset.pattern.permute.xlu0 0
        %3677 = vperm.xlu0 %3676, %v400
        %v3678 = vpop.permute.xlu0 %3677
        %3681 = vset.pattern.permute.xlu0 0
        %3682 = vperm.xlu0 %3681, %v401
        %v3683 = vpop.permute.xlu0 %3682
        %3686 = vset.pattern.permute.xlu0 0
        %3687 = vperm.xlu0 %3686, %v402
        %v3688 = vpop.permute.xlu0 %3687
        %3691 = vset.pattern.permute.xlu0 0
        %3692 = vperm.xlu0 %3691, %v403
        %v3693 = vpop.permute.xlu0 %3692
        %3696 = vset.pattern.permute.xlu0 0
        %3697 = vperm.xlu0 %3696, %v404
        %v3698 = vpop.permute.xlu0 %3697
        %3701 = vset.pattern.permute.xlu0 0
        %3702 = vperm.xlu0 %3701, %v405
        %v3703 = vpop.permute.xlu0 %3702
        %3706 = vset.pattern.permute.xlu0 0
        %3707 = vperm.xlu0 %3706, %v406
        %v3708 = vpop.permute.xlu0 %3707
        %3711 = vset.pattern.permute.xlu0 0
        %3712 = vperm.xlu0 %3711, %v407
        %v3713 = vpop.permute.xlu0 %3712
        %3716 = vset.pattern.permute.xlu0 0
        %3717 = vperm.xlu0 %3716, %v408
        %v3718 = vpop.permute.xlu0 %3717
        %3721 = vset.pattern.permute.xlu0 0
        %3722 = vperm.xlu0 %3721, %v409
        %v3723 = vpop.permute.xlu0 %3722
        %3726 = vset.pattern.permute.xlu0 0
        %3727 = vperm.xlu0 %3726, %v410
        %v3728 = vpop.permute.xlu0 %3727
        %3731 = vset.pattern.permute.xlu0 0
        %3732 = vperm.xlu0 %3731, %v411
        %v3733 = vpop.permute.xlu0 %3732
        %3736 = vset.pattern.permute.xlu0 0
        %3737 = vperm.xlu0 %3736, %v412
        %v3738 = vpop.permute.xlu0 %3737
        %3741 = vset.pattern.permute.xlu0 0
        %3742 = vperm.xlu0 %3741, %v413
        %v3743 = vpop.permute.xlu0 %3742
        %3746 = vset.pattern.permute.xlu0 0
        %3747 = vperm.xlu0 %3746, %v414
        %v3748 = vpop.permute.xlu0 %3747
        %3751 = vset.pattern.permute.xlu0 0
        %3752 = vperm.xlu0 %3751, %v415
        %v3753 = vpop.permute.xlu0 %3752
        %3756 = vset.pattern.permute.xlu0 0
        %3757 = vperm.xlu0 %3756, %v416
        %v3758 = vpop.permute.xlu0 %3757
        %3761 = vset.pattern.permute.xlu0 0
        %3762 = vperm.xlu0 %3761, %v417
        %v3763 = vpop.permute.xlu0 %3762
        %v3765 = vmul.f32 %v3519, %v3563
        %v3766 = vmul.f32 %v3520, %v3568
        %v3767 = vmul.f32 %v3521, %v3573
        %v3768 = vmul.f32 %v3522, %v3578
        %v3769 = vmul.f32 %v3523, %v3583
        %v3770 = vmul.f32 %v3524, %v3588
        %v3771 = vmul.f32 %v3525, %v3593
        %v3772 = vmul.f32 %v3526, %v3598
        %v3773 = vmul.f32 %v3527, %v3603
        %v3774 = vmul.f32 %v3528, %v3608
        %v3775 = vmul.f32 %v3529, %v3613
        %v3776 = vmul.f32 %v3530, %v3618
        %v3777 = vmul.f32 %v3531, %v3623
        %v3778 = vmul.f32 %v3532, %v3628
        %v3779 = vmul.f32 %v3533, %v3633
        %v3780 = vmul.f32 %v3534, %v3638
        %v3781 = vmul.f32 %v3535, %v3643
        %v3782 = vmul.f32 %v3536, %v3648
        %v3783 = vmul.f32 %v3537, %v3653
        %v3784 = vmul.f32 %v3538, %v3658
        %v3785 = vmul.f32 %v3539, %v3663
        %v3786 = vmul.f32 %v3540, %v3668
        %v3787 = vmul.f32 %v3541, %v3673
        %v3788 = vmul.f32 %v3542, %v3678
        %v3789 = vmul.f32 %v3543, %v3683
        %v3790 = vmul.f32 %v3544, %v3688
        %v3791 = vmul.f32 %v3545, %v3693
        %v3792 = vmul.f32 %v3546, %v3698
        %v3793 = vmul.f32 %v3547, %v3703
        %v3794 = vmul.f32 %v3548, %v3708
        %v3795 = vmul.f32 %v3549, %v3713
        %v3796 = vmul.f32 %v3550, %v3718
        %v3797 = vmul.f32 %v3551, %v3723
        %v3798 = vmul.f32 %v3552, %v3728
        %v3799 = vmul.f32 %v3553, %v3733
        %v3800 = vmul.f32 %v3554, %v3738
        %v3801 = vmul.f32 %v3555, %v3743
        %v3802 = vmul.f32 %v3556, %v3748
        %v3803 = vmul.f32 %v3557, %v3753
        %v3804 = vmul.f32 %v3558, %v3758
        %v3805 = vmul.f32 %v3559, %v3763
        %3806 = vst.msk [vmem:[#allocation2 + $0x18] sm:$0xff] %vm418, %v3765
        %3807 = vst.msk [vmem:[#allocation2 + $0x20] sm:$0xff] %vm418, %v3766
        %3808 = vst.msk [vmem:[#allocation2 + $0x28] sm:$0xff] %vm418, %v3767
        %3809 = vst.msk [vmem:[#allocation2 + $0x30] sm:$0xff] %vm418, %v3768
        %3810 = vst.msk [vmem:[#allocation2 + $0x38] sm:$0xff] %vm418, %v3769
        %3811 = vst.msk [vmem:[#allocation2 + $0x40] sm:$0xff] %vm418, %v3770
        %3812 = vst.msk [vmem:[#allocation2 + $0x48] sm:$0xff] %vm418, %v3771
        %3813 = vst.msk [vmem:[#allocation2 + $0x50] sm:$0xff] %vm418, %v3772
        %3814 = vst.msk [vmem:[#allocation2 + $0x58] sm:$0xff] %vm418, %v3773
        %3815 = vst.msk [vmem:[#allocation2 + $0x60] sm:$0xff] %vm418, %v3774
        %3816 = vst.msk [vmem:[#allocation2 + $0x68] sm:$0xff] %vm418, %v3775
        %3817 = vst.msk [vmem:[#allocation2 + $0x70] sm:$0xff] %vm418, %v3776
        %3818 = vst.msk [vmem:[#allocation2 + $0x78] sm:$0xff] %vm418, %v3777
        %3819 = vst.msk [vmem:[#allocation2 + $0x80] sm:$0xff] %vm418, %v3778
        %3820 = vst.msk [vmem:[#allocation2 + $0x88] sm:$0xff] %vm418, %v3779
        %3821 = vst.msk [vmem:[#allocation2 + $0x90] sm:$0xff] %vm418, %v3780
        %3822 = vst.msk [vmem:[#allocation2 + $0x98] sm:$0xff] %vm418, %v3781
        %3823 = vst.msk [vmem:[#allocation2 + $0xa0] sm:$0xff] %vm418, %v3782
        %3824 = vst.msk [vmem:[#allocation2 + $0xa8] sm:$0xff] %vm418, %v3783
        %3825 = vst.msk [vmem:[#allocation2 + $0xb0] sm:$0xff] %vm418, %v3784
        %3826 = vst.msk [vmem:[#allocation2 + $0xb8] sm:$0xff] %vm418, %v3785
        %3827 = vst.msk [vmem:[#allocation2 + $0xc0] sm:$0xff] %vm418, %v3786
        %3828 = vst.msk [vmem:[#allocation2 + $0xc8] sm:$0xff] %vm418, %v3787
        %3829 = vst.msk [vmem:[#allocation2 + $0xd0] sm:$0xff] %vm418, %v3788
        %3830 = vst.msk [vmem:[#allocation2 + $0xd8] sm:$0xff] %vm418, %v3789
        %3831 = vst.msk [vmem:[#allocation2 + $0xe0] sm:$0xff] %vm418, %v3790
        %3832 = vst.msk [vmem:[#allocation2 + $0xe8] sm:$0xff] %vm418, %v3791
        %3833 = vst.msk [vmem:[#allocation2 + $0xf0] sm:$0xff] %vm418, %v3792
        %3834 = vst.msk [vmem:[#allocation2 + $0xf8] sm:$0xff] %vm418, %v3793
        %3835 = vst.msk [vmem:[#allocation2 + $0x100] sm:$0xff] %vm418, %v3794
        %3836 = vst.msk [vmem:[#allocation2 + $0x108] sm:$0xff] %vm418, %v3795
        %3837 = vst.msk [vmem:[#allocation2 + $0x110] sm:$0xff] %vm418, %v3796
        %3838 = vst.msk [vmem:[#allocation2 + $0x118] sm:$0xff] %vm418, %v3797
        %3839 = vst.msk [vmem:[#allocation2 + $0x120] sm:$0xff] %vm418, %v3798
        %3840 = vst.msk [vmem:[#allocation2 + $0x128] sm:$0xff] %vm418, %v3799
        %3841 = vst.msk [vmem:[#allocation2 + $0x130] sm:$0xff] %vm418, %v3800
        %3842 = vst.msk [vmem:[#allocation2 + $0x138] sm:$0xff] %vm418, %v3801
        %3843 = vst.msk [vmem:[#allocation2 + $0x140] sm:$0xff] %vm418, %v3802
        %3844 = vst.msk [vmem:[#allocation2 + $0x148] sm:$0xff] %vm418, %v3803
        %3845 = vst.msk [vmem:[#allocation2 + $0x150] sm:$0xff] %vm418, %v3804
        %vm3846 = vcmask 125952
        %3847 = vst.msk [vmem:[#allocation2 + $0x158] sm:$0xf] %vm3846, %v3805
        %v3848 = vld [vmem:[#allocation2 + $0x5] sm:$0xff]
        %v3849 = vld [vmem:[#allocation2 + $0xd] sm:$0xff]
        %v3850 = vld [vmem:[#allocation2 + $0x15] sm:$0xff]
        %v3851 = vld [vmem:[#allocation2 + $0x1d] sm:$0xff]
        %v3852 = vld [vmem:[#allocation2 + $0x25] sm:$0xff]
        %v3853 = vld [vmem:[#allocation2 + $0x2d] sm:$0xff]
        %v3854 = vld [vmem:[#allocation2 + $0x35] sm:$0xff]
        %v3855 = vld [vmem:[#allocation2 + $0x3d] sm:$0xff]
        %v3856 = vld [vmem:[#allocation2 + $0x45] sm:$0xff]
        %v3857 = vld [vmem:[#allocation2 + $0x4d] sm:$0xff]
        %v3858 = vld [vmem:[#allocation2 + $0x55] sm:$0xff]
        %v3859 = vld [vmem:[#allocation2 + $0x5d] sm:$0xff]
        %v3860 = vld [vmem:[#allocation2 + $0x65] sm:$0xff]
        %v3861 = vld [vmem:[#allocation2 + $0x6d] sm:$0xff]
        %v3862 = vld [vmem:[#allocation2 + $0x75] sm:$0xff]
        %v3863 = vld [vmem:[#allocation2 + $0x7d] sm:$0xff]
        %v3864 = vld [vmem:[#allocation2 + $0x85] sm:$0xff]
        %v3865 = vld [vmem:[#allocation2 + $0x8d] sm:$0xff]
        %v3866 = vld [vmem:[#allocation2 + $0x95] sm:$0xff]
        %v3867 = vld [vmem:[#allocation2 + $0x9d] sm:$0xff]
        %v3868 = vld [vmem:[#allocation2 + $0xa5] sm:$0xff]
        %v3869 = vld [vmem:[#allocation2 + $0xad] sm:$0xff]
        %v3870 = vld [vmem:[#allocation2 + $0xb5] sm:$0xff]
        %v3871 = vld [vmem:[#allocation2 + $0xbd] sm:$0xff]
        %v3872 = vld [vmem:[#allocation2 + $0xc5] sm:$0xff]
        %v3873 = vld [vmem:[#allocation2 + $0xcd] sm:$0xff]
        %v3874 = vld [vmem:[#allocation2 + $0xd5] sm:$0xff]
        %v3875 = vld [vmem:[#allocation2 + $0xdd] sm:$0xff]
        %v3876 = vld [vmem:[#allocation2 + $0xe5] sm:$0xff]
        %v3877 = vld [vmem:[#allocation2 + $0xed] sm:$0xff]
        %v3878 = vld [vmem:[#allocation2 + $0xf5] sm:$0xff]
        %v3879 = vld [vmem:[#allocation2 + $0xfd] sm:$0xff]
        %v3880 = vld [vmem:[#allocation2 + $0x105] sm:$0xff]
        %v3881 = vld [vmem:[#allocation2 + $0x10d] sm:$0xff]
        %v3882 = vld [vmem:[#allocation2 + $0x115] sm:$0xff]
        %v3883 = vld [vmem:[#allocation2 + $0x11d] sm:$0xff]
        %v3884 = vld [vmem:[#allocation2 + $0x125] sm:$0xff]
        %v3885 = vld [vmem:[#allocation2 + $0x12d] sm:$0xff]
        %v3886 = vld [vmem:[#allocation2 + $0x135] sm:$0xff]
        %v3887 = vld [vmem:[#allocation2 + $0x13d] sm:$0xff]
        %v3888 = vld [vmem:[#allocation2 + $0x145] sm:$0xf]
        %3889 = vst.msk [vmem:[#allocation4] sm:$0xff] %vm418, %v3848
        %3890 = vst.msk [vmem:[#allocation4 + $0x10] sm:$0xff] %vm418, %v3849
        %3891 = vst.msk [vmem:[#allocation4 + $0x20] sm:$0xff] %vm418, %v3850
        %3892 = vst.msk [vmem:[#allocation4 + $0x30] sm:$0xff] %vm418, %v3851
        %3893 = vst.msk [vmem:[#allocation4 + $0x40] sm:$0xff] %vm418, %v3852
        %3894 = vst.msk [vmem:[#allocation4 + $0x50] sm:$0xff] %vm418, %v3853
        %3895 = vst.msk [vmem:[#allocation4 + $0x60] sm:$0xff] %vm418, %v3854
        %3896 = vst.msk [vmem:[#allocation4 + $0x70] sm:$0xff] %vm418, %v3855
        %3897 = vst.msk [vmem:[#allocation4 + $0x80] sm:$0xff] %vm418, %v3856
        %3898 = vst.msk [vmem:[#allocation4 + $0x90] sm:$0xff] %vm418, %v3857
        %3899 = vst.msk [vmem:[#allocation4 + $0xa0] sm:$0xff] %vm418, %v3858
        %3900 = vst.msk [vmem:[#allocation4 + $0xb0] sm:$0xff] %vm418, %v3859
        %3901 = vst.msk [vmem:[#allocation4 + $0xc0] sm:$0xff] %vm418, %v3860
        %3902 = vst.msk [vmem:[#allocation4 + $0xd0] sm:$0xff] %vm418, %v3861
        %3903 = vst.msk [vmem:[#allocation4 + $0xe0] sm:$0xff] %vm418, %v3862
        %3904 = vst.msk [vmem:[#allocation4 + $0xf0] sm:$0xff] %vm418, %v3863
        %3905 = vst.msk [vmem:[#allocation4 + $0x100] sm:$0xff] %vm418, %v3864
        %3906 = vst.msk [vmem:[#allocation4 + $0x110] sm:$0xff] %vm418, %v3865
        %3907 = vst.msk [vmem:[#allocation4 + $0x120] sm:$0xff] %vm418, %v3866
        %3908 = vst.msk [vmem:[#allocation4 + $0x130] sm:$0xff] %vm418, %v3867
        %3909 = vst.msk [vmem:[#allocation4 + $0x140] sm:$0xff] %vm418, %v3868
        %3910 = vst.msk [vmem:[#allocation4 + $0x150] sm:$0xff] %vm418, %v3869
        %3911 = vst.msk [vmem:[#allocation4 + $0x160] sm:$0xff] %vm418, %v3870
        %3912 = vst.msk [vmem:[#allocation4 + $0x170] sm:$0xff] %vm418, %v3871
        %3913 = vst.msk [vmem:[#allocation4 + $0x180] sm:$0xff] %vm418, %v3872
        %3914 = vst.msk [vmem:[#allocation4 + $0x190] sm:$0xff] %vm418, %v3873
        %3915 = vst.msk [vmem:[#allocation4 + $0x1a0] sm:$0xff] %vm418, %v3874
        %3916 = vst.msk [vmem:[#allocation4 + $0x1b0] sm:$0xff] %vm418, %v3875
        %3917 = vst.msk [vmem:[#allocation4 + $0x1c0] sm:$0xff] %vm418, %v3876
        %3918 = vst.msk [vmem:[#allocation4 + $0x1d0] sm:$0xff] %vm418, %v3877
        %3919 = vst.msk [vmem:[#allocation4 + $0x1e0] sm:$0xff] %vm418, %v3878
        %3920 = vst.msk [vmem:[#allocation4 + $0x1f0] sm:$0xff] %vm418, %v3879
        %3921 = vst.msk [vmem:[#allocation4 + $0x200] sm:$0xff] %vm418, %v3880
        %3922 = vst.msk [vmem:[#allocation4 + $0x210] sm:$0xff] %vm418, %v3881
        %3923 = vst.msk [vmem:[#allocation4 + $0x220] sm:$0xff] %vm418, %v3882
        %3924 = vst.msk [vmem:[#allocation4 + $0x230] sm:$0xff] %vm418, %v3883
        %3925 = vst.msk [vmem:[#allocation4 + $0x240] sm:$0xff] %vm418, %v3884
        %3926 = vst.msk [vmem:[#allocation4 + $0x250] sm:$0xff] %vm418, %v3885
        %3927 = vst.msk [vmem:[#allocation4 + $0x260] sm:$0xff] %vm418, %v3886
        %3928 = vst.msk [vmem:[#allocation4 + $0x270] sm:$0xff] %vm418, %v3887
        %3929 = vst.msk [vmem:[#allocation4 + $0x280] sm:$0xf] %vm3846, %v3888
        %v3930 = vld [vmem:[#allocation2 + $0x6] sm:$0xff]
        %v3931 = vld [vmem:[#allocation2 + $0xe] sm:$0xff]
        %v3932 = vld [vmem:[#allocation2 + $0x16] sm:$0xff]
        %v3933 = vld [vmem:[#allocation2 + $0x1e] sm:$0xff]
        %v3934 = vld [vmem:[#allocation2 + $0x26] sm:$0xff]
        %v3935 = vld [vmem:[#allocation2 + $0x2e] sm:$0xff]
        %v3936 = vld [vmem:[#allocation2 + $0x36] sm:$0xff]
        %v3937 = vld [vmem:[#allocation2 + $0x3e] sm:$0xff]
        %v3938 = vld [vmem:[#allocation2 + $0x46] sm:$0xff]
        %v3939 = vld [vmem:[#allocation2 + $0x4e] sm:$0xff]
        %v3940 = vld [vmem:[#allocation2 + $0x56] sm:$0xff]
        %v3941 = vld [vmem:[#allocation2 + $0x5e] sm:$0xff]
        %v3942 = vld [vmem:[#allocation2 + $0x66] sm:$0xff]
        %v3943 = vld [vmem:[#allocation2 + $0x6e] sm:$0xff]
        %v3944 = vld [vmem:[#allocation2 + $0x76] sm:$0xff]
        %v3945 = vld [vmem:[#allocation2 + $0x7e] sm:$0xff]
        %v3946 = vld [vmem:[#allocation2 + $0x86] sm:$0xff]
        %v3947 = vld [vmem:[#allocation2 + $0x8e] sm:$0xff]
        %v3948 = vld [vmem:[#allocation2 + $0x96] sm:$0xff]
        %v3949 = vld [vmem:[#allocation2 + $0x9e] sm:$0xff]
        %v3950 = vld [vmem:[#allocation2 + $0xa6] sm:$0xff]
        %v3951 = vld [vmem:[#allocation2 + $0xae] sm:$0xff]
        %v3952 = vld [vmem:[#allocation2 + $0xb6] sm:$0xff]
        %v3953 = vld [vmem:[#allocation2 + $0xbe] sm:$0xff]
        %v3954 = vld [vmem:[#allocation2 + $0xc6] sm:$0xff]
        %v3955 = vld [vmem:[#allocation2 + $0xce] sm:$0xff]
        %v3956 = vld [vmem:[#allocation2 + $0xd6] sm:$0xff]
        %v3957 = vld [vmem:[#allocation2 + $0xde] sm:$0xff]
        %v3958 = vld [vmem:[#allocation2 + $0xe6] sm:$0xff]
        %v3959 = vld [vmem:[#allocation2 + $0xee] sm:$0xff]
        %v3960 = vld [vmem:[#allocation2 + $0xf6] sm:$0xff]
        %v3961 = vld [vmem:[#allocation2 + $0xfe] sm:$0xff]
        %v3962 = vld [vmem:[#allocation2 + $0x106] sm:$0xff]
        %v3963 = vld [vmem:[#allocation2 + $0x10e] sm:$0xff]
        %v3964 = vld [vmem:[#allocation2 + $0x116] sm:$0xff]
        %v3965 = vld [vmem:[#allocation2 + $0x11e] sm:$0xff]
        %v3966 = vld [vmem:[#allocation2 + $0x126] sm:$0xff]
        %v3967 = vld [vmem:[#allocation2 + $0x12e] sm:$0xff]
        %v3968 = vld [vmem:[#allocation2 + $0x136] sm:$0xff]
        %v3969 = vld [vmem:[#allocation2 + $0x13e] sm:$0xff]
        %v3970 = vld [vmem:[#allocation2 + $0x146] sm:$0xf]
        %4012 = vrot.lane.b32.xlu0 %v3930, 16
        %v4013 = vpop.permute.xlu0 %4012
        %4014 = vrot.lane.b32.xlu0 %v3931, 16
        %v4015 = vpop.permute.xlu0 %4014
        %4016 = vrot.lane.b32.xlu0 %v3932, 16
        %v4017 = vpop.permute.xlu0 %4016
        %4018 = vrot.lane.b32.xlu0 %v3933, 16
        %v4019 = vpop.permute.xlu0 %4018
        %4020 = vrot.lane.b32.xlu0 %v3934, 16
        %v4021 = vpop.permute.xlu0 %4020
        %4022 = vrot.lane.b32.xlu0 %v3935, 16
        %v4023 = vpop.permute.xlu0 %4022
        %4024 = vrot.lane.b32.xlu0 %v3936, 16
        %v4025 = vpop.permute.xlu0 %4024
        %4026 = vrot.lane.b32.xlu0 %v3937, 16
        %v4027 = vpop.permute.xlu0 %4026
        %4028 = vrot.lane.b32.xlu0 %v3938, 16
        %v4029 = vpop.permute.xlu0 %4028
        %4030 = vrot.lane.b32.xlu0 %v3939, 16
        %v4031 = vpop.permute.xlu0 %4030
        %4032 = vrot.lane.b32.xlu0 %v3940, 16
        %v4033 = vpop.permute.xlu0 %4032
        %4034 = vrot.lane.b32.xlu0 %v3941, 16
        %v4035 = vpop.permute.xlu0 %4034
        %4036 = vrot.lane.b32.xlu0 %v3942, 16
        %v4037 = vpop.permute.xlu0 %4036
        %4038 = vrot.lane.b32.xlu0 %v3943, 16
        %v4039 = vpop.permute.xlu0 %4038
        %4040 = vrot.lane.b32.xlu0 %v3944, 16
        %v4041 = vpop.permute.xlu0 %4040
        %4042 = vrot.lane.b32.xlu0 %v3945, 16
        %v4043 = vpop.permute.xlu0 %4042
        %4044 = vrot.lane.b32.xlu0 %v3946, 16
        %v4045 = vpop.permute.xlu0 %4044
        %4046 = vrot.lane.b32.xlu0 %v3947, 16
        %v4047 = vpop.permute.xlu0 %4046
        %4048 = vrot.lane.b32.xlu0 %v3948, 16
        %v4049 = vpop.permute.xlu0 %4048
        %4050 = vrot.lane.b32.xlu0 %v3949, 16
        %v4051 = vpop.permute.xlu0 %4050
        %4052 = vrot.lane.b32.xlu0 %v3950, 16
        %v4053 = vpop.permute.xlu0 %4052
        %4054 = vrot.lane.b32.xlu0 %v3951, 16
        %v4055 = vpop.permute.xlu0 %4054
        %4056 = vrot.lane.b32.xlu0 %v3952, 16
        %v4057 = vpop.permute.xlu0 %4056
        %4058 = vrot.lane.b32.xlu0 %v3953, 16
        %v4059 = vpop.permute.xlu0 %4058
        %4060 = vrot.lane.b32.xlu0 %v3954, 16
        %v4061 = vpop.permute.xlu0 %4060
        %4062 = vrot.lane.b32.xlu0 %v3955, 16
        %v4063 = vpop.permute.xlu0 %4062
        %4064 = vrot.lane.b32.xlu0 %v3956, 16
        %v4065 = vpop.permute.xlu0 %4064
        %4066 = vrot.lane.b32.xlu0 %v3957, 16
        %v4067 = vpop.permute.xlu0 %4066
        %4068 = vrot.lane.b32.xlu0 %v3958, 16
        %v4069 = vpop.permute.xlu0 %4068
        %4070 = vrot.lane.b32.xlu0 %v3959, 16
        %v4071 = vpop.permute.xlu0 %4070
        %4072 = vrot.lane.b32.xlu0 %v3960, 16
        %v4073 = vpop.permute.xlu0 %4072
        %4074 = vrot.lane.b32.xlu0 %v3961, 16
        %v4075 = vpop.permute.xlu0 %4074
        %4076 = vrot.lane.b32.xlu0 %v3962, 16
        %v4077 = vpop.permute.xlu0 %4076
        %4078 = vrot.lane.b32.xlu0 %v3963, 16
        %v4079 = vpop.permute.xlu0 %4078
        %4080 = vrot.lane.b32.xlu0 %v3964, 16
        %v4081 = vpop.permute.xlu0 %4080
        %4082 = vrot.lane.b32.xlu0 %v3965, 16
        %v4083 = vpop.permute.xlu0 %4082
        %4084 = vrot.lane.b32.xlu0 %v3966, 16
        %v4085 = vpop.permute.xlu0 %4084
        %4086 = vrot.lane.b32.xlu0 %v3967, 16
        %v4087 = vpop.permute.xlu0 %4086
        %4088 = vrot.lane.b32.xlu0 %v3968, 16
        %v4089 = vpop.permute.xlu0 %4088
        %4090 = vrot.lane.b32.xlu0 %v3969, 16
        %v4091 = vpop.permute.xlu0 %4090
        %4092 = vrot.lane.b32.xlu0 %v3970, 16
        %v4093 = vpop.permute.xlu0 %4092
        %vm4135 = vcmask 261248
        %4136 = vst.msk [vmem:[#allocation4] sm:$0xff] %vm4135, %v4013
        %4137 = vst.msk [vmem:[#allocation4 + $0x10] sm:$0xff] %vm4135, %v4015
        %4138 = vst.msk [vmem:[#allocation4 + $0x20] sm:$0xff] %vm4135, %v4017
        %4139 = vst.msk [vmem:[#allocation4 + $0x30] sm:$0xff] %vm4135, %v4019
        %4140 = vst.msk [vmem:[#allocation4 + $0x40] sm:$0xff] %vm4135, %v4021
        %4141 = vst.msk [vmem:[#allocation4 + $0x50] sm:$0xff] %vm4135, %v4023
        %4142 = vst.msk [vmem:[#allocation4 + $0x60] sm:$0xff] %vm4135, %v4025
        %4143 = vst.msk [vmem:[#allocation4 + $0x70] sm:$0xff] %vm4135, %v4027
        %4144 = vst.msk [vmem:[#allocation4 + $0x80] sm:$0xff] %vm4135, %v4029
        %4145 = vst.msk [vmem:[#allocation4 + $0x90] sm:$0xff] %vm4135, %v4031
        %4146 = vst.msk [vmem:[#allocation4 + $0xa0] sm:$0xff] %vm4135, %v4033
        %4147 = vst.msk [vmem:[#allocation4 + $0xb0] sm:$0xff] %vm4135, %v4035
        %4148 = vst.msk [vmem:[#allocation4 + $0xc0] sm:$0xff] %vm4135, %v4037
        %4149 = vst.msk [vmem:[#allocation4 + $0xd0] sm:$0xff] %vm4135, %v4039
        %4150 = vst.msk [vmem:[#allocation4 + $0xe0] sm:$0xff] %vm4135, %v4041
        %4151 = vst.msk [vmem:[#allocation4 + $0xf0] sm:$0xff] %vm4135, %v4043
        %4152 = vst.msk [vmem:[#allocation4 + $0x100] sm:$0xff] %vm4135, %v4045
        %4153 = vst.msk [vmem:[#allocation4 + $0x110] sm:$0xff] %vm4135, %v4047
        %4154 = vst.msk [vmem:[#allocation4 + $0x120] sm:$0xff] %vm4135, %v4049
        %4155 = vst.msk [vmem:[#allocation4 + $0x130] sm:$0xff] %vm4135, %v4051
        %4156 = vst.msk [vmem:[#allocation4 + $0x140] sm:$0xff] %vm4135, %v4053
        %4157 = vst.msk [vmem:[#allocation4 + $0x150] sm:$0xff] %vm4135, %v4055
        %4158 = vst.msk [vmem:[#allocation4 + $0x160] sm:$0xff] %vm4135, %v4057
        %4159 = vst.msk [vmem:[#allocation4 + $0x170] sm:$0xff] %vm4135, %v4059
        %4160 = vst.msk [vmem:[#allocation4 + $0x180] sm:$0xff] %vm4135, %v4061
        %4161 = vst.msk [vmem:[#allocation4 + $0x190] sm:$0xff] %vm4135, %v4063
        %4162 = vst.msk [vmem:[#allocation4 + $0x1a0] sm:$0xff] %vm4135, %v4065
        %4163 = vst.msk [vmem:[#allocation4 + $0x1b0] sm:$0xff] %vm4135, %v4067
        %4164 = vst.msk [vmem:[#allocation4 + $0x1c0] sm:$0xff] %vm4135, %v4069
        %4165 = vst.msk [vmem:[#allocation4 + $0x1d0] sm:$0xff] %vm4135, %v4071
        %4166 = vst.msk [vmem:[#allocation4 + $0x1e0] sm:$0xff] %vm4135, %v4073
        %4167 = vst.msk [vmem:[#allocation4 + $0x1f0] sm:$0xff] %vm4135, %v4075
        %4168 = vst.msk [vmem:[#allocation4 + $0x200] sm:$0xff] %vm4135, %v4077
        %4169 = vst.msk [vmem:[#allocation4 + $0x210] sm:$0xff] %vm4135, %v4079
        %4170 = vst.msk [vmem:[#allocation4 + $0x220] sm:$0xff] %vm4135, %v4081
        %4171 = vst.msk [vmem:[#allocation4 + $0x230] sm:$0xff] %vm4135, %v4083
        %4172 = vst.msk [vmem:[#allocation4 + $0x240] sm:$0xff] %vm4135, %v4085
        %4173 = vst.msk [vmem:[#allocation4 + $0x250] sm:$0xff] %vm4135, %v4087
        %4174 = vst.msk [vmem:[#allocation4 + $0x260] sm:$0xff] %vm4135, %v4089
        %4175 = vst.msk [vmem:[#allocation4 + $0x270] sm:$0xff] %vm4135, %v4091
        %vm4176 = vcmask 257152
        %4177 = vst.msk [vmem:[#allocation4 + $0x280] sm:$0xf] %vm4176, %v4093
        %v4178 = vld [vmem:[#allocation2 + $0x7] sm:$0xff]
        %v4179 = vld [vmem:[#allocation2 + $0xf] sm:$0xff]
        %v4180 = vld [vmem:[#allocation2 + $0x17] sm:$0xff]
        %v4181 = vld [vmem:[#allocation2 + $0x1f] sm:$0xff]
        %v4182 = vld [vmem:[#allocation2 + $0x27] sm:$0xff]
        %v4183 = vld [vmem:[#allocation2 + $0x2f] sm:$0xff]
        %v4184 = vld [vmem:[#allocation2 + $0x37] sm:$0xff]
        %v4185 = vld [vmem:[#allocation2 + $0x3f] sm:$0xff]
        %v4186 = vld [vmem:[#allocation2 + $0x47] sm:$0xff]
        %v4187 = vld [vmem:[#allocation2 + $0x4f] sm:$0xff]
        %v4188 = vld [vmem:[#allocation2 + $0x57] sm:$0xff]
        %v4189 = vld [vmem:[#allocation2 + $0x5f] sm:$0xff]
        %v4190 = vld [vmem:[#allocation2 + $0x67] sm:$0xff]
        %v4191 = vld [vmem:[#allocation2 + $0x6f] sm:$0xff]
        %v4192 = vld [vmem:[#allocation2 + $0x77] sm:$0xff]
        %v4193 = vld [vmem:[#allocation2 + $0x7f] sm:$0xff]
        %v4194 = vld [vmem:[#allocation2 + $0x87] sm:$0xff]
        %v4195 = vld [vmem:[#allocation2 + $0x8f] sm:$0xff]
        %v4196 = vld [vmem:[#allocation2 + $0x97] sm:$0xff]
        %v4197 = vld [vmem:[#allocation2 + $0x9f] sm:$0xff]
        %v4198 = vld [vmem:[#allocation2 + $0xa7] sm:$0xff]
        %v4199 = vld [vmem:[#allocation2 + $0xaf] sm:$0xff]
        %v4200 = vld [vmem:[#allocation2 + $0xb7] sm:$0xff]
        %v4201 = vld [vmem:[#allocation2 + $0xbf] sm:$0xff]
        %v4202 = vld [vmem:[#allocation2 + $0xc7] sm:$0xff]
        %v4203 = vld [vmem:[#allocation2 + $0xcf] sm:$0xff]
        %v4204 = vld [vmem:[#allocation2 + $0xd7] sm:$0xff]
        %v4205 = vld [vmem:[#allocation2 + $0xdf] sm:$0xff]
        %v4206 = vld [vmem:[#allocation2 + $0xe7] sm:$0xff]
        %v4207 = vld [vmem:[#allocation2 + $0xef] sm:$0xff]
        %v4208 = vld [vmem:[#allocation2 + $0xf7] sm:$0xff]
        %v4209 = vld [vmem:[#allocation2 + $0xff] sm:$0xff]
        %v4210 = vld [vmem:[#allocation2 + $0x107] sm:$0xff]
        %v4211 = vld [vmem:[#allocation2 + $0x10f] sm:$0xff]
        %v4212 = vld [vmem:[#allocation2 + $0x117] sm:$0xff]
        %v4213 = vld [vmem:[#allocation2 + $0x11f] sm:$0xff]
        %v4214 = vld [vmem:[#allocation2 + $0x127] sm:$0xff]
        %v4215 = vld [vmem:[#allocation2 + $0x12f] sm:$0xff]
        %v4216 = vld [vmem:[#allocation2 + $0x137] sm:$0xff]
        %v4217 = vld [vmem:[#allocation2 + $0x13f] sm:$0xff]
        %v4218 = vld [vmem:[#allocation2 + $0x147] sm:$0xf]
        %4260 = vrot.lane.b32.xlu0 %v4178, 32
        %v4261 = vpop.permute.xlu0 %4260
        %4262 = vrot.lane.b32.xlu0 %v4179, 32
        %v4263 = vpop.permute.xlu0 %4262
        %4264 = vrot.lane.b32.xlu0 %v4180, 32
        %v4265 = vpop.permute.xlu0 %4264
        %4266 = vrot.lane.b32.xlu0 %v4181, 32
        %v4267 = vpop.permute.xlu0 %4266
        %4268 = vrot.lane.b32.xlu0 %v4182, 32
        %v4269 = vpop.permute.xlu0 %4268
        %4270 = vrot.lane.b32.xlu0 %v4183, 32
        %v4271 = vpop.permute.xlu0 %4270
        %4272 = vrot.lane.b32.xlu0 %v4184, 32
        %v4273 = vpop.permute.xlu0 %4272
        %4274 = vrot.lane.b32.xlu0 %v4185, 32
        %v4275 = vpop.permute.xlu0 %4274
        %4276 = vrot.lane.b32.xlu0 %v4186, 32
        %v4277 = vpop.permute.xlu0 %4276
        %4278 = vrot.lane.b32.xlu0 %v4187, 32
        %v4279 = vpop.permute.xlu0 %4278
        %4280 = vrot.lane.b32.xlu0 %v4188, 32
        %v4281 = vpop.permute.xlu0 %4280
        %4282 = vrot.lane.b32.xlu0 %v4189, 32
        %v4283 = vpop.permute.xlu0 %4282
        %4284 = vrot.lane.b32.xlu0 %v4190, 32
        %v4285 = vpop.permute.xlu0 %4284
        %4286 = vrot.lane.b32.xlu0 %v4191, 32
        %v4287 = vpop.permute.xlu0 %4286
        %4288 = vrot.lane.b32.xlu0 %v4192, 32
        %v4289 = vpop.permute.xlu0 %4288
        %4290 = vrot.lane.b32.xlu0 %v4193, 32
        %v4291 = vpop.permute.xlu0 %4290
        %4292 = vrot.lane.b32.xlu0 %v4194, 32
        %v4293 = vpop.permute.xlu0 %4292
        %4294 = vrot.lane.b32.xlu0 %v4195, 32
        %v4295 = vpop.permute.xlu0 %4294
        %4296 = vrot.lane.b32.xlu0 %v4196, 32
        %v4297 = vpop.permute.xlu0 %4296
        %4298 = vrot.lane.b32.xlu0 %v4197, 32
        %v4299 = vpop.permute.xlu0 %4298
        %4300 = vrot.lane.b32.xlu0 %v4198, 32
        %v4301 = vpop.permute.xlu0 %4300
        %4302 = vrot.lane.b32.xlu0 %v4199, 32
        %v4303 = vpop.permute.xlu0 %4302
        %4304 = vrot.lane.b32.xlu0 %v4200, 32
        %v4305 = vpop.permute.xlu0 %4304
        %4306 = vrot.lane.b32.xlu0 %v4201, 32
        %v4307 = vpop.permute.xlu0 %4306
        %4308 = vrot.lane.b32.xlu0 %v4202, 32
        %v4309 = vpop.permute.xlu0 %4308
        %4310 = vrot.lane.b32.xlu0 %v4203, 32
        %v4311 = vpop.permute.xlu0 %4310
        %4312 = vrot.lane.b32.xlu0 %v4204, 32
        %v4313 = vpop.permute.xlu0 %4312
        %4314 = vrot.lane.b32.xlu0 %v4205, 32
        %v4315 = vpop.permute.xlu0 %4314
        %4316 = vrot.lane.b32.xlu0 %v4206, 32
        %v4317 = vpop.permute.xlu0 %4316
        %4318 = vrot.lane.b32.xlu0 %v4207, 32
        %v4319 = vpop.permute.xlu0 %4318
        %4320 = vrot.lane.b32.xlu0 %v4208, 32
        %v4321 = vpop.permute.xlu0 %4320
        %4322 = vrot.lane.b32.xlu0 %v4209, 32
        %v4323 = vpop.permute.xlu0 %4322
        %4324 = vrot.lane.b32.xlu0 %v4210, 32
        %v4325 = vpop.permute.xlu0 %4324
        %4326 = vrot.lane.b32.xlu0 %v4211, 32
        %v4327 = vpop.permute.xlu0 %4326
        %4328 = vrot.lane.b32.xlu0 %v4212, 32
        %v4329 = vpop.permute.xlu0 %4328
        %4330 = vrot.lane.b32.xlu0 %v4213, 32
        %v4331 = vpop.permute.xlu0 %4330
        %4332 = vrot.lane.b32.xlu0 %v4214, 32
        %v4333 = vpop.permute.xlu0 %4332
        %4334 = vrot.lane.b32.xlu0 %v4215, 32
        %v4335 = vpop.permute.xlu0 %4334
        %4336 = vrot.lane.b32.xlu0 %v4216, 32
        %v4337 = vpop.permute.xlu0 %4336
        %4338 = vrot.lane.b32.xlu0 %v4217, 32
        %v4339 = vpop.permute.xlu0 %4338
        %4340 = vrot.lane.b32.xlu0 %v4218, 32
        %v4341 = vpop.permute.xlu0 %4340
        %vm4383 = vcmask 392448
        %4384 = vst.msk [vmem:[#allocation4] sm:$0xff] %vm4383, %v4261
        %4385 = vst.msk [vmem:[#allocation4 + $0x10] sm:$0xff] %vm4383, %v4263
        %4386 = vst.msk [vmem:[#allocation4 + $0x20] sm:$0xff] %vm4383, %v4265
        %4387 = vst.msk [vmem:[#allocation4 + $0x30] sm:$0xff] %vm4383, %v4267
        %4388 = vst.msk [vmem:[#allocation4 + $0x40] sm:$0xff] %vm4383, %v4269
        %4389 = vst.msk [vmem:[#allocation4 + $0x50] sm:$0xff] %vm4383, %v4271
        %4390 = vst.msk [vmem:[#allocation4 + $0x60] sm:$0xff] %vm4383, %v4273
        %4391 = vst.msk [vmem:[#allocation4 + $0x70] sm:$0xff] %vm4383, %v4275
        %4392 = vst.msk [vmem:[#allocation4 + $0x80] sm:$0xff] %vm4383, %v4277
        %4393 = vst.msk [vmem:[#allocation4 + $0x90] sm:$0xff] %vm4383, %v4279
        %4394 = vst.msk [vmem:[#allocation4 + $0xa0] sm:$0xff] %vm4383, %v4281
        %4395 = vst.msk [vmem:[#allocation4 + $0xb0] sm:$0xff] %vm4383, %v4283
        %4396 = vst.msk [vmem:[#allocation4 + $0xc0] sm:$0xff] %vm4383, %v4285
        %4397 = vst.msk [vmem:[#allocation4 + $0xd0] sm:$0xff] %vm4383, %v4287
        %4398 = vst.msk [vmem:[#allocation4 + $0xe0] sm:$0xff] %vm4383, %v4289
        %4399 = vst.msk [vmem:[#allocation4 + $0xf0] sm:$0xff] %vm4383, %v4291
        %4400 = vst.msk [vmem:[#allocation4 + $0x100] sm:$0xff] %vm4383, %v4293
        %4401 = vst.msk [vmem:[#allocation4 + $0x110] sm:$0xff] %vm4383, %v4295
        %4402 = vst.msk [vmem:[#allocation4 + $0x120] sm:$0xff] %vm4383, %v4297
        %4403 = vst.msk [vmem:[#allocation4 + $0x130] sm:$0xff] %vm4383, %v4299
        %4404 = vst.msk [vmem:[#allocation4 + $0x140] sm:$0xff] %vm4383, %v4301
        %4405 = vst.msk [vmem:[#allocation4 + $0x150] sm:$0xff] %vm4383, %v4303
        %4406 = vst.msk [vmem:[#allocation4 + $0x160] sm:$0xff] %vm4383, %v4305
        %4407 = vst.msk [vmem:[#allocation4 + $0x170] sm:$0xff] %vm4383, %v4307
        %4408 = vst.msk [vmem:[#allocation4 + $0x180] sm:$0xff] %vm4383, %v4309
        %4409 = vst.msk [vmem:[#allocation4 + $0x190] sm:$0xff] %vm4383, %v4311
        %4410 = vst.msk [vmem:[#allocation4 + $0x1a0] sm:$0xff] %vm4383, %v4313
        %4411 = vst.msk [vmem:[#allocation4 + $0x1b0] sm:$0xff] %vm4383, %v4315
        %4412 = vst.msk [vmem:[#allocation4 + $0x1c0] sm:$0xff] %vm4383, %v4317
        %4413 = vst.msk [vmem:[#allocation4 + $0x1d0] sm:$0xff] %vm4383, %v4319
        %4414 = vst.msk [vmem:[#allocation4 + $0x1e0] sm:$0xff] %vm4383, %v4321
        %4415 = vst.msk [vmem:[#allocation4 + $0x1f0] sm:$0xff] %vm4383, %v4323
        %4416 = vst.msk [vmem:[#allocation4 + $0x200] sm:$0xff] %vm4383, %v4325
        %4417 = vst.msk [vmem:[#allocation4 + $0x210] sm:$0xff] %vm4383, %v4327
        %4418 = vst.msk [vmem:[#allocation4 + $0x220] sm:$0xff] %vm4383, %v4329
        %4419 = vst.msk [vmem:[#allocation4 + $0x230] sm:$0xff] %vm4383, %v4331
        %4420 = vst.msk [vmem:[#allocation4 + $0x240] sm:$0xff] %vm4383, %v4333
        %4421 = vst.msk [vmem:[#allocation4 + $0x250] sm:$0xff] %vm4383, %v4335
        %4422 = vst.msk [vmem:[#allocation4 + $0x260] sm:$0xff] %vm4383, %v4337
        %4423 = vst.msk [vmem:[#allocation4 + $0x270] sm:$0xff] %vm4383, %v4339
        %vm4424 = vcmask 388352
        %4425 = vst.msk [vmem:[#allocation4 + $0x280] sm:$0xf] %vm4424, %v4341
        %v4426 = vld [vmem:[#allocation2 + $0x17] sm:$0xff]
        %v4427 = vld [vmem:[#allocation2 + $0x1f] sm:$0xff]
        %v4428 = vld [vmem:[#allocation2 + $0x27] sm:$0xff]
        %v4429 = vld [vmem:[#allocation2 + $0x2f] sm:$0xff]
        %v4430 = vld [vmem:[#allocation2 + $0x37] sm:$0xff]
        %v4431 = vld [vmem:[#allocation2 + $0x3f] sm:$0xff]
        %v4432 = vld [vmem:[#allocation2 + $0x47] sm:$0xff]
        %v4433 = vld [vmem:[#allocation2 + $0x4f] sm:$0xff]
        %v4434 = vld [vmem:[#allocation2 + $0x57] sm:$0xff]
        %v4435 = vld [vmem:[#allocation2 + $0x5f] sm:$0xff]
        %v4436 = vld [vmem:[#allocation2 + $0x67] sm:$0xff]
        %v4437 = vld [vmem:[#allocation2 + $0x6f] sm:$0xff]
        %v4438 = vld [vmem:[#allocation2 + $0x77] sm:$0xff]
        %v4439 = vld [vmem:[#allocation2 + $0x7f] sm:$0xff]
        %v4440 = vld [vmem:[#allocation2 + $0x87] sm:$0xff]
        %v4441 = vld [vmem:[#allocation2 + $0x8f] sm:$0xff]
        %v4442 = vld [vmem:[#allocation2 + $0x97] sm:$0xff]
        %v4443 = vld [vmem:[#allocation2 + $0x9f] sm:$0xff]
        %v4444 = vld [vmem:[#allocation2 + $0xa7] sm:$0xff]
        %v4445 = vld [vmem:[#allocation2 + $0xaf] sm:$0xff]
        %v4446 = vld [vmem:[#allocation2 + $0xb7] sm:$0xff]
        %v4447 = vld [vmem:[#allocation2 + $0xbf] sm:$0xff]
        %v4448 = vld [vmem:[#allocation2 + $0xc7] sm:$0xff]
        %v4449 = vld [vmem:[#allocation2 + $0xcf] sm:$0xff]
        %v4450 = vld [vmem:[#allocation2 + $0xd7] sm:$0xff]
        %v4451 = vld [vmem:[#allocation2 + $0xdf] sm:$0xff]
        %v4452 = vld [vmem:[#allocation2 + $0xe7] sm:$0xff]
        %v4453 = vld [vmem:[#allocation2 + $0xef] sm:$0xff]
        %v4454 = vld [vmem:[#allocation2 + $0xf7] sm:$0xff]
        %v4455 = vld [vmem:[#allocation2 + $0xff] sm:$0xff]
        %v4456 = vld [vmem:[#allocation2 + $0x107] sm:$0xff]
        %v4457 = vld [vmem:[#allocation2 + $0x10f] sm:$0xff]
        %v4458 = vld [vmem:[#allocation2 + $0x117] sm:$0xff]
        %v4459 = vld [vmem:[#allocation2 + $0x11f] sm:$0xff]
        %v4460 = vld [vmem:[#allocation2 + $0x127] sm:$0xff]
        %v4461 = vld [vmem:[#allocation2 + $0x12f] sm:$0xff]
        %v4462 = vld [vmem:[#allocation2 + $0x137] sm:$0xff]
        %v4463 = vld [vmem:[#allocation2 + $0x13f] sm:$0xff]
        %v4464 = vld [vmem:[#allocation2 + $0x147] sm:$0xff]
        %v4465 = vld [vmem:[#allocation2 + $0x14f] sm:$0xff]
        %v4466 = vld [vmem:[#allocation2 + $0x157] sm:$0xf]
        %4508 = vrot.lane.b32.xlu0 %v4426, 48
        %v4509 = vpop.permute.xlu0 %4508
        %4510 = vrot.lane.b32.xlu0 %v4427, 48
        %v4511 = vpop.permute.xlu0 %4510
        %4512 = vrot.lane.b32.xlu0 %v4428, 48
        %v4513 = vpop.permute.xlu0 %4512
        %4514 = vrot.lane.b32.xlu0 %v4429, 48
        %v4515 = vpop.permute.xlu0 %4514
        %4516 = vrot.lane.b32.xlu0 %v4430, 48
        %v4517 = vpop.permute.xlu0 %4516
        %4518 = vrot.lane.b32.xlu0 %v4431, 48
        %v4519 = vpop.permute.xlu0 %4518
        %4520 = vrot.lane.b32.xlu0 %v4432, 48
        %v4521 = vpop.permute.xlu0 %4520
        %4522 = vrot.lane.b32.xlu0 %v4433, 48
        %v4523 = vpop.permute.xlu0 %4522
        %4524 = vrot.lane.b32.xlu0 %v4434, 48
        %v4525 = vpop.permute.xlu0 %4524
        %4526 = vrot.lane.b32.xlu0 %v4435, 48
        %v4527 = vpop.permute.xlu0 %4526
        %4528 = vrot.lane.b32.xlu0 %v4436, 48
        %v4529 = vpop.permute.xlu0 %4528
        %4530 = vrot.lane.b32.xlu0 %v4437, 48
        %v4531 = vpop.permute.xlu0 %4530
        %4532 = vrot.lane.b32.xlu0 %v4438, 48
        %v4533 = vpop.permute.xlu0 %4532
        %4534 = vrot.lane.b32.xlu0 %v4439, 48
        %v4535 = vpop.permute.xlu0 %4534
        %4536 = vrot.lane.b32.xlu0 %v4440, 48
        %v4537 = vpop.permute.xlu0 %4536
        %4538 = vrot.lane.b32.xlu0 %v4441, 48
        %v4539 = vpop.permute.xlu0 %4538
        %4540 = vrot.lane.b32.xlu0 %v4442, 48
        %v4541 = vpop.permute.xlu0 %4540
        %4542 = vrot.lane.b32.xlu0 %v4443, 48
        %v4543 = vpop.permute.xlu0 %4542
        %4544 = vrot.lane.b32.xlu0 %v4444, 48
        %v4545 = vpop.permute.xlu0 %4544
        %4546 = vrot.lane.b32.xlu0 %v4445, 48
        %v4547 = vpop.permute.xlu0 %4546
        %4548 = vrot.lane.b32.xlu0 %v4446, 48
        %v4549 = vpop.permute.xlu0 %4548
        %4550 = vrot.lane.b32.xlu0 %v4447, 48
        %v4551 = vpop.permute.xlu0 %4550
        %4552 = vrot.lane.b32.xlu0 %v4448, 48
        %v4553 = vpop.permute.xlu0 %4552
        %4554 = vrot.lane.b32.xlu0 %v4449, 48
        %v4555 = vpop.permute.xlu0 %4554
        %4556 = vrot.lane.b32.xlu0 %v4450, 48
        %v4557 = vpop.permute.xlu0 %4556
        %4558 = vrot.lane.b32.xlu0 %v4451, 48
        %v4559 = vpop.permute.xlu0 %4558
        %4560 = vrot.lane.b32.xlu0 %v4452, 48
        %v4561 = vpop.permute.xlu0 %4560
        %4562 = vrot.lane.b32.xlu0 %v4453, 48
        %v4563 = vpop.permute.xlu0 %4562
        %4564 = vrot.lane.b32.xlu0 %v4454, 48
        %v4565 = vpop.permute.xlu0 %4564
        %4566 = vrot.lane.b32.xlu0 %v4455, 48
        %v4567 = vpop.permute.xlu0 %4566
        %4568 = vrot.lane.b32.xlu0 %v4456, 48
        %v4569 = vpop.permute.xlu0 %4568
        %4570 = vrot.lane.b32.xlu0 %v4457, 48
        %v4571 = vpop.permute.xlu0 %4570
        %4572 = vrot.lane.b32.xlu0 %v4458, 48
        %v4573 = vpop.permute.xlu0 %4572
        %4574 = vrot.lane.b32.xlu0 %v4459, 48
        %v4575 = vpop.permute.xlu0 %4574
        %4576 = vrot.lane.b32.xlu0 %v4460, 48
        %v4577 = vpop.permute.xlu0 %4576
        %4578 = vrot.lane.b32.xlu0 %v4461, 48
        %v4579 = vpop.permute.xlu0 %4578
        %4580 = vrot.lane.b32.xlu0 %v4462, 48
        %v4581 = vpop.permute.xlu0 %4580
        %4582 = vrot.lane.b32.xlu0 %v4463, 48
        %v4583 = vpop.permute.xlu0 %4582
        %4584 = vrot.lane.b32.xlu0 %v4464, 48
        %v4585 = vpop.permute.xlu0 %4584
        %4586 = vrot.lane.b32.xlu0 %v4465, 48
        %v4587 = vpop.permute.xlu0 %4586
        %4588 = vrot.lane.b32.xlu0 %v4466, 48
        %v4589 = vpop.permute.xlu0 %4588
        %vm4631 = vcmask 523648
        %4632 = vst.msk [vmem:[#allocation4] sm:$0xff] %vm4631, %v4509
        %4633 = vst.msk [vmem:[#allocation4 + $0x10] sm:$0xff] %vm4631, %v4511
        %4634 = vst.msk [vmem:[#allocation4 + $0x20] sm:$0xff] %vm4631, %v4513
        %4635 = vst.msk [vmem:[#allocation4 + $0x30] sm:$0xff] %vm4631, %v4515
        %4636 = vst.msk [vmem:[#allocation4 + $0x40] sm:$0xff] %vm4631, %v4517
        %4637 = vst.msk [vmem:[#allocation4 + $0x50] sm:$0xff] %vm4631, %v4519
        %4638 = vst.msk [vmem:[#allocation4 + $0x60] sm:$0xff] %vm4631, %v4521
        %4639 = vst.msk [vmem:[#allocation4 + $0x70] sm:$0xff] %vm4631, %v4523
        %4640 = vst.msk [vmem:[#allocation4 + $0x80] sm:$0xff] %vm4631, %v4525
        %4641 = vst.msk [vmem:[#allocation4 + $0x90] sm:$0xff] %vm4631, %v4527
        %4642 = vst.msk [vmem:[#allocation4 + $0xa0] sm:$0xff] %vm4631, %v4529
        %4643 = vst.msk [vmem:[#allocation4 + $0xb0] sm:$0xff] %vm4631, %v4531
        %4644 = vst.msk [vmem:[#allocation4 + $0xc0] sm:$0xff] %vm4631, %v4533
        %4645 = vst.msk [vmem:[#allocation4 + $0xd0] sm:$0xff] %vm4631, %v4535
        %4646 = vst.msk [vmem:[#allocation4 + $0xe0] sm:$0xff] %vm4631, %v4537
        %4647 = vst.msk [vmem:[#allocation4 + $0xf0] sm:$0xff] %vm4631, %v4539
        %4648 = vst.msk [vmem:[#allocation4 + $0x100] sm:$0xff] %vm4631, %v4541
        %4649 = vst.msk [vmem:[#allocation4 + $0x110] sm:$0xff] %vm4631, %v4543
        %4650 = vst.msk [vmem:[#allocation4 + $0x120] sm:$0xff] %vm4631, %v4545
        %4651 = vst.msk [vmem:[#allocation4 + $0x130] sm:$0xff] %vm4631, %v4547
        %4652 = vst.msk [vmem:[#allocation4 + $0x140] sm:$0xff] %vm4631, %v4549
        %4653 = vst.msk [vmem:[#allocation4 + $0x150] sm:$0xff] %vm4631, %v4551
        %4654 = vst.msk [vmem:[#allocation4 + $0x160] sm:$0xff] %vm4631, %v4553
        %4655 = vst.msk [vmem:[#allocation4 + $0x170] sm:$0xff] %vm4631, %v4555
        %4656 = vst.msk [vmem:[#allocation4 + $0x180] sm:$0xff] %vm4631, %v4557
        %4657 = vst.msk [vmem:[#allocation4 + $0x190] sm:$0xff] %vm4631, %v4559
        %4658 = vst.msk [vmem:[#allocation4 + $0x1a0] sm:$0xff] %vm4631, %v4561
        %4659 = vst.msk [vmem:[#allocation4 + $0x1b0] sm:$0xff] %vm4631, %v4563
        %4660 = vst.msk [vmem:[#allocation4 + $0x1c0] sm:$0xff] %vm4631, %v4565
        %4661 = vst.msk [vmem:[#allocation4 + $0x1d0] sm:$0xff] %vm4631, %v4567
        %4662 = vst.msk [vmem:[#allocation4 + $0x1e0] sm:$0xff] %vm4631, %v4569
        %4663 = vst.msk [vmem:[#allocation4 + $0x1f0] sm:$0xff] %vm4631, %v4571
        %4664 = vst.msk [vmem:[#allocation4 + $0x200] sm:$0xff] %vm4631, %v4573
        %4665 = vst.msk [vmem:[#allocation4 + $0x210] sm:$0xff] %vm4631, %v4575
        %4666 = vst.msk [vmem:[#allocation4 + $0x220] sm:$0xff] %vm4631, %v4577
        %4667 = vst.msk [vmem:[#allocation4 + $0x230] sm:$0xff] %vm4631, %v4579
        %4668 = vst.msk [vmem:[#allocation4 + $0x240] sm:$0xff] %vm4631, %v4581
        %4669 = vst.msk [vmem:[#allocation4 + $0x250] sm:$0xff] %vm4631, %v4583
        %4670 = vst.msk [vmem:[#allocation4 + $0x260] sm:$0xff] %vm4631, %v4585
        %4671 = vst.msk [vmem:[#allocation4 + $0x270] sm:$0xff] %vm4631, %v4587
        %vm4672 = vcmask 519552
        %4673 = vst.msk [vmem:[#allocation4 + $0x280] sm:$0xf] %vm4672, %v4589
        %v4674 = vld [vmem:[#allocation2 + $0x18] sm:$0xff]
        %v4675 = vld [vmem:[#allocation2 + $0x20] sm:$0xff]
        %v4676 = vld [vmem:[#allocation2 + $0x28] sm:$0xff]
        %v4677 = vld [vmem:[#allocation2 + $0x30] sm:$0xff]
        %v4678 = vld [vmem:[#allocation2 + $0x38] sm:$0xff]
        %v4679 = vld [vmem:[#allocation2 + $0x40] sm:$0xff]
        %v4680 = vld [vmem:[#allocation2 + $0x48] sm:$0xff]
        %v4681 = vld [vmem:[#allocation2 + $0x50] sm:$0xff]
        %v4682 = vld [vmem:[#allocation2 + $0x58] sm:$0xff]
        %v4683 = vld [vmem:[#allocation2 + $0x60] sm:$0xff]
        %v4684 = vld [vmem:[#allocation2 + $0x68] sm:$0xff]
        %v4685 = vld [vmem:[#allocation2 + $0x70] sm:$0xff]
        %v4686 = vld [vmem:[#allocation2 + $0x78] sm:$0xff]
        %v4687 = vld [vmem:[#allocation2 + $0x80] sm:$0xff]
        %v4688 = vld [vmem:[#allocation2 + $0x88] sm:$0xff]
        %v4689 = vld [vmem:[#allocation2 + $0x90] sm:$0xff]
        %v4690 = vld [vmem:[#allocation2 + $0x98] sm:$0xff]
        %v4691 = vld [vmem:[#allocation2 + $0xa0] sm:$0xff]
        %v4692 = vld [vmem:[#allocation2 + $0xa8] sm:$0xff]
        %v4693 = vld [vmem:[#allocation2 + $0xb0] sm:$0xff]
        %v4694 = vld [vmem:[#allocation2 + $0xb8] sm:$0xff]
        %v4695 = vld [vmem:[#allocation2 + $0xc0] sm:$0xff]
        %v4696 = vld [vmem:[#allocation2 + $0xc8] sm:$0xff]
        %v4697 = vld [vmem:[#allocation2 + $0xd0] sm:$0xff]
        %v4698 = vld [vmem:[#allocation2 + $0xd8] sm:$0xff]
        %v4699 = vld [vmem:[#allocation2 + $0xe0] sm:$0xff]
        %v4700 = vld [vmem:[#allocation2 + $0xe8] sm:$0xff]
        %v4701 = vld [vmem:[#allocation2 + $0xf0] sm:$0xff]
        %v4702 = vld [vmem:[#allocation2 + $0xf8] sm:$0xff]
        %v4703 = vld [vmem:[#allocation2 + $0x100] sm:$0xff]
        %v4704 = vld [vmem:[#allocation2 + $0x108] sm:$0xff]
        %v4705 = vld [vmem:[#allocation2 + $0x110] sm:$0xff]
        %v4706 = vld [vmem:[#allocation2 + $0x118] sm:$0xff]
        %v4707 = vld [vmem:[#allocation2 + $0x120] sm:$0xff]
        %v4708 = vld [vmem:[#allocation2 + $0x128] sm:$0xff]
        %v4709 = vld [vmem:[#allocation2 + $0x130] sm:$0xff]
        %v4710 = vld [vmem:[#allocation2 + $0x138] sm:$0xff]
        %v4711 = vld [vmem:[#allocation2 + $0x140] sm:$0xff]
        %v4712 = vld [vmem:[#allocation2 + $0x148] sm:$0xff]
        %v4713 = vld [vmem:[#allocation2 + $0x150] sm:$0xff]
        %v4714 = vld [vmem:[#allocation2 + $0x158] sm:$0xf]
        %4756 = vrot.lane.b32.xlu0 %v4674, 64
        %v4757 = vpop.permute.xlu0 %4756
        %4758 = vrot.lane.b32.xlu0 %v4675, 64
        %v4759 = vpop.permute.xlu0 %4758
        %4760 = vrot.lane.b32.xlu0 %v4676, 64
        %v4761 = vpop.permute.xlu0 %4760
        %4762 = vrot.lane.b32.xlu0 %v4677, 64
        %v4763 = vpop.permute.xlu0 %4762
        %4764 = vrot.lane.b32.xlu0 %v4678, 64
        %v4765 = vpop.permute.xlu0 %4764
        %4766 = vrot.lane.b32.xlu0 %v4679, 64
        %v4767 = vpop.permute.xlu0 %4766
        %4768 = vrot.lane.b32.xlu0 %v4680, 64
        %v4769 = vpop.permute.xlu0 %4768
        %4770 = vrot.lane.b32.xlu0 %v4681, 64
        %v4771 = vpop.permute.xlu0 %4770
        %4772 = vrot.lane.b32.xlu0 %v4682, 64
        %v4773 = vpop.permute.xlu0 %4772
        %4774 = vrot.lane.b32.xlu0 %v4683, 64
        %v4775 = vpop.permute.xlu0 %4774
        %4776 = vrot.lane.b32.xlu0 %v4684, 64
        %v4777 = vpop.permute.xlu0 %4776
        %4778 = vrot.lane.b32.xlu0 %v4685, 64
        %v4779 = vpop.permute.xlu0 %4778
        %4780 = vrot.lane.b32.xlu0 %v4686, 64
        %v4781 = vpop.permute.xlu0 %4780
        %4782 = vrot.lane.b32.xlu0 %v4687, 64
        %v4783 = vpop.permute.xlu0 %4782
        %4784 = vrot.lane.b32.xlu0 %v4688, 64
        %v4785 = vpop.permute.xlu0 %4784
        %4786 = vrot.lane.b32.xlu0 %v4689, 64
        %v4787 = vpop.permute.xlu0 %4786
        %4788 = vrot.lane.b32.xlu0 %v4690, 64
        %v4789 = vpop.permute.xlu0 %4788
        %4790 = vrot.lane.b32.xlu0 %v4691, 64
        %v4791 = vpop.permute.xlu0 %4790
        %4792 = vrot.lane.b32.xlu0 %v4692, 64
        %v4793 = vpop.permute.xlu0 %4792
        %4794 = vrot.lane.b32.xlu0 %v4693, 64
        %v4795 = vpop.permute.xlu0 %4794
        %4796 = vrot.lane.b32.xlu0 %v4694, 64
        %v4797 = vpop.permute.xlu0 %4796
        %4798 = vrot.lane.b32.xlu0 %v4695, 64
        %v4799 = vpop.permute.xlu0 %4798
        %4800 = vrot.lane.b32.xlu0 %v4696, 64
        %v4801 = vpop.permute.xlu0 %4800
        %4802 = vrot.lane.b32.xlu0 %v4697, 64
        %v4803 = vpop.permute.xlu0 %4802
        %4804 = vrot.lane.b32.xlu0 %v4698, 64
        %v4805 = vpop.permute.xlu0 %4804
        %4806 = vrot.lane.b32.xlu0 %v4699, 64
        %v4807 = vpop.permute.xlu0 %4806
        %4808 = vrot.lane.b32.xlu0 %v4700, 64
        %v4809 = vpop.permute.xlu0 %4808
        %4810 = vrot.lane.b32.xlu0 %v4701, 64
        %v4811 = vpop.permute.xlu0 %4810
        %4812 = vrot.lane.b32.xlu0 %v4702, 64
        %v4813 = vpop.permute.xlu0 %4812
        %4814 = vrot.lane.b32.xlu0 %v4703, 64
        %v4815 = vpop.permute.xlu0 %4814
        %4816 = vrot.lane.b32.xlu0 %v4704, 64
        %v4817 = vpop.permute.xlu0 %4816
        %4818 = vrot.lane.b32.xlu0 %v4705, 64
        %v4819 = vpop.permute.xlu0 %4818
        %4820 = vrot.lane.b32.xlu0 %v4706, 64
        %v4821 = vpop.permute.xlu0 %4820
        %4822 = vrot.lane.b32.xlu0 %v4707, 64
        %v4823 = vpop.permute.xlu0 %4822
        %4824 = vrot.lane.b32.xlu0 %v4708, 64
        %v4825 = vpop.permute.xlu0 %4824
        %4826 = vrot.lane.b32.xlu0 %v4709, 64
        %v4827 = vpop.permute.xlu0 %4826
        %4828 = vrot.lane.b32.xlu0 %v4710, 64
        %v4829 = vpop.permute.xlu0 %4828
        %4830 = vrot.lane.b32.xlu0 %v4711, 64
        %v4831 = vpop.permute.xlu0 %4830
        %4832 = vrot.lane.b32.xlu0 %v4712, 64
        %v4833 = vpop.permute.xlu0 %4832
        %4834 = vrot.lane.b32.xlu0 %v4713, 64
        %v4835 = vpop.permute.xlu0 %4834
        %4836 = vrot.lane.b32.xlu0 %v4714, 64
        %v4837 = vpop.permute.xlu0 %4836
        %vm4879 = vcmask 654848
        %4880 = vst.msk [vmem:[#allocation4] sm:$0xff] %vm4879, %v4757
        %4881 = vst.msk [vmem:[#allocation4 + $0x10] sm:$0xff] %vm4879, %v4759
        %4882 = vst.msk [vmem:[#allocation4 + $0x20] sm:$0xff] %vm4879, %v4761
        %4883 = vst.msk [vmem:[#allocation4 + $0x30] sm:$0xff] %vm4879, %v4763
        %4884 = vst.msk [vmem:[#allocation4 + $0x40] sm:$0xff] %vm4879, %v4765
        %4885 = vst.msk [vmem:[#allocation4 + $0x50] sm:$0xff] %vm4879, %v4767
        %4886 = vst.msk [vmem:[#allocation4 + $0x60] sm:$0xff] %vm4879, %v4769
        %4887 = vst.msk [vmem:[#allocation4 + $0x70] sm:$0xff] %vm4879, %v4771
        %4888 = vst.msk [vmem:[#allocation4 + $0x80] sm:$0xff] %vm4879, %v4773
        %4889 = vst.msk [vmem:[#allocation4 + $0x90] sm:$0xff] %vm4879, %v4775
        %4890 = vst.msk [vmem:[#allocation4 + $0xa0] sm:$0xff] %vm4879, %v4777
        %4891 = vst.msk [vmem:[#allocation4 + $0xb0] sm:$0xff] %vm4879, %v4779
        %4892 = vst.msk [vmem:[#allocation4 + $0xc0] sm:$0xff] %vm4879, %v4781
        %4893 = vst.msk [vmem:[#allocation4 + $0xd0] sm:$0xff] %vm4879, %v4783
        %4894 = vst.msk [vmem:[#allocation4 + $0xe0] sm:$0xff] %vm4879, %v4785
        %4895 = vst.msk [vmem:[#allocation4 + $0xf0] sm:$0xff] %vm4879, %v4787
        %4896 = vst.msk [vmem:[#allocation4 + $0x100] sm:$0xff] %vm4879, %v4789
        %4897 = vst.msk [vmem:[#allocation4 + $0x110] sm:$0xff] %vm4879, %v4791
        %4898 = vst.msk [vmem:[#allocation4 + $0x120] sm:$0xff] %vm4879, %v4793
        %4899 = vst.msk [vmem:[#allocation4 + $0x130] sm:$0xff] %vm4879, %v4795
        %4900 = vst.msk [vmem:[#allocation4 + $0x140] sm:$0xff] %vm4879, %v4797
        %4901 = vst.msk [vmem:[#allocation4 + $0x150] sm:$0xff] %vm4879, %v4799
        %4902 = vst.msk [vmem:[#allocation4 + $0x160] sm:$0xff] %vm4879, %v4801
        %4903 = vst.msk [vmem:[#allocation4 + $0x170] sm:$0xff] %vm4879, %v4803
        %4904 = vst.msk [vmem:[#allocation4 + $0x180] sm:$0xff] %vm4879, %v4805
        %4905 = vst.msk [vmem:[#allocation4 + $0x190] sm:$0xff] %vm4879, %v4807
        %4906 = vst.msk [vmem:[#allocation4 + $0x1a0] sm:$0xff] %vm4879, %v4809
        %4907 = vst.msk [vmem:[#allocation4 + $0x1b0] sm:$0xff] %vm4879, %v4811
        %4908 = vst.msk [vmem:[#allocation4 + $0x1c0] sm:$0xff] %vm4879, %v4813
        %4909 = vst.msk [vmem:[#allocation4 + $0x1d0] sm:$0xff] %vm4879, %v4815
        %4910 = vst.msk [vmem:[#allocation4 + $0x1e0] sm:$0xff] %vm4879, %v4817
        %4911 = vst.msk [vmem:[#allocation4 + $0x1f0] sm:$0xff] %vm4879, %v4819
        %4912 = vst.msk [vmem:[#allocation4 + $0x200] sm:$0xff] %vm4879, %v4821
        %4913 = vst.msk [vmem:[#allocation4 + $0x210] sm:$0xff] %vm4879, %v4823
        %4914 = vst.msk [vmem:[#allocation4 + $0x220] sm:$0xff] %vm4879, %v4825
        %4915 = vst.msk [vmem:[#allocation4 + $0x230] sm:$0xff] %vm4879, %v4827
        %4916 = vst.msk [vmem:[#allocation4 + $0x240] sm:$0xff] %vm4879, %v4829
        %4917 = vst.msk [vmem:[#allocation4 + $0x250] sm:$0xff] %vm4879, %v4831
        %4918 = vst.msk [vmem:[#allocation4 + $0x260] sm:$0xff] %vm4879, %v4833
        %4919 = vst.msk [vmem:[#allocation4 + $0x270] sm:$0xff] %vm4879, %v4835
        %vm4920 = vcmask 650752
        %4921 = vst.msk [vmem:[#allocation4 + $0x280] sm:$0xf] %vm4920, %v4837
        %v4922 = vld [vmem:[#allocation2 + $0x19] sm:$0xff]
        %v4923 = vld [vmem:[#allocation2 + $0x21] sm:$0xff]
        %v4924 = vld [vmem:[#allocation2 + $0x29] sm:$0xff]
        %v4925 = vld [vmem:[#allocation2 + $0x31] sm:$0xff]
        %v4926 = vld [vmem:[#allocation2 + $0x39] sm:$0xff]
        %v4927 = vld [vmem:[#allocation2 + $0x41] sm:$0xff]
        %v4928 = vld [vmem:[#allocation2 + $0x49] sm:$0xff]
        %v4929 = vld [vmem:[#allocation2 + $0x51] sm:$0xff]
        %v4930 = vld [vmem:[#allocation2 + $0x59] sm:$0xff]
        %v4931 = vld [vmem:[#allocation2 + $0x61] sm:$0xff]
        %v4932 = vld [vmem:[#allocation2 + $0x69] sm:$0xff]
        %v4933 = vld [vmem:[#allocation2 + $0x71] sm:$0xff]
        %v4934 = vld [vmem:[#allocation2 + $0x79] sm:$0xff]
        %v4935 = vld [vmem:[#allocation2 + $0x81] sm:$0xff]
        %v4936 = vld [vmem:[#allocation2 + $0x89] sm:$0xff]
        %v4937 = vld [vmem:[#allocation2 + $0x91] sm:$0xff]
        %v4938 = vld [vmem:[#allocation2 + $0x99] sm:$0xff]
        %v4939 = vld [vmem:[#allocation2 + $0xa1] sm:$0xff]
        %v4940 = vld [vmem:[#allocation2 + $0xa9] sm:$0xff]
        %v4941 = vld [vmem:[#allocation2 + $0xb1] sm:$0xff]
        %v4942 = vld [vmem:[#allocation2 + $0xb9] sm:$0xff]
        %v4943 = vld [vmem:[#allocation2 + $0xc1] sm:$0xff]
        %v4944 = vld [vmem:[#allocation2 + $0xc9] sm:$0xff]
        %v4945 = vld [vmem:[#allocation2 + $0xd1] sm:$0xff]
        %v4946 = vld [vmem:[#allocation2 + $0xd9] sm:$0xff]
        %v4947 = vld [vmem:[#allocation2 + $0xe1] sm:$0xff]
        %v4948 = vld [vmem:[#allocation2 + $0xe9] sm:$0xff]
        %v4949 = vld [vmem:[#allocation2 + $0xf1] sm:$0xff]
        %v4950 = vld [vmem:[#allocation2 + $0xf9] sm:$0xff]
        %v4951 = vld [vmem:[#allocation2 + $0x101] sm:$0xff]
        %v4952 = vld [vmem:[#allocation2 + $0x109] sm:$0xff]
        %v4953 = vld [vmem:[#allocation2 + $0x111] sm:$0xff]
        %v4954 = vld [vmem:[#allocation2 + $0x119] sm:$0xff]
        %v4955 = vld [vmem:[#allocation2 + $0x121] sm:$0xff]
        %v4956 = vld [vmem:[#allocation2 + $0x129] sm:$0xff]
        %v4957 = vld [vmem:[#allocation2 + $0x131] sm:$0xff]
        %v4958 = vld [vmem:[#allocation2 + $0x139] sm:$0xff]
        %v4959 = vld [vmem:[#allocation2 + $0x141] sm:$0xff]
        %v4960 = vld [vmem:[#allocation2 + $0x149] sm:$0xff]
        %v4961 = vld [vmem:[#allocation2 + $0x151] sm:$0xff]
        %v4962 = vld [vmem:[#allocation2 + $0x159] sm:$0xf]
        %5004 = vrot.lane.b32.xlu0 %v4922, 80
        %v5005 = vpop.permute.xlu0 %5004
        %5006 = vrot.lane.b32.xlu0 %v4923, 80
        %v5007 = vpop.permute.xlu0 %5006
        %5008 = vrot.lane.b32.xlu0 %v4924, 80
        %v5009 = vpop.permute.xlu0 %5008
        %5010 = vrot.lane.b32.xlu0 %v4925, 80
        %v5011 = vpop.permute.xlu0 %5010
        %5012 = vrot.lane.b32.xlu0 %v4926, 80
        %v5013 = vpop.permute.xlu0 %5012
        %5014 = vrot.lane.b32.xlu0 %v4927, 80
        %v5015 = vpop.permute.xlu0 %5014
        %5016 = vrot.lane.b32.xlu0 %v4928, 80
        %v5017 = vpop.permute.xlu0 %5016
        %5018 = vrot.lane.b32.xlu0 %v4929, 80
        %v5019 = vpop.permute.xlu0 %5018
        %5020 = vrot.lane.b32.xlu0 %v4930, 80
        %v5021 = vpop.permute.xlu0 %5020
        %5022 = vrot.lane.b32.xlu0 %v4931, 80
        %v5023 = vpop.permute.xlu0 %5022
        %5024 = vrot.lane.b32.xlu0 %v4932, 80
        %v5025 = vpop.permute.xlu0 %5024
        %5026 = vrot.lane.b32.xlu0 %v4933, 80
        %v5027 = vpop.permute.xlu0 %5026
        %5028 = vrot.lane.b32.xlu0 %v4934, 80
        %v5029 = vpop.permute.xlu0 %5028
        %5030 = vrot.lane.b32.xlu0 %v4935, 80
        %v5031 = vpop.permute.xlu0 %5030
        %5032 = vrot.lane.b32.xlu0 %v4936, 80
        %v5033 = vpop.permute.xlu0 %5032
        %5034 = vrot.lane.b32.xlu0 %v4937, 80
        %v5035 = vpop.permute.xlu0 %5034
        %5036 = vrot.lane.b32.xlu0 %v4938, 80
        %v5037 = vpop.permute.xlu0 %5036
        %5038 = vrot.lane.b32.xlu0 %v4939, 80
        %v5039 = vpop.permute.xlu0 %5038
        %5040 = vrot.lane.b32.xlu0 %v4940, 80
        %v5041 = vpop.permute.xlu0 %5040
        %5042 = vrot.lane.b32.xlu0 %v4941, 80
        %v5043 = vpop.permute.xlu0 %5042
        %5044 = vrot.lane.b32.xlu0 %v4942, 80
        %v5045 = vpop.permute.xlu0 %5044
        %5046 = vrot.lane.b32.xlu0 %v4943, 80
        %v5047 = vpop.permute.xlu0 %5046
        %5048 = vrot.lane.b32.xlu0 %v4944, 80
        %v5049 = vpop.permute.xlu0 %5048
        %5050 = vrot.lane.b32.xlu0 %v4945, 80
        %v5051 = vpop.permute.xlu0 %5050
        %5052 = vrot.lane.b32.xlu0 %v4946, 80
        %v5053 = vpop.permute.xlu0 %5052
        %5054 = vrot.lane.b32.xlu0 %v4947, 80
        %v5055 = vpop.permute.xlu0 %5054
        %5056 = vrot.lane.b32.xlu0 %v4948, 80
        %v5057 = vpop.permute.xlu0 %5056
        %5058 = vrot.lane.b32.xlu0 %v4949, 80
        %v5059 = vpop.permute.xlu0 %5058
        %5060 = vrot.lane.b32.xlu0 %v4950, 80
        %v5061 = vpop.permute.xlu0 %5060
        %5062 = vrot.lane.b32.xlu0 %v4951, 80
        %v5063 = vpop.permute.xlu0 %5062
        %5064 = vrot.lane.b32.xlu0 %v4952, 80
        %v5065 = vpop.permute.xlu0 %5064
        %5066 = vrot.lane.b32.xlu0 %v4953, 80
        %v5067 = vpop.permute.xlu0 %5066
        %5068 = vrot.lane.b32.xlu0 %v4954, 80
        %v5069 = vpop.permute.xlu0 %5068
        %5070 = vrot.lane.b32.xlu0 %v4955, 80
        %v5071 = vpop.permute.xlu0 %5070
        %5072 = vrot.lane.b32.xlu0 %v4956, 80
        %v5073 = vpop.permute.xlu0 %5072
        %5074 = vrot.lane.b32.xlu0 %v4957, 80
        %v5075 = vpop.permute.xlu0 %5074
        %5076 = vrot.lane.b32.xlu0 %v4958, 80
        %v5077 = vpop.permute.xlu0 %5076
        %5078 = vrot.lane.b32.xlu0 %v4959, 80
        %v5079 = vpop.permute.xlu0 %5078
        %5080 = vrot.lane.b32.xlu0 %v4960, 80
        %v5081 = vpop.permute.xlu0 %5080
        %5082 = vrot.lane.b32.xlu0 %v4961, 80
        %v5083 = vpop.permute.xlu0 %5082
        %5084 = vrot.lane.b32.xlu0 %v4962, 80
        %v5085 = vpop.permute.xlu0 %5084
        %vm5127 = vcmask 786048
        %5128 = vst.msk [vmem:[#allocation4] sm:$0xff] %vm5127, %v5005
        %5129 = vst.msk [vmem:[#allocation4 + $0x10] sm:$0xff] %vm5127, %v5007
        %5130 = vst.msk [vmem:[#allocation4 + $0x20] sm:$0xff] %vm5127, %v5009
        %5131 = vst.msk [vmem:[#allocation4 + $0x30] sm:$0xff] %vm5127, %v5011
        %5132 = vst.msk [vmem:[#allocation4 + $0x40] sm:$0xff] %vm5127, %v5013
        %5133 = vst.msk [vmem:[#allocation4 + $0x50] sm:$0xff] %vm5127, %v5015
        %5134 = vst.msk [vmem:[#allocation4 + $0x60] sm:$0xff] %vm5127, %v5017
        %5135 = vst.msk [vmem:[#allocation4 + $0x70] sm:$0xff] %vm5127, %v5019
        %5136 = vst.msk [vmem:[#allocation4 + $0x80] sm:$0xff] %vm5127, %v5021
        %5137 = vst.msk [vmem:[#allocation4 + $0x90] sm:$0xff] %vm5127, %v5023
        %5138 = vst.msk [vmem:[#allocation4 + $0xa0] sm:$0xff] %vm5127, %v5025
        %5139 = vst.msk [vmem:[#allocation4 + $0xb0] sm:$0xff] %vm5127, %v5027
        %5140 = vst.msk [vmem:[#allocation4 + $0xc0] sm:$0xff] %vm5127, %v5029
        %5141 = vst.msk [vmem:[#allocation4 + $0xd0] sm:$0xff] %vm5127, %v5031
        %5142 = vst.msk [vmem:[#allocation4 + $0xe0] sm:$0xff] %vm5127, %v5033
        %5143 = vst.msk [vmem:[#allocation4 + $0xf0] sm:$0xff] %vm5127, %v5035
        %5144 = vst.msk [vmem:[#allocation4 + $0x100] sm:$0xff] %vm5127, %v5037
        %5145 = vst.msk [vmem:[#allocation4 + $0x110] sm:$0xff] %vm5127, %v5039
        %5146 = vst.msk [vmem:[#allocation4 + $0x120] sm:$0xff] %vm5127, %v5041
        %5147 = vst.msk [vmem:[#allocation4 + $0x130] sm:$0xff] %vm5127, %v5043
        %5148 = vst.msk [vmem:[#allocation4 + $0x140] sm:$0xff] %vm5127, %v5045
        %5149 = vst.msk [vmem:[#allocation4 + $0x150] sm:$0xff] %vm5127, %v5047
        %5150 = vst.msk [vmem:[#allocation4 + $0x160] sm:$0xff] %vm5127, %v5049
        %5151 = vst.msk [vmem:[#allocation4 + $0x170] sm:$0xff] %vm5127, %v5051
        %5152 = vst.msk [vmem:[#allocation4 + $0x180] sm:$0xff] %vm5127, %v5053
        %5153 = vst.msk [vmem:[#allocation4 + $0x190] sm:$0xff] %vm5127, %v5055
        %5154 = vst.msk [vmem:[#allocation4 + $0x1a0] sm:$0xff] %vm5127, %v5057
        %5155 = vst.msk [vmem:[#allocation4 + $0x1b0] sm:$0xff] %vm5127, %v5059
        %5156 = vst.msk [vmem:[#allocation4 + $0x1c0] sm:$0xff] %vm5127, %v5061
        %5157 = vst.msk [vmem:[#allocation4 + $0x1d0] sm:$0xff] %vm5127, %v5063
        %5158 = vst.msk [vmem:[#allocation4 + $0x1e0] sm:$0xff] %vm5127, %v5065
        %5159 = vst.msk [vmem:[#allocation4 + $0x1f0] sm:$0xff] %vm5127, %v5067
        %5160 = vst.msk [vmem:[#allocation4 + $0x200] sm:$0xff] %vm5127, %v5069
        %5161 = vst.msk [vmem:[#allocation4 + $0x210] sm:$0xff] %vm5127, %v5071
        %5162 = vst.msk [vmem:[#allocation4 + $0x220] sm:$0xff] %vm5127, %v5073
        %5163 = vst.msk [vmem:[#allocation4 + $0x230] sm:$0xff] %vm5127, %v5075
        %5164 = vst.msk [vmem:[#allocation4 + $0x240] sm:$0xff] %vm5127, %v5077
        %5165 = vst.msk [vmem:[#allocation4 + $0x250] sm:$0xff] %vm5127, %v5079
        %5166 = vst.msk [vmem:[#allocation4 + $0x260] sm:$0xff] %vm5127, %v5081
        %5167 = vst.msk [vmem:[#allocation4 + $0x270] sm:$0xff] %vm5127, %v5083
        %vm5168 = vcmask 781952
        %5169 = vst.msk [vmem:[#allocation4 + $0x280] sm:$0xf] %vm5168, %v5085
        %v5170 = vld [vmem:[#allocation2 + $0x29] sm:$0xff]
        %v5171 = vld [vmem:[#allocation2 + $0x31] sm:$0xff]
        %v5172 = vld [vmem:[#allocation2 + $0x39] sm:$0xff]
        %v5173 = vld [vmem:[#allocation2 + $0x41] sm:$0xff]
        %v5174 = vld [vmem:[#allocation2 + $0x49] sm:$0xff]
        %v5175 = vld [vmem:[#allocation2 + $0x51] sm:$0xff]
        %v5176 = vld [vmem:[#allocation2 + $0x59] sm:$0xff]
        %v5177 = vld [vmem:[#allocation2 + $0x61] sm:$0xff]
        %v5178 = vld [vmem:[#allocation2 + $0x69] sm:$0xff]
        %v5179 = vld [vmem:[#allocation2 + $0x71] sm:$0xff]
        %v5180 = vld [vmem:[#allocation2 + $0x79] sm:$0xff]
        %v5181 = vld [vmem:[#allocation2 + $0x81] sm:$0xff]
        %v5182 = vld [vmem:[#allocation2 + $0x89] sm:$0xff]
        %v5183 = vld [vmem:[#allocation2 + $0x91] sm:$0xff]
        %v5184 = vld [vmem:[#allocation2 + $0x99] sm:$0xff]
        %v5185 = vld [vmem:[#allocation2 + $0xa1] sm:$0xff]
        %v5186 = vld [vmem:[#allocation2 + $0xa9] sm:$0xff]
        %v5187 = vld [vmem:[#allocation2 + $0xb1] sm:$0xff]
        %v5188 = vld [vmem:[#allocation2 + $0xb9] sm:$0xff]
        %v5189 = vld [vmem:[#allocation2 + $0xc1] sm:$0xff]
        %v5190 = vld [vmem:[#allocation2 + $0xc9] sm:$0xff]
        %v5191 = vld [vmem:[#allocation2 + $0xd1] sm:$0xff]
        %v5192 = vld [vmem:[#allocation2 + $0xd9] sm:$0xff]
        %v5193 = vld [vmem:[#allocation2 + $0xe1] sm:$0xff]
        %v5194 = vld [vmem:[#allocation2 + $0xe9] sm:$0xff]
        %v5195 = vld [vmem:[#allocation2 + $0xf1] sm:$0xff]
        %v5196 = vld [vmem:[#allocation2 + $0xf9] sm:$0xff]
        %v5197 = vld [vmem:[#allocation2 + $0x101] sm:$0xff]
        %v5198 = vld [vmem:[#allocation2 + $0x109] sm:$0xff]
        %v5199 = vld [vmem:[#allocation2 + $0x111] sm:$0xff]
        %v5200 = vld [vmem:[#allocation2 + $0x119] sm:$0xff]
        %v5201 = vld [vmem:[#allocation2 + $0x121] sm:$0xff]
        %v5202 = vld [vmem:[#allocation2 + $0x129] sm:$0xff]
        %v5203 = vld [vmem:[#allocation2 + $0x131] sm:$0xff]
        %v5204 = vld [vmem:[#allocation2 + $0x139] sm:$0xff]
        %v5205 = vld [vmem:[#allocation2 + $0x141] sm:$0xff]
        %v5206 = vld [vmem:[#allocation2 + $0x149] sm:$0xff]
        %v5207 = vld [vmem:[#allocation2 + $0x151] sm:$0xff]
        %v5208 = vld [vmem:[#allocation2 + $0x159] sm:$0xff]
        %v5209 = vld [vmem:[#allocation2 + $0x161] sm:$0xff]
        %v5210 = vld [vmem:[#allocation2 + $0x169] sm:$0xf]
        %5252 = vrot.lane.b32.xlu0 %v5170, 96
        %v5253 = vpop.permute.xlu0 %5252
        %5254 = vrot.lane.b32.xlu0 %v5171, 96
        %v5255 = vpop.permute.xlu0 %5254
        %5256 = vrot.lane.b32.xlu0 %v5172, 96
        %v5257 = vpop.permute.xlu0 %5256
        %5258 = vrot.lane.b32.xlu0 %v5173, 96
        %v5259 = vpop.permute.xlu0 %5258
        %5260 = vrot.lane.b32.xlu0 %v5174, 96
        %v5261 = vpop.permute.xlu0 %5260
        %5262 = vrot.lane.b32.xlu0 %v5175, 96
        %v5263 = vpop.permute.xlu0 %5262
        %5264 = vrot.lane.b32.xlu0 %v5176, 96
        %v5265 = vpop.permute.xlu0 %5264
        %5266 = vrot.lane.b32.xlu0 %v5177, 96
        %v5267 = vpop.permute.xlu0 %5266
        %5268 = vrot.lane.b32.xlu0 %v5178, 96
        %v5269 = vpop.permute.xlu0 %5268
        %5270 = vrot.lane.b32.xlu0 %v5179, 96
        %v5271 = vpop.permute.xlu0 %5270
        %5272 = vrot.lane.b32.xlu0 %v5180, 96
        %v5273 = vpop.permute.xlu0 %5272
        %5274 = vrot.lane.b32.xlu0 %v5181, 96
        %v5275 = vpop.permute.xlu0 %5274
        %5276 = vrot.lane.b32.xlu0 %v5182, 96
        %v5277 = vpop.permute.xlu0 %5276
        %5278 = vrot.lane.b32.xlu0 %v5183, 96
        %v5279 = vpop.permute.xlu0 %5278
        %5280 = vrot.lane.b32.xlu0 %v5184, 96
        %v5281 = vpop.permute.xlu0 %5280
        %5282 = vrot.lane.b32.xlu0 %v5185, 96
        %v5283 = vpop.permute.xlu0 %5282
        %5284 = vrot.lane.b32.xlu0 %v5186, 96
        %v5285 = vpop.permute.xlu0 %5284
        %5286 = vrot.lane.b32.xlu0 %v5187, 96
        %v5287 = vpop.permute.xlu0 %5286
        %5288 = vrot.lane.b32.xlu0 %v5188, 96
        %v5289 = vpop.permute.xlu0 %5288
        %5290 = vrot.lane.b32.xlu0 %v5189, 96
        %v5291 = vpop.permute.xlu0 %5290
        %5292 = vrot.lane.b32.xlu0 %v5190, 96
        %v5293 = vpop.permute.xlu0 %5292
        %5294 = vrot.lane.b32.xlu0 %v5191, 96
        %v5295 = vpop.permute.xlu0 %5294
        %5296 = vrot.lane.b32.xlu0 %v5192, 96
        %v5297 = vpop.permute.xlu0 %5296
        %5298 = vrot.lane.b32.xlu0 %v5193, 96
        %v5299 = vpop.permute.xlu0 %5298
        %5300 = vrot.lane.b32.xlu0 %v5194, 96
        %v5301 = vpop.permute.xlu0 %5300
        %5302 = vrot.lane.b32.xlu0 %v5195, 96
        %v5303 = vpop.permute.xlu0 %5302
        %5304 = vrot.lane.b32.xlu0 %v5196, 96
        %v5305 = vpop.permute.xlu0 %5304
        %5306 = vrot.lane.b32.xlu0 %v5197, 96
        %v5307 = vpop.permute.xlu0 %5306
        %5308 = vrot.lane.b32.xlu0 %v5198, 96
        %v5309 = vpop.permute.xlu0 %5308
        %5310 = vrot.lane.b32.xlu0 %v5199, 96
        %v5311 = vpop.permute.xlu0 %5310
        %5312 = vrot.lane.b32.xlu0 %v5200, 96
        %v5313 = vpop.permute.xlu0 %5312
        %5314 = vrot.lane.b32.xlu0 %v5201, 96
        %v5315 = vpop.permute.xlu0 %5314
        %5316 = vrot.lane.b32.xlu0 %v5202, 96
        %v5317 = vpop.permute.xlu0 %5316
        %5318 = vrot.lane.b32.xlu0 %v5203, 96
        %v5319 = vpop.permute.xlu0 %5318
        %5320 = vrot.lane.b32.xlu0 %v5204, 96
        %v5321 = vpop.permute.xlu0 %5320
        %5322 = vrot.lane.b32.xlu0 %v5205, 96
        %v5323 = vpop.permute.xlu0 %5322
        %5324 = vrot.lane.b32.xlu0 %v5206, 96
        %v5325 = vpop.permute.xlu0 %5324
        %5326 = vrot.lane.b32.xlu0 %v5207, 96
        %v5327 = vpop.permute.xlu0 %5326
        %5328 = vrot.lane.b32.xlu0 %v5208, 96
        %v5329 = vpop.permute.xlu0 %5328
        %5330 = vrot.lane.b32.xlu0 %v5209, 96
        %v5331 = vpop.permute.xlu0 %5330
        %5332 = vrot.lane.b32.xlu0 %v5210, 96
        %v5333 = vpop.permute.xlu0 %5332
        %vm5375 = vcmask 917248
        %5376 = vst.msk [vmem:[#allocation4] sm:$0xff] %vm5375, %v5253
        %5377 = vst.msk [vmem:[#allocation4 + $0x10] sm:$0xff] %vm5375, %v5255
        %5378 = vst.msk [vmem:[#allocation4 + $0x20] sm:$0xff] %vm5375, %v5257
        %5379 = vst.msk [vmem:[#allocation4 + $0x30] sm:$0xff] %vm5375, %v5259
        %5380 = vst.msk [vmem:[#allocation4 + $0x40] sm:$0xff] %vm5375, %v5261
        %5381 = vst.msk [vmem:[#allocation4 + $0x50] sm:$0xff] %vm5375, %v5263
        %5382 = vst.msk [vmem:[#allocation4 + $0x60] sm:$0xff] %vm5375, %v5265
        %5383 = vst.msk [vmem:[#allocation4 + $0x70] sm:$0xff] %vm5375, %v5267
        %5384 = vst.msk [vmem:[#allocation4 + $0x80] sm:$0xff] %vm5375, %v5269
        %5385 = vst.msk [vmem:[#allocation4 + $0x90] sm:$0xff] %vm5375, %v5271
        %5386 = vst.msk [vmem:[#allocation4 + $0xa0] sm:$0xff] %vm5375, %v5273
        %5387 = vst.msk [vmem:[#allocation4 + $0xb0] sm:$0xff] %vm5375, %v5275
        %5388 = vst.msk [vmem:[#allocation4 + $0xc0] sm:$0xff] %vm5375, %v5277
        %5389 = vst.msk [vmem:[#allocation4 + $0xd0] sm:$0xff] %vm5375, %v5279
        %5390 = vst.msk [vmem:[#allocation4 + $0xe0] sm:$0xff] %vm5375, %v5281
        %5391 = vst.msk [vmem:[#allocation4 + $0xf0] sm:$0xff] %vm5375, %v5283
        %5392 = vst.msk [vmem:[#allocation4 + $0x100] sm:$0xff] %vm5375, %v5285
        %5393 = vst.msk [vmem:[#allocation4 + $0x110] sm:$0xff] %vm5375, %v5287
        %5394 = vst.msk [vmem:[#allocation4 + $0x120] sm:$0xff] %vm5375, %v5289
        %5395 = vst.msk [vmem:[#allocation4 + $0x130] sm:$0xff] %vm5375, %v5291
        %5396 = vst.msk [vmem:[#allocation4 + $0x140] sm:$0xff] %vm5375, %v5293
        %5397 = vst.msk [vmem:[#allocation4 + $0x150] sm:$0xff] %vm5375, %v5295
        %5398 = vst.msk [vmem:[#allocation4 + $0x160] sm:$0xff] %vm5375, %v5297
        %5399 = vst.msk [vmem:[#allocation4 + $0x170] sm:$0xff] %vm5375, %v5299
        %5400 = vst.msk [vmem:[#allocation4 + $0x180] sm:$0xff] %vm5375, %v5301
        %5401 = vst.msk [vmem:[#allocation4 + $0x190] sm:$0xff] %vm5375, %v5303
        %5402 = vst.msk [vmem:[#allocation4 + $0x1a0] sm:$0xff] %vm5375, %v5305
        %5403 = vst.msk [vmem:[#allocation4 + $0x1b0] sm:$0xff] %vm5375, %v5307
        %5404 = vst.msk [vmem:[#allocation4 + $0x1c0] sm:$0xff] %vm5375, %v5309
        %5405 = vst.msk [vmem:[#allocation4 + $0x1d0] sm:$0xff] %vm5375, %v5311
        %5406 = vst.msk [vmem:[#allocation4 + $0x1e0] sm:$0xff] %vm5375, %v5313
        %5407 = vst.msk [vmem:[#allocation4 + $0x1f0] sm:$0xff] %vm5375, %v5315
        %5408 = vst.msk [vmem:[#allocation4 + $0x200] sm:$0xff] %vm5375, %v5317
        %5409 = vst.msk [vmem:[#allocation4 + $0x210] sm:$0xff] %vm5375, %v5319
        %5410 = vst.msk [vmem:[#allocation4 + $0x220] sm:$0xff] %vm5375, %v5321
        %5411 = vst.msk [vmem:[#allocation4 + $0x230] sm:$0xff] %vm5375, %v5323
        %5412 = vst.msk [vmem:[#allocation4 + $0x240] sm:$0xff] %vm5375, %v5325
        %5413 = vst.msk [vmem:[#allocation4 + $0x250] sm:$0xff] %vm5375, %v5327
        %5414 = vst.msk [vmem:[#allocation4 + $0x260] sm:$0xff] %vm5375, %v5329
        %5415 = vst.msk [vmem:[#allocation4 + $0x270] sm:$0xff] %vm5375, %v5331
        %vm5416 = vcmask 913152
        %5417 = vst.msk [vmem:[#allocation4 + $0x280] sm:$0xf] %vm5416, %v5333
        %v5418 = vld [vmem:[#allocation2 + $0x2a] sm:$0xff]
        %v5419 = vld [vmem:[#allocation2 + $0x32] sm:$0xff]
        %v5420 = vld [vmem:[#allocation2 + $0x3a] sm:$0xff]
        %v5421 = vld [vmem:[#allocation2 + $0x42] sm:$0xff]
        %v5422 = vld [vmem:[#allocation2 + $0x4a] sm:$0xff]
        %v5423 = vld [vmem:[#allocation2 + $0x52] sm:$0xff]
        %v5424 = vld [vmem:[#allocation2 + $0x5a] sm:$0xff]
        %v5425 = vld [vmem:[#allocation2 + $0x62] sm:$0xff]
        %v5426 = vld [vmem:[#allocation2 + $0x6a] sm:$0xff]
        %v5427 = vld [vmem:[#allocation2 + $0x72] sm:$0xff]
        %v5428 = vld [vmem:[#allocation2 + $0x7a] sm:$0xff]
        %v5429 = vld [vmem:[#allocation2 + $0x82] sm:$0xff]
        %v5430 = vld [vmem:[#allocation2 + $0x8a] sm:$0xff]
        %v5431 = vld [vmem:[#allocation2 + $0x92] sm:$0xff]
        %v5432 = vld [vmem:[#allocation2 + $0x9a] sm:$0xff]
        %v5433 = vld [vmem:[#allocation2 + $0xa2] sm:$0xff]
        %v5434 = vld [vmem:[#allocation2 + $0xaa] sm:$0xff]
        %v5435 = vld [vmem:[#allocation2 + $0xb2] sm:$0xff]
        %v5436 = vld [vmem:[#allocation2 + $0xba] sm:$0xff]
        %v5437 = vld [vmem:[#allocation2 + $0xc2] sm:$0xff]
        %v5438 = vld [vmem:[#allocation2 + $0xca] sm:$0xff]
        %v5439 = vld [vmem:[#allocation2 + $0xd2] sm:$0xff]
        %v5440 = vld [vmem:[#allocation2 + $0xda] sm:$0xff]
        %v5441 = vld [vmem:[#allocation2 + $0xe2] sm:$0xff]
        %v5442 = vld [vmem:[#allocation2 + $0xea] sm:$0xff]
        %v5443 = vld [vmem:[#allocation2 + $0xf2] sm:$0xff]
        %v5444 = vld [vmem:[#allocation2 + $0xfa] sm:$0xff]
        %v5445 = vld [vmem:[#allocation2 + $0x102] sm:$0xff]
        %v5446 = vld [vmem:[#allocation2 + $0x10a] sm:$0xff]
        %v5447 = vld [vmem:[#allocation2 + $0x112] sm:$0xff]
        %v5448 = vld [vmem:[#allocation2 + $0x11a] sm:$0xff]
        %v5449 = vld [vmem:[#allocation2 + $0x122] sm:$0xff]
        %v5450 = vld [vmem:[#allocation2 + $0x12a] sm:$0xff]
        %v5451 = vld [vmem:[#allocation2 + $0x132] sm:$0xff]
        %v5452 = vld [vmem:[#allocation2 + $0x13a] sm:$0xff]
        %v5453 = vld [vmem:[#allocation2 + $0x142] sm:$0xff]
        %v5454 = vld [vmem:[#allocation2 + $0x14a] sm:$0xff]
        %v5455 = vld [vmem:[#allocation2 + $0x152] sm:$0xff]
        %v5456 = vld [vmem:[#allocation2 + $0x15a] sm:$0xff]
        %v5457 = vld [vmem:[#allocation2 + $0x162] sm:$0xff]
        %v5458 = vld [vmem:[#allocation2 + $0x16a] sm:$0xf]
        %5500 = vrot.lane.b32.xlu0 %v5418, 112
        %v5501 = vpop.permute.xlu0 %5500
        %5502 = vrot.lane.b32.xlu0 %v5419, 112
        %v5503 = vpop.permute.xlu0 %5502
        %5504 = vrot.lane.b32.xlu0 %v5420, 112
        %v5505 = vpop.permute.xlu0 %5504
        %5506 = vrot.lane.b32.xlu0 %v5421, 112
        %v5507 = vpop.permute.xlu0 %5506
        %5508 = vrot.lane.b32.xlu0 %v5422, 112
        %v5509 = vpop.permute.xlu0 %5508
        %5510 = vrot.lane.b32.xlu0 %v5423, 112
        %v5511 = vpop.permute.xlu0 %5510
        %5512 = vrot.lane.b32.xlu0 %v5424, 112
        %v5513 = vpop.permute.xlu0 %5512
        %5514 = vrot.lane.b32.xlu0 %v5425, 112
        %v5515 = vpop.permute.xlu0 %5514
        %5516 = vrot.lane.b32.xlu0 %v5426, 112
        %v5517 = vpop.permute.xlu0 %5516
        %5518 = vrot.lane.b32.xlu0 %v5427, 112
        %v5519 = vpop.permute.xlu0 %5518
        %5520 = vrot.lane.b32.xlu0 %v5428, 112
        %v5521 = vpop.permute.xlu0 %5520
        %5522 = vrot.lane.b32.xlu0 %v5429, 112
        %v5523 = vpop.permute.xlu0 %5522
        %5524 = vrot.lane.b32.xlu0 %v5430, 112
        %v5525 = vpop.permute.xlu0 %5524
        %5526 = vrot.lane.b32.xlu0 %v5431, 112
        %v5527 = vpop.permute.xlu0 %5526
        %5528 = vrot.lane.b32.xlu0 %v5432, 112
        %v5529 = vpop.permute.xlu0 %5528
        %5530 = vrot.lane.b32.xlu0 %v5433, 112
        %v5531 = vpop.permute.xlu0 %5530
        %5532 = vrot.lane.b32.xlu0 %v5434, 112
        %v5533 = vpop.permute.xlu0 %5532
        %5534 = vrot.lane.b32.xlu0 %v5435, 112
        %v5535 = vpop.permute.xlu0 %5534
        %5536 = vrot.lane.b32.xlu0 %v5436, 112
        %v5537 = vpop.permute.xlu0 %5536
        %5538 = vrot.lane.b32.xlu0 %v5437, 112
        %v5539 = vpop.permute.xlu0 %5538
        %5540 = vrot.lane.b32.xlu0 %v5438, 112
        %v5541 = vpop.permute.xlu0 %5540
        %5542 = vrot.lane.b32.xlu0 %v5439, 112
        %v5543 = vpop.permute.xlu0 %5542
        %5544 = vrot.lane.b32.xlu0 %v5440, 112
        %v5545 = vpop.permute.xlu0 %5544
        %5546 = vrot.lane.b32.xlu0 %v5441, 112
        %v5547 = vpop.permute.xlu0 %5546
        %5548 = vrot.lane.b32.xlu0 %v5442, 112
        %v5549 = vpop.permute.xlu0 %5548
        %5550 = vrot.lane.b32.xlu0 %v5443, 112
        %v5551 = vpop.permute.xlu0 %5550
        %5552 = vrot.lane.b32.xlu0 %v5444, 112
        %v5553 = vpop.permute.xlu0 %5552
        %5554 = vrot.lane.b32.xlu0 %v5445, 112
        %v5555 = vpop.permute.xlu0 %5554
        %5556 = vrot.lane.b32.xlu0 %v5446, 112
        %v5557 = vpop.permute.xlu0 %5556
        %5558 = vrot.lane.b32.xlu0 %v5447, 112
        %v5559 = vpop.permute.xlu0 %5558
        %5560 = vrot.lane.b32.xlu0 %v5448, 112
        %v5561 = vpop.permute.xlu0 %5560
        %5562 = vrot.lane.b32.xlu0 %v5449, 112
        %v5563 = vpop.permute.xlu0 %5562
        %5564 = vrot.lane.b32.xlu0 %v5450, 112
        %v5565 = vpop.permute.xlu0 %5564
        %5566 = vrot.lane.b32.xlu0 %v5451, 112
        %v5567 = vpop.permute.xlu0 %5566
        %5568 = vrot.lane.b32.xlu0 %v5452, 112
        %v5569 = vpop.permute.xlu0 %5568
        %5570 = vrot.lane.b32.xlu0 %v5453, 112
        %v5571 = vpop.permute.xlu0 %5570
        %5572 = vrot.lane.b32.xlu0 %v5454, 112
        %v5573 = vpop.permute.xlu0 %5572
        %5574 = vrot.lane.b32.xlu0 %v5455, 112
        %v5575 = vpop.permute.xlu0 %5574
        %5576 = vrot.lane.b32.xlu0 %v5456, 112
        %v5577 = vpop.permute.xlu0 %5576
        %5578 = vrot.lane.b32.xlu0 %v5457, 112
        %v5579 = vpop.permute.xlu0 %5578
        %5580 = vrot.lane.b32.xlu0 %v5458, 112
        %v5581 = vpop.permute.xlu0 %5580
        %vm5623 = vcmask 1048448
        %5624 = vst.msk [vmem:[#allocation4] sm:$0xff] %vm5623, %v5501
        %5625 = vst.msk [vmem:[#allocation4 + $0x10] sm:$0xff] %vm5623, %v5503
        %5626 = vst.msk [vmem:[#allocation4 + $0x20] sm:$0xff] %vm5623, %v5505
        %5627 = vst.msk [vmem:[#allocation4 + $0x30] sm:$0xff] %vm5623, %v5507
        %5628 = vst.msk [vmem:[#allocation4 + $0x40] sm:$0xff] %vm5623, %v5509
        %5629 = vst.msk [vmem:[#allocation4 + $0x50] sm:$0xff] %vm5623, %v5511
        %5630 = vst.msk [vmem:[#allocation4 + $0x60] sm:$0xff] %vm5623, %v5513
        %5631 = vst.msk [vmem:[#allocation4 + $0x70] sm:$0xff] %vm5623, %v5515
        %5632 = vst.msk [vmem:[#allocation4 + $0x80] sm:$0xff] %vm5623, %v5517
        %5633 = vst.msk [vmem:[#allocation4 + $0x90] sm:$0xff] %vm5623, %v5519
        %5634 = vst.msk [vmem:[#allocation4 + $0xa0] sm:$0xff] %vm5623, %v5521
        %5635 = vst.msk [vmem:[#allocation4 + $0xb0] sm:$0xff] %vm5623, %v5523
        %5636 = vst.msk [vmem:[#allocation4 + $0xc0] sm:$0xff] %vm5623, %v5525
        %5637 = vst.msk [vmem:[#allocation4 + $0xd0] sm:$0xff] %vm5623, %v5527
        %5638 = vst.msk [vmem:[#allocation4 + $0xe0] sm:$0xff] %vm5623, %v5529
        %5639 = vst.msk [vmem:[#allocation4 + $0xf0] sm:$0xff] %vm5623, %v5531
        %5640 = vst.msk [vmem:[#allocation4 + $0x100] sm:$0xff] %vm5623, %v5533
        %5641 = vst.msk [vmem:[#allocation4 + $0x110] sm:$0xff] %vm5623, %v5535
        %5642 = vst.msk [vmem:[#allocation4 + $0x120] sm:$0xff] %vm5623, %v5537
        %5643 = vst.msk [vmem:[#allocation4 + $0x130] sm:$0xff] %vm5623, %v5539
        %5644 = vst.msk [vmem:[#allocation4 + $0x140] sm:$0xff] %vm5623, %v5541
        %5645 = vst.msk [vmem:[#allocation4 + $0x150] sm:$0xff] %vm5623, %v5543
        %5646 = vst.msk [vmem:[#allocation4 + $0x160] sm:$0xff] %vm5623, %v5545
        %5647 = vst.msk [vmem:[#allocation4 + $0x170] sm:$0xff] %vm5623, %v5547
        %5648 = vst.msk [vmem:[#allocation4 + $0x180] sm:$0xff] %vm5623, %v5549
        %5649 = vst.msk [vmem:[#allocation4 + $0x190] sm:$0xff] %vm5623, %v5551
        %5650 = vst.msk [vmem:[#allocation4 + $0x1a0] sm:$0xff] %vm5623, %v5553
        %5651 = vst.msk [vmem:[#allocation4 + $0x1b0] sm:$0xff] %vm5623, %v5555
        %5652 = vst.msk [vmem:[#allocation4 + $0x1c0] sm:$0xff] %vm5623, %v5557
        %5653 = vst.msk [vmem:[#allocation4 + $0x1d0] sm:$0xff] %vm5623, %v5559
        %5654 = vst.msk [vmem:[#allocation4 + $0x1e0] sm:$0xff] %vm5623, %v5561
        %5655 = vst.msk [vmem:[#allocation4 + $0x1f0] sm:$0xff] %vm5623, %v5563
        %5656 = vst.msk [vmem:[#allocation4 + $0x200] sm:$0xff] %vm5623, %v5565
        %5657 = vst.msk [vmem:[#allocation4 + $0x210] sm:$0xff] %vm5623, %v5567
        %5658 = vst.msk [vmem:[#allocation4 + $0x220] sm:$0xff] %vm5623, %v5569
        %5659 = vst.msk [vmem:[#allocation4 + $0x230] sm:$0xff] %vm5623, %v5571
        %5660 = vst.msk [vmem:[#allocation4 + $0x240] sm:$0xff] %vm5623, %v5573
        %5661 = vst.msk [vmem:[#allocation4 + $0x250] sm:$0xff] %vm5623, %v5575
        %5662 = vst.msk [vmem:[#allocation4 + $0x260] sm:$0xff] %vm5623, %v5577
        %5663 = vst.msk [vmem:[#allocation4 + $0x270] sm:$0xff] %vm5623, %v5579
        %vm5664 = vcmask 1044352
        %5665 = vst.msk [vmem:[#allocation4 + $0x280] sm:$0xf] %vm5664, %v5581
        %v5666 = vld [vmem:[#allocation2 + $0x2b] sm:$0xff]
        %v5667 = vld [vmem:[#allocation2 + $0x33] sm:$0xff]
        %v5668 = vld [vmem:[#allocation2 + $0x3b] sm:$0xff]
        %v5669 = vld [vmem:[#allocation2 + $0x43] sm:$0xff]
        %v5670 = vld [vmem:[#allocation2 + $0x4b] sm:$0xff]
        %v5671 = vld [vmem:[#allocation2 + $0x53] sm:$0xff]
        %v5672 = vld [vmem:[#allocation2 + $0x5b] sm:$0xff]
        %v5673 = vld [vmem:[#allocation2 + $0x63] sm:$0xff]
        %v5674 = vld [vmem:[#allocation2 + $0x6b] sm:$0xff]
        %v5675 = vld [vmem:[#allocation2 + $0x73] sm:$0xff]
        %v5676 = vld [vmem:[#allocation2 + $0x7b] sm:$0xff]
        %v5677 = vld [vmem:[#allocation2 + $0x83] sm:$0xff]
        %v5678 = vld [vmem:[#allocation2 + $0x8b] sm:$0xff]
        %v5679 = vld [vmem:[#allocation2 + $0x93] sm:$0xff]
        %v5680 = vld [vmem:[#allocation2 + $0x9b] sm:$0xff]
        %v5681 = vld [vmem:[#allocation2 + $0xa3] sm:$0xff]
        %v5682 = vld [vmem:[#allocation2 + $0xab] sm:$0xff]
        %v5683 = vld [vmem:[#allocation2 + $0xb3] sm:$0xff]
        %v5684 = vld [vmem:[#allocation2 + $0xbb] sm:$0xff]
        %v5685 = vld [vmem:[#allocation2 + $0xc3] sm:$0xff]
        %v5686 = vld [vmem:[#allocation2 + $0xcb] sm:$0xff]
        %v5687 = vld [vmem:[#allocation2 + $0xd3] sm:$0xff]
        %v5688 = vld [vmem:[#allocation2 + $0xdb] sm:$0xff]
        %v5689 = vld [vmem:[#allocation2 + $0xe3] sm:$0xff]
        %v5690 = vld [vmem:[#allocation2 + $0xeb] sm:$0xff]
        %v5691 = vld [vmem:[#allocation2 + $0xf3] sm:$0xff]
        %v5692 = vld [vmem:[#allocation2 + $0xfb] sm:$0xff]
        %v5693 = vld [vmem:[#allocation2 + $0x103] sm:$0xff]
        %v5694 = vld [vmem:[#allocation2 + $0x10b] sm:$0xff]
        %v5695 = vld [vmem:[#allocation2 + $0x113] sm:$0xff]
        %v5696 = vld [vmem:[#allocation2 + $0x11b] sm:$0xff]
        %v5697 = vld [vmem:[#allocation2 + $0x123] sm:$0xff]
        %v5698 = vld [vmem:[#allocation2 + $0x12b] sm:$0xff]
        %v5699 = vld [vmem:[#allocation2 + $0x133] sm:$0xff]
        %v5700 = vld [vmem:[#allocation2 + $0x13b] sm:$0xff]
        %v5701 = vld [vmem:[#allocation2 + $0x143] sm:$0xff]
        %v5702 = vld [vmem:[#allocation2 + $0x14b] sm:$0xff]
        %v5703 = vld [vmem:[#allocation2 + $0x153] sm:$0xff]
        %v5704 = vld [vmem:[#allocation2 + $0x15b] sm:$0xff]
        %v5705 = vld [vmem:[#allocation2 + $0x163] sm:$0xff]
        %v5706 = vld [vmem:[#allocation2 + $0x16b] sm:$0xf]
        %5707 = vst.msk [vmem:[#allocation4 + $0x8] sm:$0xff] %vm418, %v5666
        %5708 = vst.msk [vmem:[#allocation4 + $0x18] sm:$0xff] %vm418, %v5667
        %5709 = vst.msk [vmem:[#allocation4 + $0x28] sm:$0xff] %vm418, %v5668
        %5710 = vst.msk [vmem:[#allocation4 + $0x38] sm:$0xff] %vm418, %v5669
        %5711 = vst.msk [vmem:[#allocation4 + $0x48] sm:$0xff] %vm418, %v5670
        %5712 = vst.msk [vmem:[#allocation4 + $0x58] sm:$0xff] %vm418, %v5671
        %5713 = vst.msk [vmem:[#allocation4 + $0x68] sm:$0xff] %vm418, %v5672
        %5714 = vst.msk [vmem:[#allocation4 + $0x78] sm:$0xff] %vm418, %v5673
        %5715 = vst.msk [vmem:[#allocation4 + $0x88] sm:$0xff] %vm418, %v5674
        %5716 = vst.msk [vmem:[#allocation4 + $0x98] sm:$0xff] %vm418, %v5675
        %5717 = vst.msk [vmem:[#allocation4 + $0xa8] sm:$0xff] %vm418, %v5676
        %5718 = vst.msk [vmem:[#allocation4 + $0xb8] sm:$0xff] %vm418, %v5677
        %5719 = vst.msk [vmem:[#allocation4 + $0xc8] sm:$0xff] %vm418, %v5678
        %5720 = vst.msk [vmem:[#allocation4 + $0xd8] sm:$0xff] %vm418, %v5679
        %5721 = vst.msk [vmem:[#allocation4 + $0xe8] sm:$0xff] %vm418, %v5680
        %5722 = vst.msk [vmem:[#allocation4 + $0xf8] sm:$0xff] %vm418, %v5681
        %5723 = vst.msk [vmem:[#allocation4 + $0x108] sm:$0xff] %vm418, %v5682
        %5724 = vst.msk [vmem:[#allocation4 + $0x118] sm:$0xff] %vm418, %v5683
        %5725 = vst.msk [vmem:[#allocation4 + $0x128] sm:$0xff] %vm418, %v5684
        %5726 = vst.msk [vmem:[#allocation4 + $0x138] sm:$0xff] %vm418, %v5685
        %5727 = vst.msk [vmem:[#allocation4 + $0x148] sm:$0xff] %vm418, %v5686
        %5728 = vst.msk [vmem:[#allocation4 + $0x158] sm:$0xff] %vm418, %v5687
        %5729 = vst.msk [vmem:[#allocation4 + $0x168] sm:$0xff] %vm418, %v5688
        %5730 = vst.msk [vmem:[#allocation4 + $0x178] sm:$0xff] %vm418, %v5689
        %5731 = vst.msk [vmem:[#allocation4 + $0x188] sm:$0xff] %vm418, %v5690
        %5732 = vst.msk [vmem:[#allocation4 + $0x198] sm:$0xff] %vm418, %v5691
        %5733 = vst.msk [vmem:[#allocation4 + $0x1a8] sm:$0xff] %vm418, %v5692
        %5734 = vst.msk [vmem:[#allocation4 + $0x1b8] sm:$0xff] %vm418, %v5693
        %5735 = vst.msk [vmem:[#allocation4 + $0x1c8] sm:$0xff] %vm418, %v5694
        %5736 = vst.msk [vmem:[#allocation4 + $0x1d8] sm:$0xff] %vm418, %v5695
        %5737 = vst.msk [vmem:[#allocation4 + $0x1e8] sm:$0xff] %vm418, %v5696
        %5738 = vst.msk [vmem:[#allocation4 + $0x1f8] sm:$0xff] %vm418, %v5697
        %5739 = vst.msk [vmem:[#allocation4 + $0x208] sm:$0xff] %vm418, %v5698
        %5740 = vst.msk [vmem:[#allocation4 + $0x218] sm:$0xff] %vm418, %v5699
        %5741 = vst.msk [vmem:[#allocation4 + $0x228] sm:$0xff] %vm418, %v5700
        %5742 = vst.msk [vmem:[#allocation4 + $0x238] sm:$0xff] %vm418, %v5701
        %5743 = vst.msk [vmem:[#allocation4 + $0x248] sm:$0xff] %vm418, %v5702
        %5744 = vst.msk [vmem:[#allocation4 + $0x258] sm:$0xff] %vm418, %v5703
        %5745 = vst.msk [vmem:[#allocation4 + $0x268] sm:$0xff] %vm418, %v5704
        %5746 = vst.msk [vmem:[#allocation4 + $0x278] sm:$0xff] %vm418, %v5705
        %5747 = vst.msk [vmem:[#allocation4 + $0x288] sm:$0xf] %vm3846, %v5706
        %v5748 = vld [vmem:[#allocation4] sm:$0xff]
        %v5749 = vld [vmem:[#allocation4 + $0x8] sm:$0xff]
        %v5750 = vld [vmem:[#allocation4 + $0x10] sm:$0xff]
        %v5751 = vld [vmem:[#allocation4 + $0x18] sm:$0xff]
        %v5752 = vld [vmem:[#allocation4 + $0x20] sm:$0xff]
        %v5753 = vld [vmem:[#allocation4 + $0x28] sm:$0xff]
        %v5754 = vld [vmem:[#allocation4 + $0x30] sm:$0xff]
        %v5755 = vld [vmem:[#allocation4 + $0x38] sm:$0xff]
        %v5756 = vld [vmem:[#allocation4 + $0x40] sm:$0xff]
        %v5757 = vld [vmem:[#allocation4 + $0x48] sm:$0xff]
        %v5758 = vld [vmem:[#allocation4 + $0x50] sm:$0xff]
        %v5759 = vld [vmem:[#allocation4 + $0x58] sm:$0xff]
        %v5760 = vld [vmem:[#allocation4 + $0x60] sm:$0xff]
        %v5761 = vld [vmem:[#allocation4 + $0x68] sm:$0xff]
        %v5762 = vld [vmem:[#allocation4 + $0x70] sm:$0xff]
        %v5763 = vld [vmem:[#allocation4 + $0x78] sm:$0xff]
        %v5764 = vld [vmem:[#allocation4 + $0x80] sm:$0xff]
        %v5765 = vld [vmem:[#allocation4 + $0x88] sm:$0xff]
        %v5766 = vld [vmem:[#allocation4 + $0x90] sm:$0xff]
        %v5767 = vld [vmem:[#allocation4 + $0x98] sm:$0xff]
        %v5768 = vld [vmem:[#allocation4 + $0xa0] sm:$0xff]
        %v5769 = vld [vmem:[#allocation4 + $0xa8] sm:$0xff]
        %v5770 = vld [vmem:[#allocation4 + $0xb0] sm:$0xff]
        %v5771 = vld [vmem:[#allocation4 + $0xb8] sm:$0xff]
        %v5772 = vld [vmem:[#allocation4 + $0xc0] sm:$0xff]
        %v5773 = vld [vmem:[#allocation4 + $0xc8] sm:$0xff]
        %v5774 = vld [vmem:[#allocation4 + $0xd0] sm:$0xff]
        %v5775 = vld [vmem:[#allocation4 + $0xd8] sm:$0xff]
        %v5776 = vld [vmem:[#allocation4 + $0xe0] sm:$0xff]
        %v5777 = vld [vmem:[#allocation4 + $0xe8] sm:$0xff]
        %v5778 = vld [vmem:[#allocation4 + $0xf0] sm:$0xff]
        %v5779 = vld [vmem:[#allocation4 + $0xf8] sm:$0xff]
        %v5780 = vld [vmem:[#allocation4 + $0x100] sm:$0xff]
        %v5781 = vld [vmem:[#allocation4 + $0x108] sm:$0xff]
        %v5782 = vld [vmem:[#allocation4 + $0x110] sm:$0xff]
        %v5783 = vld [vmem:[#allocation4 + $0x118] sm:$0xff]
        %v5784 = vld [vmem:[#allocation4 + $0x120] sm:$0xff]
        %v5785 = vld [vmem:[#allocation4 + $0x128] sm:$0xff]
        %v5786 = vld [vmem:[#allocation4 + $0x130] sm:$0xff]
        %v5787 = vld [vmem:[#allocation4 + $0x138] sm:$0xff]
        %v5788 = vld [vmem:[#allocation4 + $0x140] sm:$0xff]
        %v5789 = vld [vmem:[#allocation4 + $0x148] sm:$0xff]
        %v5790 = vld [vmem:[#allocation4 + $0x150] sm:$0xff]
        %v5791 = vld [vmem:[#allocation4 + $0x158] sm:$0xff]
        %v5792 = vld [vmem:[#allocation4 + $0x160] sm:$0xff]
        %v5793 = vld [vmem:[#allocation4 + $0x168] sm:$0xff]
        %v5794 = vld [vmem:[#allocation4 + $0x170] sm:$0xff]
        %v5795 = vld [vmem:[#allocation4 + $0x178] sm:$0xff]
        %v5796 = vld [vmem:[#allocation4 + $0x180] sm:$0xff]
        %v5797 = vld [vmem:[#allocation4 + $0x188] sm:$0xff]
        %v5798 = vld [vmem:[#allocation4 + $0x190] sm:$0xff]
        %v5799 = vld [vmem:[#allocation4 + $0x198] sm:$0xff]
        %v5800 = vld [vmem:[#allocation4 + $0x1a0] sm:$0xff]
        %v5801 = vld [vmem:[#allocation4 + $0x1a8] sm:$0xff]
        %v5802 = vld [vmem:[#allocation4 + $0x1b0] sm:$0xff]
        %v5803 = vld [vmem:[#allocation4 + $0x1b8] sm:$0xff]
        %v5804 = vld [vmem:[#allocation4 + $0x1c0] sm:$0xff]
        %v5805 = vld [vmem:[#allocation4 + $0x1c8] sm:$0xff]
        %v5806 = vld [vmem:[#allocation4 + $0x1d0] sm:$0xff]
        %v5807 = vld [vmem:[#allocation4 + $0x1d8] sm:$0xff]
        %v5808 = vld [vmem:[#allocation4 + $0x1e0] sm:$0xff]
        %v5809 = vld [vmem:[#allocation4 + $0x1e8] sm:$0xff]
        %v5810 = vld [vmem:[#allocation4 + $0x1f0] sm:$0xff]
        %v5811 = vld [vmem:[#allocation4 + $0x1f8] sm:$0xff]
        %v5812 = vld [vmem:[#allocation4 + $0x200] sm:$0xff]
        %v5813 = vld [vmem:[#allocation4 + $0x208] sm:$0xff]
        %v5814 = vld [vmem:[#allocation4 + $0x210] sm:$0xff]
        %v5815 = vld [vmem:[#allocation4 + $0x218] sm:$0xff]
        %v5816 = vld [vmem:[#allocation4 + $0x220] sm:$0xff]
        %v5817 = vld [vmem:[#allocation4 + $0x228] sm:$0xff]
        %v5818 = vld [vmem:[#allocation4 + $0x230] sm:$0xff]
        %v5819 = vld [vmem:[#allocation4 + $0x238] sm:$0xff]
        %v5820 = vld [vmem:[#allocation4 + $0x240] sm:$0xff]
        %v5821 = vld [vmem:[#allocation4 + $0x248] sm:$0xff]
        %v5822 = vld [vmem:[#allocation4 + $0x250] sm:$0xff]
        %v5823 = vld [vmem:[#allocation4 + $0x258] sm:$0xff]
        %v5824 = vld [vmem:[#allocation4 + $0x260] sm:$0xff]
        %v5825 = vld [vmem:[#allocation4 + $0x268] sm:$0xff]
        %v5826 = vld [vmem:[#allocation4 + $0x270] sm:$0xff]
        %v5827 = vld [vmem:[#allocation4 + $0x278] sm:$0xff]
        %v5828 = vld [vmem:[#allocation4 + $0x280] sm:$0xf]
        %v5829 = vld [vmem:[#allocation4 + $0x288] sm:$0xf]
        %v5830 = vld [vmem:[%s5] sm:$0xff]
        %v5831 = vld [vmem:[%s5 + $0x8] sm:$0xff]
        %v5832 = vld [vmem:[%s5 + $0x10] sm:$0xff]
        %v5833 = vld [vmem:[%s5 + $0x18] sm:$0xff]
        %v5834 = vld [vmem:[%s5 + $0x20] sm:$0xff]
        %v5835 = vld [vmem:[%s5 + $0x28] sm:$0xff]
        %v5836 = vld [vmem:[%s5 + $0x30] sm:$0xff]
        %v5837 = vld [vmem:[%s5 + $0x38] sm:$0xff]
        %v5838 = vld [vmem:[%s5 + $0x40] sm:$0xff]
        %v5839 = vld [vmem:[%s5 + $0x48] sm:$0xff]
        %v5840 = vld [vmem:[%s5 + $0x50] sm:$0xff]
        %v5841 = vld [vmem:[%s5 + $0x58] sm:$0xff]
        %v5842 = vld [vmem:[%s5 + $0x60] sm:$0xff]
        %v5843 = vld [vmem:[%s5 + $0x68] sm:$0xff]
        %v5844 = vld [vmem:[%s5 + $0x70] sm:$0xff]
        %v5845 = vld [vmem:[%s5 + $0x78] sm:$0xff]
        %v5846 = vld [vmem:[%s5 + $0x80] sm:$0xff]
        %v5847 = vld [vmem:[%s5 + $0x88] sm:$0xff]
        %v5848 = vld [vmem:[%s6] sm:$0x1]
        %v5850 = vlaneseq
        %v5851 = vshrl.u32 %v5850, 7
        %v5852 = vsub.s32 0, %v5851
        %v5853 = vrot.slane %v5848, %v5852
        %v5856 = vsel %vm418, %v5749, 0
        %v5859 = vsel %vm418, %v5751, 0
        %v5862 = vsel %vm418, %v5753, 0
        %v5865 = vsel %vm418, %v5755, 0
        %v5868 = vsel %vm418, %v5757, 0
        %v5871 = vsel %vm418, %v5759, 0
        %v5874 = vsel %vm418, %v5761, 0
        %v5877 = vsel %vm418, %v5763, 0
        %v5880 = vsel %vm418, %v5765, 0
        %v5883 = vsel %vm418, %v5767, 0
        %v5886 = vsel %vm418, %v5769, 0
        %v5889 = vsel %vm418, %v5771, 0
        %v5892 = vsel %vm418, %v5773, 0
        %v5895 = vsel %vm418, %v5775, 0
        %v5898 = vsel %vm418, %v5777, 0
        %v5901 = vsel %vm418, %v5779, 0
        %v5904 = vsel %vm418, %v5781, 0
        %v5907 = vsel %vm418, %v5783, 0
        %v5910 = vsel %vm418, %v5785, 0
        %v5913 = vsel %vm418, %v5787, 0
        %v5916 = vsel %vm418, %v5789, 0
        %v5919 = vsel %vm418, %v5791, 0
        %v5922 = vsel %vm418, %v5793, 0
        %v5925 = vsel %vm418, %v5795, 0
        %v5928 = vsel %vm418, %v5797, 0
        %v5931 = vsel %vm418, %v5799, 0
        %v5934 = vsel %vm418, %v5801, 0
        %v5937 = vsel %vm418, %v5803, 0
        %v5940 = vsel %vm418, %v5805, 0
        %v5943 = vsel %vm418, %v5807, 0
        %v5946 = vsel %vm418, %v5809, 0
        %v5949 = vsel %vm418, %v5811, 0
        %v5952 = vsel %vm418, %v5813, 0
        %v5955 = vsel %vm418, %v5815, 0
        %v5958 = vsel %vm418, %v5817, 0
        %v5961 = vsel %vm418, %v5819, 0
        %v5964 = vsel %vm418, %v5821, 0
        %v5967 = vsel %vm418, %v5823, 0
        %v5970 = vsel %vm418, %v5825, 0
        %v5973 = vsel %vm418, %v5827, 0
        %v5976 = vsel %vm418, %v5829, 0
        %5978 = vmatprep.subr.mxu0 0.0
        %5979 = vmatpush1.msra.mxu0 %v5830
        %5980 = vmatprep.subr.mxu0 0.0
        %5981 = vmatpush1.msra.mxu0 %v5831
        %5982 = vmatprep.subr.mxu0 0.0
        %5983 = vmatpush1.msra.mxu0 %v5832
        %5984 = vmatprep.subr.mxu0 0.0
        %5985 = vmatpush1.msra.mxu0 %v5833
        %5986 = vmatprep.subr.mxu0 0.0
        %5987 = vmatpush1.msra.mxu0 %v5834
        %5988 = vmatprep.subr.mxu0 0.0
        %5989 = vmatpush1.msra.mxu0 %v5835
        %5990 = vmatprep.subr.mxu0 0.0
        %5991 = vmatpush1.msra.mxu0 %v5836
        %5992 = vmatprep.subr.mxu0 0.0
        %5993 = vmatpush1.msra.mxu0 %v5837
        %5994 = vmatprep.subr.mxu0 0.0
        %5995 = vmatpush1.msra.mxu0 %v5838
        %5996 = vmatprep.subr.mxu0 0.0
        %5997 = vmatpush1.msra.mxu0 %v5839
        %5998 = vmatprep.subr.mxu0 0.0
        %5999 = vmatpush1.msra.mxu0 %v5840
        %6000 = vmatprep.subr.mxu0 0.0
        %6001 = vmatpush1.msra.mxu0 %v5841
        %6002 = vmatprep.subr.mxu0 0.0
        %6003 = vmatpush1.msra.mxu0 %v5842
        %6004 = vmatprep.subr.mxu0 0.0
        %6005 = vmatpush1.msra.mxu0 %v5843
        %6006 = vmatprep.subr.mxu0 0.0
        %6007 = vmatpush1.msra.mxu0 %v5844
        %6008 = vmatprep.subr.mxu0 0.0
        %6009 = vmatpush1.msra.mxu0 %v5845
        %6010 = vmatprep.subr.mxu0 0.0
        %6011 = vmatpush1.msra.mxu0 %v5846
        %6012 = vmatprep.subr.mxu0 0.0
        %6013 = vmatpush1.msra.mxu0 %v5847
        %6014 = vmatprep.subr.mxu0 0.0
        %6015 = vmatpush1.msra.mxu0 0.0
        %6016 = vmatprep.subr.mxu0 0.0
        %6017 = vmatpush1.msra.mxu0 0.0
        %6018 = vmatprep.subr.mxu0 0.0
        %6019 = vmatpush1.msra.mxu0 0.0
        %6020 = vmatprep.subr.mxu0 0.0
        %6021 = vmatpush1.msra.mxu0 0.0
        %6022 = vmatprep.subr.mxu0 0.0
        %6023 = vmatpush1.msra.mxu0 0.0
        %6024 = vmatprep.subr.mxu0 0.0
        %6025 = vmatpush1.msra.mxu0 0.0
        %6026 = vmatprep.subr.mxu0 0.0
        %6027 = vmatpush1.msra.mxu0 0.0
        %6028 = vmatprep.subr.mxu0 0.0
        %6029 = vmatpush1.msra.mxu0 0.0
        %6030 = vmatprep.subr.mxu0 0.0
        %6031 = vmatpush1.msra.mxu0 0.0
        %6032 = vmatprep.subr.mxu0 0.0
        %6033 = vmatpush1.msra.mxu0 0.0
        %6034 = vmatprep.subr.mxu0 0.0
        %6035 = vmatpush1.msra.mxu0 0.0
        %6036 = vmatprep.subr.mxu0 0.0
        %6037 = vmatpush1.msra.mxu0 0.0
        %6038 = vmatprep.subr.mxu0 0.0
        %6039 = vmatpush1.msra.mxu0 0.0
        %6040 = vmatprep.subr.mxu0 0.0
        %6041 = vmatpush1.msra.mxu0 0.0
        %6042 = vmatprep.mubr.f32.mxu0 %v5856
        %6043 = vmatmul.mubr.f32.gmra.mrb[0].mxu0 %v5748
        %v6044 = vpop.f32.mrb[0].mxu0
        %v6045 = vadd.f32 %v5853, %v6044
        %v6046 = vpop.f32.mrb[0].mxu0
        %6047 = vmatprep.mubr.f32.mxu0 %v5859
        %6048 = vmatmul.mubr.f32.gmra.mrb[0].mxu0 %v5750
        %v6049 = vpop.f32.mrb[0].mxu0
        %v6050 = vadd.f32 %v5853, %v6049
        %v6051 = vpop.f32.mrb[0].mxu0
        %6052 = vmatprep.mubr.f32.mxu0 %v5862
        %6053 = vmatmul.mubr.f32.gmra.mrb[0].mxu0 %v5752
        %v6054 = vpop.f32.mrb[0].mxu0
        %v6055 = vadd.f32 %v5853, %v6054
        %v6056 = vpop.f32.mrb[0].mxu0
        %6057 = vmatprep.mubr.f32.mxu0 %v5865
        %6058 = vmatmul.mubr.f32.gmra.mrb[0].mxu0 %v5754
        %v6059 = vpop.f32.mrb[0].mxu0
        %v6060 = vadd.f32 %v5853, %v6059
        %v6061 = vpop.f32.mrb[0].mxu0
        %6062 = vmatprep.mubr.f32.mxu0 %v5868
        %6063 = vmatmul.mubr.f32.gmra.mrb[0].mxu0 %v5756
        %v6064 = vpop.f32.mrb[0].mxu0
        %v6065 = vadd.f32 %v5853, %v6064
        %v6066 = vpop.f32.mrb[0].mxu0
        %6067 = vmatprep.mubr.f32.mxu0 %v5871
        %6068 = vmatmul.mubr.f32.gmra.mrb[0].mxu0 %v5758
        %v6069 = vpop.f32.mrb[0].mxu0
        %v6070 = vadd.f32 %v5853, %v6069
        %v6071 = vpop.f32.mrb[0].mxu0
        %6072 = vmatprep.mubr.f32.mxu0 %v5874
        %6073 = vmatmul.mubr.f32.gmra.mrb[0].mxu0 %v5760
        %v6074 = vpop.f32.mrb[0].mxu0
        %v6075 = vadd.f32 %v5853, %v6074
        %v6076 = vpop.f32.mrb[0].mxu0
        %6077 = vmatprep.mubr.f32.mxu0 %v5877
        %6078 = vmatmul.mubr.f32.gmra.mrb[0].mxu0 %v5762
        %v6079 = vpop.f32.mrb[0].mxu0
        %v6080 = vadd.f32 %v5853, %v6079
        %v6081 = vpop.f32.mrb[0].mxu0
        %6082 = vmatprep.mubr.f32.mxu0 %v5880
        %6083 = vmatmul.mubr.f32.gmra.mrb[0].mxu0 %v5764
        %v6084 = vpop.f32.mrb[0].mxu0
        %v6085 = vadd.f32 %v5853, %v6084
        %v6086 = vpop.f32.mrb[0].mxu0
        %6087 = vmatprep.mubr.f32.mxu0 %v5883
        %6088 = vmatmul.mubr.f32.gmra.mrb[0].mxu0 %v5766
        %v6089 = vpop.f32.mrb[0].mxu0
        %v6090 = vadd.f32 %v5853, %v6089
        %v6091 = vpop.f32.mrb[0].mxu0
        %6092 = vmatprep.mubr.f32.mxu0 %v5886
        %6093 = vmatmul.mubr.f32.gmra.mrb[0].mxu0 %v5768
        %v6094 = vpop.f32.mrb[0].mxu0
        %v6095 = vadd.f32 %v5853, %v6094
        %v6096 = vpop.f32.mrb[0].mxu0
        %6097 = vmatprep.mubr.f32.mxu0 %v5889
        %6098 = vmatmul.mubr.f32.gmra.mrb[0].mxu0 %v5770
        %v6099 = vpop.f32.mrb[0].mxu0
        %v6100 = vadd.f32 %v5853, %v6099
        %v6101 = vpop.f32.mrb[0].mxu0
        %6102 = vmatprep.mubr.f32.mxu0 %v5892
        %6103 = vmatmul.mubr.f32.gmra.mrb[0].mxu0 %v5772
        %v6104 = vpop.f32.mrb[0].mxu0
        %v6105 = vadd.f32 %v5853, %v6104
        %v6106 = vpop.f32.mrb[0].mxu0
        %6107 = vmatprep.mubr.f32.mxu0 %v5895
        %6108 = vmatmul.mubr.f32.gmra.mrb[0].mxu0 %v5774
        %v6109 = vpop.f32.mrb[0].mxu0
        %v6110 = vadd.f32 %v5853, %v6109
        %v6111 = vpop.f32.mrb[0].mxu0
        %6112 = vmatprep.mubr.f32.mxu0 %v5898
        %6113 = vmatmul.mubr.f32.gmra.mrb[0].mxu0 %v5776
        %v6114 = vpop.f32.mrb[0].mxu0
        %v6115 = vadd.f32 %v5853, %v6114
        %v6116 = vpop.f32.mrb[0].mxu0
        %6117 = vmatprep.mubr.f32.mxu0 %v5901
        %6118 = vmatmul.mubr.f32.gmra.mrb[0].mxu0 %v5778
        %v6119 = vpop.f32.mrb[0].mxu0
        %v6120 = vadd.f32 %v5853, %v6119
        %v6121 = vpop.f32.mrb[0].mxu0
        %6122 = vmatprep.mubr.f32.mxu0 %v5904
        %6123 = vmatmul.mubr.f32.gmra.mrb[0].mxu0 %v5780
        %v6124 = vpop.f32.mrb[0].mxu0
        %v6125 = vadd.f32 %v5853, %v6124
        %v6126 = vpop.f32.mrb[0].mxu0
        %6127 = vmatprep.mubr.f32.mxu0 %v5907
        %6128 = vmatmul.mubr.f32.gmra.mrb[0].mxu0 %v5782
        %v6129 = vpop.f32.mrb[0].mxu0
        %v6130 = vadd.f32 %v5853, %v6129
        %v6131 = vpop.f32.mrb[0].mxu0
        %6132 = vmatprep.mubr.f32.mxu0 %v5910
        %6133 = vmatmul.mubr.f32.gmra.mrb[0].mxu0 %v5784
        %v6134 = vpop.f32.mrb[0].mxu0
        %v6135 = vadd.f32 %v5853, %v6134
        %v6136 = vpop.f32.mrb[0].mxu0
        %6137 = vmatprep.mubr.f32.mxu0 %v5913
        %6138 = vmatmul.mubr.f32.gmra.mrb[0].mxu0 %v5786
        %v6139 = vpop.f32.mrb[0].mxu0
        %v6140 = vadd.f32 %v5853, %v6139
        %v6141 = vpop.f32.mrb[0].mxu0
        %6142 = vmatprep.mubr.f32.mxu0 %v5916
        %6143 = vmatmul.mubr.f32.gmra.mrb[0].mxu0 %v5788
        %v6144 = vpop.f32.mrb[0].mxu0
        %v6145 = vadd.f32 %v5853, %v6144
        %v6146 = vpop.f32.mrb[0].mxu0
        %6147 = vmatprep.mubr.f32.mxu0 %v5919
        %6148 = vmatmul.mubr.f32.gmra.mrb[0].mxu0 %v5790
        %v6149 = vpop.f32.mrb[0].mxu0
        %v6150 = vadd.f32 %v5853, %v6149
        %v6151 = vpop.f32.mrb[0].mxu0
        %6152 = vmatprep.mubr.f32.mxu0 %v5922
        %6153 = vmatmul.mubr.f32.gmra.mrb[0].mxu0 %v5792
        %v6154 = vpop.f32.mrb[0].mxu0
        %v6155 = vadd.f32 %v5853, %v6154
        %v6156 = vpop.f32.mrb[0].mxu0
        %6157 = vmatprep.mubr.f32.mxu0 %v5925
        %6158 = vmatmul.mubr.f32.gmra.mrb[0].mxu0 %v5794
        %v6159 = vpop.f32.mrb[0].mxu0
        %v6160 = vadd.f32 %v5853, %v6159
        %v6161 = vpop.f32.mrb[0].mxu0
        %6162 = vmatprep.mubr.f32.mxu0 %v5928
        %6163 = vmatmul.mubr.f32.gmra.mrb[0].mxu0 %v5796
        %v6164 = vpop.f32.mrb[0].mxu0
        %v6165 = vadd.f32 %v5853, %v6164
        %v6166 = vpop.f32.mrb[0].mxu0
        %6167 = vmatprep.mubr.f32.mxu0 %v5931
        %6168 = vmatmul.mubr.f32.gmra.mrb[0].mxu0 %v5798
        %v6169 = vpop.f32.mrb[0].mxu0
        %v6170 = vadd.f32 %v5853, %v6169
        %v6171 = vpop.f32.mrb[0].mxu0
        %6172 = vmatprep.mubr.f32.mxu0 %v5934
        %6173 = vmatmul.mubr.f32.gmra.mrb[0].mxu0 %v5800
        %v6174 = vpop.f32.mrb[0].mxu0
        %v6175 = vadd.f32 %v5853, %v6174
        %v6176 = vpop.f32.mrb[0].mxu0
        %6177 = vmatprep.mubr.f32.mxu0 %v5937
        %6178 = vmatmul.mubr.f32.gmra.mrb[0].mxu0 %v5802
        %v6179 = vpop.f32.mrb[0].mxu0
        %v6180 = vadd.f32 %v5853, %v6179
        %v6181 = vpop.f32.mrb[0].mxu0
        %6182 = vmatprep.mubr.f32.mxu0 %v5940
        %6183 = vmatmul.mubr.f32.gmra.mrb[0].mxu0 %v5804
        %v6184 = vpop.f32.mrb[0].mxu0
        %v6185 = vadd.f32 %v5853, %v6184
        %v6186 = vpop.f32.mrb[0].mxu0
        %6187 = vmatprep.mubr.f32.mxu0 %v5943
        %6188 = vmatmul.mubr.f32.gmra.mrb[0].mxu0 %v5806
        %v6189 = vpop.f32.mrb[0].mxu0
        %v6190 = vadd.f32 %v5853, %v6189
        %v6191 = vpop.f32.mrb[0].mxu0
        %6192 = vmatprep.mubr.f32.mxu0 %v5946
        %6193 = vmatmul.mubr.f32.gmra.mrb[0].mxu0 %v5808
        %v6194 = vpop.f32.mrb[0].mxu0
        %v6195 = vadd.f32 %v5853, %v6194
        %v6196 = vpop.f32.mrb[0].mxu0
        %6197 = vmatprep.mubr.f32.mxu0 %v5949
        %6198 = vmatmul.mubr.f32.gmra.mrb[0].mxu0 %v5810
        %v6199 = vpop.f32.mrb[0].mxu0
        %v6200 = vadd.f32 %v5853, %v6199
        %v6201 = vpop.f32.mrb[0].mxu0
        %6202 = vmatprep.mubr.f32.mxu0 %v5952
        %6203 = vmatmul.mubr.f32.gmra.mrb[0].mxu0 %v5812
        %v6204 = vpop.f32.mrb[0].mxu0
        %v6205 = vadd.f32 %v5853, %v6204
        %v6206 = vpop.f32.mrb[0].mxu0
        %6207 = vmatprep.mubr.f32.mxu0 %v5955
        %6208 = vmatmul.mubr.f32.gmra.mrb[0].mxu0 %v5814
        %v6209 = vpop.f32.mrb[0].mxu0
        %v6210 = vadd.f32 %v5853, %v6209
        %v6211 = vpop.f32.mrb[0].mxu0
        %6212 = vmatprep.mubr.f32.mxu0 %v5958
        %6213 = vmatmul.mubr.f32.gmra.mrb[0].mxu0 %v5816
        %v6214 = vpop.f32.mrb[0].mxu0
        %v6215 = vadd.f32 %v5853, %v6214
        %v6216 = vpop.f32.mrb[0].mxu0
        %6217 = vmatprep.mubr.f32.mxu0 %v5961
        %6218 = vmatmul.mubr.f32.gmra.mrb[0].mxu0 %v5818
        %v6219 = vpop.f32.mrb[0].mxu0
        %v6220 = vadd.f32 %v5853, %v6219
        %v6221 = vpop.f32.mrb[0].mxu0
        %6222 = vmatprep.mubr.f32.mxu0 %v5964
        %6223 = vmatmul.mubr.f32.gmra.mrb[0].mxu0 %v5820
        %v6224 = vpop.f32.mrb[0].mxu0
        %v6225 = vadd.f32 %v5853, %v6224
        %v6226 = vpop.f32.mrb[0].mxu0
        %6227 = vmatprep.mubr.f32.mxu0 %v5967
        %6228 = vmatmul.mubr.f32.gmra.mrb[0].mxu0 %v5822
        %v6229 = vpop.f32.mrb[0].mxu0
        %v6230 = vadd.f32 %v5853, %v6229
        %v6231 = vpop.f32.mrb[0].mxu0
        %6232 = vmatprep.mubr.f32.mxu0 %v5970
        %6233 = vmatmul.mubr.f32.gmra.mrb[0].mxu0 %v5824
        %v6234 = vpop.f32.mrb[0].mxu0
        %v6235 = vadd.f32 %v5853, %v6234
        %v6236 = vpop.f32.mrb[0].mxu0
        %6237 = vmatprep.mubr.f32.mxu0 %v5973
        %6238 = vmatmul.mubr.f32.gmra.mrb[0].mxu0 %v5826
        %v6239 = vpop.f32.mrb[0].mxu0
        %v6240 = vadd.f32 %v5853, %v6239
        %v6241 = vpop.f32.mrb[0].mxu0
        %6242 = vmatprep.mubr.f32.mxu0 %v5976
        %6243 = vmatmul.mubr.f32.gmra.mrb[0].mxu0 %v5828
        %v6244 = vpop.f32.mrb[0].mxu0
        %v6245 = vadd.f32 %v5853, %v6244
        %v6246 = vpop.f32.mrb[0].mxu0
        %6247 = vdwg.mxu0
        %vm6248 = vcmp.ge.f32.partialorder %v6045, 0.0
        %vm6249 = vcmp.ge.f32.partialorder %v6050, 0.0
        %vm6250 = vcmp.ge.f32.partialorder %v6055, 0.0
        %vm6251 = vcmp.ge.f32.partialorder %v6060, 0.0
        %vm6252 = vcmp.ge.f32.partialorder %v6065, 0.0
        %vm6253 = vcmp.ge.f32.partialorder %v6070, 0.0
        %vm6254 = vcmp.ge.f32.partialorder %v6075, 0.0
        %vm6255 = vcmp.ge.f32.partialorder %v6080, 0.0
        %vm6256 = vcmp.ge.f32.partialorder %v6085, 0.0
        %vm6257 = vcmp.ge.f32.partialorder %v6090, 0.0
        %vm6258 = vcmp.ge.f32.partialorder %v6095, 0.0
        %vm6259 = vcmp.ge.f32.partialorder %v6100, 0.0
        %vm6260 = vcmp.ge.f32.partialorder %v6105, 0.0
        %vm6261 = vcmp.ge.f32.partialorder %v6110, 0.0
        %vm6262 = vcmp.ge.f32.partialorder %v6115, 0.0
        %vm6263 = vcmp.ge.f32.partialorder %v6120, 0.0
        %vm6264 = vcmp.ge.f32.partialorder %v6125, 0.0
        %vm6265 = vcmp.ge.f32.partialorder %v6130, 0.0
        %vm6266 = vcmp.ge.f32.partialorder %v6135, 0.0
        %vm6267 = vcmp.ge.f32.partialorder %v6140, 0.0
        %vm6268 = vcmp.ge.f32.partialorder %v6145, 0.0
        %vm6269 = vcmp.ge.f32.partialorder %v6150, 0.0
        %vm6270 = vcmp.ge.f32.partialorder %v6155, 0.0
        %vm6271 = vcmp.ge.f32.partialorder %v6160, 0.0
        %vm6272 = vcmp.ge.f32.partialorder %v6165, 0.0
        %vm6273 = vcmp.ge.f32.partialorder %v6170, 0.0
        %vm6274 = vcmp.ge.f32.partialorder %v6175, 0.0
        %vm6275 = vcmp.ge.f32.partialorder %v6180, 0.0
        %vm6276 = vcmp.ge.f32.partialorder %v6185, 0.0
        %vm6277 = vcmp.ge.f32.partialorder %v6190, 0.0
        %vm6278 = vcmp.ge.f32.partialorder %v6195, 0.0
        %vm6279 = vcmp.ge.f32.partialorder %v6200, 0.0
        %vm6280 = vcmp.ge.f32.partialorder %v6205, 0.0
        %vm6281 = vcmp.ge.f32.partialorder %v6210, 0.0
        %vm6282 = vcmp.ge.f32.partialorder %v6215, 0.0
        %vm6283 = vcmp.ge.f32.partialorder %v6220, 0.0
        %vm6284 = vcmp.ge.f32.partialorder %v6225, 0.0
        %vm6285 = vcmp.ge.f32.partialorder %v6230, 0.0
        %vm6286 = vcmp.ge.f32.partialorder %v6235, 0.0
        %vm6287 = vcmp.ge.f32.partialorder %v6240, 0.0
        %vm6288 = vcmp.ge.f32.partialorder %v6245, 0.0
        %v6289 = vstv %s375
        %v6290 = vmul.f32 %v6289, %v6045
        %v6291 = vmul.f32 %v6289, %v6050
        %v6292 = vmul.f32 %v6289, %v6055
        %v6293 = vmul.f32 %v6289, %v6060
        %v6294 = vmul.f32 %v6289, %v6065
        %v6295 = vmul.f32 %v6289, %v6070
        %v6296 = vmul.f32 %v6289, %v6075
        %v6297 = vmul.f32 %v6289, %v6080
        %v6298 = vmul.f32 %v6289, %v6085
        %v6299 = vmul.f32 %v6289, %v6090
        %v6300 = vmul.f32 %v6289, %v6095
        %v6301 = vmul.f32 %v6289, %v6100
        %v6302 = vmul.f32 %v6289, %v6105
        %v6303 = vmul.f32 %v6289, %v6110
        %v6304 = vmul.f32 %v6289, %v6115
        %v6305 = vmul.f32 %v6289, %v6120
        %v6306 = vmul.f32 %v6289, %v6125
        %v6307 = vmul.f32 %v6289, %v6130
        %v6308 = vmul.f32 %v6289, %v6135
        %v6309 = vmul.f32 %v6289, %v6140
        %v6310 = vmul.f32 %v6289, %v6145
        %v6311 = vmul.f32 %v6289, %v6150
        %v6312 = vmul.f32 %v6289, %v6155
        %v6313 = vmul.f32 %v6289, %v6160
        %v6314 = vmul.f32 %v6289, %v6165
        %v6315 = vmul.f32 %v6289, %v6170
        %v6316 = vmul.f32 %v6289, %v6175
        %v6317 = vmul.f32 %v6289, %v6180
        %v6318 = vmul.f32 %v6289, %v6185
        %v6319 = vmul.f32 %v6289, %v6190
        %v6320 = vmul.f32 %v6289, %v6195
        %v6321 = vmul.f32 %v6289, %v6200
        %v6322 = vmul.f32 %v6289, %v6205
        %v6323 = vmul.f32 %v6289, %v6210
        %v6324 = vmul.f32 %v6289, %v6215
        %v6325 = vmul.f32 %v6289, %v6220
        %v6326 = vmul.f32 %v6289, %v6225
        %v6327 = vmul.f32 %v6289, %v6230
        %v6328 = vmul.f32 %v6289, %v6235
        %v6329 = vmul.f32 %v6289, %v6240
        %v6330 = vmul.f32 %v6289, %v6245
        %v6331 = vsel %vm6248, %v6045, %v6290
        %v6332 = vsel %vm6249, %v6050, %v6291
        %v6333 = vsel %vm6250, %v6055, %v6292
        %v6334 = vsel %vm6251, %v6060, %v6293
        %v6335 = vsel %vm6252, %v6065, %v6294
        %v6336 = vsel %vm6253, %v6070, %v6295
        %v6337 = vsel %vm6254, %v6075, %v6296
        %v6338 = vsel %vm6255, %v6080, %v6297
        %v6339 = vsel %vm6256, %v6085, %v6298
        %v6340 = vsel %vm6257, %v6090, %v6299
        %v6341 = vsel %vm6258, %v6095, %v6300
        %v6342 = vsel %vm6259, %v6100, %v6301
        %v6343 = vsel %vm6260, %v6105, %v6302
        %v6344 = vsel %vm6261, %v6110, %v6303
        %v6345 = vsel %vm6262, %v6115, %v6304
        %v6346 = vsel %vm6263, %v6120, %v6305
        %v6347 = vsel %vm6264, %v6125, %v6306
        %v6348 = vsel %vm6265, %v6130, %v6307
        %v6349 = vsel %vm6266, %v6135, %v6308
        %v6350 = vsel %vm6267, %v6140, %v6309
        %v6351 = vsel %vm6268, %v6145, %v6310
        %v6352 = vsel %vm6269, %v6150, %v6311
        %v6353 = vsel %vm6270, %v6155, %v6312
        %v6354 = vsel %vm6271, %v6160, %v6313
        %v6355 = vsel %vm6272, %v6165, %v6314
        %v6356 = vsel %vm6273, %v6170, %v6315
        %v6357 = vsel %vm6274, %v6175, %v6316
        %v6358 = vsel %vm6275, %v6180, %v6317
        %v6359 = vsel %vm6276, %v6185, %v6318
        %v6360 = vsel %vm6277, %v6190, %v6319
        %v6361 = vsel %vm6278, %v6195, %v6320
        %v6362 = vsel %vm6279, %v6200, %v6321
        %v6363 = vsel %vm6280, %v6205, %v6322
        %v6364 = vsel %vm6281, %v6210, %v6323
        %v6365 = vsel %vm6282, %v6215, %v6324
        %v6366 = vsel %vm6283, %v6220, %v6325
        %v6367 = vsel %vm6284, %v6225, %v6326
        %v6368 = vsel %vm6285, %v6230, %v6327
        %v6369 = vsel %vm6286, %v6235, %v6328
        %v6370 = vsel %vm6287, %v6240, %v6329
        %v6371 = vsel %vm6288, %v6245, %v6330
        %v6372 = vmul.f32 %v6331, %v3563
        %v6373 = vmul.f32 %v6332, %v3568
        %v6374 = vmul.f32 %v6333, %v3573
        %v6375 = vmul.f32 %v6334, %v3578
        %v6376 = vmul.f32 %v6335, %v3583
        %v6377 = vmul.f32 %v6336, %v3588
        %v6378 = vmul.f32 %v6337, %v3593
        %v6379 = vmul.f32 %v6338, %v3598
        %v6380 = vmul.f32 %v6339, %v3603
        %v6381 = vmul.f32 %v6340, %v3608
        %v6382 = vmul.f32 %v6341, %v3613
        %v6383 = vmul.f32 %v6342, %v3618
        %v6384 = vmul.f32 %v6343, %v3623
        %v6385 = vmul.f32 %v6344, %v3628
        %v6386 = vmul.f32 %v6345, %v3633
        %v6387 = vmul.f32 %v6346, %v3638
        %v6388 = vmul.f32 %v6347, %v3643
        %v6389 = vmul.f32 %v6348, %v3648
        %v6390 = vmul.f32 %v6349, %v3653
        %v6391 = vmul.f32 %v6350, %v3658
        %v6392 = vmul.f32 %v6351, %v3663
        %v6393 = vmul.f32 %v6352, %v3668
        %v6394 = vmul.f32 %v6353, %v3673
        %v6395 = vmul.f32 %v6354, %v3678
        %v6396 = vmul.f32 %v6355, %v3683
        %v6397 = vmul.f32 %v6356, %v3688
        %v6398 = vmul.f32 %v6357, %v3693
        %v6399 = vmul.f32 %v6358, %v3698
        %v6400 = vmul.f32 %v6359, %v3703
        %v6401 = vmul.f32 %v6360, %v3708
        %v6402 = vmul.f32 %v6361, %v3713
        %v6403 = vmul.f32 %v6362, %v3718
        %v6404 = vmul.f32 %v6363, %v3723
        %v6405 = vmul.f32 %v6364, %v3728
        %v6406 = vmul.f32 %v6365, %v3733
        %v6407 = vmul.f32 %v6366, %v3738
        %v6408 = vmul.f32 %v6367, %v3743
        %v6409 = vmul.f32 %v6368, %v3748
        %v6410 = vmul.f32 %v6369, %v3753
        %v6411 = vmul.f32 %v6370, %v3758
        %v6412 = vmul.f32 %v6371, %v3763
        %6413 = vst.msk [vmem:[#allocation3 + $0x18] sm:$0xff] %vm425, %v6372
        %6414 = vst.msk [vmem:[#allocation3 + $0x20] sm:$0xff] %vm425, %v6373
        %6415 = vst.msk [vmem:[#allocation3 + $0x28] sm:$0xff] %vm425, %v6374
        %6416 = vst.msk [vmem:[#allocation3 + $0x30] sm:$0xff] %vm425, %v6375
        %6417 = vst.msk [vmem:[#allocation3 + $0x38] sm:$0xff] %vm425, %v6376
        %6418 = vst.msk [vmem:[#allocation3 + $0x40] sm:$0xff] %vm425, %v6377
        %6419 = vst.msk [vmem:[#allocation3 + $0x48] sm:$0xff] %vm425, %v6378
        %6420 = vst.msk [vmem:[#allocation3 + $0x50] sm:$0xff] %vm425, %v6379
        %6421 = vst.msk [vmem:[#allocation3 + $0x58] sm:$0xff] %vm425, %v6380
        %6422 = vst.msk [vmem:[#allocation3 + $0x60] sm:$0xff] %vm425, %v6381
        %6423 = vst.msk [vmem:[#allocation3 + $0x68] sm:$0xff] %vm425, %v6382
        %6424 = vst.msk [vmem:[#allocation3 + $0x70] sm:$0xff] %vm425, %v6383
        %6425 = vst.msk [vmem:[#allocation3 + $0x78] sm:$0xff] %vm425, %v6384
        %6426 = vst.msk [vmem:[#allocation3 + $0x80] sm:$0xff] %vm425, %v6385
        %6427 = vst.msk [vmem:[#allocation3 + $0x88] sm:$0xff] %vm425, %v6386
        %6428 = vst.msk [vmem:[#allocation3 + $0x90] sm:$0xff] %vm425, %v6387
        %6429 = vst.msk [vmem:[#allocation3 + $0x98] sm:$0xff] %vm425, %v6388
        %6430 = vst.msk [vmem:[#allocation3 + $0xa0] sm:$0xff] %vm425, %v6389
        %6431 = vst.msk [vmem:[#allocation3 + $0xa8] sm:$0xff] %vm425, %v6390
        %6432 = vst.msk [vmem:[#allocation3 + $0xb0] sm:$0xff] %vm425, %v6391
        %6433 = vst.msk [vmem:[#allocation3 + $0xb8] sm:$0xff] %vm425, %v6392
        %6434 = vst.msk [vmem:[#allocation3 + $0xc0] sm:$0xff] %vm425, %v6393
        %6435 = vst.msk [vmem:[#allocation3 + $0xc8] sm:$0xff] %vm425, %v6394
        %6436 = vst.msk [vmem:[#allocation3 + $0xd0] sm:$0xff] %vm425, %v6395
        %6437 = vst.msk [vmem:[#allocation3 + $0xd8] sm:$0xff] %vm425, %v6396
        %6438 = vst.msk [vmem:[#allocation3 + $0xe0] sm:$0xff] %vm425, %v6397
        %6439 = vst.msk [vmem:[#allocation3 + $0xe8] sm:$0xff] %vm425, %v6398
        %6440 = vst.msk [vmem:[#allocation3 + $0xf0] sm:$0xff] %vm425, %v6399
        %6441 = vst.msk [vmem:[#allocation3 + $0xf8] sm:$0xff] %vm425, %v6400
        %6442 = vst.msk [vmem:[#allocation3 + $0x100] sm:$0xff] %vm425, %v6401
        %6443 = vst.msk [vmem:[#allocation3 + $0x108] sm:$0xff] %vm425, %v6402
        %6444 = vst.msk [vmem:[#allocation3 + $0x110] sm:$0xff] %vm425, %v6403
        %6445 = vst.msk [vmem:[#allocation3 + $0x118] sm:$0xff] %vm425, %v6404
        %6446 = vst.msk [vmem:[#allocation3 + $0x120] sm:$0xff] %vm425, %v6405
        %6447 = vst.msk [vmem:[#allocation3 + $0x128] sm:$0xff] %vm425, %v6406
        %6448 = vst.msk [vmem:[#allocation3 + $0x130] sm:$0xff] %vm425, %v6407
        %6449 = vst.msk [vmem:[#allocation3 + $0x138] sm:$0xff] %vm425, %v6408
        %6450 = vst.msk [vmem:[#allocation3 + $0x140] sm:$0xff] %vm425, %v6409
        %6451 = vst.msk [vmem:[#allocation3 + $0x148] sm:$0xff] %vm425, %v6410
        %6452 = vst.msk [vmem:[#allocation3 + $0x150] sm:$0xff] %vm425, %v6411
        %vm6453 = vcmask 257024
        %6454 = vst.msk [vmem:[#allocation3 + $0x158] sm:$0xf] %vm6453, %v6412
        %v6455 = vld [vmem:[#allocation3 + $0x5] sm:$0xff]
        %v6456 = vld [vmem:[#allocation3 + $0xd] sm:$0xff]
        %v6457 = vld [vmem:[#allocation3 + $0x15] sm:$0xff]
        %v6458 = vld [vmem:[#allocation3 + $0x1d] sm:$0xff]
        %v6459 = vld [vmem:[#allocation3 + $0x25] sm:$0xff]
        %v6460 = vld [vmem:[#allocation3 + $0x2d] sm:$0xff]
        %v6461 = vld [vmem:[#allocation3 + $0x35] sm:$0xff]
        %v6462 = vld [vmem:[#allocation3 + $0x3d] sm:$0xff]
        %v6463 = vld [vmem:[#allocation3 + $0x45] sm:$0xff]
        %v6464 = vld [vmem:[#allocation3 + $0x4d] sm:$0xff]
        %v6465 = vld [vmem:[#allocation3 + $0x55] sm:$0xff]
        %v6466 = vld [vmem:[#allocation3 + $0x5d] sm:$0xff]
        %v6467 = vld [vmem:[#allocation3 + $0x65] sm:$0xff]
        %v6468 = vld [vmem:[#allocation3 + $0x6d] sm:$0xff]
        %v6469 = vld [vmem:[#allocation3 + $0x75] sm:$0xff]
        %v6470 = vld [vmem:[#allocation3 + $0x7d] sm:$0xff]
        %v6471 = vld [vmem:[#allocation3 + $0x85] sm:$0xff]
        %v6472 = vld [vmem:[#allocation3 + $0x8d] sm:$0xff]
        %v6473 = vld [vmem:[#allocation3 + $0x95] sm:$0xff]
        %v6474 = vld [vmem:[#allocation3 + $0x9d] sm:$0xff]
        %v6475 = vld [vmem:[#allocation3 + $0xa5] sm:$0xff]
        %v6476 = vld [vmem:[#allocation3 + $0xad] sm:$0xff]
        %v6477 = vld [vmem:[#allocation3 + $0xb5] sm:$0xff]
        %v6478 = vld [vmem:[#allocation3 + $0xbd] sm:$0xff]
        %v6479 = vld [vmem:[#allocation3 + $0xc5] sm:$0xff]
        %v6480 = vld [vmem:[#allocation3 + $0xcd] sm:$0xff]
        %v6481 = vld [vmem:[#allocation3 + $0xd5] sm:$0xff]
        %v6482 = vld [vmem:[#allocation3 + $0xdd] sm:$0xff]
        %v6483 = vld [vmem:[#allocation3 + $0xe5] sm:$0xff]
        %v6484 = vld [vmem:[#allocation3 + $0xed] sm:$0xff]
        %v6485 = vld [vmem:[#allocation3 + $0xf5] sm:$0xff]
        %v6486 = vld [vmem:[#allocation3 + $0xfd] sm:$0xff]
        %v6487 = vld [vmem:[#allocation3 + $0x105] sm:$0xff]
        %v6488 = vld [vmem:[#allocation3 + $0x10d] sm:$0xff]
        %v6489 = vld [vmem:[#allocation3 + $0x115] sm:$0xff]
        %v6490 = vld [vmem:[#allocation3 + $0x11d] sm:$0xff]
        %v6491 = vld [vmem:[#allocation3 + $0x125] sm:$0xff]
        %v6492 = vld [vmem:[#allocation3 + $0x12d] sm:$0xff]
        %v6493 = vld [vmem:[#allocation3 + $0x135] sm:$0xff]
        %v6494 = vld [vmem:[#allocation3 + $0x13d] sm:$0xff]
        %v6495 = vld [vmem:[#allocation3 + $0x145] sm:$0xf]
        %6496 = vst.msk [vmem:[#allocation5] sm:$0xff] %vm425, %v6455
        %6497 = vst.msk [vmem:[#allocation5 + $0x18] sm:$0xff] %vm425, %v6456
        %6498 = vst.msk [vmem:[#allocation5 + $0x30] sm:$0xff] %vm425, %v6457
        %6499 = vst.msk [vmem:[#allocation5 + $0x48] sm:$0xff] %vm425, %v6458
        %6500 = vst.msk [vmem:[#allocation5 + $0x60] sm:$0xff] %vm425, %v6459
        %6501 = vst.msk [vmem:[#allocation5 + $0x78] sm:$0xff] %vm425, %v6460
        %6502 = vst.msk [vmem:[#allocation5 + $0x90] sm:$0xff] %vm425, %v6461
        %6503 = vst.msk [vmem:[#allocation5 + $0xa8] sm:$0xff] %vm425, %v6462
        %6504 = vst.msk [vmem:[#allocation5 + $0xc0] sm:$0xff] %vm425, %v6463
        %6505 = vst.msk [vmem:[#allocation5 + $0xd8] sm:$0xff] %vm425, %v6464
        %6506 = vst.msk [vmem:[#allocation5 + $0xf0] sm:$0xff] %vm425, %v6465
        %6507 = vst.msk [vmem:[#allocation5 + $0x108] sm:$0xff] %vm425, %v6466
        %6508 = vst.msk [vmem:[#allocation5 + $0x120] sm:$0xff] %vm425, %v6467
        %6509 = vst.msk [vmem:[#allocation5 + $0x138] sm:$0xff] %vm425, %v6468
        %6510 = vst.msk [vmem:[#allocation5 + $0x150] sm:$0xff] %vm425, %v6469
        %6511 = vst.msk [vmem:[#allocation5 + $0x168] sm:$0xff] %vm425, %v6470
        %6512 = vst.msk [vmem:[#allocation5 + $0x180] sm:$0xff] %vm425, %v6471
        %6513 = vst.msk [vmem:[#allocation5 + $0x198] sm:$0xff] %vm425, %v6472
        %6514 = vst.msk [vmem:[#allocation5 + $0x1b0] sm:$0xff] %vm425, %v6473
        %6515 = vst.msk [vmem:[#allocation5 + $0x1c8] sm:$0xff] %vm425, %v6474
        %6516 = vst.msk [vmem:[#allocation5 + $0x1e0] sm:$0xff] %vm425, %v6475
        %6517 = vst.msk [vmem:[#allocation5 + $0x1f8] sm:$0xff] %vm425, %v6476
        %6518 = vst.msk [vmem:[#allocation5 + $0x210] sm:$0xff] %vm425, %v6477
        %6519 = vst.msk [vmem:[#allocation5 + $0x228] sm:$0xff] %vm425, %v6478
        %6520 = vst.msk [vmem:[#allocation5 + $0x240] sm:$0xff] %vm425, %v6479
        %6521 = vst.msk [vmem:[#allocation5 + $0x258] sm:$0xff] %vm425, %v6480
        %6522 = vst.msk [vmem:[#allocation5 + $0x270] sm:$0xff] %vm425, %v6481
        %6523 = vst.msk [vmem:[#allocation5 + $0x288] sm:$0xff] %vm425, %v6482
        %6524 = vst.msk [vmem:[#allocation5 + $0x2a0] sm:$0xff] %vm425, %v6483
        %6525 = vst.msk [vmem:[#allocation5 + $0x2b8] sm:$0xff] %vm425, %v6484
        %6526 = vst.msk [vmem:[#allocation5 + $0x2d0] sm:$0xff] %vm425, %v6485
        %6527 = vst.msk [vmem:[#allocation5 + $0x2e8] sm:$0xff] %vm425, %v6486
        %6528 = vst.msk [vmem:[#allocation5 + $0x300] sm:$0xff] %vm425, %v6487
        %6529 = vst.msk [vmem:[#allocation5 + $0x318] sm:$0xff] %vm425, %v6488
        %6530 = vst.msk [vmem:[#allocation5 + $0x330] sm:$0xff] %vm425, %v6489
        %6531 = vst.msk [vmem:[#allocation5 + $0x348] sm:$0xff] %vm425, %v6490
        %6532 = vst.msk [vmem:[#allocation5 + $0x360] sm:$0xff] %vm425, %v6491
        %6533 = vst.msk [vmem:[#allocation5 + $0x378] sm:$0xff] %vm425, %v6492
        %6534 = vst.msk [vmem:[#allocation5 + $0x390] sm:$0xff] %vm425, %v6493
        %6535 = vst.msk [vmem:[#allocation5 + $0x3a8] sm:$0xff] %vm425, %v6494
        %6536 = vst.msk [vmem:[#allocation5 + $0x3c0] sm:$0xf] %vm6453, %v6495
        %v6537 = vld [vmem:[#allocation3 + $0x6] sm:$0xff]
        %v6538 = vld [vmem:[#allocation3 + $0xe] sm:$0xff]
        %v6539 = vld [vmem:[#allocation3 + $0x16] sm:$0xff]
        %v6540 = vld [vmem:[#allocation3 + $0x1e] sm:$0xff]
        %v6541 = vld [vmem:[#allocation3 + $0x26] sm:$0xff]
        %v6542 = vld [vmem:[#allocation3 + $0x2e] sm:$0xff]
        %v6543 = vld [vmem:[#allocation3 + $0x36] sm:$0xff]
        %v6544 = vld [vmem:[#allocation3 + $0x3e] sm:$0xff]
        %v6545 = vld [vmem:[#allocation3 + $0x46] sm:$0xff]
        %v6546 = vld [vmem:[#allocation3 + $0x4e] sm:$0xff]
        %v6547 = vld [vmem:[#allocation3 + $0x56] sm:$0xff]
        %v6548 = vld [vmem:[#allocation3 + $0x5e] sm:$0xff]
        %v6549 = vld [vmem:[#allocation3 + $0x66] sm:$0xff]
        %v6550 = vld [vmem:[#allocation3 + $0x6e] sm:$0xff]
        %v6551 = vld [vmem:[#allocation3 + $0x76] sm:$0xff]
        %v6552 = vld [vmem:[#allocation3 + $0x7e] sm:$0xff]
        %v6553 = vld [vmem:[#allocation3 + $0x86] sm:$0xff]
        %v6554 = vld [vmem:[#allocation3 + $0x8e] sm:$0xff]
        %v6555 = vld [vmem:[#allocation3 + $0x96] sm:$0xff]
        %v6556 = vld [vmem:[#allocation3 + $0x9e] sm:$0xff]
        %v6557 = vld [vmem:[#allocation3 + $0xa6] sm:$0xff]
        %v6558 = vld [vmem:[#allocation3 + $0xae] sm:$0xff]
        %v6559 = vld [vmem:[#allocation3 + $0xb6] sm:$0xff]
        %v6560 = vld [vmem:[#allocation3 + $0xbe] sm:$0xff]
        %v6561 = vld [vmem:[#allocation3 + $0xc6] sm:$0xff]
        %v6562 = vld [vmem:[#allocation3 + $0xce] sm:$0xff]
        %v6563 = vld [vmem:[#allocation3 + $0xd6] sm:$0xff]
        %v6564 = vld [vmem:[#allocation3 + $0xde] sm:$0xff]
        %v6565 = vld [vmem:[#allocation3 + $0xe6] sm:$0xff]
        %v6566 = vld [vmem:[#allocation3 + $0xee] sm:$0xff]
        %v6567 = vld [vmem:[#allocation3 + $0xf6] sm:$0xff]
        %v6568 = vld [vmem:[#allocation3 + $0xfe] sm:$0xff]
        %v6569 = vld [vmem:[#allocation3 + $0x106] sm:$0xff]
        %v6570 = vld [vmem:[#allocation3 + $0x10e] sm:$0xff]
        %v6571 = vld [vmem:[#allocation3 + $0x116] sm:$0xff]
        %v6572 = vld [vmem:[#allocation3 + $0x11e] sm:$0xff]
        %v6573 = vld [vmem:[#allocation3 + $0x126] sm:$0xff]
        %v6574 = vld [vmem:[#allocation3 + $0x12e] sm:$0xff]
        %v6575 = vld [vmem:[#allocation3 + $0x136] sm:$0xff]
        %v6576 = vld [vmem:[#allocation3 + $0x13e] sm:$0xff]
        %v6577 = vld [vmem:[#allocation3 + $0x146] sm:$0xf]
        %6619 = vrot.lane.b32.xlu0 %v6537, 32
        %v6620 = vpop.permute.xlu0 %6619
        %6621 = vrot.lane.b32.xlu0 %v6538, 32
        %v6622 = vpop.permute.xlu0 %6621
        %6623 = vrot.lane.b32.xlu0 %v6539, 32
        %v6624 = vpop.permute.xlu0 %6623
        %6625 = vrot.lane.b32.xlu0 %v6540, 32
        %v6626 = vpop.permute.xlu0 %6625
        %6627 = vrot.lane.b32.xlu0 %v6541, 32
        %v6628 = vpop.permute.xlu0 %6627
        %6629 = vrot.lane.b32.xlu0 %v6542, 32
        %v6630 = vpop.permute.xlu0 %6629
        %6631 = vrot.lane.b32.xlu0 %v6543, 32
        %v6632 = vpop.permute.xlu0 %6631
        %6633 = vrot.lane.b32.xlu0 %v6544, 32
        %v6634 = vpop.permute.xlu0 %6633
        %6635 = vrot.lane.b32.xlu0 %v6545, 32
        %v6636 = vpop.permute.xlu0 %6635
        %6637 = vrot.lane.b32.xlu0 %v6546, 32
        %v6638 = vpop.permute.xlu0 %6637
        %6639 = vrot.lane.b32.xlu0 %v6547, 32
        %v6640 = vpop.permute.xlu0 %6639
        %6641 = vrot.lane.b32.xlu0 %v6548, 32
        %v6642 = vpop.permute.xlu0 %6641
        %6643 = vrot.lane.b32.xlu0 %v6549, 32
        %v6644 = vpop.permute.xlu0 %6643
        %6645 = vrot.lane.b32.xlu0 %v6550, 32
        %v6646 = vpop.permute.xlu0 %6645
        %6647 = vrot.lane.b32.xlu0 %v6551, 32
        %v6648 = vpop.permute.xlu0 %6647
        %6649 = vrot.lane.b32.xlu0 %v6552, 32
        %v6650 = vpop.permute.xlu0 %6649
        %6651 = vrot.lane.b32.xlu0 %v6553, 32
        %v6652 = vpop.permute.xlu0 %6651
        %6653 = vrot.lane.b32.xlu0 %v6554, 32
        %v6654 = vpop.permute.xlu0 %6653
        %6655 = vrot.lane.b32.xlu0 %v6555, 32
        %v6656 = vpop.permute.xlu0 %6655
        %6657 = vrot.lane.b32.xlu0 %v6556, 32
        %v6658 = vpop.permute.xlu0 %6657
        %6659 = vrot.lane.b32.xlu0 %v6557, 32
        %v6660 = vpop.permute.xlu0 %6659
        %6661 = vrot.lane.b32.xlu0 %v6558, 32
        %v6662 = vpop.permute.xlu0 %6661
        %6663 = vrot.lane.b32.xlu0 %v6559, 32
        %v6664 = vpop.permute.xlu0 %6663
        %6665 = vrot.lane.b32.xlu0 %v6560, 32
        %v6666 = vpop.permute.xlu0 %6665
        %6667 = vrot.lane.b32.xlu0 %v6561, 32
        %v6668 = vpop.permute.xlu0 %6667
        %6669 = vrot.lane.b32.xlu0 %v6562, 32
        %v6670 = vpop.permute.xlu0 %6669
        %6671 = vrot.lane.b32.xlu0 %v6563, 32
        %v6672 = vpop.permute.xlu0 %6671
        %6673 = vrot.lane.b32.xlu0 %v6564, 32
        %v6674 = vpop.permute.xlu0 %6673
        %6675 = vrot.lane.b32.xlu0 %v6565, 32
        %v6676 = vpop.permute.xlu0 %6675
        %6677 = vrot.lane.b32.xlu0 %v6566, 32
        %v6678 = vpop.permute.xlu0 %6677
        %6679 = vrot.lane.b32.xlu0 %v6567, 32
        %v6680 = vpop.permute.xlu0 %6679
        %6681 = vrot.lane.b32.xlu0 %v6568, 32
        %v6682 = vpop.permute.xlu0 %6681
        %6683 = vrot.lane.b32.xlu0 %v6569, 32
        %v6684 = vpop.permute.xlu0 %6683
        %6685 = vrot.lane.b32.xlu0 %v6570, 32
        %v6686 = vpop.permute.xlu0 %6685
        %6687 = vrot.lane.b32.xlu0 %v6571, 32
        %v6688 = vpop.permute.xlu0 %6687
        %6689 = vrot.lane.b32.xlu0 %v6572, 32
        %v6690 = vpop.permute.xlu0 %6689
        %6691 = vrot.lane.b32.xlu0 %v6573, 32
        %v6692 = vpop.permute.xlu0 %6691
        %6693 = vrot.lane.b32.xlu0 %v6574, 32
        %v6694 = vpop.permute.xlu0 %6693
        %6695 = vrot.lane.b32.xlu0 %v6575, 32
        %v6696 = vpop.permute.xlu0 %6695
        %6697 = vrot.lane.b32.xlu0 %v6576, 32
        %v6698 = vpop.permute.xlu0 %6697
        %6699 = vrot.lane.b32.xlu0 %v6577, 32
        %v6700 = vpop.permute.xlu0 %6699
        %vm6742 = vcmask 523520
        %6743 = vst.msk [vmem:[#allocation5] sm:$0xff] %vm6742, %v6620
        %6744 = vst.msk [vmem:[#allocation5 + $0x18] sm:$0xff] %vm6742, %v6622
        %6745 = vst.msk [vmem:[#allocation5 + $0x30] sm:$0xff] %vm6742, %v6624
        %6746 = vst.msk [vmem:[#allocation5 + $0x48] sm:$0xff] %vm6742, %v6626
        %6747 = vst.msk [vmem:[#allocation5 + $0x60] sm:$0xff] %vm6742, %v6628
        %6748 = vst.msk [vmem:[#allocation5 + $0x78] sm:$0xff] %vm6742, %v6630
        %6749 = vst.msk [vmem:[#allocation5 + $0x90] sm:$0xff] %vm6742, %v6632
        %6750 = vst.msk [vmem:[#allocation5 + $0xa8] sm:$0xff] %vm6742, %v6634
        %6751 = vst.msk [vmem:[#allocation5 + $0xc0] sm:$0xff] %vm6742, %v6636
        %6752 = vst.msk [vmem:[#allocation5 + $0xd8] sm:$0xff] %vm6742, %v6638
        %6753 = vst.msk [vmem:[#allocation5 + $0xf0] sm:$0xff] %vm6742, %v6640
        %6754 = vst.msk [vmem:[#allocation5 + $0x108] sm:$0xff] %vm6742, %v6642
        %6755 = vst.msk [vmem:[#allocation5 + $0x120] sm:$0xff] %vm6742, %v6644
        %6756 = vst.msk [vmem:[#allocation5 + $0x138] sm:$0xff] %vm6742, %v6646
        %6757 = vst.msk [vmem:[#allocation5 + $0x150] sm:$0xff] %vm6742, %v6648
        %6758 = vst.msk [vmem:[#allocation5 + $0x168] sm:$0xff] %vm6742, %v6650
        %6759 = vst.msk [vmem:[#allocation5 + $0x180] sm:$0xff] %vm6742, %v6652
        %6760 = vst.msk [vmem:[#allocation5 + $0x198] sm:$0xff] %vm6742, %v6654
        %6761 = vst.msk [vmem:[#allocation5 + $0x1b0] sm:$0xff] %vm6742, %v6656
        %6762 = vst.msk [vmem:[#allocation5 + $0x1c8] sm:$0xff] %vm6742, %v6658
        %6763 = vst.msk [vmem:[#allocation5 + $0x1e0] sm:$0xff] %vm6742, %v6660
        %6764 = vst.msk [vmem:[#allocation5 + $0x1f8] sm:$0xff] %vm6742, %v6662
        %6765 = vst.msk [vmem:[#allocation5 + $0x210] sm:$0xff] %vm6742, %v6664
        %6766 = vst.msk [vmem:[#allocation5 + $0x228] sm:$0xff] %vm6742, %v6666
        %6767 = vst.msk [vmem:[#allocation5 + $0x240] sm:$0xff] %vm6742, %v6668
        %6768 = vst.msk [vmem:[#allocation5 + $0x258] sm:$0xff] %vm6742, %v6670
        %6769 = vst.msk [vmem:[#allocation5 + $0x270] sm:$0xff] %vm6742, %v6672
        %6770 = vst.msk [vmem:[#allocation5 + $0x288] sm:$0xff] %vm6742, %v6674
        %6771 = vst.msk [vmem:[#allocation5 + $0x2a0] sm:$0xff] %vm6742, %v6676
        %6772 = vst.msk [vmem:[#allocation5 + $0x2b8] sm:$0xff] %vm6742, %v6678
        %6773 = vst.msk [vmem:[#allocation5 + $0x2d0] sm:$0xff] %vm6742, %v6680
        %6774 = vst.msk [vmem:[#allocation5 + $0x2e8] sm:$0xff] %vm6742, %v6682
        %6775 = vst.msk [vmem:[#allocation5 + $0x300] sm:$0xff] %vm6742, %v6684
        %6776 = vst.msk [vmem:[#allocation5 + $0x318] sm:$0xff] %vm6742, %v6686
        %6777 = vst.msk [vmem:[#allocation5 + $0x330] sm:$0xff] %vm6742, %v6688
        %6778 = vst.msk [vmem:[#allocation5 + $0x348] sm:$0xff] %vm6742, %v6690
        %6779 = vst.msk [vmem:[#allocation5 + $0x360] sm:$0xff] %vm6742, %v6692
        %6780 = vst.msk [vmem:[#allocation5 + $0x378] sm:$0xff] %vm6742, %v6694
        %6781 = vst.msk [vmem:[#allocation5 + $0x390] sm:$0xff] %vm6742, %v6696
        %6782 = vst.msk [vmem:[#allocation5 + $0x3a8] sm:$0xff] %vm6742, %v6698
        %vm6783 = vcmask 519424
        %6784 = vst.msk [vmem:[#allocation5 + $0x3c0] sm:$0xf] %vm6783, %v6700
        %v6785 = vld [vmem:[#allocation3 + $0x7] sm:$0xff]
        %v6786 = vld [vmem:[#allocation3 + $0xf] sm:$0xff]
        %v6787 = vld [vmem:[#allocation3 + $0x17] sm:$0xff]
        %v6788 = vld [vmem:[#allocation3 + $0x1f] sm:$0xff]
        %v6789 = vld [vmem:[#allocation3 + $0x27] sm:$0xff]
        %v6790 = vld [vmem:[#allocation3 + $0x2f] sm:$0xff]
        %v6791 = vld [vmem:[#allocation3 + $0x37] sm:$0xff]
        %v6792 = vld [vmem:[#allocation3 + $0x3f] sm:$0xff]
        %v6793 = vld [vmem:[#allocation3 + $0x47] sm:$0xff]
        %v6794 = vld [vmem:[#allocation3 + $0x4f] sm:$0xff]
        %v6795 = vld [vmem:[#allocation3 + $0x57] sm:$0xff]
        %v6796 = vld [vmem:[#allocation3 + $0x5f] sm:$0xff]
        %v6797 = vld [vmem:[#allocation3 + $0x67] sm:$0xff]
        %v6798 = vld [vmem:[#allocation3 + $0x6f] sm:$0xff]
        %v6799 = vld [vmem:[#allocation3 + $0x77] sm:$0xff]
        %v6800 = vld [vmem:[#allocation3 + $0x7f] sm:$0xff]
        %v6801 = vld [vmem:[#allocation3 + $0x87] sm:$0xff]
        %v6802 = vld [vmem:[#allocation3 + $0x8f] sm:$0xff]
        %v6803 = vld [vmem:[#allocation3 + $0x97] sm:$0xff]
        %v6804 = vld [vmem:[#allocation3 + $0x9f] sm:$0xff]
        %v6805 = vld [vmem:[#allocation3 + $0xa7] sm:$0xff]
        %v6806 = vld [vmem:[#allocation3 + $0xaf] sm:$0xff]
        %v6807 = vld [vmem:[#allocation3 + $0xb7] sm:$0xff]
        %v6808 = vld [vmem:[#allocation3 + $0xbf] sm:$0xff]
        %v6809 = vld [vmem:[#allocation3 + $0xc7] sm:$0xff]
        %v6810 = vld [vmem:[#allocation3 + $0xcf] sm:$0xff]
        %v6811 = vld [vmem:[#allocation3 + $0xd7] sm:$0xff]
        %v6812 = vld [vmem:[#allocation3 + $0xdf] sm:$0xff]
        %v6813 = vld [vmem:[#allocation3 + $0xe7] sm:$0xff]
        %v6814 = vld [vmem:[#allocation3 + $0xef] sm:$0xff]
        %v6815 = vld [vmem:[#allocation3 + $0xf7] sm:$0xff]
        %v6816 = vld [vmem:[#allocation3 + $0xff] sm:$0xff]
        %v6817 = vld [vmem:[#allocation3 + $0x107] sm:$0xff]
        %v6818 = vld [vmem:[#allocation3 + $0x10f] sm:$0xff]
        %v6819 = vld [vmem:[#allocation3 + $0x117] sm:$0xff]
        %v6820 = vld [vmem:[#allocation3 + $0x11f] sm:$0xff]
        %v6821 = vld [vmem:[#allocation3 + $0x127] sm:$0xff]
        %v6822 = vld [vmem:[#allocation3 + $0x12f] sm:$0xff]
        %v6823 = vld [vmem:[#allocation3 + $0x137] sm:$0xff]
        %v6824 = vld [vmem:[#allocation3 + $0x13f] sm:$0xff]
        %v6825 = vld [vmem:[#allocation3 + $0x147] sm:$0xf]
        %6867 = vrot.lane.b32.xlu0 %v6785, 64
        %v6868 = vpop.permute.xlu0 %6867
        %6869 = vrot.lane.b32.xlu0 %v6786, 64
        %v6870 = vpop.permute.xlu0 %6869
        %6871 = vrot.lane.b32.xlu0 %v6787, 64
        %v6872 = vpop.permute.xlu0 %6871
        %6873 = vrot.lane.b32.xlu0 %v6788, 64
        %v6874 = vpop.permute.xlu0 %6873
        %6875 = vrot.lane.b32.xlu0 %v6789, 64
        %v6876 = vpop.permute.xlu0 %6875
        %6877 = vrot.lane.b32.xlu0 %v6790, 64
        %v6878 = vpop.permute.xlu0 %6877
        %6879 = vrot.lane.b32.xlu0 %v6791, 64
        %v6880 = vpop.permute.xlu0 %6879
        %6881 = vrot.lane.b32.xlu0 %v6792, 64
        %v6882 = vpop.permute.xlu0 %6881
        %6883 = vrot.lane.b32.xlu0 %v6793, 64
        %v6884 = vpop.permute.xlu0 %6883
        %6885 = vrot.lane.b32.xlu0 %v6794, 64
        %v6886 = vpop.permute.xlu0 %6885
        %6887 = vrot.lane.b32.xlu0 %v6795, 64
        %v6888 = vpop.permute.xlu0 %6887
        %6889 = vrot.lane.b32.xlu0 %v6796, 64
        %v6890 = vpop.permute.xlu0 %6889
        %6891 = vrot.lane.b32.xlu0 %v6797, 64
        %v6892 = vpop.permute.xlu0 %6891
        %6893 = vrot.lane.b32.xlu0 %v6798, 64
        %v6894 = vpop.permute.xlu0 %6893
        %6895 = vrot.lane.b32.xlu0 %v6799, 64
        %v6896 = vpop.permute.xlu0 %6895
        %6897 = vrot.lane.b32.xlu0 %v6800, 64
        %v6898 = vpop.permute.xlu0 %6897
        %6899 = vrot.lane.b32.xlu0 %v6801, 64
        %v6900 = vpop.permute.xlu0 %6899
        %6901 = vrot.lane.b32.xlu0 %v6802, 64
        %v6902 = vpop.permute.xlu0 %6901
        %6903 = vrot.lane.b32.xlu0 %v6803, 64
        %v6904 = vpop.permute.xlu0 %6903
        %6905 = vrot.lane.b32.xlu0 %v6804, 64
        %v6906 = vpop.permute.xlu0 %6905
        %6907 = vrot.lane.b32.xlu0 %v6805, 64
        %v6908 = vpop.permute.xlu0 %6907
        %6909 = vrot.lane.b32.xlu0 %v6806, 64
        %v6910 = vpop.permute.xlu0 %6909
        %6911 = vrot.lane.b32.xlu0 %v6807, 64
        %v6912 = vpop.permute.xlu0 %6911
        %6913 = vrot.lane.b32.xlu0 %v6808, 64
        %v6914 = vpop.permute.xlu0 %6913
        %6915 = vrot.lane.b32.xlu0 %v6809, 64
        %v6916 = vpop.permute.xlu0 %6915
        %6917 = vrot.lane.b32.xlu0 %v6810, 64
        %v6918 = vpop.permute.xlu0 %6917
        %6919 = vrot.lane.b32.xlu0 %v6811, 64
        %v6920 = vpop.permute.xlu0 %6919
        %6921 = vrot.lane.b32.xlu0 %v6812, 64
        %v6922 = vpop.permute.xlu0 %6921
        %6923 = vrot.lane.b32.xlu0 %v6813, 64
        %v6924 = vpop.permute.xlu0 %6923
        %6925 = vrot.lane.b32.xlu0 %v6814, 64
        %v6926 = vpop.permute.xlu0 %6925
        %6927 = vrot.lane.b32.xlu0 %v6815, 64
        %v6928 = vpop.permute.xlu0 %6927
        %6929 = vrot.lane.b32.xlu0 %v6816, 64
        %v6930 = vpop.permute.xlu0 %6929
        %6931 = vrot.lane.b32.xlu0 %v6817, 64
        %v6932 = vpop.permute.xlu0 %6931
        %6933 = vrot.lane.b32.xlu0 %v6818, 64
        %v6934 = vpop.permute.xlu0 %6933
        %6935 = vrot.lane.b32.xlu0 %v6819, 64
        %v6936 = vpop.permute.xlu0 %6935
        %6937 = vrot.lane.b32.xlu0 %v6820, 64
        %v6938 = vpop.permute.xlu0 %6937
        %6939 = vrot.lane.b32.xlu0 %v6821, 64
        %v6940 = vpop.permute.xlu0 %6939
        %6941 = vrot.lane.b32.xlu0 %v6822, 64
        %v6942 = vpop.permute.xlu0 %6941
        %6943 = vrot.lane.b32.xlu0 %v6823, 64
        %v6944 = vpop.permute.xlu0 %6943
        %6945 = vrot.lane.b32.xlu0 %v6824, 64
        %v6946 = vpop.permute.xlu0 %6945
        %6947 = vrot.lane.b32.xlu0 %v6825, 64
        %v6948 = vpop.permute.xlu0 %6947
        %vm6990 = vcmask 785920
        %6991 = vst.msk [vmem:[#allocation5] sm:$0xff] %vm6990, %v6868
        %6992 = vst.msk [vmem:[#allocation5 + $0x18] sm:$0xff] %vm6990, %v6870
        %6993 = vst.msk [vmem:[#allocation5 + $0x30] sm:$0xff] %vm6990, %v6872
        %6994 = vst.msk [vmem:[#allocation5 + $0x48] sm:$0xff] %vm6990, %v6874
        %6995 = vst.msk [vmem:[#allocation5 + $0x60] sm:$0xff] %vm6990, %v6876
        %6996 = vst.msk [vmem:[#allocation5 + $0x78] sm:$0xff] %vm6990, %v6878
        %6997 = vst.msk [vmem:[#allocation5 + $0x90] sm:$0xff] %vm6990, %v6880
        %6998 = vst.msk [vmem:[#allocation5 + $0xa8] sm:$0xff] %vm6990, %v6882
        %6999 = vst.msk [vmem:[#allocation5 + $0xc0] sm:$0xff] %vm6990, %v6884
        %7000 = vst.msk [vmem:[#allocation5 + $0xd8] sm:$0xff] %vm6990, %v6886
        %7001 = vst.msk [vmem:[#allocation5 + $0xf0] sm:$0xff] %vm6990, %v6888
        %7002 = vst.msk [vmem:[#allocation5 + $0x108] sm:$0xff] %vm6990, %v6890
        %7003 = vst.msk [vmem:[#allocation5 + $0x120] sm:$0xff] %vm6990, %v6892
        %7004 = vst.msk [vmem:[#allocation5 + $0x138] sm:$0xff] %vm6990, %v6894
        %7005 = vst.msk [vmem:[#allocation5 + $0x150] sm:$0xff] %vm6990, %v6896
        %7006 = vst.msk [vmem:[#allocation5 + $0x168] sm:$0xff] %vm6990, %v6898
        %7007 = vst.msk [vmem:[#allocation5 + $0x180] sm:$0xff] %vm6990, %v6900
        %7008 = vst.msk [vmem:[#allocation5 + $0x198] sm:$0xff] %vm6990, %v6902
        %7009 = vst.msk [vmem:[#allocation5 + $0x1b0] sm:$0xff] %vm6990, %v6904
        %7010 = vst.msk [vmem:[#allocation5 + $0x1c8] sm:$0xff] %vm6990, %v6906
        %7011 = vst.msk [vmem:[#allocation5 + $0x1e0] sm:$0xff] %vm6990, %v6908
        %7012 = vst.msk [vmem:[#allocation5 + $0x1f8] sm:$0xff] %vm6990, %v6910
        %7013 = vst.msk [vmem:[#allocation5 + $0x210] sm:$0xff] %vm6990, %v6912
        %7014 = vst.msk [vmem:[#allocation5 + $0x228] sm:$0xff] %vm6990, %v6914
        %7015 = vst.msk [vmem:[#allocation5 + $0x240] sm:$0xff] %vm6990, %v6916
        %7016 = vst.msk [vmem:[#allocation5 + $0x258] sm:$0xff] %vm6990, %v6918
        %7017 = vst.msk [vmem:[#allocation5 + $0x270] sm:$0xff] %vm6990, %v6920
        %7018 = vst.msk [vmem:[#allocation5 + $0x288] sm:$0xff] %vm6990, %v6922
        %7019 = vst.msk [vmem:[#allocation5 + $0x2a0] sm:$0xff] %vm6990, %v6924
        %7020 = vst.msk [vmem:[#allocation5 + $0x2b8] sm:$0xff] %vm6990, %v6926
        %7021 = vst.msk [vmem:[#allocation5 + $0x2d0] sm:$0xff] %vm6990, %v6928
        %7022 = vst.msk [vmem:[#allocation5 + $0x2e8] sm:$0xff] %vm6990, %v6930
        %7023 = vst.msk [vmem:[#allocation5 + $0x300] sm:$0xff] %vm6990, %v6932
        %7024 = vst.msk [vmem:[#allocation5 + $0x318] sm:$0xff] %vm6990, %v6934
        %7025 = vst.msk [vmem:[#allocation5 + $0x330] sm:$0xff] %vm6990, %v6936
        %7026 = vst.msk [vmem:[#allocation5 + $0x348] sm:$0xff] %vm6990, %v6938
        %7027 = vst.msk [vmem:[#allocation5 + $0x360] sm:$0xff] %vm6990, %v6940
        %7028 = vst.msk [vmem:[#allocation5 + $0x378] sm:$0xff] %vm6990, %v6942
        %7029 = vst.msk [vmem:[#allocation5 + $0x390] sm:$0xff] %vm6990, %v6944
        %7030 = vst.msk [vmem:[#allocation5 + $0x3a8] sm:$0xff] %vm6990, %v6946
        %vm7031 = vcmask 781824
        %7032 = vst.msk [vmem:[#allocation5 + $0x3c0] sm:$0xf] %vm7031, %v6948
        %v7033 = vld [vmem:[#allocation3 + $0x17] sm:$0xff]
        %v7034 = vld [vmem:[#allocation3 + $0x1f] sm:$0xff]
        %v7035 = vld [vmem:[#allocation3 + $0x27] sm:$0xff]
        %v7036 = vld [vmem:[#allocation3 + $0x2f] sm:$0xff]
        %v7037 = vld [vmem:[#allocation3 + $0x37] sm:$0xff]
        %v7038 = vld [vmem:[#allocation3 + $0x3f] sm:$0xff]
        %v7039 = vld [vmem:[#allocation3 + $0x47] sm:$0xff]
        %v7040 = vld [vmem:[#allocation3 + $0x4f] sm:$0xff]
        %v7041 = vld [vmem:[#allocation3 + $0x57] sm:$0xff]
        %v7042 = vld [vmem:[#allocation3 + $0x5f] sm:$0xff]
        %v7043 = vld [vmem:[#allocation3 + $0x67] sm:$0xff]
        %v7044 = vld [vmem:[#allocation3 + $0x6f] sm:$0xff]
        %v7045 = vld [vmem:[#allocation3 + $0x77] sm:$0xff]
        %v7046 = vld [vmem:[#allocation3 + $0x7f] sm:$0xff]
        %v7047 = vld [vmem:[#allocation3 + $0x87] sm:$0xff]
        %v7048 = vld [vmem:[#allocation3 + $0x8f] sm:$0xff]
        %v7049 = vld [vmem:[#allocation3 + $0x97] sm:$0xff]
        %v7050 = vld [vmem:[#allocation3 + $0x9f] sm:$0xff]
        %v7051 = vld [vmem:[#allocation3 + $0xa7] sm:$0xff]
        %v7052 = vld [vmem:[#allocation3 + $0xaf] sm:$0xff]
        %v7053 = vld [vmem:[#allocation3 + $0xb7] sm:$0xff]
        %v7054 = vld [vmem:[#allocation3 + $0xbf] sm:$0xff]
        %v7055 = vld [vmem:[#allocation3 + $0xc7] sm:$0xff]
        %v7056 = vld [vmem:[#allocation3 + $0xcf] sm:$0xff]
        %v7057 = vld [vmem:[#allocation3 + $0xd7] sm:$0xff]
        %v7058 = vld [vmem:[#allocation3 + $0xdf] sm:$0xff]
        %v7059 = vld [vmem:[#allocation3 + $0xe7] sm:$0xff]
        %v7060 = vld [vmem:[#allocation3 + $0xef] sm:$0xff]
        %v7061 = vld [vmem:[#allocation3 + $0xf7] sm:$0xff]
        %v7062 = vld [vmem:[#allocation3 + $0xff] sm:$0xff]
        %v7063 = vld [vmem:[#allocation3 + $0x107] sm:$0xff]
        %v7064 = vld [vmem:[#allocation3 + $0x10f] sm:$0xff]
        %v7065 = vld [vmem:[#allocation3 + $0x117] sm:$0xff]
        %v7066 = vld [vmem:[#allocation3 + $0x11f] sm:$0xff]
        %v7067 = vld [vmem:[#allocation3 + $0x127] sm:$0xff]
        %v7068 = vld [vmem:[#allocation3 + $0x12f] sm:$0xff]
        %v7069 = vld [vmem:[#allocation3 + $0x137] sm:$0xff]
        %v7070 = vld [vmem:[#allocation3 + $0x13f] sm:$0xff]
        %v7071 = vld [vmem:[#allocation3 + $0x147] sm:$0xff]
        %v7072 = vld [vmem:[#allocation3 + $0x14f] sm:$0xff]
        %v7073 = vld [vmem:[#allocation3 + $0x157] sm:$0xf]
        %7115 = vrot.lane.b32.xlu0 %v7033, 96
        %v7116 = vpop.permute.xlu0 %7115
        %7117 = vrot.lane.b32.xlu0 %v7034, 96
        %v7118 = vpop.permute.xlu0 %7117
        %7119 = vrot.lane.b32.xlu0 %v7035, 96
        %v7120 = vpop.permute.xlu0 %7119
        %7121 = vrot.lane.b32.xlu0 %v7036, 96
        %v7122 = vpop.permute.xlu0 %7121
        %7123 = vrot.lane.b32.xlu0 %v7037, 96
        %v7124 = vpop.permute.xlu0 %7123
        %7125 = vrot.lane.b32.xlu0 %v7038, 96
        %v7126 = vpop.permute.xlu0 %7125
        %7127 = vrot.lane.b32.xlu0 %v7039, 96
        %v7128 = vpop.permute.xlu0 %7127
        %7129 = vrot.lane.b32.xlu0 %v7040, 96
        %v7130 = vpop.permute.xlu0 %7129
        %7131 = vrot.lane.b32.xlu0 %v7041, 96
        %v7132 = vpop.permute.xlu0 %7131
        %7133 = vrot.lane.b32.xlu0 %v7042, 96
        %v7134 = vpop.permute.xlu0 %7133
        %7135 = vrot.lane.b32.xlu0 %v7043, 96
        %v7136 = vpop.permute.xlu0 %7135
        %7137 = vrot.lane.b32.xlu0 %v7044, 96
        %v7138 = vpop.permute.xlu0 %7137
        %7139 = vrot.lane.b32.xlu0 %v7045, 96
        %v7140 = vpop.permute.xlu0 %7139
        %7141 = vrot.lane.b32.xlu0 %v7046, 96
        %v7142 = vpop.permute.xlu0 %7141
        %7143 = vrot.lane.b32.xlu0 %v7047, 96
        %v7144 = vpop.permute.xlu0 %7143
        %7145 = vrot.lane.b32.xlu0 %v7048, 96
        %v7146 = vpop.permute.xlu0 %7145
        %7147 = vrot.lane.b32.xlu0 %v7049, 96
        %v7148 = vpop.permute.xlu0 %7147
        %7149 = vrot.lane.b32.xlu0 %v7050, 96
        %v7150 = vpop.permute.xlu0 %7149
        %7151 = vrot.lane.b32.xlu0 %v7051, 96
        %v7152 = vpop.permute.xlu0 %7151
        %7153 = vrot.lane.b32.xlu0 %v7052, 96
        %v7154 = vpop.permute.xlu0 %7153
        %7155 = vrot.lane.b32.xlu0 %v7053, 96
        %v7156 = vpop.permute.xlu0 %7155
        %7157 = vrot.lane.b32.xlu0 %v7054, 96
        %v7158 = vpop.permute.xlu0 %7157
        %7159 = vrot.lane.b32.xlu0 %v7055, 96
        %v7160 = vpop.permute.xlu0 %7159
        %7161 = vrot.lane.b32.xlu0 %v7056, 96
        %v7162 = vpop.permute.xlu0 %7161
        %7163 = vrot.lane.b32.xlu0 %v7057, 96
        %v7164 = vpop.permute.xlu0 %7163
        %7165 = vrot.lane.b32.xlu0 %v7058, 96
        %v7166 = vpop.permute.xlu0 %7165
        %7167 = vrot.lane.b32.xlu0 %v7059, 96
        %v7168 = vpop.permute.xlu0 %7167
        %7169 = vrot.lane.b32.xlu0 %v7060, 96
        %v7170 = vpop.permute.xlu0 %7169
        %7171 = vrot.lane.b32.xlu0 %v7061, 96
        %v7172 = vpop.permute.xlu0 %7171
        %7173 = vrot.lane.b32.xlu0 %v7062, 96
        %v7174 = vpop.permute.xlu0 %7173
        %7175 = vrot.lane.b32.xlu0 %v7063, 96
        %v7176 = vpop.permute.xlu0 %7175
        %7177 = vrot.lane.b32.xlu0 %v7064, 96
        %v7178 = vpop.permute.xlu0 %7177
        %7179 = vrot.lane.b32.xlu0 %v7065, 96
        %v7180 = vpop.permute.xlu0 %7179
        %7181 = vrot.lane.b32.xlu0 %v7066, 96
        %v7182 = vpop.permute.xlu0 %7181
        %7183 = vrot.lane.b32.xlu0 %v7067, 96
        %v7184 = vpop.permute.xlu0 %7183
        %7185 = vrot.lane.b32.xlu0 %v7068, 96
        %v7186 = vpop.permute.xlu0 %7185
        %7187 = vrot.lane.b32.xlu0 %v7069, 96
        %v7188 = vpop.permute.xlu0 %7187
        %7189 = vrot.lane.b32.xlu0 %v7070, 96
        %v7190 = vpop.permute.xlu0 %7189
        %7191 = vrot.lane.b32.xlu0 %v7071, 96
        %v7192 = vpop.permute.xlu0 %7191
        %7193 = vrot.lane.b32.xlu0 %v7072, 96
        %v7194 = vpop.permute.xlu0 %7193
        %7195 = vrot.lane.b32.xlu0 %v7073, 96
        %v7196 = vpop.permute.xlu0 %7195
        %vm7238 = vcmask 1048320
        %7239 = vst.msk [vmem:[#allocation5] sm:$0xff] %vm7238, %v7116
        %7240 = vst.msk [vmem:[#allocation5 + $0x18] sm:$0xff] %vm7238, %v7118
        %7241 = vst.msk [vmem:[#allocation5 + $0x30] sm:$0xff] %vm7238, %v7120
        %7242 = vst.msk [vmem:[#allocation5 + $0x48] sm:$0xff] %vm7238, %v7122
        %7243 = vst.msk [vmem:[#allocation5 + $0x60] sm:$0xff] %vm7238, %v7124
        %7244 = vst.msk [vmem:[#allocation5 + $0x78] sm:$0xff] %vm7238, %v7126
        %7245 = vst.msk [vmem:[#allocation5 + $0x90] sm:$0xff] %vm7238, %v7128
        %7246 = vst.msk [vmem:[#allocation5 + $0xa8] sm:$0xff] %vm7238, %v7130
        %7247 = vst.msk [vmem:[#allocation5 + $0xc0] sm:$0xff] %vm7238, %v7132
        %7248 = vst.msk [vmem:[#allocation5 + $0xd8] sm:$0xff] %vm7238, %v7134
        %7249 = vst.msk [vmem:[#allocation5 + $0xf0] sm:$0xff] %vm7238, %v7136
        %7250 = vst.msk [vmem:[#allocation5 + $0x108] sm:$0xff] %vm7238, %v7138
        %7251 = vst.msk [vmem:[#allocation5 + $0x120] sm:$0xff] %vm7238, %v7140
        %7252 = vst.msk [vmem:[#allocation5 + $0x138] sm:$0xff] %vm7238, %v7142
        %7253 = vst.msk [vmem:[#allocation5 + $0x150] sm:$0xff] %vm7238, %v7144
        %7254 = vst.msk [vmem:[#allocation5 + $0x168] sm:$0xff] %vm7238, %v7146
        %7255 = vst.msk [vmem:[#allocation5 + $0x180] sm:$0xff] %vm7238, %v7148
        %7256 = vst.msk [vmem:[#allocation5 + $0x198] sm:$0xff] %vm7238, %v7150
        %7257 = vst.msk [vmem:[#allocation5 + $0x1b0] sm:$0xff] %vm7238, %v7152
        %7258 = vst.msk [vmem:[#allocation5 + $0x1c8] sm:$0xff] %vm7238, %v7154
        %7259 = vst.msk [vmem:[#allocation5 + $0x1e0] sm:$0xff] %vm7238, %v7156
        %7260 = vst.msk [vmem:[#allocation5 + $0x1f8] sm:$0xff] %vm7238, %v7158
        %7261 = vst.msk [vmem:[#allocation5 + $0x210] sm:$0xff] %vm7238, %v7160
        %7262 = vst.msk [vmem:[#allocation5 + $0x228] sm:$0xff] %vm7238, %v7162
        %7263 = vst.msk [vmem:[#allocation5 + $0x240] sm:$0xff] %vm7238, %v7164
        %7264 = vst.msk [vmem:[#allocation5 + $0x258] sm:$0xff] %vm7238, %v7166
        %7265 = vst.msk [vmem:[#allocation5 + $0x270] sm:$0xff] %vm7238, %v7168
        %7266 = vst.msk [vmem:[#allocation5 + $0x288] sm:$0xff] %vm7238, %v7170
        %7267 = vst.msk [vmem:[#allocation5 + $0x2a0] sm:$0xff] %vm7238, %v7172
        %7268 = vst.msk [vmem:[#allocation5 + $0x2b8] sm:$0xff] %vm7238, %v7174
        %7269 = vst.msk [vmem:[#allocation5 + $0x2d0] sm:$0xff] %vm7238, %v7176
        %7270 = vst.msk [vmem:[#allocation5 + $0x2e8] sm:$0xff] %vm7238, %v7178
        %7271 = vst.msk [vmem:[#allocation5 + $0x300] sm:$0xff] %vm7238, %v7180
        %7272 = vst.msk [vmem:[#allocation5 + $0x318] sm:$0xff] %vm7238, %v7182
        %7273 = vst.msk [vmem:[#allocation5 + $0x330] sm:$0xff] %vm7238, %v7184
        %7274 = vst.msk [vmem:[#allocation5 + $0x348] sm:$0xff] %vm7238, %v7186
        %7275 = vst.msk [vmem:[#allocation5 + $0x360] sm:$0xff] %vm7238, %v7188
        %7276 = vst.msk [vmem:[#allocation5 + $0x378] sm:$0xff] %vm7238, %v7190
        %7277 = vst.msk [vmem:[#allocation5 + $0x390] sm:$0xff] %vm7238, %v7192
        %7278 = vst.msk [vmem:[#allocation5 + $0x3a8] sm:$0xff] %vm7238, %v7194
        %vm7279 = vcmask 1044224
        %7280 = vst.msk [vmem:[#allocation5 + $0x3c0] sm:$0xf] %vm7279, %v7196
        %v7281 = vld [vmem:[#allocation3 + $0x18] sm:$0xff]
        %v7282 = vld [vmem:[#allocation3 + $0x20] sm:$0xff]
        %v7283 = vld [vmem:[#allocation3 + $0x28] sm:$0xff]
        %v7284 = vld [vmem:[#allocation3 + $0x30] sm:$0xff]
        %v7285 = vld [vmem:[#allocation3 + $0x38] sm:$0xff]
        %v7286 = vld [vmem:[#allocation3 + $0x40] sm:$0xff]
        %v7287 = vld [vmem:[#allocation3 + $0x48] sm:$0xff]
        %v7288 = vld [vmem:[#allocation3 + $0x50] sm:$0xff]
        %v7289 = vld [vmem:[#allocation3 + $0x58] sm:$0xff]
        %v7290 = vld [vmem:[#allocation3 + $0x60] sm:$0xff]
        %v7291 = vld [vmem:[#allocation3 + $0x68] sm:$0xff]
        %v7292 = vld [vmem:[#allocation3 + $0x70] sm:$0xff]
        %v7293 = vld [vmem:[#allocation3 + $0x78] sm:$0xff]
        %v7294 = vld [vmem:[#allocation3 + $0x80] sm:$0xff]
        %v7295 = vld [vmem:[#allocation3 + $0x88] sm:$0xff]
        %v7296 = vld [vmem:[#allocation3 + $0x90] sm:$0xff]
        %v7297 = vld [vmem:[#allocation3 + $0x98] sm:$0xff]
        %v7298 = vld [vmem:[#allocation3 + $0xa0] sm:$0xff]
        %v7299 = vld [vmem:[#allocation3 + $0xa8] sm:$0xff]
        %v7300 = vld [vmem:[#allocation3 + $0xb0] sm:$0xff]
        %v7301 = vld [vmem:[#allocation3 + $0xb8] sm:$0xff]
        %v7302 = vld [vmem:[#allocation3 + $0xc0] sm:$0xff]
        %v7303 = vld [vmem:[#allocation3 + $0xc8] sm:$0xff]
        %v7304 = vld [vmem:[#allocation3 + $0xd0] sm:$0xff]
        %v7305 = vld [vmem:[#allocation3 + $0xd8] sm:$0xff]
        %v7306 = vld [vmem:[#allocation3 + $0xe0] sm:$0xff]
        %v7307 = vld [vmem:[#allocation3 + $0xe8] sm:$0xff]
        %v7308 = vld [vmem:[#allocation3 + $0xf0] sm:$0xff]
        %v7309 = vld [vmem:[#allocation3 + $0xf8] sm:$0xff]
        %v7310 = vld [vmem:[#allocation3 + $0x100] sm:$0xff]
        %v7311 = vld [vmem:[#allocation3 + $0x108] sm:$0xff]
        %v7312 = vld [vmem:[#allocation3 + $0x110] sm:$0xff]
        %v7313 = vld [vmem:[#allocation3 + $0x118] sm:$0xff]
        %v7314 = vld [vmem:[#allocation3 + $0x120] sm:$0xff]
        %v7315 = vld [vmem:[#allocation3 + $0x128] sm:$0xff]
        %v7316 = vld [vmem:[#allocation3 + $0x130] sm:$0xff]
        %v7317 = vld [vmem:[#allocation3 + $0x138] sm:$0xff]
        %v7318 = vld [vmem:[#allocation3 + $0x140] sm:$0xff]
        %v7319 = vld [vmem:[#allocation3 + $0x148] sm:$0xff]
        %v7320 = vld [vmem:[#allocation3 + $0x150] sm:$0xff]
        %v7321 = vld [vmem:[#allocation3 + $0x158] sm:$0xf]
        %7322 = vst.msk [vmem:[#allocation5 + $0x8] sm:$0xff] %vm425, %v7281
        %7323 = vst.msk [vmem:[#allocation5 + $0x20] sm:$0xff] %vm425, %v7282
        %7324 = vst.msk [vmem:[#allocation5 + $0x38] sm:$0xff] %vm425, %v7283
        %7325 = vst.msk [vmem:[#allocation5 + $0x50] sm:$0xff] %vm425, %v7284
        %7326 = vst.msk [vmem:[#allocation5 + $0x68] sm:$0xff] %vm425, %v7285
        %7327 = vst.msk [vmem:[#allocation5 + $0x80] sm:$0xff] %vm425, %v7286
        %7328 = vst.msk [vmem:[#allocation5 + $0x98] sm:$0xff] %vm425, %v7287
        %7329 = vst.msk [vmem:[#allocation5 + $0xb0] sm:$0xff] %vm425, %v7288
        %7330 = vst.msk [vmem:[#allocation5 + $0xc8] sm:$0xff] %vm425, %v7289
        %7331 = vst.msk [vmem:[#allocation5 + $0xe0] sm:$0xff] %vm425, %v7290
        %7332 = vst.msk [vmem:[#allocation5 + $0xf8] sm:$0xff] %vm425, %v7291
        %7333 = vst.msk [vmem:[#allocation5 + $0x110] sm:$0xff] %vm425, %v7292
        %7334 = vst.msk [vmem:[#allocation5 + $0x128] sm:$0xff] %vm425, %v7293
        %7335 = vst.msk [vmem:[#allocation5 + $0x140] sm:$0xff] %vm425, %v7294
        %7336 = vst.msk [vmem:[#allocation5 + $0x158] sm:$0xff] %vm425, %v7295
        %7337 = vst.msk [vmem:[#allocation5 + $0x170] sm:$0xff] %vm425, %v7296
        %7338 = vst.msk [vmem:[#allocation5 + $0x188] sm:$0xff] %vm425, %v7297
        %7339 = vst.msk [vmem:[#allocation5 + $0x1a0] sm:$0xff] %vm425, %v7298
        %7340 = vst.msk [vmem:[#allocation5 + $0x1b8] sm:$0xff] %vm425, %v7299
        %7341 = vst.msk [vmem:[#allocation5 + $0x1d0] sm:$0xff] %vm425, %v7300
        %7342 = vst.msk [vmem:[#allocation5 + $0x1e8] sm:$0xff] %vm425, %v7301
        %7343 = vst.msk [vmem:[#allocation5 + $0x200] sm:$0xff] %vm425, %v7302
        %7344 = vst.msk [vmem:[#allocation5 + $0x218] sm:$0xff] %vm425, %v7303
        %7345 = vst.msk [vmem:[#allocation5 + $0x230] sm:$0xff] %vm425, %v7304
        %7346 = vst.msk [vmem:[#allocation5 + $0x248] sm:$0xff] %vm425, %v7305
        %7347 = vst.msk [vmem:[#allocation5 + $0x260] sm:$0xff] %vm425, %v7306
        %7348 = vst.msk [vmem:[#allocation5 + $0x278] sm:$0xff] %vm425, %v7307
        %7349 = vst.msk [vmem:[#allocation5 + $0x290] sm:$0xff] %vm425, %v7308
        %7350 = vst.msk [vmem:[#allocation5 + $0x2a8] sm:$0xff] %vm425, %v7309
        %7351 = vst.msk [vmem:[#allocation5 + $0x2c0] sm:$0xff] %vm425, %v7310
        %7352 = vst.msk [vmem:[#allocation5 + $0x2d8] sm:$0xff] %vm425, %v7311
        %7353 = vst.msk [vmem:[#allocation5 + $0x2f0] sm:$0xff] %vm425, %v7312
        %7354 = vst.msk [vmem:[#allocation5 + $0x308] sm:$0xff] %vm425, %v7313
        %7355 = vst.msk [vmem:[#allocation5 + $0x320] sm:$0xff] %vm425, %v7314
        %7356 = vst.msk [vmem:[#allocation5 + $0x338] sm:$0xff] %vm425, %v7315
        %7357 = vst.msk [vmem:[#allocation5 + $0x350] sm:$0xff] %vm425, %v7316
        %7358 = vst.msk [vmem:[#allocation5 + $0x368] sm:$0xff] %vm425, %v7317
        %7359 = vst.msk [vmem:[#allocation5 + $0x380] sm:$0xff] %vm425, %v7318
        %7360 = vst.msk [vmem:[#allocation5 + $0x398] sm:$0xff] %vm425, %v7319
        %7361 = vst.msk [vmem:[#allocation5 + $0x3b0] sm:$0xff] %vm425, %v7320
        %7362 = vst.msk [vmem:[#allocation5 + $0x3c8] sm:$0xf] %vm6453, %v7321
        %v7363 = vld [vmem:[#allocation3 + $0x19] sm:$0xff]
        %v7364 = vld [vmem:[#allocation3 + $0x21] sm:$0xff]
        %v7365 = vld [vmem:[#allocation3 + $0x29] sm:$0xff]
        %v7366 = vld [vmem:[#allocation3 + $0x31] sm:$0xff]
        %v7367 = vld [vmem:[#allocation3 + $0x39] sm:$0xff]
        %v7368 = vld [vmem:[#allocation3 + $0x41] sm:$0xff]
        %v7369 = vld [vmem:[#allocation3 + $0x49] sm:$0xff]
        %v7370 = vld [vmem:[#allocation3 + $0x51] sm:$0xff]
        %v7371 = vld [vmem:[#allocation3 + $0x59] sm:$0xff]
        %v7372 = vld [vmem:[#allocation3 + $0x61] sm:$0xff]
        %v7373 = vld [vmem:[#allocation3 + $0x69] sm:$0xff]
        %v7374 = vld [vmem:[#allocation3 + $0x71] sm:$0xff]
        %v7375 = vld [vmem:[#allocation3 + $0x79] sm:$0xff]
        %v7376 = vld [vmem:[#allocation3 + $0x81] sm:$0xff]
        %v7377 = vld [vmem:[#allocation3 + $0x89] sm:$0xff]
        %v7378 = vld [vmem:[#allocation3 + $0x91] sm:$0xff]
        %v7379 = vld [vmem:[#allocation3 + $0x99] sm:$0xff]
        %v7380 = vld [vmem:[#allocation3 + $0xa1] sm:$0xff]
        %v7381 = vld [vmem:[#allocation3 + $0xa9] sm:$0xff]
        %v7382 = vld [vmem:[#allocation3 + $0xb1] sm:$0xff]
        %v7383 = vld [vmem:[#allocation3 + $0xb9] sm:$0xff]
        %v7384 = vld [vmem:[#allocation3 + $0xc1] sm:$0xff]
        %v7385 = vld [vmem:[#allocation3 + $0xc9] sm:$0xff]
        %v7386 = vld [vmem:[#allocation3 + $0xd1] sm:$0xff]
        %v7387 = vld [vmem:[#allocation3 + $0xd9] sm:$0xff]
        %v7388 = vld [vmem:[#allocation3 + $0xe1] sm:$0xff]
        %v7389 = vld [vmem:[#allocation3 + $0xe9] sm:$0xff]
        %v7390 = vld [vmem:[#allocation3 + $0xf1] sm:$0xff]
        %v7391 = vld [vmem:[#allocation3 + $0xf9] sm:$0xff]
        %v7392 = vld [vmem:[#allocation3 + $0x101] sm:$0xff]
        %v7393 = vld [vmem:[#allocation3 + $0x109] sm:$0xff]
        %v7394 = vld [vmem:[#allocation3 + $0x111] sm:$0xff]
        %v7395 = vld [vmem:[#allocation3 + $0x119] sm:$0xff]
        %v7396 = vld [vmem:[#allocation3 + $0x121] sm:$0xff]
        %v7397 = vld [vmem:[#allocation3 + $0x129] sm:$0xff]
        %v7398 = vld [vmem:[#allocation3 + $0x131] sm:$0xff]
        %v7399 = vld [vmem:[#allocation3 + $0x139] sm:$0xff]
        %v7400 = vld [vmem:[#allocation3 + $0x141] sm:$0xff]
        %v7401 = vld [vmem:[#allocation3 + $0x149] sm:$0xff]
        %v7402 = vld [vmem:[#allocation3 + $0x151] sm:$0xff]
        %v7403 = vld [vmem:[#allocation3 + $0x159] sm:$0xf]
        %7445 = vrot.lane.b32.xlu0 %v7363, 32
        %v7446 = vpop.permute.xlu0 %7445
        %7447 = vrot.lane.b32.xlu0 %v7364, 32
        %v7448 = vpop.permute.xlu0 %7447
        %7449 = vrot.lane.b32.xlu0 %v7365, 32
        %v7450 = vpop.permute.xlu0 %7449
        %7451 = vrot.lane.b32.xlu0 %v7366, 32
        %v7452 = vpop.permute.xlu0 %7451
        %7453 = vrot.lane.b32.xlu0 %v7367, 32
        %v7454 = vpop.permute.xlu0 %7453
        %7455 = vrot.lane.b32.xlu0 %v7368, 32
        %v7456 = vpop.permute.xlu0 %7455
        %7457 = vrot.lane.b32.xlu0 %v7369, 32
        %v7458 = vpop.permute.xlu0 %7457
        %7459 = vrot.lane.b32.xlu0 %v7370, 32
        %v7460 = vpop.permute.xlu0 %7459
        %7461 = vrot.lane.b32.xlu0 %v7371, 32
        %v7462 = vpop.permute.xlu0 %7461
        %7463 = vrot.lane.b32.xlu0 %v7372, 32
        %v7464 = vpop.permute.xlu0 %7463
        %7465 = vrot.lane.b32.xlu0 %v7373, 32
        %v7466 = vpop.permute.xlu0 %7465
        %7467 = vrot.lane.b32.xlu0 %v7374, 32
        %v7468 = vpop.permute.xlu0 %7467
        %7469 = vrot.lane.b32.xlu0 %v7375, 32
        %v7470 = vpop.permute.xlu0 %7469
        %7471 = vrot.lane.b32.xlu0 %v7376, 32
        %v7472 = vpop.permute.xlu0 %7471
        %7473 = vrot.lane.b32.xlu0 %v7377, 32
        %v7474 = vpop.permute.xlu0 %7473
        %7475 = vrot.lane.b32.xlu0 %v7378, 32
        %v7476 = vpop.permute.xlu0 %7475
        %7477 = vrot.lane.b32.xlu0 %v7379, 32
        %v7478 = vpop.permute.xlu0 %7477
        %7479 = vrot.lane.b32.xlu0 %v7380, 32
        %v7480 = vpop.permute.xlu0 %7479
        %7481 = vrot.lane.b32.xlu0 %v7381, 32
        %v7482 = vpop.permute.xlu0 %7481
        %7483 = vrot.lane.b32.xlu0 %v7382, 32
        %v7484 = vpop.permute.xlu0 %7483
        %7485 = vrot.lane.b32.xlu0 %v7383, 32
        %v7486 = vpop.permute.xlu0 %7485
        %7487 = vrot.lane.b32.xlu0 %v7384, 32
        %v7488 = vpop.permute.xlu0 %7487
        %7489 = vrot.lane.b32.xlu0 %v7385, 32
        %v7490 = vpop.permute.xlu0 %7489
        %7491 = vrot.lane.b32.xlu0 %v7386, 32
        %v7492 = vpop.permute.xlu0 %7491
        %7493 = vrot.lane.b32.xlu0 %v7387, 32
        %v7494 = vpop.permute.xlu0 %7493
        %7495 = vrot.lane.b32.xlu0 %v7388, 32
        %v7496 = vpop.permute.xlu0 %7495
        %7497 = vrot.lane.b32.xlu0 %v7389, 32
        %v7498 = vpop.permute.xlu0 %7497
        %7499 = vrot.lane.b32.xlu0 %v7390, 32
        %v7500 = vpop.permute.xlu0 %7499
        %7501 = vrot.lane.b32.xlu0 %v7391, 32
        %v7502 = vpop.permute.xlu0 %7501
        %7503 = vrot.lane.b32.xlu0 %v7392, 32
        %v7504 = vpop.permute.xlu0 %7503
        %7505 = vrot.lane.b32.xlu0 %v7393, 32
        %v7506 = vpop.permute.xlu0 %7505
        %7507 = vrot.lane.b32.xlu0 %v7394, 32
        %v7508 = vpop.permute.xlu0 %7507
        %7509 = vrot.lane.b32.xlu0 %v7395, 32
        %v7510 = vpop.permute.xlu0 %7509
        %7511 = vrot.lane.b32.xlu0 %v7396, 32
        %v7512 = vpop.permute.xlu0 %7511
        %7513 = vrot.lane.b32.xlu0 %v7397, 32
        %v7514 = vpop.permute.xlu0 %7513
        %7515 = vrot.lane.b32.xlu0 %v7398, 32
        %v7516 = vpop.permute.xlu0 %7515
        %7517 = vrot.lane.b32.xlu0 %v7399, 32
        %v7518 = vpop.permute.xlu0 %7517
        %7519 = vrot.lane.b32.xlu0 %v7400, 32
        %v7520 = vpop.permute.xlu0 %7519
        %7521 = vrot.lane.b32.xlu0 %v7401, 32
        %v7522 = vpop.permute.xlu0 %7521
        %7523 = vrot.lane.b32.xlu0 %v7402, 32
        %v7524 = vpop.permute.xlu0 %7523
        %7525 = vrot.lane.b32.xlu0 %v7403, 32
        %v7526 = vpop.permute.xlu0 %7525
        %7568 = vst.msk [vmem:[#allocation5 + $0x8] sm:$0xff] %vm6742, %v7446
        %7569 = vst.msk [vmem:[#allocation5 + $0x20] sm:$0xff] %vm6742, %v7448
        %7570 = vst.msk [vmem:[#allocation5 + $0x38] sm:$0xff] %vm6742, %v7450
        %7571 = vst.msk [vmem:[#allocation5 + $0x50] sm:$0xff] %vm6742, %v7452
        %7572 = vst.msk [vmem:[#allocation5 + $0x68] sm:$0xff] %vm6742, %v7454
        %7573 = vst.msk [vmem:[#allocation5 + $0x80] sm:$0xff] %vm6742, %v7456
        %7574 = vst.msk [vmem:[#allocation5 + $0x98] sm:$0xff] %vm6742, %v7458
        %7575 = vst.msk [vmem:[#allocation5 + $0xb0] sm:$0xff] %vm6742, %v7460
        %7576 = vst.msk [vmem:[#allocation5 + $0xc8] sm:$0xff] %vm6742, %v7462
        %7577 = vst.msk [vmem:[#allocation5 + $0xe0] sm:$0xff] %vm6742, %v7464
        %7578 = vst.msk [vmem:[#allocation5 + $0xf8] sm:$0xff] %vm6742, %v7466
        %7579 = vst.msk [vmem:[#allocation5 + $0x110] sm:$0xff] %vm6742, %v7468
        %7580 = vst.msk [vmem:[#allocation5 + $0x128] sm:$0xff] %vm6742, %v7470
        %7581 = vst.msk [vmem:[#allocation5 + $0x140] sm:$0xff] %vm6742, %v7472
        %7582 = vst.msk [vmem:[#allocation5 + $0x158] sm:$0xff] %vm6742, %v7474
        %7583 = vst.msk [vmem:[#allocation5 + $0x170] sm:$0xff] %vm6742, %v7476
        %7584 = vst.msk [vmem:[#allocation5 + $0x188] sm:$0xff] %vm6742, %v7478
        %7585 = vst.msk [vmem:[#allocation5 + $0x1a0] sm:$0xff] %vm6742, %v7480
        %7586 = vst.msk [vmem:[#allocation5 + $0x1b8] sm:$0xff] %vm6742, %v7482
        %7587 = vst.msk [vmem:[#allocation5 + $0x1d0] sm:$0xff] %vm6742, %v7484
        %7588 = vst.msk [vmem:[#allocation5 + $0x1e8] sm:$0xff] %vm6742, %v7486
        %7589 = vst.msk [vmem:[#allocation5 + $0x200] sm:$0xff] %vm6742, %v7488
        %7590 = vst.msk [vmem:[#allocation5 + $0x218] sm:$0xff] %vm6742, %v7490
        %7591 = vst.msk [vmem:[#allocation5 + $0x230] sm:$0xff] %vm6742, %v7492
        %7592 = vst.msk [vmem:[#allocation5 + $0x248] sm:$0xff] %vm6742, %v7494
        %7593 = vst.msk [vmem:[#allocation5 + $0x260] sm:$0xff] %vm6742, %v7496
        %7594 = vst.msk [vmem:[#allocation5 + $0x278] sm:$0xff] %vm6742, %v7498
        %7595 = vst.msk [vmem:[#allocation5 + $0x290] sm:$0xff] %vm6742, %v7500
        %7596 = vst.msk [vmem:[#allocation5 + $0x2a8] sm:$0xff] %vm6742, %v7502
        %7597 = vst.msk [vmem:[#allocation5 + $0x2c0] sm:$0xff] %vm6742, %v7504
        %7598 = vst.msk [vmem:[#allocation5 + $0x2d8] sm:$0xff] %vm6742, %v7506
        %7599 = vst.msk [vmem:[#allocation5 + $0x2f0] sm:$0xff] %vm6742, %v7508
        %7600 = vst.msk [vmem:[#allocation5 + $0x308] sm:$0xff] %vm6742, %v7510
        %7601 = vst.msk [vmem:[#allocation5 + $0x320] sm:$0xff] %vm6742, %v7512
        %7602 = vst.msk [vmem:[#allocation5 + $0x338] sm:$0xff] %vm6742, %v7514
        %7603 = vst.msk [vmem:[#allocation5 + $0x350] sm:$0xff] %vm6742, %v7516
        %7604 = vst.msk [vmem:[#allocation5 + $0x368] sm:$0xff] %vm6742, %v7518
        %7605 = vst.msk [vmem:[#allocation5 + $0x380] sm:$0xff] %vm6742, %v7520
        %7606 = vst.msk [vmem:[#allocation5 + $0x398] sm:$0xff] %vm6742, %v7522
        %7607 = vst.msk [vmem:[#allocation5 + $0x3b0] sm:$0xff] %vm6742, %v7524
        %7608 = vst.msk [vmem:[#allocation5 + $0x3c8] sm:$0xf] %vm6783, %v7526
        %v7609 = vld [vmem:[#allocation3 + $0x29] sm:$0xff]
        %v7610 = vld [vmem:[#allocation3 + $0x31] sm:$0xff]
        %v7611 = vld [vmem:[#allocation3 + $0x39] sm:$0xff]
        %v7612 = vld [vmem:[#allocation3 + $0x41] sm:$0xff]
        %v7613 = vld [vmem:[#allocation3 + $0x49] sm:$0xff]
        %v7614 = vld [vmem:[#allocation3 + $0x51] sm:$0xff]
        %v7615 = vld [vmem:[#allocation3 + $0x59] sm:$0xff]
        %v7616 = vld [vmem:[#allocation3 + $0x61] sm:$0xff]
        %v7617 = vld [vmem:[#allocation3 + $0x69] sm:$0xff]
        %v7618 = vld [vmem:[#allocation3 + $0x71] sm:$0xff]
        %v7619 = vld [vmem:[#allocation3 + $0x79] sm:$0xff]
        %v7620 = vld [vmem:[#allocation3 + $0x81] sm:$0xff]
        %v7621 = vld [vmem:[#allocation3 + $0x89] sm:$0xff]
        %v7622 = vld [vmem:[#allocation3 + $0x91] sm:$0xff]
        %v7623 = vld [vmem:[#allocation3 + $0x99] sm:$0xff]
        %v7624 = vld [vmem:[#allocation3 + $0xa1] sm:$0xff]
        %v7625 = vld [vmem:[#allocation3 + $0xa9] sm:$0xff]
        %v7626 = vld [vmem:[#allocation3 + $0xb1] sm:$0xff]
        %v7627 = vld [vmem:[#allocation3 + $0xb9] sm:$0xff]
        %v7628 = vld [vmem:[#allocation3 + $0xc1] sm:$0xff]
        %v7629 = vld [vmem:[#allocation3 + $0xc9] sm:$0xff]
        %v7630 = vld [vmem:[#allocation3 + $0xd1] sm:$0xff]
        %v7631 = vld [vmem:[#allocation3 + $0xd9] sm:$0xff]
        %v7632 = vld [vmem:[#allocation3 + $0xe1] sm:$0xff]
        %v7633 = vld [vmem:[#allocation3 + $0xe9] sm:$0xff]
        %v7634 = vld [vmem:[#allocation3 + $0xf1] sm:$0xff]
        %v7635 = vld [vmem:[#allocation3 + $0xf9] sm:$0xff]
        %v7636 = vld [vmem:[#allocation3 + $0x101] sm:$0xff]
        %v7637 = vld [vmem:[#allocation3 + $0x109] sm:$0xff]
        %v7638 = vld [vmem:[#allocation3 + $0x111] sm:$0xff]
        %v7639 = vld [vmem:[#allocation3 + $0x119] sm:$0xff]
        %v7640 = vld [vmem:[#allocation3 + $0x121] sm:$0xff]
        %v7641 = vld [vmem:[#allocation3 + $0x129] sm:$0xff]
        %v7642 = vld [vmem:[#allocation3 + $0x131] sm:$0xff]
        %v7643 = vld [vmem:[#allocation3 + $0x139] sm:$0xff]
        %v7644 = vld [vmem:[#allocation3 + $0x141] sm:$0xff]
        %v7645 = vld [vmem:[#allocation3 + $0x149] sm:$0xff]
        %v7646 = vld [vmem:[#allocation3 + $0x151] sm:$0xff]
        %v7647 = vld [vmem:[#allocation3 + $0x159] sm:$0xff]
        %v7648 = vld [vmem:[#allocation3 + $0x161] sm:$0xff]
        %v7649 = vld [vmem:[#allocation3 + $0x169] sm:$0xf]
        %7691 = vrot.lane.b32.xlu0 %v7609, 64
        %v7692 = vpop.permute.xlu0 %7691
        %7693 = vrot.lane.b32.xlu0 %v7610, 64
        %v7694 = vpop.permute.xlu0 %7693
        %7695 = vrot.lane.b32.xlu0 %v7611, 64
        %v7696 = vpop.permute.xlu0 %7695
        %7697 = vrot.lane.b32.xlu0 %v7612, 64
        %v7698 = vpop.permute.xlu0 %7697
        %7699 = vrot.lane.b32.xlu0 %v7613, 64
        %v7700 = vpop.permute.xlu0 %7699
        %7701 = vrot.lane.b32.xlu0 %v7614, 64
        %v7702 = vpop.permute.xlu0 %7701
        %7703 = vrot.lane.b32.xlu0 %v7615, 64
        %v7704 = vpop.permute.xlu0 %7703
        %7705 = vrot.lane.b32.xlu0 %v7616, 64
        %v7706 = vpop.permute.xlu0 %7705
        %7707 = vrot.lane.b32.xlu0 %v7617, 64
        %v7708 = vpop.permute.xlu0 %7707
        %7709 = vrot.lane.b32.xlu0 %v7618, 64
        %v7710 = vpop.permute.xlu0 %7709
        %7711 = vrot.lane.b32.xlu0 %v7619, 64
        %v7712 = vpop.permute.xlu0 %7711
        %7713 = vrot.lane.b32.xlu0 %v7620, 64
        %v7714 = vpop.permute.xlu0 %7713
        %7715 = vrot.lane.b32.xlu0 %v7621, 64
        %v7716 = vpop.permute.xlu0 %7715
        %7717 = vrot.lane.b32.xlu0 %v7622, 64
        %v7718 = vpop.permute.xlu0 %7717
        %7719 = vrot.lane.b32.xlu0 %v7623, 64
        %v7720 = vpop.permute.xlu0 %7719
        %7721 = vrot.lane.b32.xlu0 %v7624, 64
        %v7722 = vpop.permute.xlu0 %7721
        %7723 = vrot.lane.b32.xlu0 %v7625, 64
        %v7724 = vpop.permute.xlu0 %7723
        %7725 = vrot.lane.b32.xlu0 %v7626, 64
        %v7726 = vpop.permute.xlu0 %7725
        %7727 = vrot.lane.b32.xlu0 %v7627, 64
        %v7728 = vpop.permute.xlu0 %7727
        %7729 = vrot.lane.b32.xlu0 %v7628, 64
        %v7730 = vpop.permute.xlu0 %7729
        %7731 = vrot.lane.b32.xlu0 %v7629, 64
        %v7732 = vpop.permute.xlu0 %7731
        %7733 = vrot.lane.b32.xlu0 %v7630, 64
        %v7734 = vpop.permute.xlu0 %7733
        %7735 = vrot.lane.b32.xlu0 %v7631, 64
        %v7736 = vpop.permute.xlu0 %7735
        %7737 = vrot.lane.b32.xlu0 %v7632, 64
        %v7738 = vpop.permute.xlu0 %7737
        %7739 = vrot.lane.b32.xlu0 %v7633, 64
        %v7740 = vpop.permute.xlu0 %7739
        %7741 = vrot.lane.b32.xlu0 %v7634, 64
        %v7742 = vpop.permute.xlu0 %7741
        %7743 = vrot.lane.b32.xlu0 %v7635, 64
        %v7744 = vpop.permute.xlu0 %7743
        %7745 = vrot.lane.b32.xlu0 %v7636, 64
        %v7746 = vpop.permute.xlu0 %7745
        %7747 = vrot.lane.b32.xlu0 %v7637, 64
        %v7748 = vpop.permute.xlu0 %7747
        %7749 = vrot.lane.b32.xlu0 %v7638, 64
        %v7750 = vpop.permute.xlu0 %7749
        %7751 = vrot.lane.b32.xlu0 %v7639, 64
        %v7752 = vpop.permute.xlu0 %7751
        %7753 = vrot.lane.b32.xlu0 %v7640, 64
        %v7754 = vpop.permute.xlu0 %7753
        %7755 = vrot.lane.b32.xlu0 %v7641, 64
        %v7756 = vpop.permute.xlu0 %7755
        %7757 = vrot.lane.b32.xlu0 %v7642, 64
        %v7758 = vpop.permute.xlu0 %7757
        %7759 = vrot.lane.b32.xlu0 %v7643, 64
        %v7760 = vpop.permute.xlu0 %7759
        %7761 = vrot.lane.b32.xlu0 %v7644, 64
        %v7762 = vpop.permute.xlu0 %7761
        %7763 = vrot.lane.b32.xlu0 %v7645, 64
        %v7764 = vpop.permute.xlu0 %7763
        %7765 = vrot.lane.b32.xlu0 %v7646, 64
        %v7766 = vpop.permute.xlu0 %7765
        %7767 = vrot.lane.b32.xlu0 %v7647, 64
        %v7768 = vpop.permute.xlu0 %7767
        %7769 = vrot.lane.b32.xlu0 %v7648, 64
        %v7770 = vpop.permute.xlu0 %7769
        %7771 = vrot.lane.b32.xlu0 %v7649, 64
        %v7772 = vpop.permute.xlu0 %7771
        %7814 = vst.msk [vmem:[#allocation5 + $0x8] sm:$0xff] %vm6990, %v7692
        %7815 = vst.msk [vmem:[#allocation5 + $0x20] sm:$0xff] %vm6990, %v7694
        %7816 = vst.msk [vmem:[#allocation5 + $0x38] sm:$0xff] %vm6990, %v7696
        %7817 = vst.msk [vmem:[#allocation5 + $0x50] sm:$0xff] %vm6990, %v7698
        %7818 = vst.msk [vmem:[#allocation5 + $0x68] sm:$0xff] %vm6990, %v7700
        %7819 = vst.msk [vmem:[#allocation5 + $0x80] sm:$0xff] %vm6990, %v7702
        %7820 = vst.msk [vmem:[#allocation5 + $0x98] sm:$0xff] %vm6990, %v7704
        %7821 = vst.msk [vmem:[#allocation5 + $0xb0] sm:$0xff] %vm6990, %v7706
        %7822 = vst.msk [vmem:[#allocation5 + $0xc8] sm:$0xff] %vm6990, %v7708
        %7823 = vst.msk [vmem:[#allocation5 + $0xe0] sm:$0xff] %vm6990, %v7710
        %7824 = vst.msk [vmem:[#allocation5 + $0xf8] sm:$0xff] %vm6990, %v7712
        %7825 = vst.msk [vmem:[#allocation5 + $0x110] sm:$0xff] %vm6990, %v7714
        %7826 = vst.msk [vmem:[#allocation5 + $0x128] sm:$0xff] %vm6990, %v7716
        %7827 = vst.msk [vmem:[#allocation5 + $0x140] sm:$0xff] %vm6990, %v7718
        %7828 = vst.msk [vmem:[#allocation5 + $0x158] sm:$0xff] %vm6990, %v7720
        %7829 = vst.msk [vmem:[#allocation5 + $0x170] sm:$0xff] %vm6990, %v7722
        %7830 = vst.msk [vmem:[#allocation5 + $0x188] sm:$0xff] %vm6990, %v7724
        %7831 = vst.msk [vmem:[#allocation5 + $0x1a0] sm:$0xff] %vm6990, %v7726
        %7832 = vst.msk [vmem:[#allocation5 + $0x1b8] sm:$0xff] %vm6990, %v7728
        %7833 = vst.msk [vmem:[#allocation5 + $0x1d0] sm:$0xff] %vm6990, %v7730
        %7834 = vst.msk [vmem:[#allocation5 + $0x1e8] sm:$0xff] %vm6990, %v7732
        %7835 = vst.msk [vmem:[#allocation5 + $0x200] sm:$0xff] %vm6990, %v7734
        %7836 = vst.msk [vmem:[#allocation5 + $0x218] sm:$0xff] %vm6990, %v7736
        %7837 = vst.msk [vmem:[#allocation5 + $0x230] sm:$0xff] %vm6990, %v7738
        %7838 = vst.msk [vmem:[#allocation5 + $0x248] sm:$0xff] %vm6990, %v7740
        %7839 = vst.msk [vmem:[#allocation5 + $0x260] sm:$0xff] %vm6990, %v7742
        %7840 = vst.msk [vmem:[#allocation5 + $0x278] sm:$0xff] %vm6990, %v7744
        %7841 = vst.msk [vmem:[#allocation5 + $0x290] sm:$0xff] %vm6990, %v7746
        %7842 = vst.msk [vmem:[#allocation5 + $0x2a8] sm:$0xff] %vm6990, %v7748
        %7843 = vst.msk [vmem:[#allocation5 + $0x2c0] sm:$0xff] %vm6990, %v7750
        %7844 = vst.msk [vmem:[#allocation5 + $0x2d8] sm:$0xff] %vm6990, %v7752
        %7845 = vst.msk [vmem:[#allocation5 + $0x2f0] sm:$0xff] %vm6990, %v7754
        %7846 = vst.msk [vmem:[#allocation5 + $0x308] sm:$0xff] %vm6990, %v7756
        %7847 = vst.msk [vmem:[#allocation5 + $0x320] sm:$0xff] %vm6990, %v7758
        %7848 = vst.msk [vmem:[#allocation5 + $0x338] sm:$0xff] %vm6990, %v7760
        %7849 = vst.msk [vmem:[#allocation5 + $0x350] sm:$0xff] %vm6990, %v7762
        %7850 = vst.msk [vmem:[#allocation5 + $0x368] sm:$0xff] %vm6990, %v7764
        %7851 = vst.msk [vmem:[#allocation5 + $0x380] sm:$0xff] %vm6990, %v7766
        %7852 = vst.msk [vmem:[#allocation5 + $0x398] sm:$0xff] %vm6990, %v7768
        %7853 = vst.msk [vmem:[#allocation5 + $0x3b0] sm:$0xff] %vm6990, %v7770
        %7854 = vst.msk [vmem:[#allocation5 + $0x3c8] sm:$0xf] %vm7031, %v7772
        %v7855 = vld [vmem:[#allocation3 + $0x2a] sm:$0xff]
        %v7856 = vld [vmem:[#allocation3 + $0x32] sm:$0xff]
        %v7857 = vld [vmem:[#allocation3 + $0x3a] sm:$0xff]
        %v7858 = vld [vmem:[#allocation3 + $0x42] sm:$0xff]
        %v7859 = vld [vmem:[#allocation3 + $0x4a] sm:$0xff]
        %v7860 = vld [vmem:[#allocation3 + $0x52] sm:$0xff]
        %v7861 = vld [vmem:[#allocation3 + $0x5a] sm:$0xff]
        %v7862 = vld [vmem:[#allocation3 + $0x62] sm:$0xff]
        %v7863 = vld [vmem:[#allocation3 + $0x6a] sm:$0xff]
        %v7864 = vld [vmem:[#allocation3 + $0x72] sm:$0xff]
        %v7865 = vld [vmem:[#allocation3 + $0x7a] sm:$0xff]
        %v7866 = vld [vmem:[#allocation3 + $0x82] sm:$0xff]
        %v7867 = vld [vmem:[#allocation3 + $0x8a] sm:$0xff]
        %v7868 = vld [vmem:[#allocation3 + $0x92] sm:$0xff]
        %v7869 = vld [vmem:[#allocation3 + $0x9a] sm:$0xff]
        %v7870 = vld [vmem:[#allocation3 + $0xa2] sm:$0xff]
        %v7871 = vld [vmem:[#allocation3 + $0xaa] sm:$0xff]
        %v7872 = vld [vmem:[#allocation3 + $0xb2] sm:$0xff]
        %v7873 = vld [vmem:[#allocation3 + $0xba] sm:$0xff]
        %v7874 = vld [vmem:[#allocation3 + $0xc2] sm:$0xff]
        %v7875 = vld [vmem:[#allocation3 + $0xca] sm:$0xff]
        %v7876 = vld [vmem:[#allocation3 + $0xd2] sm:$0xff]
        %v7877 = vld [vmem:[#allocation3 + $0xda] sm:$0xff]
        %v7878 = vld [vmem:[#allocation3 + $0xe2] sm:$0xff]
        %v7879 = vld [vmem:[#allocation3 + $0xea] sm:$0xff]
        %v7880 = vld [vmem:[#allocation3 + $0xf2] sm:$0xff]
        %v7881 = vld [vmem:[#allocation3 + $0xfa] sm:$0xff]
        %v7882 = vld [vmem:[#allocation3 + $0x102] sm:$0xff]
        %v7883 = vld [vmem:[#allocation3 + $0x10a] sm:$0xff]
        %v7884 = vld [vmem:[#allocation3 + $0x112] sm:$0xff]
        %v7885 = vld [vmem:[#allocation3 + $0x11a] sm:$0xff]
        %v7886 = vld [vmem:[#allocation3 + $0x122] sm:$0xff]
        %v7887 = vld [vmem:[#allocation3 + $0x12a] sm:$0xff]
        %v7888 = vld [vmem:[#allocation3 + $0x132] sm:$0xff]
        %v7889 = vld [vmem:[#allocation3 + $0x13a] sm:$0xff]
        %v7890 = vld [vmem:[#allocation3 + $0x142] sm:$0xff]
        %v7891 = vld [vmem:[#allocation3 + $0x14a] sm:$0xff]
        %v7892 = vld [vmem:[#allocation3 + $0x152] sm:$0xff]
        %v7893 = vld [vmem:[#allocation3 + $0x15a] sm:$0xff]
        %v7894 = vld [vmem:[#allocation3 + $0x162] sm:$0xff]
        %v7895 = vld [vmem:[#allocation3 + $0x16a] sm:$0xf]
        %7937 = vrot.lane.b32.xlu0 %v7855, 96
        %v7938 = vpop.permute.xlu0 %7937
        %7939 = vrot.lane.b32.xlu0 %v7856, 96
        %v7940 = vpop.permute.xlu0 %7939
        %7941 = vrot.lane.b32.xlu0 %v7857, 96
        %v7942 = vpop.permute.xlu0 %7941
        %7943 = vrot.lane.b32.xlu0 %v7858, 96
        %v7944 = vpop.permute.xlu0 %7943
        %7945 = vrot.lane.b32.xlu0 %v7859, 96
        %v7946 = vpop.permute.xlu0 %7945
        %7947 = vrot.lane.b32.xlu0 %v7860, 96
        %v7948 = vpop.permute.xlu0 %7947
        %7949 = vrot.lane.b32.xlu0 %v7861, 96
        %v7950 = vpop.permute.xlu0 %7949
        %7951 = vrot.lane.b32.xlu0 %v7862, 96
        %v7952 = vpop.permute.xlu0 %7951
        %7953 = vrot.lane.b32.xlu0 %v7863, 96
        %v7954 = vpop.permute.xlu0 %7953
        %7955 = vrot.lane.b32.xlu0 %v7864, 96
        %v7956 = vpop.permute.xlu0 %7955
        %7957 = vrot.lane.b32.xlu0 %v7865, 96
        %v7958 = vpop.permute.xlu0 %7957
        %7959 = vrot.lane.b32.xlu0 %v7866, 96
        %v7960 = vpop.permute.xlu0 %7959
        %7961 = vrot.lane.b32.xlu0 %v7867, 96
        %v7962 = vpop.permute.xlu0 %7961
        %7963 = vrot.lane.b32.xlu0 %v7868, 96
        %v7964 = vpop.permute.xlu0 %7963
        %7965 = vrot.lane.b32.xlu0 %v7869, 96
        %v7966 = vpop.permute.xlu0 %7965
        %7967 = vrot.lane.b32.xlu0 %v7870, 96
        %v7968 = vpop.permute.xlu0 %7967
        %7969 = vrot.lane.b32.xlu0 %v7871, 96
        %v7970 = vpop.permute.xlu0 %7969
        %7971 = vrot.lane.b32.xlu0 %v7872, 96
        %v7972 = vpop.permute.xlu0 %7971
        %7973 = vrot.lane.b32.xlu0 %v7873, 96
        %v7974 = vpop.permute.xlu0 %7973
        %7975 = vrot.lane.b32.xlu0 %v7874, 96
        %v7976 = vpop.permute.xlu0 %7975
        %7977 = vrot.lane.b32.xlu0 %v7875, 96
        %v7978 = vpop.permute.xlu0 %7977
        %7979 = vrot.lane.b32.xlu0 %v7876, 96
        %v7980 = vpop.permute.xlu0 %7979
        %7981 = vrot.lane.b32.xlu0 %v7877, 96
        %v7982 = vpop.permute.xlu0 %7981
        %7983 = vrot.lane.b32.xlu0 %v7878, 96
        %v7984 = vpop.permute.xlu0 %7983
        %7985 = vrot.lane.b32.xlu0 %v7879, 96
        %v7986 = vpop.permute.xlu0 %7985
        %7987 = vrot.lane.b32.xlu0 %v7880, 96
        %v7988 = vpop.permute.xlu0 %7987
        %7989 = vrot.lane.b32.xlu0 %v7881, 96
        %v7990 = vpop.permute.xlu0 %7989
        %7991 = vrot.lane.b32.xlu0 %v7882, 96
        %v7992 = vpop.permute.xlu0 %7991
        %7993 = vrot.lane.b32.xlu0 %v7883, 96
        %v7994 = vpop.permute.xlu0 %7993
        %7995 = vrot.lane.b32.xlu0 %v7884, 96
        %v7996 = vpop.permute.xlu0 %7995
        %7997 = vrot.lane.b32.xlu0 %v7885, 96
        %v7998 = vpop.permute.xlu0 %7997
        %7999 = vrot.lane.b32.xlu0 %v7886, 96
        %v8000 = vpop.permute.xlu0 %7999
        %8001 = vrot.lane.b32.xlu0 %v7887, 96
        %v8002 = vpop.permute.xlu0 %8001
        %8003 = vrot.lane.b32.xlu0 %v7888, 96
        %v8004 = vpop.permute.xlu0 %8003
        %8005 = vrot.lane.b32.xlu0 %v7889, 96
        %v8006 = vpop.permute.xlu0 %8005
        %8007 = vrot.lane.b32.xlu0 %v7890, 96
        %v8008 = vpop.permute.xlu0 %8007
        %8009 = vrot.lane.b32.xlu0 %v7891, 96
        %v8010 = vpop.permute.xlu0 %8009
        %8011 = vrot.lane.b32.xlu0 %v7892, 96
        %v8012 = vpop.permute.xlu0 %8011
        %8013 = vrot.lane.b32.xlu0 %v7893, 96
        %v8014 = vpop.permute.xlu0 %8013
        %8015 = vrot.lane.b32.xlu0 %v7894, 96
        %v8016 = vpop.permute.xlu0 %8015
        %8017 = vrot.lane.b32.xlu0 %v7895, 96
        %v8018 = vpop.permute.xlu0 %8017
        %8060 = vst.msk [vmem:[#allocation5 + $0x8] sm:$0xff] %vm7238, %v7938
        %8061 = vst.msk [vmem:[#allocation5 + $0x20] sm:$0xff] %vm7238, %v7940
        %8062 = vst.msk [vmem:[#allocation5 + $0x38] sm:$0xff] %vm7238, %v7942
        %8063 = vst.msk [vmem:[#allocation5 + $0x50] sm:$0xff] %vm7238, %v7944
        %8064 = vst.msk [vmem:[#allocation5 + $0x68] sm:$0xff] %vm7238, %v7946
        %8065 = vst.msk [vmem:[#allocation5 + $0x80] sm:$0xff] %vm7238, %v7948
        %8066 = vst.msk [vmem:[#allocation5 + $0x98] sm:$0xff] %vm7238, %v7950
        %8067 = vst.msk [vmem:[#allocation5 + $0xb0] sm:$0xff] %vm7238, %v7952
        %8068 = vst.msk [vmem:[#allocation5 + $0xc8] sm:$0xff] %vm7238, %v7954
        %8069 = vst.msk [vmem:[#allocation5 + $0xe0] sm:$0xff] %vm7238, %v7956
        %8070 = vst.msk [vmem:[#allocation5 + $0xf8] sm:$0xff] %vm7238, %v7958
        %8071 = vst.msk [vmem:[#allocation5 + $0x110] sm:$0xff] %vm7238, %v7960
        %8072 = vst.msk [vmem:[#allocation5 + $0x128] sm:$0xff] %vm7238, %v7962
        %8073 = vst.msk [vmem:[#allocation5 + $0x140] sm:$0xff] %vm7238, %v7964
        %8074 = vst.msk [vmem:[#allocation5 + $0x158] sm:$0xff] %vm7238, %v7966
        %8075 = vst.msk [vmem:[#allocation5 + $0x170] sm:$0xff] %vm7238, %v7968
        %8076 = vst.msk [vmem:[#allocation5 + $0x188] sm:$0xff] %vm7238, %v7970
        %8077 = vst.msk [vmem:[#allocation5 + $0x1a0] sm:$0xff] %vm7238, %v7972
        %8078 = vst.msk [vmem:[#allocation5 + $0x1b8] sm:$0xff] %vm7238, %v7974
        %8079 = vst.msk [vmem:[#allocation5 + $0x1d0] sm:$0xff] %vm7238, %v7976
        %8080 = vst.msk [vmem:[#allocation5 + $0x1e8] sm:$0xff] %vm7238, %v7978
        %8081 = vst.msk [vmem:[#allocation5 + $0x200] sm:$0xff] %vm7238, %v7980
        %8082 = vst.msk [vmem:[#allocation5 + $0x218] sm:$0xff] %vm7238, %v7982
        %8083 = vst.msk [vmem:[#allocation5 + $0x230] sm:$0xff] %vm7238, %v7984
        %8084 = vst.msk [vmem:[#allocation5 + $0x248] sm:$0xff] %vm7238, %v7986
        %8085 = vst.msk [vmem:[#allocation5 + $0x260] sm:$0xff] %vm7238, %v7988
        %8086 = vst.msk [vmem:[#allocation5 + $0x278] sm:$0xff] %vm7238, %v7990
        %8087 = vst.msk [vmem:[#allocation5 + $0x290] sm:$0xff] %vm7238, %v7992
        %8088 = vst.msk [vmem:[#allocation5 + $0x2a8] sm:$0xff] %vm7238, %v7994
        %8089 = vst.msk [vmem:[#allocation5 + $0x2c0] sm:$0xff] %vm7238, %v7996
        %8090 = vst.msk [vmem:[#allocation5 + $0x2d8] sm:$0xff] %vm7238, %v7998
        %8091 = vst.msk [vmem:[#allocation5 + $0x2f0] sm:$0xff] %vm7238, %v8000
        %8092 = vst.msk [vmem:[#allocation5 + $0x308] sm:$0xff] %vm7238, %v8002
        %8093 = vst.msk [vmem:[#allocation5 + $0x320] sm:$0xff] %vm7238, %v8004
        %8094 = vst.msk [vmem:[#allocation5 + $0x338] sm:$0xff] %vm7238, %v8006
        %8095 = vst.msk [vmem:[#allocation5 + $0x350] sm:$0xff] %vm7238, %v8008
        %8096 = vst.msk [vmem:[#allocation5 + $0x368] sm:$0xff] %vm7238, %v8010
        %8097 = vst.msk [vmem:[#allocation5 + $0x380] sm:$0xff] %vm7238, %v8012
        %8098 = vst.msk [vmem:[#allocation5 + $0x398] sm:$0xff] %vm7238, %v8014
        %8099 = vst.msk [vmem:[#allocation5 + $0x3b0] sm:$0xff] %vm7238, %v8016
        %8100 = vst.msk [vmem:[#allocation5 + $0x3c8] sm:$0xf] %vm7279, %v8018
        %v8101 = vld [vmem:[#allocation3 + $0x2b] sm:$0xff]
        %v8102 = vld [vmem:[#allocation3 + $0x33] sm:$0xff]
        %v8103 = vld [vmem:[#allocation3 + $0x3b] sm:$0xff]
        %v8104 = vld [vmem:[#allocation3 + $0x43] sm:$0xff]
        %v8105 = vld [vmem:[#allocation3 + $0x4b] sm:$0xff]
        %v8106 = vld [vmem:[#allocation3 + $0x53] sm:$0xff]
        %v8107 = vld [vmem:[#allocation3 + $0x5b] sm:$0xff]
        %v8108 = vld [vmem:[#allocation3 + $0x63] sm:$0xff]
        %v8109 = vld [vmem:[#allocation3 + $0x6b] sm:$0xff]
        %v8110 = vld [vmem:[#allocation3 + $0x73] sm:$0xff]
        %v8111 = vld [vmem:[#allocation3 + $0x7b] sm:$0xff]
        %v8112 = vld [vmem:[#allocation3 + $0x83] sm:$0xff]
        %v8113 = vld [vmem:[#allocation3 + $0x8b] sm:$0xff]
        %v8114 = vld [vmem:[#allocation3 + $0x93] sm:$0xff]
        %v8115 = vld [vmem:[#allocation3 + $0x9b] sm:$0xff]
        %v8116 = vld [vmem:[#allocation3 + $0xa3] sm:$0xff]
        %v8117 = vld [vmem:[#allocation3 + $0xab] sm:$0xff]
        %v8118 = vld [vmem:[#allocation3 + $0xb3] sm:$0xff]
        %v8119 = vld [vmem:[#allocation3 + $0xbb] sm:$0xff]
        %v8120 = vld [vmem:[#allocation3 + $0xc3] sm:$0xff]
        %v8121 = vld [vmem:[#allocation3 + $0xcb] sm:$0xff]
        %v8122 = vld [vmem:[#allocation3 + $0xd3] sm:$0xff]
        %v8123 = vld [vmem:[#allocation3 + $0xdb] sm:$0xff]
        %v8124 = vld [vmem:[#allocation3 + $0xe3] sm:$0xff]
        %v8125 = vld [vmem:[#allocation3 + $0xeb] sm:$0xff]
        %v8126 = vld [vmem:[#allocation3 + $0xf3] sm:$0xff]
        %v8127 = vld [vmem:[#allocation3 + $0xfb] sm:$0xff]
        %v8128 = vld [vmem:[#allocation3 + $0x103] sm:$0xff]
        %v8129 = vld [vmem:[#allocation3 + $0x10b] sm:$0xff]
        %v8130 = vld [vmem:[#allocation3 + $0x113] sm:$0xff]
        %v8131 = vld [vmem:[#allocation3 + $0x11b] sm:$0xff]
        %v8132 = vld [vmem:[#allocation3 + $0x123] sm:$0xff]
        %v8133 = vld [vmem:[#allocation3 + $0x12b] sm:$0xff]
        %v8134 = vld [vmem:[#allocation3 + $0x133] sm:$0xff]
        %v8135 = vld [vmem:[#allocation3 + $0x13b] sm:$0xff]
        %v8136 = vld [vmem:[#allocation3 + $0x143] sm:$0xff]
        %v8137 = vld [vmem:[#allocation3 + $0x14b] sm:$0xff]
        %v8138 = vld [vmem:[#allocation3 + $0x153] sm:$0xff]
        %v8139 = vld [vmem:[#allocation3 + $0x15b] sm:$0xff]
        %v8140 = vld [vmem:[#allocation3 + $0x163] sm:$0xff]
        %v8141 = vld [vmem:[#allocation3 + $0x16b] sm:$0xf]
        %8142 = vst.msk [vmem:[#allocation5 + $0x10] sm:$0xff] %vm425, %v8101
        %8143 = vst.msk [vmem:[#allocation5 + $0x28] sm:$0xff] %vm425, %v8102
        %8144 = vst.msk [vmem:[#allocation5 + $0x40] sm:$0xff] %vm425, %v8103
        %8145 = vst.msk [vmem:[#allocation5 + $0x58] sm:$0xff] %vm425, %v8104
        %8146 = vst.msk [vmem:[#allocation5 + $0x70] sm:$0xff] %vm425, %v8105
        %8147 = vst.msk [vmem:[#allocation5 + $0x88] sm:$0xff] %vm425, %v8106
        %8148 = vst.msk [vmem:[#allocation5 + $0xa0] sm:$0xff] %vm425, %v8107
        %8149 = vst.msk [vmem:[#allocation5 + $0xb8] sm:$0xff] %vm425, %v8108
        %8150 = vst.msk [vmem:[#allocation5 + $0xd0] sm:$0xff] %vm425, %v8109
        %8151 = vst.msk [vmem:[#allocation5 + $0xe8] sm:$0xff] %vm425, %v8110
        %8152 = vst.msk [vmem:[#allocation5 + $0x100] sm:$0xff] %vm425, %v8111
        %8153 = vst.msk [vmem:[#allocation5 + $0x118] sm:$0xff] %vm425, %v8112
        %8154 = vst.msk [vmem:[#allocation5 + $0x130] sm:$0xff] %vm425, %v8113
        %8155 = vst.msk [vmem:[#allocation5 + $0x148] sm:$0xff] %vm425, %v8114
        %8156 = vst.msk [vmem:[#allocation5 + $0x160] sm:$0xff] %vm425, %v8115
        %8157 = vst.msk [vmem:[#allocation5 + $0x178] sm:$0xff] %vm425, %v8116
        %8158 = vst.msk [vmem:[#allocation5 + $0x190] sm:$0xff] %vm425, %v8117
        %8159 = vst.msk [vmem:[#allocation5 + $0x1a8] sm:$0xff] %vm425, %v8118
        %8160 = vst.msk [vmem:[#allocation5 + $0x1c0] sm:$0xff] %vm425, %v8119
        %8161 = vst.msk [vmem:[#allocation5 + $0x1d8] sm:$0xff] %vm425, %v8120
        %8162 = vst.msk [vmem:[#allocation5 + $0x1f0] sm:$0xff] %vm425, %v8121
        %8163 = vst.msk [vmem:[#allocation5 + $0x208] sm:$0xff] %vm425, %v8122
        %8164 = vst.msk [vmem:[#allocation5 + $0x220] sm:$0xff] %vm425, %v8123
        %8165 = vst.msk [vmem:[#allocation5 + $0x238] sm:$0xff] %vm425, %v8124
        %8166 = vst.msk [vmem:[#allocation5 + $0x250] sm:$0xff] %vm425, %v8125
        %8167 = vst.msk [vmem:[#allocation5 + $0x268] sm:$0xff] %vm425, %v8126
        %8168 = vst.msk [vmem:[#allocation5 + $0x280] sm:$0xff] %vm425, %v8127
        %8169 = vst.msk [vmem:[#allocation5 + $0x298] sm:$0xff] %vm425, %v8128
        %8170 = vst.msk [vmem:[#allocation5 + $0x2b0] sm:$0xff] %vm425, %v8129
        %8171 = vst.msk [vmem:[#allocation5 + $0x2c8] sm:$0xff] %vm425, %v8130
        %8172 = vst.msk [vmem:[#allocation5 + $0x2e0] sm:$0xff] %vm425, %v8131
        %8173 = vst.msk [vmem:[#allocation5 + $0x2f8] sm:$0xff] %vm425, %v8132
        %8174 = vst.msk [vmem:[#allocation5 + $0x310] sm:$0xff] %vm425, %v8133
        %8175 = vst.msk [vmem:[#allocation5 + $0x328] sm:$0xff] %vm425, %v8134
        %8176 = vst.msk [vmem:[#allocation5 + $0x340] sm:$0xff] %vm425, %v8135
        %8177 = vst.msk [vmem:[#allocation5 + $0x358] sm:$0xff] %vm425, %v8136
        %8178 = vst.msk [vmem:[#allocation5 + $0x370] sm:$0xff] %vm425, %v8137
        %8179 = vst.msk [vmem:[#allocation5 + $0x388] sm:$0xff] %vm425, %v8138
        %8180 = vst.msk [vmem:[#allocation5 + $0x3a0] sm:$0xff] %vm425, %v8139
        %8181 = vst.msk [vmem:[#allocation5 + $0x3b8] sm:$0xff] %vm425, %v8140
        %8182 = vst.msk [vmem:[#allocation5 + $0x3d0] sm:$0xf] %vm6453, %v8141
        %v8183 = vld [vmem:[#allocation5] sm:$0xff]
        %v8184 = vld [vmem:[#allocation5 + $0x8] sm:$0xff]
        %v8185 = vld [vmem:[#allocation5 + $0x10] sm:$0xff]
        %v8186 = vld [vmem:[#allocation5 + $0x18] sm:$0xff]
        %v8187 = vld [vmem:[#allocation5 + $0x20] sm:$0xff]
        %v8188 = vld [vmem:[#allocation5 + $0x28] sm:$0xff]
        %v8189 = vld [vmem:[#allocation5 + $0x30] sm:$0xff]
        %v8190 = vld [vmem:[#allocation5 + $0x38] sm:$0xff]
        %v8191 = vld [vmem:[#allocation5 + $0x40] sm:$0xff]
        %v8192 = vld [vmem:[#allocation5 + $0x48] sm:$0xff]
        %v8193 = vld [vmem:[#allocation5 + $0x50] sm:$0xff]
        %v8194 = vld [vmem:[#allocation5 + $0x58] sm:$0xff]
        %v8195 = vld [vmem:[#allocation5 + $0x60] sm:$0xff]
        %v8196 = vld [vmem:[#allocation5 + $0x68] sm:$0xff]
        %v8197 = vld [vmem:[#allocation5 + $0x70] sm:$0xff]
        %v8198 = vld [vmem:[#allocation5 + $0x78] sm:$0xff]
        %v8199 = vld [vmem:[#allocation5 + $0x80] sm:$0xff]
        %v8200 = vld [vmem:[#allocation5 + $0x88] sm:$0xff]
        %v8201 = vld [vmem:[#allocation5 + $0x90] sm:$0xff]
        %v8202 = vld [vmem:[#allocation5 + $0x98] sm:$0xff]
        %v8203 = vld [vmem:[#allocation5 + $0xa0] sm:$0xff]
        %v8204 = vld [vmem:[#allocation5 + $0xa8] sm:$0xff]
        %v8205 = vld [vmem:[#allocation5 + $0xb0] sm:$0xff]
        %v8206 = vld [vmem:[#allocation5 + $0xb8] sm:$0xff]
        %v8207 = vld [vmem:[#allocation5 + $0xc0] sm:$0xff]
        %v8208 = vld [vmem:[#allocation5 + $0xc8] sm:$0xff]
        %v8209 = vld [vmem:[#allocation5 + $0xd0] sm:$0xff]
        %v8210 = vld [vmem:[#allocation5 + $0xd8] sm:$0xff]
        %v8211 = vld [vmem:[#allocation5 + $0xe0] sm:$0xff]
        %v8212 = vld [vmem:[#allocation5 + $0xe8] sm:$0xff]
        %v8213 = vld [vmem:[#allocation5 + $0xf0] sm:$0xff]
        %v8214 = vld [vmem:[#allocation5 + $0xf8] sm:$0xff]
        %v8215 = vld [vmem:[#allocation5 + $0x100] sm:$0xff]
        %v8216 = vld [vmem:[#allocation5 + $0x108] sm:$0xff]
        %v8217 = vld [vmem:[#allocation5 + $0x110] sm:$0xff]
        %v8218 = vld [vmem:[#allocation5 + $0x118] sm:$0xff]
        %v8219 = vld [vmem:[#allocation5 + $0x120] sm:$0xff]
        %v8220 = vld [vmem:[#allocation5 + $0x128] sm:$0xff]
        %v8221 = vld [vmem:[#allocation5 + $0x130] sm:$0xff]
        %v8222 = vld [vmem:[#allocation5 + $0x138] sm:$0xff]
        %v8223 = vld [vmem:[#allocation5 + $0x140] sm:$0xff]
        %v8224 = vld [vmem:[#allocation5 + $0x148] sm:$0xff]
        %v8225 = vld [vmem:[#allocation5 + $0x150] sm:$0xff]
        %v8226 = vld [vmem:[#allocation5 + $0x158] sm:$0xff]
        %v8227 = vld [vmem:[#allocation5 + $0x160] sm:$0xff]
        %v8228 = vld [vmem:[#allocation5 + $0x168] sm:$0xff]
        %v8229 = vld [vmem:[#allocation5 + $0x170] sm:$0xff]
        %v8230 = vld [vmem:[#allocation5 + $0x178] sm:$0xff]
        %v8231 = vld [vmem:[#allocation5 + $0x180] sm:$0xff]
        %v8232 = vld [vmem:[#allocation5 + $0x188] sm:$0xff]
        %v8233 = vld [vmem:[#allocation5 + $0x190] sm:$0xff]
        %v8234 = vld [vmem:[#allocation5 + $0x198] sm:$0xff]
        %v8235 = vld [vmem:[#allocation5 + $0x1a0] sm:$0xff]
        %v8236 = vld [vmem:[#allocation5 + $0x1a8] sm:$0xff]
        %v8237 = vld [vmem:[#allocation5 + $0x1b0] sm:$0xff]
        %v8238 = vld [vmem:[#allocation5 + $0x1b8] sm:$0xff]
        %v8239 = vld [vmem:[#allocation5 + $0x1c0] sm:$0xff]
        %v8240 = vld [vmem:[#allocation5 + $0x1c8] sm:$0xff]
        %v8241 = vld [vmem:[#allocation5 + $0x1d0] sm:$0xff]
        %v8242 = vld [vmem:[#allocation5 + $0x1d8] sm:$0xff]
        %v8243 = vld [vmem:[#allocation5 + $0x1e0] sm:$0xff]
        %v8244 = vld [vmem:[#allocation5 + $0x1e8] sm:$0xff]
        %v8245 = vld [vmem:[#allocation5 + $0x1f0] sm:$0xff]
        %v8246 = vld [vmem:[#allocation5 + $0x1f8] sm:$0xff]
        %v8247 = vld [vmem:[#allocation5 + $0x200] sm:$0xff]
        %v8248 = vld [vmem:[#allocation5 + $0x208] sm:$0xff]
        %v8249 = vld [vmem:[#allocation5 + $0x210] sm:$0xff]
        %v8250 = vld [vmem:[#allocation5 + $0x218] sm:$0xff]
        %v8251 = vld [vmem:[#allocation5 + $0x220] sm:$0xff]
        %v8252 = vld [vmem:[#allocation5 + $0x228] sm:$0xff]
        %v8253 = vld [vmem:[#allocation5 + $0x230] sm:$0xff]
        %v8254 = vld [vmem:[#allocation5 + $0x238] sm:$0xff]
        %v8255 = vld [vmem:[#allocation5 + $0x240] sm:$0xff]
        %v8256 = vld [vmem:[#allocation5 + $0x248] sm:$0xff]
        %v8257 = vld [vmem:[#allocation5 + $0x250] sm:$0xff]
        %v8258 = vld [vmem:[#allocation5 + $0x258] sm:$0xff]
        %v8259 = vld [vmem:[#allocation5 + $0x260] sm:$0xff]
        %v8260 = vld [vmem:[#allocation5 + $0x268] sm:$0xff]
        %v8261 = vld [vmem:[#allocation5 + $0x270] sm:$0xff]
        %v8262 = vld [vmem:[#allocation5 + $0x278] sm:$0xff]
        %v8263 = vld [vmem:[#allocation5 + $0x280] sm:$0xff]
        %v8264 = vld [vmem:[#allocation5 + $0x288] sm:$0xff]
        %v8265 = vld [vmem:[#allocation5 + $0x290] sm:$0xff]
        %v8266 = vld [vmem:[#allocation5 + $0x298] sm:$0xff]
        %v8267 = vld [vmem:[#allocation5 + $0x2a0] sm:$0xff]
        %v8268 = vld [vmem:[#allocation5 + $0x2a8] sm:$0xff]
        %v8269 = vld [vmem:[#allocation5 + $0x2b0] sm:$0xff]
        %v8270 = vld [vmem:[#allocation5 + $0x2b8] sm:$0xff]
        %v8271 = vld [vmem:[#allocation5 + $0x2c0] sm:$0xff]
        %v8272 = vld [vmem:[#allocation5 + $0x2c8] sm:$0xff]
        %v8273 = vld [vmem:[#allocation5 + $0x2d0] sm:$0xff]
        %v8274 = vld [vmem:[#allocation5 + $0x2d8] sm:$0xff]
        %v8275 = vld [vmem:[#allocation5 + $0x2e0] sm:$0xff]
        %v8276 = vld [vmem:[#allocation5 + $0x2e8] sm:$0xff]
        %v8277 = vld [vmem:[#allocation5 + $0x2f0] sm:$0xff]
        %v8278 = vld [vmem:[#allocation5 + $0x2f8] sm:$0xff]
        %v8279 = vld [vmem:[#allocation5 + $0x300] sm:$0xff]
        %v8280 = vld [vmem:[#allocation5 + $0x308] sm:$0xff]
        %v8281 = vld [vmem:[#allocation5 + $0x310] sm:$0xff]
        %v8282 = vld [vmem:[#allocation5 + $0x318] sm:$0xff]
        %v8283 = vld [vmem:[#allocation5 + $0x320] sm:$0xff]
        %v8284 = vld [vmem:[#allocation5 + $0x328] sm:$0xff]
        %v8285 = vld [vmem:[#allocation5 + $0x330] sm:$0xff]
        %v8286 = vld [vmem:[#allocation5 + $0x338] sm:$0xff]
        %v8287 = vld [vmem:[#allocation5 + $0x340] sm:$0xff]
        %v8288 = vld [vmem:[#allocation5 + $0x348] sm:$0xff]
        %v8289 = vld [vmem:[#allocation5 + $0x350] sm:$0xff]
        %v8290 = vld [vmem:[#allocation5 + $0x358] sm:$0xff]
        %v8291 = vld [vmem:[#allocation5 + $0x360] sm:$0xff]
        %v8292 = vld [vmem:[#allocation5 + $0x368] sm:$0xff]
        %v8293 = vld [vmem:[#allocation5 + $0x370] sm:$0xff]
        %v8294 = vld [vmem:[#allocation5 + $0x378] sm:$0xff]
        %v8295 = vld [vmem:[#allocation5 + $0x380] sm:$0xff]
        %v8296 = vld [vmem:[#allocation5 + $0x388] sm:$0xff]
        %v8297 = vld [vmem:[#allocation5 + $0x390] sm:$0xff]
        %v8298 = vld [vmem:[#allocation5 + $0x398] sm:$0xff]
        %v8299 = vld [vmem:[#allocation5 + $0x3a0] sm:$0xff]
        %v8300 = vld [vmem:[#allocation5 + $0x3a8] sm:$0xff]
        %v8301 = vld [vmem:[#allocation5 + $0x3b0] sm:$0xff]
        %v8302 = vld [vmem:[#allocation5 + $0x3b8] sm:$0xff]
        %v8303 = vld [vmem:[#allocation5 + $0x3c0] sm:$0xf]
        %v8304 = vld [vmem:[#allocation5 + $0x3c8] sm:$0xf]
        %v8305 = vld [vmem:[#allocation5 + $0x3d0] sm:$0xf]
        %v8306 = vld [vmem:[%s7] sm:$0xff]
        %v8307 = vld [vmem:[%s7 + $0x8] sm:$0xff]
        %v8308 = vld [vmem:[%s7 + $0x10] sm:$0xff]
        %v8309 = vld [vmem:[%s7 + $0x18] sm:$0xff]
        %v8310 = vld [vmem:[%s7 + $0x20] sm:$0xff]
        %v8311 = vld [vmem:[%s7 + $0x28] sm:$0xff]
        %v8312 = vld [vmem:[%s7 + $0x30] sm:$0xff]
        %v8313 = vld [vmem:[%s7 + $0x38] sm:$0xff]
        %v8314 = vld [vmem:[%s7 + $0x40] sm:$0xff]
        %v8315 = vld [vmem:[%s7 + $0x48] sm:$0xff]
        %v8316 = vld [vmem:[%s7 + $0x50] sm:$0xff]
        %v8317 = vld [vmem:[%s7 + $0x58] sm:$0xff]
        %v8318 = vld [vmem:[%s7 + $0x60] sm:$0xff]
        %v8319 = vld [vmem:[%s7 + $0x68] sm:$0xff]
        %v8320 = vld [vmem:[%s7 + $0x70] sm:$0xff]
        %v8321 = vld [vmem:[%s7 + $0x78] sm:$0xff]
        %v8322 = vld [vmem:[%s7 + $0x80] sm:$0xff]
        %v8323 = vld [vmem:[%s7 + $0x88] sm:$0xff]
        %v8324 = vld [vmem:[%s7 + $0x90] sm:$0xff]
        %v8325 = vld [vmem:[%s7 + $0x98] sm:$0xff]
        %v8326 = vld [vmem:[%s7 + $0xa0] sm:$0xff]
        %v8327 = vld [vmem:[%s7 + $0xa8] sm:$0xff]
        %v8328 = vld [vmem:[%s7 + $0xb0] sm:$0xff]
        %v8329 = vld [vmem:[%s7 + $0xb8] sm:$0xff]
        %v8330 = vld [vmem:[%s7 + $0xc0] sm:$0xff]
        %v8331 = vld [vmem:[%s7 + $0xc8] sm:$0xff]
        %v8332 = vld [vmem:[%s7 + $0xd0] sm:$0xff]
        %v8333 = vld [vmem:[%s7 + $0xd8] sm:$0xff]
        %v8334 = vld [vmem:[%s7 + $0xe0] sm:$0xff]
        %v8335 = vld [vmem:[%s7 + $0xe8] sm:$0xff]
        %v8336 = vld [vmem:[%s7 + $0xf0] sm:$0xff]
        %v8337 = vld [vmem:[%s7 + $0xf8] sm:$0xff]
        %v8338 = vld [vmem:[%s7 + $0x100] sm:$0xff]
        %v8339 = vld [vmem:[%s7 + $0x108] sm:$0xff]
        %v8340 = vld [vmem:[%s7 + $0x110] sm:$0xff]
        %v8341 = vld [vmem:[%s7 + $0x118] sm:$0xff]
        %v8342 = vld [vmem:[%s8] sm:$0x1]
        %v8344 = vlaneseq
        %v8345 = vshrl.u32 %v8344, 7
        %v8346 = vsub.s32 0, %v8345
        %v8347 = vrot.slane %v8342, %v8346
        %v8350 = vsel %vm425, %v8185, 0
        %v8353 = vsel %vm425, %v8188, 0
        %v8356 = vsel %vm425, %v8191, 0
        %v8359 = vsel %vm425, %v8194, 0
        %v8362 = vsel %vm425, %v8197, 0
        %v8365 = vsel %vm425, %v8200, 0
        %v8368 = vsel %vm425, %v8203, 0
        %v8371 = vsel %vm425, %v8206, 0
        %v8374 = vsel %vm425, %v8209, 0
        %v8377 = vsel %vm425, %v8212, 0
        %v8380 = vsel %vm425, %v8215, 0
        %v8383 = vsel %vm425, %v8218, 0
        %v8386 = vsel %vm425, %v8221, 0
        %v8389 = vsel %vm425, %v8224, 0
        %v8392 = vsel %vm425, %v8227, 0
        %v8395 = vsel %vm425, %v8230, 0
        %v8398 = vsel %vm425, %v8233, 0
        %v8401 = vsel %vm425, %v8236, 0
        %v8404 = vsel %vm425, %v8239, 0
        %v8407 = vsel %vm425, %v8242, 0
        %v8410 = vsel %vm425, %v8245, 0
        %v8413 = vsel %vm425, %v8248, 0
        %v8416 = vsel %vm425, %v8251, 0
        %v8419 = vsel %vm425, %v8254, 0
        %v8422 = vsel %vm425, %v8257, 0
        %v8425 = vsel %vm425, %v8260, 0
        %v8428 = vsel %vm425, %v8263, 0
        %v8431 = vsel %vm425, %v8266, 0
        %v8434 = vsel %vm425, %v8269, 0
        %v8437 = vsel %vm425, %v8272, 0
        %v8440 = vsel %vm425, %v8275, 0
        %v8443 = vsel %vm425, %v8278, 0
        %v8446 = vsel %vm425, %v8281, 0
        %v8449 = vsel %vm425, %v8284, 0
        %v8452 = vsel %vm425, %v8287, 0
        %v8455 = vsel %vm425, %v8290, 0
        %v8458 = vsel %vm425, %v8293, 0
        %v8461 = vsel %vm425, %v8296, 0
        %v8464 = vsel %vm425, %v8299, 0
        %v8467 = vsel %vm425, %v8302, 0
        %v8470 = vsel %vm425, %v8305, 0
        %8472 = vmatprep.subr.mxu0 0.0
        %8473 = vmatpush1.msra.mxu0 %v8306
        %8474 = vmatprep.subr.mxu0 0.0
        %8475 = vmatpush1.msra.mxu0 %v8307
        %8476 = vmatprep.subr.mxu0 0.0
        %8477 = vmatpush1.msra.mxu0 %v8308
        %8478 = vmatprep.subr.mxu0 0.0
        %8479 = vmatpush1.msra.mxu0 %v8309
        %8480 = vmatprep.subr.mxu0 0.0
        %8481 = vmatpush1.msra.mxu0 %v8310
        %8482 = vmatprep.subr.mxu0 0.0
        %8483 = vmatpush1.msra.mxu0 %v8311
        %8484 = vmatprep.subr.mxu0 0.0
        %8485 = vmatpush1.msra.mxu0 %v8312
        %8486 = vmatprep.subr.mxu0 0.0
        %8487 = vmatpush1.msra.mxu0 %v8313
        %8488 = vmatprep.subr.mxu0 0.0
        %8489 = vmatpush1.msra.mxu0 %v8314
        %8490 = vmatprep.subr.mxu0 0.0
        %8491 = vmatpush1.msra.mxu0 %v8315
        %8492 = vmatprep.subr.mxu0 0.0
        %8493 = vmatpush1.msra.mxu0 %v8316
        %8494 = vmatprep.subr.mxu0 0.0
        %8495 = vmatpush1.msra.mxu0 %v8317
        %8496 = vmatprep.subr.mxu0 0.0
        %8497 = vmatpush1.msra.mxu0 %v8318
        %8498 = vmatprep.subr.mxu0 0.0
        %8499 = vmatpush1.msra.mxu0 %v8319
        %8500 = vmatprep.subr.mxu0 0.0
        %8501 = vmatpush1.msra.mxu0 %v8320
        %8502 = vmatprep.subr.mxu0 0.0
        %8503 = vmatpush1.msra.mxu0 %v8321
        %8504 = vmatprep.subr.mxu0 0.0
        %8505 = vmatpush1.msra.mxu0 %v8322
        %8506 = vmatprep.subr.mxu0 0.0
        %8507 = vmatpush1.msra.mxu0 %v8323
        %8508 = vmatprep.subr.mxu0 0.0
        %8509 = vmatpush1.msra.mxu0 %v8324
        %8510 = vmatprep.subr.mxu0 0.0
        %8511 = vmatpush1.msra.mxu0 %v8325
        %8512 = vmatprep.subr.mxu0 0.0
        %8513 = vmatpush1.msra.mxu0 %v8326
        %8514 = vmatprep.subr.mxu0 0.0
        %8515 = vmatpush1.msra.mxu0 %v8327
        %8516 = vmatprep.subr.mxu0 0.0
        %8517 = vmatpush1.msra.mxu0 %v8328
        %8518 = vmatprep.subr.mxu0 0.0
        %8519 = vmatpush1.msra.mxu0 %v8329
        %8520 = vmatprep.subr.mxu0 0.0
        %8521 = vmatpush1.msra.mxu0 %v8330
        %8522 = vmatprep.subr.mxu0 0.0
        %8523 = vmatpush1.msra.mxu0 %v8331
        %8524 = vmatprep.subr.mxu0 0.0
        %8525 = vmatpush1.msra.mxu0 %v8332
        %8526 = vmatprep.subr.mxu0 0.0
        %8527 = vmatpush1.msra.mxu0 %v8333
        %8528 = vmatprep.subr.mxu0 0.0
        %8529 = vmatpush1.msra.mxu0 %v8334
        %8530 = vmatprep.subr.mxu0 0.0
        %8531 = vmatpush1.msra.mxu0 %v8335
        %8532 = vmatprep.subr.mxu0 0.0
        %8533 = vmatpush1.msra.mxu0 %v8336
        %8534 = vmatprep.subr.mxu0 0.0
        %8535 = vmatpush1.msra.mxu0 %v8337
        %8536 = vmatprep.mubr.f32.mxu0 %v8184
        %8537 = vmatmul.mubr.f32.gmra.mrb[0].mxu0 %v8183
        %v8538 = vpop.f32.mrb[0].mxu0
        %v8539 = vadd.f32 %v8347, %v8538
        %v8540 = vpop.f32.mrb[0].mxu0
        %8541 = vmatprep.mubr.f32.mxu0 %v8187
        %8542 = vmatmul.mubr.f32.gmra.mrb[0].mxu0 %v8186
        %v8543 = vpop.f32.mrb[0].mxu0
        %v8544 = vadd.f32 %v8347, %v8543
        %v8545 = vpop.f32.mrb[0].mxu0
        %8546 = vmatprep.mubr.f32.mxu0 %v8190
        %8547 = vmatmul.mubr.f32.gmra.mrb[0].mxu0 %v8189
        %v8548 = vpop.f32.mrb[0].mxu0
        %v8549 = vadd.f32 %v8347, %v8548
        %v8550 = vpop.f32.mrb[0].mxu0
        %8551 = vmatprep.mubr.f32.mxu0 %v8193
        %8552 = vmatmul.mubr.f32.gmra.mrb[0].mxu0 %v8192
        %v8553 = vpop.f32.mrb[0].mxu0
        %v8554 = vadd.f32 %v8347, %v8553
        %v8555 = vpop.f32.mrb[0].mxu0
        %8556 = vmatprep.mubr.f32.mxu0 %v8196
        %8557 = vmatmul.mubr.f32.gmra.mrb[0].mxu0 %v8195
        %v8558 = vpop.f32.mrb[0].mxu0
        %v8559 = vadd.f32 %v8347, %v8558
        %v8560 = vpop.f32.mrb[0].mxu0
        %8561 = vmatprep.mubr.f32.mxu0 %v8199
        %8562 = vmatmul.mubr.f32.gmra.mrb[0].mxu0 %v8198
        %v8563 = vpop.f32.mrb[0].mxu0
        %v8564 = vadd.f32 %v8347, %v8563
        %v8565 = vpop.f32.mrb[0].mxu0
        %8566 = vmatprep.mubr.f32.mxu0 %v8202
        %8567 = vmatmul.mubr.f32.gmra.mrb[0].mxu0 %v8201
        %v8568 = vpop.f32.mrb[0].mxu0
        %v8569 = vadd.f32 %v8347, %v8568
        %v8570 = vpop.f32.mrb[0].mxu0
        %8571 = vmatprep.mubr.f32.mxu0 %v8205
        %8572 = vmatmul.mubr.f32.gmra.mrb[0].mxu0 %v8204
        %v8573 = vpop.f32.mrb[0].mxu0
        %v8574 = vadd.f32 %v8347, %v8573
        %v8575 = vpop.f32.mrb[0].mxu0
        %8576 = vmatprep.mubr.f32.mxu0 %v8208
        %8577 = vmatmul.mubr.f32.gmra.mrb[0].mxu0 %v8207
        %v8578 = vpop.f32.mrb[0].mxu0
        %v8579 = vadd.f32 %v8347, %v8578
        %v8580 = vpop.f32.mrb[0].mxu0
        %8581 = vmatprep.mubr.f32.mxu0 %v8211
        %8582 = vmatmul.mubr.f32.gmra.mrb[0].mxu0 %v8210
        %v8583 = vpop.f32.mrb[0].mxu0
        %v8584 = vadd.f32 %v8347, %v8583
        %v8585 = vpop.f32.mrb[0].mxu0
        %8586 = vmatprep.mubr.f32.mxu0 %v8214
        %8587 = vmatmul.mubr.f32.gmra.mrb[0].mxu0 %v8213
        %v8588 = vpop.f32.mrb[0].mxu0
        %v8589 = vadd.f32 %v8347, %v8588
        %v8590 = vpop.f32.mrb[0].mxu0
        %8591 = vmatprep.mubr.f32.mxu0 %v8217
        %8592 = vmatmul.mubr.f32.gmra.mrb[0].mxu0 %v8216
        %v8593 = vpop.f32.mrb[0].mxu0
        %v8594 = vadd.f32 %v8347, %v8593
        %v8595 = vpop.f32.mrb[0].mxu0
        %8596 = vmatprep.mubr.f32.mxu0 %v8220
        %8597 = vmatmul.mubr.f32.gmra.mrb[0].mxu0 %v8219
        %v8598 = vpop.f32.mrb[0].mxu0
        %v8599 = vadd.f32 %v8347, %v8598
        %v8600 = vpop.f32.mrb[0].mxu0
        %8601 = vmatprep.mubr.f32.mxu0 %v8223
        %8602 = vmatmul.mubr.f32.gmra.mrb[0].mxu0 %v8222
        %v8603 = vpop.f32.mrb[0].mxu0
        %v8604 = vadd.f32 %v8347, %v8603
        %v8605 = vpop.f32.mrb[0].mxu0
        %8606 = vmatprep.mubr.f32.mxu0 %v8226
        %8607 = vmatmul.mubr.f32.gmra.mrb[0].mxu0 %v8225
        %v8608 = vpop.f32.mrb[0].mxu0
        %v8609 = vadd.f32 %v8347, %v8608
        %v8610 = vpop.f32.mrb[0].mxu0
        %8611 = vmatprep.mubr.f32.mxu0 %v8229
        %8612 = vmatmul.mubr.f32.gmra.mrb[0].mxu0 %v8228
        %v8613 = vpop.f32.mrb[0].mxu0
        %v8614 = vadd.f32 %v8347, %v8613
        %v8615 = vpop.f32.mrb[0].mxu0
        %8616 = vmatprep.mubr.f32.mxu0 %v8232
        %8617 = vmatmul.mubr.f32.gmra.mrb[0].mxu0 %v8231
        %v8618 = vpop.f32.mrb[0].mxu0
        %v8619 = vadd.f32 %v8347, %v8618
        %v8620 = vpop.f32.mrb[0].mxu0
        %8621 = vmatprep.mubr.f32.mxu0 %v8235
        %8622 = vmatmul.mubr.f32.gmra.mrb[0].mxu0 %v8234
        %v8623 = vpop.f32.mrb[0].mxu0
        %v8624 = vadd.f32 %v8347, %v8623
        %v8625 = vpop.f32.mrb[0].mxu0
        %8626 = vmatprep.mubr.f32.mxu0 %v8238
        %8627 = vmatmul.mubr.f32.gmra.mrb[0].mxu0 %v8237
        %v8628 = vpop.f32.mrb[0].mxu0
        %v8629 = vadd.f32 %v8347, %v8628
        %v8630 = vpop.f32.mrb[0].mxu0
        %8631 = vmatprep.mubr.f32.mxu0 %v8241
        %8632 = vmatmul.mubr.f32.gmra.mrb[0].mxu0 %v8240
        %v8633 = vpop.f32.mrb[0].mxu0
        %v8634 = vadd.f32 %v8347, %v8633
        %v8635 = vpop.f32.mrb[0].mxu0
        %8636 = vmatprep.mubr.f32.mxu0 %v8244
        %8637 = vmatmul.mubr.f32.gmra.mrb[0].mxu0 %v8243
        %v8638 = vpop.f32.mrb[0].mxu0
        %v8639 = vadd.f32 %v8347, %v8638
        %v8640 = vpop.f32.mrb[0].mxu0
        %8641 = vmatprep.mubr.f32.mxu0 %v8247
        %8642 = vmatmul.mubr.f32.gmra.mrb[0].mxu0 %v8246
        %v8643 = vpop.f32.mrb[0].mxu0
        %v8644 = vadd.f32 %v8347, %v8643
        %v8645 = vpop.f32.mrb[0].mxu0
        %8646 = vmatprep.mubr.f32.mxu0 %v8250
        %8647 = vmatmul.mubr.f32.gmra.mrb[0].mxu0 %v8249
        %v8648 = vpop.f32.mrb[0].mxu0
        %v8649 = vadd.f32 %v8347, %v8648
        %v8650 = vpop.f32.mrb[0].mxu0
        %8651 = vmatprep.mubr.f32.mxu0 %v8253
        %8652 = vmatmul.mubr.f32.gmra.mrb[0].mxu0 %v8252
        %v8653 = vpop.f32.mrb[0].mxu0
        %v8654 = vadd.f32 %v8347, %v8653
        %v8655 = vpop.f32.mrb[0].mxu0
        %8656 = vmatprep.mubr.f32.mxu0 %v8256
        %8657 = vmatmul.mubr.f32.gmra.mrb[0].mxu0 %v8255
        %v8658 = vpop.f32.mrb[0].mxu0
        %v8659 = vadd.f32 %v8347, %v8658
        %v8660 = vpop.f32.mrb[0].mxu0
        %8661 = vmatprep.mubr.f32.mxu0 %v8259
        %8662 = vmatmul.mubr.f32.gmra.mrb[0].mxu0 %v8258
        %v8663 = vpop.f32.mrb[0].mxu0
        %v8664 = vadd.f32 %v8347, %v8663
        %v8665 = vpop.f32.mrb[0].mxu0
        %8666 = vmatprep.mubr.f32.mxu0 %v8262
        %8667 = vmatmul.mubr.f32.gmra.mrb[0].mxu0 %v8261
        %v8668 = vpop.f32.mrb[0].mxu0
        %v8669 = vadd.f32 %v8347, %v8668
        %v8670 = vpop.f32.mrb[0].mxu0
        %8671 = vmatprep.mubr.f32.mxu0 %v8265
        %8672 = vmatmul.mubr.f32.gmra.mrb[0].mxu0 %v8264
        %v8673 = vpop.f32.mrb[0].mxu0
        %v8674 = vadd.f32 %v8347, %v8673
        %v8675 = vpop.f32.mrb[0].mxu0
        %8676 = vmatprep.mubr.f32.mxu0 %v8268
        %8677 = vmatmul.mubr.f32.gmra.mrb[0].mxu0 %v8267
        %v8678 = vpop.f32.mrb[0].mxu0
        %v8679 = vadd.f32 %v8347, %v8678
        %v8680 = vpop.f32.mrb[0].mxu0
        %8681 = vmatprep.mubr.f32.mxu0 %v8271
        %8682 = vmatmul.mubr.f32.gmra.mrb[0].mxu0 %v8270
        %v8683 = vpop.f32.mrb[0].mxu0
        %v8684 = vadd.f32 %v8347, %v8683
        %v8685 = vpop.f32.mrb[0].mxu0
        %8686 = vmatprep.mubr.f32.mxu0 %v8274
        %8687 = vmatmul.mubr.f32.gmra.mrb[0].mxu0 %v8273
        %v8688 = vpop.f32.mrb[0].mxu0
        %v8689 = vadd.f32 %v8347, %v8688
        %v8690 = vpop.f32.mrb[0].mxu0
        %8691 = vmatprep.mubr.f32.mxu0 %v8277
        %8692 = vmatmul.mubr.f32.gmra.mrb[0].mxu0 %v8276
        %v8693 = vpop.f32.mrb[0].mxu0
        %v8694 = vadd.f32 %v8347, %v8693
        %v8695 = vpop.f32.mrb[0].mxu0
        %8696 = vmatprep.mubr.f32.mxu0 %v8280
        %8697 = vmatmul.mubr.f32.gmra.mrb[0].mxu0 %v8279
        %v8698 = vpop.f32.mrb[0].mxu0
        %v8699 = vadd.f32 %v8347, %v8698
        %v8700 = vpop.f32.mrb[0].mxu0
        %8701 = vmatprep.mubr.f32.mxu0 %v8283
        %8702 = vmatmul.mubr.f32.gmra.mrb[0].mxu0 %v8282
        %v8703 = vpop.f32.mrb[0].mxu0
        %v8704 = vadd.f32 %v8347, %v8703
        %v8705 = vpop.f32.mrb[0].mxu0
        %8706 = vmatprep.mubr.f32.mxu0 %v8286
        %8707 = vmatmul.mubr.f32.gmra.mrb[0].mxu0 %v8285
        %v8708 = vpop.f32.mrb[0].mxu0
        %v8709 = vadd.f32 %v8347, %v8708
        %v8710 = vpop.f32.mrb[0].mxu0
        %8711 = vmatprep.mubr.f32.mxu0 %v8289
        %8712 = vmatmul.mubr.f32.gmra.mrb[0].mxu0 %v8288
        %v8713 = vpop.f32.mrb[0].mxu0
        %v8714 = vadd.f32 %v8347, %v8713
        %v8715 = vpop.f32.mrb[0].mxu0
        %8716 = vmatprep.mubr.f32.mxu0 %v8292
        %8717 = vmatmul.mubr.f32.gmra.mrb[0].mxu0 %v8291
        %v8718 = vpop.f32.mrb[0].mxu0
        %v8719 = vadd.f32 %v8347, %v8718
        %v8720 = vpop.f32.mrb[0].mxu0
        %8721 = vmatprep.mubr.f32.mxu0 %v8295
        %8722 = vmatmul.mubr.f32.gmra.mrb[0].mxu0 %v8294
        %v8723 = vpop.f32.mrb[0].mxu0
        %v8724 = vadd.f32 %v8347, %v8723
        %v8725 = vpop.f32.mrb[0].mxu0
        %8726 = vmatprep.mubr.f32.mxu0 %v8298
        %8727 = vmatmul.mubr.f32.gmra.mrb[0].mxu0 %v8297
        %v8728 = vpop.f32.mrb[0].mxu0
        %v8729 = vadd.f32 %v8347, %v8728
        %v8730 = vpop.f32.mrb[0].mxu0
        %8731 = vmatprep.mubr.f32.mxu0 %v8301
        %8732 = vmatmul.mubr.f32.gmra.mrb[0].mxu0 %v8300
        %v8733 = vpop.f32.mrb[0].mxu0
        %v8734 = vadd.f32 %v8347, %v8733
        %v8735 = vpop.f32.mrb[0].mxu0
        %8736 = vmatprep.mubr.f32.mxu0 %v8304
        %8737 = vmatmul.mubr.f32.gmra.mrb[0].mxu0 %v8303
        %v8738 = vpop.f32.mrb[0].mxu0
        %v8739 = vadd.f32 %v8347, %v8738
        %v8740 = vpop.f32.mrb[0].mxu0
        %8741 = vdwg.mxu0
        %8742 = vmatprep.subr.mxu0 0.0
        %8743 = vmatpush1.msra.mxu0 %v8338
        %8744 = vmatprep.subr.mxu0 0.0
        %8745 = vmatpush1.msra.mxu0 %v8339
        %8746 = vmatprep.subr.mxu0 0.0
        %8747 = vmatpush1.msra.mxu0 %v8340
        %8748 = vmatprep.subr.mxu0 0.0
        %8749 = vmatpush1.msra.mxu0 %v8341
        %8750 = vmatprep.subr.mxu0 0.0
        %8751 = vmatpush1.msra.mxu0 0.0
        %8752 = vmatprep.subr.mxu0 0.0
        %8753 = vmatpush1.msra.mxu0 0.0
        %8754 = vmatprep.subr.mxu0 0.0
        %8755 = vmatpush1.msra.mxu0 0.0
        %8756 = vmatprep.subr.mxu0 0.0
        %8757 = vmatpush1.msra.mxu0 0.0
        %8758 = vmatprep.subr.mxu0 0.0
        %8759 = vmatpush1.msra.mxu0 0.0
        %8760 = vmatprep.subr.mxu0 0.0
        %8761 = vmatpush1.msra.mxu0 0.0
        %8762 = vmatprep.subr.mxu0 0.0
        %8763 = vmatpush1.msra.mxu0 0.0
        %8764 = vmatprep.subr.mxu0 0.0
        %8765 = vmatpush1.msra.mxu0 0.0
        %8766 = vmatprep.subr.mxu0 0.0
        %8767 = vmatpush1.msra.mxu0 0.0
        %8768 = vmatprep.subr.mxu0 0.0
        %8769 = vmatpush1.msra.mxu0 0.0
        %8770 = vmatprep.subr.mxu0 0.0
        %8771 = vmatpush1.msra.mxu0 0.0
        %8772 = vmatprep.subr.mxu0 0.0
        %8773 = vmatpush1.msra.mxu0 0.0
        %8774 = vmatprep.subr.mxu0 0.0
        %8775 = vmatpush1.msra.mxu0 0.0
        %8776 = vmatprep.subr.mxu0 0.0
        %8777 = vmatpush1.msra.mxu0 0.0
        %8778 = vmatprep.subr.mxu0 0.0
        %8779 = vmatpush1.msra.mxu0 0.0
        %8780 = vmatprep.subr.mxu0 0.0
        %8781 = vmatpush1.msra.mxu0 0.0
        %8782 = vmatprep.subr.mxu0 0.0
        %8783 = vmatpush1.msra.mxu0 0.0
        %8784 = vmatprep.subr.mxu0 0.0
        %8785 = vmatpush1.msra.mxu0 0.0
        %8786 = vmatprep.subr.mxu0 0.0
        %8787 = vmatpush1.msra.mxu0 0.0
        %8788 = vmatprep.subr.mxu0 0.0
        %8789 = vmatpush1.msra.mxu0 0.0
        %8790 = vmatprep.subr.mxu0 0.0
        %8791 = vmatpush1.msra.mxu0 0.0
        %8792 = vmatprep.subr.mxu0 0.0
        %8793 = vmatpush1.msra.mxu0 0.0
        %8794 = vmatprep.subr.mxu0 0.0
        %8795 = vmatpush1.msra.mxu0 0.0
        %8796 = vmatprep.subr.mxu0 0.0
        %8797 = vmatpush1.msra.mxu0 0.0
        %8798 = vmatprep.subr.mxu0 0.0
        %8799 = vmatpush1.msra.mxu0 0.0
        %8800 = vmatprep.subr.mxu0 0.0
        %8801 = vmatpush1.msra.mxu0 0.0
        %8802 = vmatprep.subr.mxu0 0.0
        %8803 = vmatpush1.msra.mxu0 0.0
        %8804 = vmatprep.subr.mxu0 0.0
        %8805 = vmatpush1.msra.mxu0 0.0
        %8806 = vmatprep.mubr.f32.mxu0 0.0
        %8807 = vmatmul.mubr.f32.gmra.mrb[0].mxu0 %v8350
        %v8808 = vpop.f32.mrb[0].mxu0
        %v8809 = vadd.f32 %v8539, %v8808
        %v8810 = vpop.f32.mrb[0].mxu0
        %8811 = vmatprep.mubr.f32.mxu0 0.0
        %8812 = vmatmul.mubr.f32.gmra.mrb[0].mxu0 %v8353
        %v8813 = vpop.f32.mrb[0].mxu0
        %v8814 = vadd.f32 %v8544, %v8813
        %v8815 = vpop.f32.mrb[0].mxu0
        %8816 = vmatprep.mubr.f32.mxu0 0.0
        %8817 = vmatmul.mubr.f32.gmra.mrb[0].mxu0 %v8356
        %v8818 = vpop.f32.mrb[0].mxu0
        %v8819 = vadd.f32 %v8549, %v8818
        %v8820 = vpop.f32.mrb[0].mxu0
        %8821 = vmatprep.mubr.f32.mxu0 0.0
        %8822 = vmatmul.mubr.f32.gmra.mrb[0].mxu0 %v8359
        %v8823 = vpop.f32.mrb[0].mxu0
        %v8824 = vadd.f32 %v8554, %v8823
        %v8825 = vpop.f32.mrb[0].mxu0
        %8826 = vmatprep.mubr.f32.mxu0 0.0
        %8827 = vmatmul.mubr.f32.gmra.mrb[0].mxu0 %v8362
        %v8828 = vpop.f32.mrb[0].mxu0
        %v8829 = vadd.f32 %v8559, %v8828
        %v8830 = vpop.f32.mrb[0].mxu0
        %8831 = vmatprep.mubr.f32.mxu0 0.0
        %8832 = vmatmul.mubr.f32.gmra.mrb[0].mxu0 %v8365
        %v8833 = vpop.f32.mrb[0].mxu0
        %v8834 = vadd.f32 %v8564, %v8833
        %v8835 = vpop.f32.mrb[0].mxu0
        %8836 = vmatprep.mubr.f32.mxu0 0.0
        %8837 = vmatmul.mubr.f32.gmra.mrb[0].mxu0 %v8368
        %v8838 = vpop.f32.mrb[0].mxu0
        %v8839 = vadd.f32 %v8569, %v8838
        %v8840 = vpop.f32.mrb[0].mxu0
        %8841 = vmatprep.mubr.f32.mxu0 0.0
        %8842 = vmatmul.mubr.f32.gmra.mrb[0].mxu0 %v8371
        %v8843 = vpop.f32.mrb[0].mxu0
        %v8844 = vadd.f32 %v8574, %v8843
        %v8845 = vpop.f32.mrb[0].mxu0
        %8846 = vmatprep.mubr.f32.mxu0 0.0
        %8847 = vmatmul.mubr.f32.gmra.mrb[0].mxu0 %v8374
        %v8848 = vpop.f32.mrb[0].mxu0
        %v8849 = vadd.f32 %v8579, %v8848
        %v8850 = vpop.f32.mrb[0].mxu0
        %8851 = vmatprep.mubr.f32.mxu0 0.0
        %8852 = vmatmul.mubr.f32.gmra.mrb[0].mxu0 %v8377
        %v8853 = vpop.f32.mrb[0].mxu0
        %v8854 = vadd.f32 %v8584, %v8853
        %v8855 = vpop.f32.mrb[0].mxu0
        %8856 = vmatprep.mubr.f32.mxu0 0.0
        %8857 = vmatmul.mubr.f32.gmra.mrb[0].mxu0 %v8380
        %v8858 = vpop.f32.mrb[0].mxu0
        %v8859 = vadd.f32 %v8589, %v8858
        %v8860 = vpop.f32.mrb[0].mxu0
        %8861 = vmatprep.mubr.f32.mxu0 0.0
        %8862 = vmatmul.mubr.f32.gmra.mrb[0].mxu0 %v8383
        %v8863 = vpop.f32.mrb[0].mxu0
        %v8864 = vadd.f32 %v8594, %v8863
        %v8865 = vpop.f32.mrb[0].mxu0
        %8866 = vmatprep.mubr.f32.mxu0 0.0
        %8867 = vmatmul.mubr.f32.gmra.mrb[0].mxu0 %v8386
        %v8868 = vpop.f32.mrb[0].mxu0
        %v8869 = vadd.f32 %v8599, %v8868
        %v8870 = vpop.f32.mrb[0].mxu0
        %8871 = vmatprep.mubr.f32.mxu0 0.0
        %8872 = vmatmul.mubr.f32.gmra.mrb[0].mxu0 %v8389
        %v8873 = vpop.f32.mrb[0].mxu0
        %v8874 = vadd.f32 %v8604, %v8873
        %v8875 = vpop.f32.mrb[0].mxu0
        %8876 = vmatprep.mubr.f32.mxu0 0.0
        %8877 = vmatmul.mubr.f32.gmra.mrb[0].mxu0 %v8392
        %v8878 = vpop.f32.mrb[0].mxu0
        %v8879 = vadd.f32 %v8609, %v8878
        %v8880 = vpop.f32.mrb[0].mxu0
        %8881 = vmatprep.mubr.f32.mxu0 0.0
        %8882 = vmatmul.mubr.f32.gmra.mrb[0].mxu0 %v8395
        %v8883 = vpop.f32.mrb[0].mxu0
        %v8884 = vadd.f32 %v8614, %v8883
        %v8885 = vpop.f32.mrb[0].mxu0
        %8886 = vmatprep.mubr.f32.mxu0 0.0
        %8887 = vmatmul.mubr.f32.gmra.mrb[0].mxu0 %v8398
        %v8888 = vpop.f32.mrb[0].mxu0
        %v8889 = vadd.f32 %v8619, %v8888
        %v8890 = vpop.f32.mrb[0].mxu0
        %8891 = vmatprep.mubr.f32.mxu0 0.0
        %8892 = vmatmul.mubr.f32.gmra.mrb[0].mxu0 %v8401
        %v8893 = vpop.f32.mrb[0].mxu0
        %v8894 = vadd.f32 %v8624, %v8893
        %v8895 = vpop.f32.mrb[0].mxu0
        %8896 = vmatprep.mubr.f32.mxu0 0.0
        %8897 = vmatmul.mubr.f32.gmra.mrb[0].mxu0 %v8404
        %v8898 = vpop.f32.mrb[0].mxu0
        %v8899 = vadd.f32 %v8629, %v8898
        %v8900 = vpop.f32.mrb[0].mxu0
        %8901 = vmatprep.mubr.f32.mxu0 0.0
        %8902 = vmatmul.mubr.f32.gmra.mrb[0].mxu0 %v8407
        %v8903 = vpop.f32.mrb[0].mxu0
        %v8904 = vadd.f32 %v8634, %v8903
        %v8905 = vpop.f32.mrb[0].mxu0
        %8906 = vmatprep.mubr.f32.mxu0 0.0
        %8907 = vmatmul.mubr.f32.gmra.mrb[0].mxu0 %v8410
        %v8908 = vpop.f32.mrb[0].mxu0
        %v8909 = vadd.f32 %v8639, %v8908
        %v8910 = vpop.f32.mrb[0].mxu0
        %8911 = vmatprep.mubr.f32.mxu0 0.0
        %8912 = vmatmul.mubr.f32.gmra.mrb[0].mxu0 %v8413
        %v8913 = vpop.f32.mrb[0].mxu0
        %v8914 = vadd.f32 %v8644, %v8913
        %v8915 = vpop.f32.mrb[0].mxu0
        %8916 = vmatprep.mubr.f32.mxu0 0.0
        %8917 = vmatmul.mubr.f32.gmra.mrb[0].mxu0 %v8416
        %v8918 = vpop.f32.mrb[0].mxu0
        %v8919 = vadd.f32 %v8649, %v8918
        %v8920 = vpop.f32.mrb[0].mxu0
        %8921 = vmatprep.mubr.f32.mxu0 0.0
        %8922 = vmatmul.mubr.f32.gmra.mrb[0].mxu0 %v8419
        %v8923 = vpop.f32.mrb[0].mxu0
        %v8924 = vadd.f32 %v8654, %v8923
        %v8925 = vpop.f32.mrb[0].mxu0
        %8926 = vmatprep.mubr.f32.mxu0 0.0
        %8927 = vmatmul.mubr.f32.gmra.mrb[0].mxu0 %v8422
        %v8928 = vpop.f32.mrb[0].mxu0
        %v8929 = vadd.f32 %v8659, %v8928
        %v8930 = vpop.f32.mrb[0].mxu0
        %8931 = vmatprep.mubr.f32.mxu0 0.0
        %8932 = vmatmul.mubr.f32.gmra.mrb[0].mxu0 %v8425
        %v8933 = vpop.f32.mrb[0].mxu0
        %v8934 = vadd.f32 %v8664, %v8933
        %v8935 = vpop.f32.mrb[0].mxu0
        %8936 = vmatprep.mubr.f32.mxu0 0.0
        %8937 = vmatmul.mubr.f32.gmra.mrb[0].mxu0 %v8428
        %v8938 = vpop.f32.mrb[0].mxu0
        %v8939 = vadd.f32 %v8669, %v8938
        %v8940 = vpop.f32.mrb[0].mxu0
        %8941 = vmatprep.mubr.f32.mxu0 0.0
        %8942 = vmatmul.mubr.f32.gmra.mrb[0].mxu0 %v8431
        %v8943 = vpop.f32.mrb[0].mxu0
        %v8944 = vadd.f32 %v8674, %v8943
        %v8945 = vpop.f32.mrb[0].mxu0
        %8946 = vmatprep.mubr.f32.mxu0 0.0
        %8947 = vmatmul.mubr.f32.gmra.mrb[0].mxu0 %v8434
        %v8948 = vpop.f32.mrb[0].mxu0
        %v8949 = vadd.f32 %v8679, %v8948
        %v8950 = vpop.f32.mrb[0].mxu0
        %8951 = vmatprep.mubr.f32.mxu0 0.0
        %8952 = vmatmul.mubr.f32.gmra.mrb[0].mxu0 %v8437
        %v8953 = vpop.f32.mrb[0].mxu0
        %v8954 = vadd.f32 %v8684, %v8953
        %v8955 = vpop.f32.mrb[0].mxu0
        %8956 = vmatprep.mubr.f32.mxu0 0.0
        %8957 = vmatmul.mubr.f32.gmra.mrb[0].mxu0 %v8440
        %v8958 = vpop.f32.mrb[0].mxu0
        %v8959 = vadd.f32 %v8689, %v8958
        %v8960 = vpop.f32.mrb[0].mxu0
        %8961 = vmatprep.mubr.f32.mxu0 0.0
        %8962 = vmatmul.mubr.f32.gmra.mrb[0].mxu0 %v8443
        %v8963 = vpop.f32.mrb[0].mxu0
        %v8964 = vadd.f32 %v8694, %v8963
        %v8965 = vpop.f32.mrb[0].mxu0
        %8966 = vmatprep.mubr.f32.mxu0 0.0
        %8967 = vmatmul.mubr.f32.gmra.mrb[0].mxu0 %v8446
        %v8968 = vpop.f32.mrb[0].mxu0
        %v8969 = vadd.f32 %v8699, %v8968
        %v8970 = vpop.f32.mrb[0].mxu0
        %8971 = vmatprep.mubr.f32.mxu0 0.0
        %8972 = vmatmul.mubr.f32.gmra.mrb[0].mxu0 %v8449
        %v8973 = vpop.f32.mrb[0].mxu0
        %v8974 = vadd.f32 %v8704, %v8973
        %v8975 = vpop.f32.mrb[0].mxu0
        %8976 = vmatprep.mubr.f32.mxu0 0.0
        %8977 = vmatmul.mubr.f32.gmra.mrb[0].mxu0 %v8452
        %v8978 = vpop.f32.mrb[0].mxu0
        %v8979 = vadd.f32 %v8709, %v8978
        %v8980 = vpop.f32.mrb[0].mxu0
        %8981 = vmatprep.mubr.f32.mxu0 0.0
        %8982 = vmatmul.mubr.f32.gmra.mrb[0].mxu0 %v8455
        %v8983 = vpop.f32.mrb[0].mxu0
        %v8984 = vadd.f32 %v8714, %v8983
        %v8985 = vpop.f32.mrb[0].mxu0
        %8986 = vmatprep.mubr.f32.mxu0 0.0
        %8987 = vmatmul.mubr.f32.gmra.mrb[0].mxu0 %v8458
        %v8988 = vpop.f32.mrb[0].mxu0
        %v8989 = vadd.f32 %v8719, %v8988
        %v8990 = vpop.f32.mrb[0].mxu0
        %8991 = vmatprep.mubr.f32.mxu0 0.0
        %8992 = vmatmul.mubr.f32.gmra.mrb[0].mxu0 %v8461
        %v8993 = vpop.f32.mrb[0].mxu0
        %v8994 = vadd.f32 %v8724, %v8993
        %v8995 = vpop.f32.mrb[0].mxu0
        %8996 = vmatprep.mubr.f32.mxu0 0.0
        %8997 = vmatmul.mubr.f32.gmra.mrb[0].mxu0 %v8464
        %v8998 = vpop.f32.mrb[0].mxu0
        %v8999 = vadd.f32 %v8729, %v8998
        %v9000 = vpop.f32.mrb[0].mxu0
        %9001 = vmatprep.mubr.f32.mxu0 0.0
        %9002 = vmatmul.mubr.f32.gmra.mrb[0].mxu0 %v8467
        %v9003 = vpop.f32.mrb[0].mxu0
        %v9004 = vadd.f32 %v8734, %v9003
        %v9005 = vpop.f32.mrb[0].mxu0
        %9006 = vmatprep.mubr.f32.mxu0 0.0
        %9007 = vmatmul.mubr.f32.gmra.mrb[0].mxu0 %v8470
        %v9008 = vpop.f32.mrb[0].mxu0
        %v9009 = vadd.f32 %v8739, %v9008
        %v9010 = vpop.f32.mrb[0].mxu0
        %9011 = vdwg.mxu0
        %vm9012 = vcmp.ge.f32.partialorder %v8809, 0.0
        %vm9013 = vcmp.ge.f32.partialorder %v8814, 0.0
        %vm9014 = vcmp.ge.f32.partialorder %v8819, 0.0
        %vm9015 = vcmp.ge.f32.partialorder %v8824, 0.0
        %vm9016 = vcmp.ge.f32.partialorder %v8829, 0.0
        %vm9017 = vcmp.ge.f32.partialorder %v8834, 0.0
        %vm9018 = vcmp.ge.f32.partialorder %v8839, 0.0
        %vm9019 = vcmp.ge.f32.partialorder %v8844, 0.0
        %vm9020 = vcmp.ge.f32.partialorder %v8849, 0.0
        %vm9021 = vcmp.ge.f32.partialorder %v8854, 0.0
        %vm9022 = vcmp.ge.f32.partialorder %v8859, 0.0
        %vm9023 = vcmp.ge.f32.partialorder %v8864, 0.0
        %vm9024 = vcmp.ge.f32.partialorder %v8869, 0.0
        %vm9025 = vcmp.ge.f32.partialorder %v8874, 0.0
        %vm9026 = vcmp.ge.f32.partialorder %v8879, 0.0
        %vm9027 = vcmp.ge.f32.partialorder %v8884, 0.0
        %vm9028 = vcmp.ge.f32.partialorder %v8889, 0.0
        %vm9029 = vcmp.ge.f32.partialorder %v8894, 0.0
        %vm9030 = vcmp.ge.f32.partialorder %v8899, 0.0
        %vm9031 = vcmp.ge.f32.partialorder %v8904, 0.0
        %vm9032 = vcmp.ge.f32.partialorder %v8909, 0.0
        %vm9033 = vcmp.ge.f32.partialorder %v8914, 0.0
        %vm9034 = vcmp.ge.f32.partialorder %v8919, 0.0
        %vm9035 = vcmp.ge.f32.partialorder %v8924, 0.0
        %vm9036 = vcmp.ge.f32.partialorder %v8929, 0.0
        %vm9037 = vcmp.ge.f32.partialorder %v8934, 0.0
        %vm9038 = vcmp.ge.f32.partialorder %v8939, 0.0
        %vm9039 = vcmp.ge.f32.partialorder %v8944, 0.0
        %vm9040 = vcmp.ge.f32.partialorder %v8949, 0.0
        %vm9041 = vcmp.ge.f32.partialorder %v8954, 0.0
        %vm9042 = vcmp.ge.f32.partialorder %v8959, 0.0
        %vm9043 = vcmp.ge.f32.partialorder %v8964, 0.0
        %vm9044 = vcmp.ge.f32.partialorder %v8969, 0.0
        %vm9045 = vcmp.ge.f32.partialorder %v8974, 0.0
        %vm9046 = vcmp.ge.f32.partialorder %v8979, 0.0
        %vm9047 = vcmp.ge.f32.partialorder %v8984, 0.0
        %vm9048 = vcmp.ge.f32.partialorder %v8989, 0.0
        %vm9049 = vcmp.ge.f32.partialorder %v8994, 0.0
        %vm9050 = vcmp.ge.f32.partialorder %v8999, 0.0
        %vm9051 = vcmp.ge.f32.partialorder %v9004, 0.0
        %vm9052 = vcmp.ge.f32.partialorder %v9009, 0.0
        %v9053 = vstv %s376
        %v9054 = vmul.f32 %v9053, %v8809
        %v9055 = vmul.f32 %v9053, %v8814
        %v9056 = vmul.f32 %v9053, %v8819
        %v9057 = vmul.f32 %v9053, %v8824
        %v9058 = vmul.f32 %v9053, %v8829
        %v9059 = vmul.f32 %v9053, %v8834
        %v9060 = vmul.f32 %v9053, %v8839
        %v9061 = vmul.f32 %v9053, %v8844
        %v9062 = vmul.f32 %v9053, %v8849
        %v9063 = vmul.f32 %v9053, %v8854
        %v9064 = vmul.f32 %v9053, %v8859
        %v9065 = vmul.f32 %v9053, %v8864
        %v9066 = vmul.f32 %v9053, %v8869
        %v9067 = vmul.f32 %v9053, %v8874
        %v9068 = vmul.f32 %v9053, %v8879
        %v9069 = vmul.f32 %v9053, %v8884
        %v9070 = vmul.f32 %v9053, %v8889
        %v9071 = vmul.f32 %v9053, %v8894
        %v9072 = vmul.f32 %v9053, %v8899
        %v9073 = vmul.f32 %v9053, %v8904
        %v9074 = vmul.f32 %v9053, %v8909
        %v9075 = vmul.f32 %v9053, %v8914
        %v9076 = vmul.f32 %v9053, %v8919
        %v9077 = vmul.f32 %v9053, %v8924
        %v9078 = vmul.f32 %v9053, %v8929
        %v9079 = vmul.f32 %v9053, %v8934
        %v9080 = vmul.f32 %v9053, %v8939
        %v9081 = vmul.f32 %v9053, %v8944
        %v9082 = vmul.f32 %v9053, %v8949
        %v9083 = vmul.f32 %v9053, %v8954
        %v9084 = vmul.f32 %v9053, %v8959
        %v9085 = vmul.f32 %v9053, %v8964
        %v9086 = vmul.f32 %v9053, %v8969
        %v9087 = vmul.f32 %v9053, %v8974
        %v9088 = vmul.f32 %v9053, %v8979
        %v9089 = vmul.f32 %v9053, %v8984
        %v9090 = vmul.f32 %v9053, %v8989
        %v9091 = vmul.f32 %v9053, %v8994
        %v9092 = vmul.f32 %v9053, %v8999
        %v9093 = vmul.f32 %v9053, %v9004
        %v9094 = vmul.f32 %v9053, %v9009
        %v9095 = vsel %vm9012, %v8809, %v9054
        %v9096 = vsel %vm9013, %v8814, %v9055
        %v9097 = vsel %vm9014, %v8819, %v9056
        %v9098 = vsel %vm9015, %v8824, %v9057
        %v9099 = vsel %vm9016, %v8829, %v9058
        %v9100 = vsel %vm9017, %v8834, %v9059
        %v9101 = vsel %vm9018, %v8839, %v9060
        %v9102 = vsel %vm9019, %v8844, %v9061
        %v9103 = vsel %vm9020, %v8849, %v9062
        %v9104 = vsel %vm9021, %v8854, %v9063
        %v9105 = vsel %vm9022, %v8859, %v9064
        %v9106 = vsel %vm9023, %v8864, %v9065
        %v9107 = vsel %vm9024, %v8869, %v9066
        %v9108 = vsel %vm9025, %v8874, %v9067
        %v9109 = vsel %vm9026, %v8879, %v9068
        %v9110 = vsel %vm9027, %v8884, %v9069
        %v9111 = vsel %vm9028, %v8889, %v9070
        %v9112 = vsel %vm9029, %v8894, %v9071
        %v9113 = vsel %vm9030, %v8899, %v9072
        %v9114 = vsel %vm9031, %v8904, %v9073
        %v9115 = vsel %vm9032, %v8909, %v9074
        %v9116 = vsel %vm9033, %v8914, %v9075
        %v9117 = vsel %vm9034, %v8919, %v9076
        %v9118 = vsel %vm9035, %v8924, %v9077
        %v9119 = vsel %vm9036, %v8929, %v9078
        %v9120 = vsel %vm9037, %v8934, %v9079
        %v9121 = vsel %vm9038, %v8939, %v9080
        %v9122 = vsel %vm9039, %v8944, %v9081
        %v9123 = vsel %vm9040, %v8949, %v9082
        %v9124 = vsel %vm9041, %v8954, %v9083
        %v9125 = vsel %vm9042, %v8959, %v9084
        %v9126 = vsel %vm9043, %v8964, %v9085
        %v9127 = vsel %vm9044, %v8969, %v9086
        %v9128 = vsel %vm9045, %v8974, %v9087
        %v9129 = vsel %vm9046, %v8979, %v9088
        %v9130 = vsel %vm9047, %v8984, %v9089
        %v9131 = vsel %vm9048, %v8989, %v9090
        %v9132 = vsel %vm9049, %v8994, %v9091
        %v9133 = vsel %vm9050, %v8999, %v9092
        %v9134 = vsel %vm9051, %v9004, %v9093
        %v9135 = vsel %vm9052, %v9009, %v9094
        %v9136 = vld [vmem:[%s9] sm:$0x1]
        %v9138 = vlaneseq
        %v9139 = vshrl.u32 %v9138, 7
        %v9140 = vsub.s32 0, %v9139
        %v9141 = vrot.slane %v9136, %v9140
        %v9143 = vmul.f32 %v9095, %v9141
        %v9144 = vmul.f32 %v9096, %v9141
        %v9145 = vmul.f32 %v9097, %v9141
        %v9146 = vmul.f32 %v9098, %v9141
        %v9147 = vmul.f32 %v9099, %v9141
        %v9148 = vmul.f32 %v9100, %v9141
        %v9149 = vmul.f32 %v9101, %v9141
        %v9150 = vmul.f32 %v9102, %v9141
        %v9151 = vmul.f32 %v9103, %v9141
        %v9152 = vmul.f32 %v9104, %v9141
        %v9153 = vmul.f32 %v9105, %v9141
        %v9154 = vmul.f32 %v9106, %v9141
        %v9155 = vmul.f32 %v9107, %v9141
        %v9156 = vmul.f32 %v9108, %v9141
        %v9157 = vmul.f32 %v9109, %v9141
        %v9158 = vmul.f32 %v9110, %v9141
        %v9159 = vmul.f32 %v9111, %v9141
        %v9160 = vmul.f32 %v9112, %v9141
        %v9161 = vmul.f32 %v9113, %v9141
        %v9162 = vmul.f32 %v9114, %v9141
        %v9163 = vmul.f32 %v9115, %v9141
        %v9164 = vmul.f32 %v9116, %v9141
        %v9165 = vmul.f32 %v9117, %v9141
        %v9166 = vmul.f32 %v9118, %v9141
        %v9167 = vmul.f32 %v9119, %v9141
        %v9168 = vmul.f32 %v9120, %v9141
        %v9169 = vmul.f32 %v9121, %v9141
        %v9170 = vmul.f32 %v9122, %v9141
        %v9171 = vmul.f32 %v9123, %v9141
        %v9172 = vmul.f32 %v9124, %v9141
        %v9173 = vmul.f32 %v9125, %v9141
        %v9174 = vmul.f32 %v9126, %v9141
        %v9175 = vmul.f32 %v9127, %v9141
        %v9176 = vmul.f32 %v9128, %v9141
        %v9177 = vmul.f32 %v9129, %v9141
        %v9178 = vmul.f32 %v9130, %v9141
        %v9179 = vmul.f32 %v9131, %v9141
        %v9180 = vmul.f32 %v9132, %v9141
        %v9181 = vmul.f32 %v9133, %v9141
        %v9182 = vmul.f32 %v9134, %v9141
        %v9183 = vmul.f32 %v9135, %v9141
        %vm9184 = vcmask 523264
        %v9185 = vsel %vm9184, %v9143, 0.0
        %9186 = vadd.xlane.f32.xlu0 %v9185
        %v9187 = vpop.xlane.xlu0 %9186
        %v9188 = vsel %vm9184, %v9144, 0.0
        %9189 = vadd.xlane.f32.xlu0 %v9188
        %v9190 = vpop.xlane.xlu0 %9189
        %v9191 = vsel %vm9184, %v9145, 0.0
        %9192 = vadd.xlane.f32.xlu0 %v9191
        %v9193 = vpop.xlane.xlu0 %9192
        %v9194 = vsel %vm9184, %v9146, 0.0
        %9195 = vadd.xlane.f32.xlu0 %v9194
        %v9196 = vpop.xlane.xlu0 %9195
        %v9197 = vsel %vm9184, %v9147, 0.0
        %9198 = vadd.xlane.f32.xlu0 %v9197
        %v9199 = vpop.xlane.xlu0 %9198
        %v9200 = vsel %vm9184, %v9148, 0.0
        %9201 = vadd.xlane.f32.xlu0 %v9200
        %v9202 = vpop.xlane.xlu0 %9201
        %v9203 = vsel %vm9184, %v9149, 0.0
        %9204 = vadd.xlane.f32.xlu0 %v9203
        %v9205 = vpop.xlane.xlu0 %9204
        %v9206 = vsel %vm9184, %v9150, 0.0
        %9207 = vadd.xlane.f32.xlu0 %v9206
        %v9208 = vpop.xlane.xlu0 %9207
        %v9209 = vsel %vm9184, %v9151, 0.0
        %9210 = vadd.xlane.f32.xlu0 %v9209
        %v9211 = vpop.xlane.xlu0 %9210
        %v9212 = vsel %vm9184, %v9152, 0.0
        %9213 = vadd.xlane.f32.xlu0 %v9212
        %v9214 = vpop.xlane.xlu0 %9213
        %v9215 = vsel %vm9184, %v9153, 0.0
        %9216 = vadd.xlane.f32.xlu0 %v9215
        %v9217 = vpop.xlane.xlu0 %9216
        %v9218 = vsel %vm9184, %v9154, 0.0
        %9219 = vadd.xlane.f32.xlu0 %v9218
        %v9220 = vpop.xlane.xlu0 %9219
        %v9221 = vsel %vm9184, %v9155, 0.0
        %9222 = vadd.xlane.f32.xlu0 %v9221
        %v9223 = vpop.xlane.xlu0 %9222
        %v9224 = vsel %vm9184, %v9156, 0.0
        %9225 = vadd.xlane.f32.xlu0 %v9224
        %v9226 = vpop.xlane.xlu0 %9225
        %v9227 = vsel %vm9184, %v9157, 0.0
        %9228 = vadd.xlane.f32.xlu0 %v9227
        %v9229 = vpop.xlane.xlu0 %9228
        %v9230 = vsel %vm9184, %v9158, 0.0
        %9231 = vadd.xlane.f32.xlu0 %v9230
        %v9232 = vpop.xlane.xlu0 %9231
        %v9233 = vsel %vm9184, %v9159, 0.0
        %9234 = vadd.xlane.f32.xlu0 %v9233
        %v9235 = vpop.xlane.xlu0 %9234
        %v9236 = vsel %vm9184, %v9160, 0.0
        %9237 = vadd.xlane.f32.xlu0 %v9236
        %v9238 = vpop.xlane.xlu0 %9237
        %v9239 = vsel %vm9184, %v9161, 0.0
        %9240 = vadd.xlane.f32.xlu0 %v9239
        %v9241 = vpop.xlane.xlu0 %9240
        %v9242 = vsel %vm9184, %v9162, 0.0
        %9243 = vadd.xlane.f32.xlu0 %v9242
        %v9244 = vpop.xlane.xlu0 %9243
        %v9245 = vsel %vm9184, %v9163, 0.0
        %9246 = vadd.xlane.f32.xlu0 %v9245
        %v9247 = vpop.xlane.xlu0 %9246
        %v9248 = vsel %vm9184, %v9164, 0.0
        %9249 = vadd.xlane.f32.xlu0 %v9248
        %v9250 = vpop.xlane.xlu0 %9249
        %v9251 = vsel %vm9184, %v9165, 0.0
        %9252 = vadd.xlane.f32.xlu0 %v9251
        %v9253 = vpop.xlane.xlu0 %9252
        %v9254 = vsel %vm9184, %v9166, 0.0
        %9255 = vadd.xlane.f32.xlu0 %v9254
        %v9256 = vpop.xlane.xlu0 %9255
        %v9257 = vsel %vm9184, %v9167, 0.0
        %9258 = vadd.xlane.f32.xlu0 %v9257
        %v9259 = vpop.xlane.xlu0 %9258
        %v9260 = vsel %vm9184, %v9168, 0.0
        %9261 = vadd.xlane.f32.xlu0 %v9260
        %v9262 = vpop.xlane.xlu0 %9261
        %v9263 = vsel %vm9184, %v9169, 0.0
        %9264 = vadd.xlane.f32.xlu0 %v9263
        %v9265 = vpop.xlane.xlu0 %9264
        %v9266 = vsel %vm9184, %v9170, 0.0
        %9267 = vadd.xlane.f32.xlu0 %v9266
        %v9268 = vpop.xlane.xlu0 %9267
        %v9269 = vsel %vm9184, %v9171, 0.0
        %9270 = vadd.xlane.f32.xlu0 %v9269
        %v9271 = vpop.xlane.xlu0 %9270
        %v9272 = vsel %vm9184, %v9172, 0.0
        %9273 = vadd.xlane.f32.xlu0 %v9272
        %v9274 = vpop.xlane.xlu0 %9273
        %v9275 = vsel %vm9184, %v9173, 0.0
        %9276 = vadd.xlane.f32.xlu0 %v9275
        %v9277 = vpop.xlane.xlu0 %9276
        %v9278 = vsel %vm9184, %v9174, 0.0
        %9279 = vadd.xlane.f32.xlu0 %v9278
        %v9280 = vpop.xlane.xlu0 %9279
        %v9281 = vsel %vm9184, %v9175, 0.0
        %9282 = vadd.xlane.f32.xlu0 %v9281
        %v9283 = vpop.xlane.xlu0 %9282
        %v9284 = vsel %vm9184, %v9176, 0.0
        %9285 = vadd.xlane.f32.xlu0 %v9284
        %v9286 = vpop.xlane.xlu0 %9285
        %v9287 = vsel %vm9184, %v9177, 0.0
        %9288 = vadd.xlane.f32.xlu0 %v9287
        %v9289 = vpop.xlane.xlu0 %9288
        %v9290 = vsel %vm9184, %v9178, 0.0
        %9291 = vadd.xlane.f32.xlu0 %v9290
        %v9292 = vpop.xlane.xlu0 %9291
        %v9293 = vsel %vm9184, %v9179, 0.0
        %9294 = vadd.xlane.f32.xlu0 %v9293
        %v9295 = vpop.xlane.xlu0 %9294
        %v9296 = vsel %vm9184, %v9180, 0.0
        %9297 = vadd.xlane.f32.xlu0 %v9296
        %v9298 = vpop.xlane.xlu0 %9297
        %v9299 = vsel %vm9184, %v9181, 0.0
        %9300 = vadd.xlane.f32.xlu0 %v9299
        %v9301 = vpop.xlane.xlu0 %9300
        %v9302 = vsel %vm9184, %v9182, 0.0
        %9303 = vadd.xlane.f32.xlu0 %v9302
        %v9304 = vpop.xlane.xlu0 %9303
        %vm9305 = vcmask 519168
        %v9306 = vsel %vm9305, %v9183, 0.0
        %9307 = vadd.xlane.f32.xlu0 %v9306
        %v9308 = vpop.xlane.xlu0 %9307
        %v9309 = vld [vmem:[%s368 + $0x18] sm:$0xff]
        %v9310 = vld [vmem:[%s368 + $0x20] sm:$0xff]
        %v9311 = vld [vmem:[%s368 + $0x28] sm:$0xff]
        %v9312 = vld [vmem:[%s368 + $0x30] sm:$0xff]
        %v9313 = vld [vmem:[%s368 + $0x38] sm:$0xff]
        %v9314 = vld [vmem:[%s368 + $0x40] sm:$0xff]
        %v9315 = vld [vmem:[%s368 + $0x48] sm:$0xff]
        %v9316 = vld [vmem:[%s368 + $0x50] sm:$0xff]
        %v9317 = vld [vmem:[%s368 + $0x58] sm:$0xff]
        %v9318 = vld [vmem:[%s368 + $0x60] sm:$0xff]
        %v9319 = vld [vmem:[%s368 + $0x68] sm:$0xff]
        %v9320 = vld [vmem:[%s368 + $0x70] sm:$0xff]
        %v9321 = vld [vmem:[%s368 + $0x78] sm:$0xff]
        %v9322 = vld [vmem:[%s368 + $0x80] sm:$0xff]
        %v9323 = vld [vmem:[%s368 + $0x88] sm:$0xff]
        %v9324 = vld [vmem:[%s368 + $0x90] sm:$0xff]
        %v9325 = vld [vmem:[%s368 + $0x98] sm:$0xff]
        %v9326 = vld [vmem:[%s368 + $0xa0] sm:$0xff]
        %v9327 = vld [vmem:[%s368 + $0xa8] sm:$0xff]
        %v9328 = vld [vmem:[%s368 + $0xb0] sm:$0xff]
        %v9329 = vld [vmem:[%s368 + $0xb8] sm:$0xff]
        %v9330 = vld [vmem:[%s368 + $0xc0] sm:$0xff]
        %v9331 = vld [vmem:[%s368 + $0xc8] sm:$0xff]
        %v9332 = vld [vmem:[%s368 + $0xd0] sm:$0xff]
        %v9333 = vld [vmem:[%s368 + $0xd8] sm:$0xff]
        %v9334 = vld [vmem:[%s368 + $0xe0] sm:$0xff]
        %v9335 = vld [vmem:[%s368 + $0xe8] sm:$0xff]
        %v9336 = vld [vmem:[%s368 + $0xf0] sm:$0xff]
        %v9337 = vld [vmem:[%s368 + $0xf8] sm:$0xff]
        %v9338 = vld [vmem:[%s368 + $0x100] sm:$0xff]
        %v9339 = vld [vmem:[%s368 + $0x108] sm:$0xff]
        %v9340 = vld [vmem:[%s368 + $0x110] sm:$0xff]
        %v9341 = vld [vmem:[%s368 + $0x118] sm:$0xff]
        %v9342 = vld [vmem:[%s368 + $0x120] sm:$0xff]
        %v9343 = vld [vmem:[%s368 + $0x128] sm:$0xff]
        %v9344 = vld [vmem:[%s368 + $0x130] sm:$0xff]
        %v9345 = vld [vmem:[%s368 + $0x138] sm:$0xff]
        %v9346 = vld [vmem:[%s368 + $0x140] sm:$0xff]
        %v9347 = vld [vmem:[%s368 + $0x148] sm:$0xff]
        %v9348 = vld [vmem:[%s368 + $0x150] sm:$0xff]
        %v9349 = vld [vmem:[%s368 + $0x158] sm:$0xf]
        %v9350 = vmul.f32 %v9309, %v9187
        %v9351 = vmul.f32 %v9310, %v9190
        %v9352 = vmul.f32 %v9311, %v9193
        %v9353 = vmul.f32 %v9312, %v9196
        %v9354 = vmul.f32 %v9313, %v9199
        %v9355 = vmul.f32 %v9314, %v9202
        %v9356 = vmul.f32 %v9315, %v9205
        %v9357 = vmul.f32 %v9316, %v9208
        %v9358 = vmul.f32 %v9317, %v9211
        %v9359 = vmul.f32 %v9318, %v9214
        %v9360 = vmul.f32 %v9319, %v9217
        %v9361 = vmul.f32 %v9320, %v9220
        %v9362 = vmul.f32 %v9321, %v9223
        %v9363 = vmul.f32 %v9322, %v9226
        %v9364 = vmul.f32 %v9323, %v9229
        %v9365 = vmul.f32 %v9324, %v9232
        %v9366 = vmul.f32 %v9325, %v9235
        %v9367 = vmul.f32 %v9326, %v9238
        %v9368 = vmul.f32 %v9327, %v9241
        %v9369 = vmul.f32 %v9328, %v9244
        %v9370 = vmul.f32 %v9329, %v9247
        %v9371 = vmul.f32 %v9330, %v9250
        %v9372 = vmul.f32 %v9331, %v9253
        %v9373 = vmul.f32 %v9332, %v9256
        %v9374 = vmul.f32 %v9333, %v9259
        %v9375 = vmul.f32 %v9334, %v9262
        %v9376 = vmul.f32 %v9335, %v9265
        %v9377 = vmul.f32 %v9336, %v9268
        %v9378 = vmul.f32 %v9337, %v9271
        %v9379 = vmul.f32 %v9338, %v9274
        %v9380 = vmul.f32 %v9339, %v9277
        %v9381 = vmul.f32 %v9340, %v9280
        %v9382 = vmul.f32 %v9341, %v9283
        %v9383 = vmul.f32 %v9342, %v9286
        %v9384 = vmul.f32 %v9343, %v9289
        %v9385 = vmul.f32 %v9344, %v9292
        %v9386 = vmul.f32 %v9345, %v9295
        %v9387 = vmul.f32 %v9346, %v9298
        %v9388 = vmul.f32 %v9347, %v9301
        %v9389 = vmul.f32 %v9348, %v9304
        %v9390 = vmul.f32 %v9349, %v9308
        %v9391 = vxor.u32 %v9350, 2147483648
        %v9392 = vxor.u32 %v9351, 2147483648
        %v9393 = vxor.u32 %v9352, 2147483648
        %v9394 = vxor.u32 %v9353, 2147483648
        %v9395 = vxor.u32 %v9354, 2147483648
        %v9396 = vxor.u32 %v9355, 2147483648
        %v9397 = vxor.u32 %v9356, 2147483648
        %v9398 = vxor.u32 %v9357, 2147483648
        %v9399 = vxor.u32 %v9358, 2147483648
        %v9400 = vxor.u32 %v9359, 2147483648
        %v9401 = vxor.u32 %v9360, 2147483648
        %v9402 = vxor.u32 %v9361, 2147483648
        %v9403 = vxor.u32 %v9362, 2147483648
        %v9404 = vxor.u32 %v9363, 2147483648
        %v9405 = vxor.u32 %v9364, 2147483648
        %v9406 = vxor.u32 %v9365, 2147483648
        %v9407 = vxor.u32 %v9366, 2147483648
        %v9408 = vxor.u32 %v9367, 2147483648
        %v9409 = vxor.u32 %v9368, 2147483648
        %v9410 = vxor.u32 %v9369, 2147483648
        %v9411 = vxor.u32 %v9370, 2147483648
        %v9412 = vxor.u32 %v9371, 2147483648
        %v9413 = vxor.u32 %v9372, 2147483648
        %v9414 = vxor.u32 %v9373, 2147483648
        %v9415 = vxor.u32 %v9374, 2147483648
        %v9416 = vxor.u32 %v9375, 2147483648
        %v9417 = vxor.u32 %v9376, 2147483648
        %v9418 = vxor.u32 %v9377, 2147483648
        %v9419 = vxor.u32 %v9378, 2147483648
        %v9420 = vxor.u32 %v9379, 2147483648
        %v9421 = vxor.u32 %v9380, 2147483648
        %v9422 = vxor.u32 %v9381, 2147483648
        %v9423 = vxor.u32 %v9382, 2147483648
        %v9424 = vxor.u32 %v9383, 2147483648
        %v9425 = vxor.u32 %v9384, 2147483648
        %v9426 = vxor.u32 %v9385, 2147483648
        %v9427 = vxor.u32 %v9386, 2147483648
        %v9428 = vxor.u32 %v9387, 2147483648
        %v9429 = vxor.u32 %v9388, 2147483648
        %v9430 = vxor.u32 %v9389, 2147483648
        %v9431 = vxor.u32 %v9390, 2147483648
        %v9432 = vmul.f32 %v9391, 1.442695
        %v9433 = vpow.pop %v9432
        %v9434 = vmul.f32 %v9392, 1.442695
        %v9435 = vpow.pop %v9434
        %v9436 = vmul.f32 %v9393, 1.442695
        %v9437 = vpow.pop %v9436
        %v9438 = vmul.f32 %v9394, 1.442695
        %v9439 = vpow.pop %v9438
        %v9440 = vmul.f32 %v9395, 1.442695
        %v9441 = vpow.pop %v9440
        %v9442 = vmul.f32 %v9396, 1.442695
        %v9443 = vpow.pop %v9442
        %v9444 = vmul.f32 %v9397, 1.442695
        %v9445 = vpow.pop %v9444
        %v9446 = vmul.f32 %v9398, 1.442695
        %v9447 = vpow.pop %v9446
        %v9448 = vmul.f32 %v9399, 1.442695
        %v9449 = vpow.pop %v9448
        %v9450 = vmul.f32 %v9400, 1.442695
        %v9451 = vpow.pop %v9450
        %v9452 = vmul.f32 %v9401, 1.442695
        %v9453 = vpow.pop %v9452
        %v9454 = vmul.f32 %v9402, 1.442695
        %v9455 = vpow.pop %v9454
        %v9456 = vmul.f32 %v9403, 1.442695
        %v9457 = vpow.pop %v9456
        %v9458 = vmul.f32 %v9404, 1.442695
        %v9459 = vpow.pop %v9458
        %v9460 = vmul.f32 %v9405, 1.442695
        %v9461 = vpow.pop %v9460
        %v9462 = vmul.f32 %v9406, 1.442695
        %v9463 = vpow.pop %v9462
        %v9464 = vmul.f32 %v9407, 1.442695
        %v9465 = vpow.pop %v9464
        %v9466 = vmul.f32 %v9408, 1.442695
        %v9467 = vpow.pop %v9466
        %v9468 = vmul.f32 %v9409, 1.442695
        %v9469 = vpow.pop %v9468
        %v9470 = vmul.f32 %v9410, 1.442695
        %v9471 = vpow.pop %v9470
        %v9472 = vmul.f32 %v9411, 1.442695
        %v9473 = vpow.pop %v9472
        %v9474 = vmul.f32 %v9412, 1.442695
        %v9475 = vpow.pop %v9474
        %v9476 = vmul.f32 %v9413, 1.442695
        %v9477 = vpow.pop %v9476
        %v9478 = vmul.f32 %v9414, 1.442695
        %v9479 = vpow.pop %v9478
        %v9480 = vmul.f32 %v9415, 1.442695
        %v9481 = vpow.pop %v9480
        %v9482 = vmul.f32 %v9416, 1.442695
        %v9483 = vpow.pop %v9482
        %v9484 = vmul.f32 %v9417, 1.442695
        %v9485 = vpow.pop %v9484
        %v9486 = vmul.f32 %v9418, 1.442695
        %v9487 = vpow.pop %v9486
        %v9488 = vmul.f32 %v9419, 1.442695
        %v9489 = vpow.pop %v9488
        %v9490 = vmul.f32 %v9420, 1.442695
        %v9491 = vpow.pop %v9490
        %v9492 = vmul.f32 %v9421, 1.442695
        %v9493 = vpow.pop %v9492
        %v9494 = vmul.f32 %v9422, 1.442695
        %v9495 = vpow.pop %v9494
        %v9496 = vmul.f32 %v9423, 1.442695
        %v9497 = vpow.pop %v9496
        %v9498 = vmul.f32 %v9424, 1.442695
        %v9499 = vpow.pop %v9498
        %v9500 = vmul.f32 %v9425, 1.442695
        %v9501 = vpow.pop %v9500
        %v9502 = vmul.f32 %v9426, 1.442695
        %v9503 = vpow.pop %v9502
        %v9504 = vmul.f32 %v9427, 1.442695
        %v9505 = vpow.pop %v9504
        %v9506 = vmul.f32 %v9428, 1.442695
        %v9507 = vpow.pop %v9506
        %v9508 = vmul.f32 %v9429, 1.442695
        %v9509 = vpow.pop %v9508
        %v9510 = vmul.f32 %v9430, 1.442695
        %v9511 = vpow.pop %v9510
        %v9512 = vmul.f32 %v9431, 1.442695
        %v9513 = vpow.pop %v9512
        %v9514 = vadd.f32 %v9433, 1.0
        %v9515 = vadd.f32 %v9435, 1.0
        %v9516 = vadd.f32 %v9437, 1.0
        %v9517 = vadd.f32 %v9439, 1.0
        %v9518 = vadd.f32 %v9441, 1.0
        %v9519 = vadd.f32 %v9443, 1.0
        %v9520 = vadd.f32 %v9445, 1.0
        %v9521 = vadd.f32 %v9447, 1.0
        %v9522 = vadd.f32 %v9449, 1.0
        %v9523 = vadd.f32 %v9451, 1.0
        %v9524 = vadd.f32 %v9453, 1.0
        %v9525 = vadd.f32 %v9455, 1.0
        %v9526 = vadd.f32 %v9457, 1.0
        %v9527 = vadd.f32 %v9459, 1.0
        %v9528 = vadd.f32 %v9461, 1.0
        %v9529 = vadd.f32 %v9463, 1.0
        %v9530 = vadd.f32 %v9465, 1.0
        %v9531 = vadd.f32 %v9467, 1.0
        %v9532 = vadd.f32 %v9469, 1.0
        %v9533 = vadd.f32 %v9471, 1.0
        %v9534 = vadd.f32 %v9473, 1.0
        %v9535 = vadd.f32 %v9475, 1.0
        %v9536 = vadd.f32 %v9477, 1.0
        %v9537 = vadd.f32 %v9479, 1.0
        %v9538 = vadd.f32 %v9481, 1.0
        %v9539 = vadd.f32 %v9483, 1.0
        %v9540 = vadd.f32 %v9485, 1.0
        %v9541 = vadd.f32 %v9487, 1.0
        %v9542 = vadd.f32 %v9489, 1.0
        %v9543 = vadd.f32 %v9491, 1.0
        %v9544 = vadd.f32 %v9493, 1.0
        %v9545 = vadd.f32 %v9495, 1.0
        %v9546 = vadd.f32 %v9497, 1.0
        %v9547 = vadd.f32 %v9499, 1.0
        %v9548 = vadd.f32 %v9501, 1.0
        %v9549 = vadd.f32 %v9503, 1.0
        %v9550 = vadd.f32 %v9505, 1.0
        %v9551 = vadd.f32 %v9507, 1.0
        %v9552 = vadd.f32 %v9509, 1.0
        %v9553 = vadd.f32 %v9511, 1.0
        %v9554 = vadd.f32 %v9513, 1.0
        %v9555 = vrcp.pop %v9514
        %v9556 = vmul.f32 1.0, %v9555
        %v9557 = vrcp.pop %v9515
        %v9558 = vmul.f32 1.0, %v9557
        %v9559 = vrcp.pop %v9516
        %v9560 = vmul.f32 1.0, %v9559
        %v9561 = vrcp.pop %v9517
        %v9562 = vmul.f32 1.0, %v9561
        %v9563 = vrcp.pop %v9518
        %v9564 = vmul.f32 1.0, %v9563
        %v9565 = vrcp.pop %v9519
        %v9566 = vmul.f32 1.0, %v9565
        %v9567 = vrcp.pop %v9520
        %v9568 = vmul.f32 1.0, %v9567
        %v9569 = vrcp.pop %v9521
        %v9570 = vmul.f32 1.0, %v9569
        %v9571 = vrcp.pop %v9522
        %v9572 = vmul.f32 1.0, %v9571
        %v9573 = vrcp.pop %v9523
        %v9574 = vmul.f32 1.0, %v9573
        %v9575 = vrcp.pop %v9524
        %v9576 = vmul.f32 1.0, %v9575
        %v9577 = vrcp.pop %v9525
        %v9578 = vmul.f32 1.0, %v9577
        %v9579 = vrcp.pop %v9526
        %v9580 = vmul.f32 1.0, %v9579
        %v9581 = vrcp.pop %v9527
        %v9582 = vmul.f32 1.0, %v9581
        %v9583 = vrcp.pop %v9528
        %v9584 = vmul.f32 1.0, %v9583
        %v9585 = vrcp.pop %v9529
        %v9586 = vmul.f32 1.0, %v9585
        %v9587 = vrcp.pop %v9530
        %v9588 = vmul.f32 1.0, %v9587
        %v9589 = vrcp.pop %v9531
        %v9590 = vmul.f32 1.0, %v9589
        %v9591 = vrcp.pop %v9532
        %v9592 = vmul.f32 1.0, %v9591
        %v9593 = vrcp.pop %v9533
        %v9594 = vmul.f32 1.0, %v9593
        %v9595 = vrcp.pop %v9534
        %v9596 = vmul.f32 1.0, %v9595
        %v9597 = vrcp.pop %v9535
        %v9598 = vmul.f32 1.0, %v9597
        %v9599 = vrcp.pop %v9536
        %v9600 = vmul.f32 1.0, %v9599
        %v9601 = vrcp.pop %v9537
        %v9602 = vmul.f32 1.0, %v9601
        %v9603 = vrcp.pop %v9538
        %v9604 = vmul.f32 1.0, %v9603
        %v9605 = vrcp.pop %v9539
        %v9606 = vmul.f32 1.0, %v9605
        %v9607 = vrcp.pop %v9540
        %v9608 = vmul.f32 1.0, %v9607
        %v9609 = vrcp.pop %v9541
        %v9610 = vmul.f32 1.0, %v9609
        %v9611 = vrcp.pop %v9542
        %v9612 = vmul.f32 1.0, %v9611
        %v9613 = vrcp.pop %v9543
        %v9614 = vmul.f32 1.0, %v9613
        %v9615 = vrcp.pop %v9544
        %v9616 = vmul.f32 1.0, %v9615
        %v9617 = vrcp.pop %v9545
        %v9618 = vmul.f32 1.0, %v9617
        %v9619 = vrcp.pop %v9546
        %v9620 = vmul.f32 1.0, %v9619
        %v9621 = vrcp.pop %v9547
        %v9622 = vmul.f32 1.0, %v9621
        %v9623 = vrcp.pop %v9548
        %v9624 = vmul.f32 1.0, %v9623
        %v9625 = vrcp.pop %v9549
        %v9626 = vmul.f32 1.0, %v9625
        %v9627 = vrcp.pop %v9550
        %v9628 = vmul.f32 1.0, %v9627
        %v9629 = vrcp.pop %v9551
        %v9630 = vmul.f32 1.0, %v9629
        %v9631 = vrcp.pop %v9552
        %v9632 = vmul.f32 1.0, %v9631
        %v9633 = vrcp.pop %v9553
        %v9634 = vmul.f32 1.0, %v9633
        %v9635 = vrcp.pop %v9554
        %v9636 = vmul.f32 1.0, %v9635
        %vm9637 = vcmask 7168
        %9638 = vst.msk [vmem:[%s373] sm:$0xff] %vm9637, %v9556
        %9639 = vst.msk [vmem:[%s373 + $0x8] sm:$0xff] %vm9637, %v9558
        %9640 = vst.msk [vmem:[%s373 + $0x10] sm:$0xff] %vm9637, %v9560
        %9641 = vst.msk [vmem:[%s373 + $0x18] sm:$0xff] %vm9637, %v9562
        %9642 = vst.msk [vmem:[%s373 + $0x20] sm:$0xff] %vm9637, %v9564
        %9643 = vst.msk [vmem:[%s373 + $0x28] sm:$0xff] %vm9637, %v9566
        %9644 = vst.msk [vmem:[%s373 + $0x30] sm:$0xff] %vm9637, %v9568
        %9645 = vst.msk [vmem:[%s373 + $0x38] sm:$0xff] %vm9637, %v9570
        %9646 = vst.msk [vmem:[%s373 + $0x40] sm:$0xff] %vm9637, %v9572
        %9647 = vst.msk [vmem:[%s373 + $0x48] sm:$0xff] %vm9637, %v9574
        %9648 = vst.msk [vmem:[%s373 + $0x50] sm:$0xff] %vm9637, %v9576
        %9649 = vst.msk [vmem:[%s373 + $0x58] sm:$0xff] %vm9637, %v9578
        %9650 = vst.msk [vmem:[%s373 + $0x60] sm:$0xff] %vm9637, %v9580
        %9651 = vst.msk [vmem:[%s373 + $0x68] sm:$0xff] %vm9637, %v9582
        %9652 = vst.msk [vmem:[%s373 + $0x70] sm:$0xff] %vm9637, %v9584
        %9653 = vst.msk [vmem:[%s373 + $0x78] sm:$0xff] %vm9637, %v9586
        %9654 = vst.msk [vmem:[%s373 + $0x80] sm:$0xff] %vm9637, %v9588
        %9655 = vst.msk [vmem:[%s373 + $0x88] sm:$0xff] %vm9637, %v9590
        %9656 = vst.msk [vmem:[%s373 + $0x90] sm:$0xff] %vm9637, %v9592
        %9657 = vst.msk [vmem:[%s373 + $0x98] sm:$0xff] %vm9637, %v9594
        %9658 = vst.msk [vmem:[%s373 + $0xa0] sm:$0xff] %vm9637, %v9596
        %9659 = vst.msk [vmem:[%s373 + $0xa8] sm:$0xff] %vm9637, %v9598
        %9660 = vst.msk [vmem:[%s373 + $0xb0] sm:$0xff] %vm9637, %v9600
        %9661 = vst.msk [vmem:[%s373 + $0xb8] sm:$0xff] %vm9637, %v9602
        %9662 = vst.msk [vmem:[%s373 + $0xc0] sm:$0xff] %vm9637, %v9604
        %9663 = vst.msk [vmem:[%s373 + $0xc8] sm:$0xff] %vm9637, %v9606
        %9664 = vst.msk [vmem:[%s373 + $0xd0] sm:$0xff] %vm9637, %v9608
        %9665 = vst.msk [vmem:[%s373 + $0xd8] sm:$0xff] %vm9637, %v9610
        %9666 = vst.msk [vmem:[%s373 + $0xe0] sm:$0xff] %vm9637, %v9612
        %9667 = vst.msk [vmem:[%s373 + $0xe8] sm:$0xff] %vm9637, %v9614
        %9668 = vst.msk [vmem:[%s373 + $0xf0] sm:$0xff] %vm9637, %v9616
        %9669 = vst.msk [vmem:[%s373 + $0xf8] sm:$0xff] %vm9637, %v9618
        %9670 = vst.msk [vmem:[%s373 + $0x100] sm:$0xff] %vm9637, %v9620
        %9671 = vst.msk [vmem:[%s373 + $0x108] sm:$0xff] %vm9637, %v9622
        %9672 = vst.msk [vmem:[%s373 + $0x110] sm:$0xff] %vm9637, %v9624
        %9673 = vst.msk [vmem:[%s373 + $0x118] sm:$0xff] %vm9637, %v9626
        %9674 = vst.msk [vmem:[%s373 + $0x120] sm:$0xff] %vm9637, %v9628
        %9675 = vst.msk [vmem:[%s373 + $0x128] sm:$0xff] %vm9637, %v9630
        %9676 = vst.msk [vmem:[%s373 + $0x130] sm:$0xff] %vm9637, %v9632
        %9677 = vst.msk [vmem:[%s373 + $0x138] sm:$0xff] %vm9637, %v9634
        %vm9678 = vcmask 3072
        %9679 = vst.msk [vmem:[%s373 + $0x140] sm:$0xf] %vm9678, %v9636
        %p9680 = scmp.lt.s32.totalorder %s22, 1
        %s9681 = scalar_select %p9680, %s22, 1
        %s9682 = smul.addr %s9681, 41
        %s9683 = smul.addr %s9682, 8
        %s9684 = scalar_lea.vmem %s10, %s9683
        // Predicated region
        $region65: #{confidence_network.1} parent=59 // pred_check
          %p9685 = pneg %p255
        $region66: #{confidence_network.1} parent=59 // pred_check_branch
          %9687 = sbr.rel (%p9685) target = $region68
        $region67: #{confidence_network.1} parent=59 // pred_region
          _
        $region68: #{confidence_network.1} parent=59 // pred_fallthru
          _
      $region60: #{confidence_network.1} parent=5 // pred_fallthru
        _
      %p9688 = scmp.le.s32.totalorder 2, %s17
      // Predicated region
      $region69: #{confidence_network.1} parent=5 // pred_check
        %p9689 = pneg %p9688
      $region70: #{confidence_network.1} parent=5 // pred_check_branch
        %9691 = sbr.rel (%p9689) target = $region72
      $region71: #{confidence_network.1} parent=5 // pred_region
        %s9692 = ssub.s32 %s17, 2
        // Predicated region
        $region73: #{confidence_network.1} parent=71 // pred_check
          %p9693 = pneg %p261
        $region74: #{confidence_network.1} parent=71 // pred_check_branch
          %9695 = sbr.rel (%p9693) target = $region76
        $region75: #{confidence_network.1} parent=71 // pred_region
          %p9696 = scmp.lt.s32.totalorder %s23, 1
          %s9697 = scalar_select %p9696, %s23, 1
          %s9698 = smul.addr %s9697, 41
          %s9699 = smul.addr %s9698, 8
          %s9700 = scalar_lea.vmem %s10, %s9699
        $region76: #{confidence_network.1} parent=71 // pred_fallthru
          _
      $region72: #{confidence_network.1} parent=5 // pred_fallthru
        _
    $region6: #{confidence_network.1} parent=1 // loop_footer
      %s21 = sadd.s32 1, %s17
    $region7: #{confidence_network.1} parent=1 // loop_footer_branch
      %16 = sbr.rel target = $region3
    $region8: #{confidence_network.1} parent=1 // loop_exit
      _
    %9701 = vsyncpa [#allocation7], 1
    %s9702 = scalar_lea.sflag [#allocation7], 1
    %9703 = vsyncpa %s9702, 1

</llo_original>
